<compile_context>
chip_gen: v5e
topology: v5e:2x2
jax: 0.10.0
libtpu: 0.0.40
codegen_flags: <defaults>
</compile_context>

<pallas_src>
import functools
import math

import jax
import jax.numpy as jnp
from jax.experimental import pallas as pl
from jax.experimental.pallas import tpu as pltpu

# ----------------------------------------------------------------------------
# Small-shape configuration (scaled-down but structurally faithful ViT)
# ----------------------------------------------------------------------------
CFG = dict(
    img_hw=(32, 64),       # input spatial size (PyTorch module used (608, 1088))
    in_ch=3,
    patch=16,
    embed=128,             # embed_dims (768 in the reference)
    depth=4,               # num_layers (12 in the reference)
    num_heads=4,           # num_heads  (12 in the reference)
    mlp_ratio=4,
    out_indices=(0, 1, 2, 3),   # (2, 5, 8, 11) in the reference
    head_conv=32,          # 256 in the reference
    heads={"hm": 2, "wh": 2},
    ln_eps=1e-6,
)

_VMEM_FLOOR = 16 << 20


@functools.lru_cache(maxsize=None)
def _vmem_cap():
    """~0.75x physical per-core VMEM (v7x safe); fallback assumes 64 MiB."""
    cap = 64 << 20
    try:
        info = pltpu.get_tpu_info()
        cap = int(getattr(info, "vmem_capacity_bytes", cap))
    except Exception:
        pass
    return max(_VMEM_FLOOR, (cap * 3) // 4)


def _vmem_limit(block_bytes, scratch_bytes=0):
    est = 2 * block_bytes + scratch_bytes + (2 << 20)
    return int(min(max(est, _VMEM_FLOOR), _vmem_cap()))


def _round_up(x, m):
    return ((x + m - 1) // m) * m


def _pick_tile(dim, candidates):
    """Largest candidate that evenly divides `dim`, else the full dim.
    Row (M) / token dims are pre-padded by the callers so this fallback is
    only a last-resort guard."""
    for c in candidates:
        if dim % c == 0:
            return c
    return dim


def _token_tiling(n):
    """(token tile, padded token count) -- pad once, tile everywhere."""
    t = 256 if n >= 256 else max(8, _round_up(n, 8))
    return t, _round_up(n, t)


# ----------------------------------------------------------------------------
# Fused (LayerNorm?) -> matmul -> bias -> (activation?) -> (+residual?) kernel
# ----------------------------------------------------------------------------
def _fused_matmul_kernel(*refs, activation, fuse_ln, fuse_res, single_k, eps):
    it = iter(refs)
    x_ref = next(it)
    w_ref = next(it)
    b_ref = next(it)
    g_ref = bt_ref = res_ref = None
    if fuse_ln:
        g_ref = next(it)
        bt_ref = next(it)
    if fuse_res:
        res_ref = next(it)
    o_ref = next(it)
    xln_ref = next(it) if fuse_ln else None
    acc_ref = None if single_k else next(it)

    k_idx = pl.program_id(2)
    nk = pl.num_programs(2)

    if fuse_ln:
        # LN computed once per row tile (j == 0), reused across output tiles.
        @pl.when(pl.program_id(1) == 0)
        def _():
            xf = x_ref[...].astype(jnp.float32)
            mu = jnp.mean(xf, axis=-1, keepdims=True)
            xc = xf - mu
            var = jnp.mean(xc * xc, axis=-1, keepdims=True)
            xln_ref[...] = (xc * jax.lax.rsqrt(var + eps) * g_ref[...]
                            + bt_ref[...]).astype(xln_ref.dtype)
        x = xln_ref[...]
    else:
        x = x_ref[...]

    part = jnp.dot(x, w_ref[...], preferred_element_type=jnp.float32)

    def epilogue(out):
        out = out + b_ref[...].astype(jnp.float32)
        if activation == "relu":
            out = jnp.maximum(out, 0.0)
        elif activation == "gelu":    # exact erf GELU (nn.GELU default)
            out = 0.5 * out * (1.0 + jax.lax.erf(out * (1.0 / math.sqrt(2.0))))
        if fuse_res:
            out = out + res_ref[...].astype(jnp.float32)
        o_ref[...] = out.astype(o_ref.dtype)

    if single_k:
        epilogue(part)
    else:
        @pl.when(k_idx == 0)
        def _():
            acc_ref[...] = jnp.zeros_like(acc_ref)
        acc_ref[...] += part

        @pl.when(k_idx == nk - 1)
        def _():
            epilogue(acc_ref[...])


def fused_matmul(x, w, b, *, activation="none", ln=None, residual=None,
                 out_dtype=jnp.bfloat16):
    """(M, K) @ (K, N) + b with optional fused pre-LayerNorm, activation and
    residual add.  bf16 MXU operands, f32 accumulation."""
    M, K = x.shape
    K2, N = w.shape
    assert K == K2
    fuse_ln = ln is not None
    fuse_res = residual is not None

    tm = _pick_tile(M, (256, 128, 64, 32, 16, 8))
    tn = _pick_tile(N, (512, 256, 128))
    tk = K if fuse_ln else _pick_tile(K, (512, 256, 128))   # LN needs full rows
    single_k = (tk == K)
    grid = (M // tm, N // tn, K // tk)

    in_arrays = [x, w, jnp.reshape(b, (1, N)).astype(jnp.float32)]
    in_specs = [
        pl.BlockSpec((tm, tk), lambda i, j, k: (i, k)),
        pl.BlockSpec((tk, tn), lambda i, j, k: (k, j)),
        pl.BlockSpec((1, tn), lambda i, j, k: (0, j)),
    ]
    if fuse_ln:
        g, bt = ln
        in_arrays += [jnp.reshape(g, (1, K)).astype(jnp.float32),
                      jnp.reshape(bt, (1, K)).astype(jnp.float32)]
        in_specs += [pl.BlockSpec((1, K), lambda i, j, k: (0, 0)),
                     pl.BlockSpec((1, K), lambda i, j, k: (0, 0))]
    if fuse_res:
        in_arrays.append(residual)
        in_specs.append(pl.BlockSpec((tm, tn), lambda i, j, k: (i, j)))

    scratch = []
    scratch_bytes = 0
    if fuse_ln:
        scratch.append(pltpu.VMEM((tm, K), jnp.bfloat16))
        scratch_bytes += tm * K * 2
    if not single_k:
        scratch.append(pltpu.VMEM((tm, tn), jnp.float32))
        scratch_bytes += tm * tn * 4

    kern = functools.partial(_fused_matmul_kernel, activation=activation,
                             fuse_ln=fuse_ln, fuse_res=fuse_res,
                             single_k=single_k, eps=CFG["ln_eps"])

    blk = (tm * tk * x.dtype.itemsize + tk * tn * w.dtype.itemsize
           + tn * 4 + tm * tn * jnp.dtype(out_dtype).itemsize)
    if fuse_ln:
        blk += 2 * K * 4
    if fuse_res:
        blk += tm * tn * residual.dtype.itemsize

    # The j axis must stay on one core when LN is hoisted into a per-i scratch.
    dims = ("parallel", "arbitrary" if fuse_ln else "parallel", "arbitrary")

    return pl.pallas_call(
        kern,
        grid=grid,
        in_specs=in_specs,
        out_specs=pl.BlockSpec((tm, tn), lambda i, j, k: (i, j)),
        out_shape=jax.ShapeDtypeStruct((M, N), out_dtype),
        scratch_shapes=scratch,
        compiler_params=pltpu.CompilerParams(
            dimension_semantics=dims,
            vmem_limit_bytes=_vmem_limit(blk, scratch_bytes)),
    )(*in_arrays)


# ----------------------------------------------------------------------------
# Flash-style multi-head attention (online softmax over KV tiles)
# ----------------------------------------------------------------------------
def _flash_attn_kernel(q_ref, k_ref, v_ref, o_ref, m_ref, l_ref, acc_ref,
                       *, nh, dh, tkv, n_valid, need_mask):
    ki = pl.program_id(2)

    @pl.when(ki == 0)
    def _():
        m_ref[...] = jnp.full(m_ref.shape, -1e30, dtype=m_ref.dtype)
        l_ref[...] = jnp.zeros_like(l_ref)
        acc_ref[...] = jnp.zeros_like(acc_ref)

    # The 1/sqrt(dh) scale is already folded into the q projection weights.
    q = q_ref[0]      # (tq, E) bf16
    k = k_ref[0]      # (tkv, E) bf16
    v = v_ref[0]      # (tkv, E) bf16

    if need_mask:
        kv_idx = ki * tkv + jax.lax.broadcasted_iota(jnp.int32, (1, tkv), 1)
        kv_mask = kv_idx < n_valid

    for h in range(nh):                                    # static unroll
        sl = slice(h * dh, (h + 1) * dh)
        s = jax.lax.dot_general(q[:, sl], k[:, sl],
                                (((1,), (1,)), ((), ())),
                                preferred_element_type=jnp.float32)   # (tq, tkv)
        if need_mask:
            s = jnp.where(kv_mask, s, -1e30)
        m_prev = m_ref[:, h:h + 1]
        m_new = jnp.maximum(m_prev, jnp.max(s, axis=-1, keepdims=True))
        alpha = jnp.exp(m_prev - m_new)
        p = jnp.exp(s - m_new)
        l_ref[:, h:h + 1] = alpha * l_ref[:, h:h + 1] + jnp.sum(p, axis=-1,
                                                                keepdims=True)
        pv = jnp.dot(p.astype(v.dtype), v[:, sl],
                     preferred_element_type=jnp.float32)
        acc_ref[:, sl] = alpha * acc_ref[:, sl] + pv
        m_ref[:, h:h + 1] = m_new

    @pl.when(ki == pl.num_programs(2) - 1)
    def _():
        inv = pl.reciprocal(l_ref[...], approx=True)       # EUP slot, (tq, nh)
        for h in range(nh):
            sl = slice(h * dh, (h + 1) * dh)
            o_ref[0, :, sl] = (acc_ref[:, sl] * inv[:, h:h + 1]).astype(o_ref.dtype)


def attention(qkv, nh, dh, *, n_valid, tok_tile):
    """qkv: (B, Npad, 3E) bf16 in its natural layout; returns (B, Npad, E) bf16.
    Only the q / k / v column blocks are DMA'd (narrow BlockSpecs)."""
    B, Npad, E3 = qkv.shape
    E = E3 // 3
    tq = tkv = tok_tile
    grid = (B, Npad // tq, Npad // tkv)
    need_mask = (Npad != n_valid)

    kern = functools.partial(_flash_attn_kernel, nh=nh, dh=dh, tkv=tkv,
                             n_valid=n_valid, need_mask=need_mask)
    blk = (tq * E + 2 * tkv * E) * qkv.dtype.itemsize + tq * E * 2
    scratch_bytes = (2 * tq * nh + tq * E) * 4

    return pl.pallas_call(
        kern,
        grid=grid,
        in_specs=[
            pl.BlockSpec((1, tq, E), lambda b, qi, ki: (b, qi, 0)),    # q cols
            pl.BlockSpec((1, tkv, E), lambda b, qi, ki: (b, ki, 1)),   # k cols
            pl.BlockSpec((1, tkv, E), lambda b, qi, ki: (b, ki, 2)),   # v cols
        ],
        out_specs=pl.BlockSpec((1, tq, E), lambda b, qi, ki: (b, qi, 0)),
        out_shape=jax.ShapeDtypeStruct((B, Npad, E), jnp.bfloat16),
        scratch_shapes=[pltpu.VMEM((tq, nh), jnp.float32),
                        pltpu.VMEM((tq, nh), jnp.float32),
                        pltpu.VMEM((tq, E), jnp.float32)],
        compiler_params=pltpu.CompilerParams(
            dimension_semantics=("parallel", "parallel", "arbitrary"),
            vmem_limit_bytes=_vmem_limit(blk, scratch_bytes)),
    )(qkv, qkv, qkv)


# ----------------------------------------------------------------------------
# Detection heads: 3x3 conv (+ReLU) + 1x1 conv for ALL heads in one kernel.
# The 3x3 conv is 9 constant-offset shifted matmuls over the flattened padded
# feature (pure sublane-offset slices, no im2col / 3D reshapes), with the
# accumulator in f32 VMEM scratch and the Cin reduction tiled ("arbitrary").
# ----------------------------------------------------------------------------
def _heads_kernel(x_ref, w1_ref, b1_ref, w2_ref, b2_ref, o_ref, acc_ref,
                  *, mout, wp2):
    ci = pl.program_id(1)

    @pl.when(ci == 0)
    def _():
        acc_ref[...] = jnp.zeros_like(acc_ref)

    t = 0
    for dh in range(3):
        for dw in range(3):
            off = dh * wp2 + dw
            patch = x_ref[0, off:off + mout, :]            # (mout, tcin) bf16
            acc_ref[...] += jnp.dot(patch, w1_ref[t],
                                    preferred_element_type=jnp.float32)
            t += 1

    @pl.when(ci == pl.num_programs(1) - 1)
    def _():
        hid = jnp.maximum(acc_ref[...] + b1_ref[...].astype(jnp.float32), 0.0)
        out = jnp.dot(hid.astype(w2_ref.dtype), w2_ref[...],
                      preferred_element_type=jnp.float32)
        out = out + b2_ref[...].astype(jnp.float32)
        o_ref[0] = out.astype(o_ref.dtype)


def detection_heads(feat_nhwc, heads_params, head_names):
    B, H, W, Cin = feat_nhwc.shape
    wp2 = W + 2
    mout = H * wp2

    hcs = [heads_params[h]["w1"].shape[-1] for h in head_names]
    ncls = [heads_params[h]["w2"].shape[-1] for h in head_names]
    hc_total = sum(hcs)
    cls_total = sum(ncls)

    # Stack per-head 3x3 weights along channels; 1x1 weights block-diagonal.
    w1 = jnp.concatenate([heads_params[h]["w1"] for h in head_names], axis=-1)
    b1 = jnp.concatenate([heads_params[h]["b1"] for h in head_names], axis=-1)
    b2 = jnp.concatenate([heads_params[h]["b2"] for h in head_names], axis=-1)
    w2 = jnp.zeros((hc_total, cls_total), heads_params[head_names[0]]["w2"].dtype)
    ho = co = 0
    for h, hc, nc in zip(head_names, hcs, ncls):
        w2 = w2.at[ho:ho + hc, co:co + nc].set(heads_params[h]["w2"])
        ho += hc
        co += nc

    # TODO(synk): the pad+cast below is one extra HBM round-trip of the feature
    # map; fusing the halo zero-fill into the kernel is left as future work.
    xpad = jnp.pad(feat_nhwc.astype(jnp.bfloat16),
                   ((0, 0), (1, 2), (1, 1), (0, 0)))       # extra bottom row: slack
    fr = (H + 3) * wp2
    xflat = xpad.reshape(B, fr, Cin)

    tcin = _pick_tile(Cin, (512, 256, 128))
    n_cin = Cin // tcin

    kern = functools.partial(_heads_kernel, mout=mout, wp2=wp2)
    blk = (fr * tcin * 2 + 9 * tcin * hc_total * 2 + hc_total * 4
           + hc_total * cls_total * 2 + cls_total * 4 + mout * cls_total * 4)

    out = pl.pallas_call(
        kern,
        grid=(B, n_cin),
        in_specs=[
            pl.BlockSpec((1, fr, tcin), lambda b, c: (b, 0, c)),
            pl.BlockSpec((9, tcin, hc_total), lambda b, c: (0, c, 0)),
            pl.BlockSpec((1, hc_total), lambda b, c: (0, 0)),
            pl.BlockSpec((hc_total, cls_total), lambda b, c: (0, 0)),
            pl.BlockSpec((1, cls_total), lambda b, c: (0, 0)),
        ],
        out_specs=pl.BlockSpec((1, mout, cls_total), lambda b, c: (b, 0, 0)),
        out_shape=jax.ShapeDtypeStruct((B, mout, cls_total), jnp.float32),
        scratch_shapes=[pltpu.VMEM((mout, hc_total), jnp.float32)],
        compiler_params=pltpu.CompilerParams(
            dimension_semantics=("parallel", "arbitrary"),
            vmem_limit_bytes=_vmem_limit(blk, mout * hc_total * 4)),
    )(xflat, w1,
      b1.reshape(1, hc_total).astype(jnp.float32),
      w2,
      b2.reshape(1, cls_total).astype(jnp.float32))

    out = out.reshape(B, H, wp2, cls_total)[:, :, :W, :]   # drop invalid columns
    ret = {}
    co = 0
    for h, nc in zip(head_names, ncls):
        ret[h] = out[..., co:co + nc]
        co += nc
    return ret                                             # dict of NHWC


def bilinear_upsample(x_nhwc, size_hw):
    # All ViT stage outputs share the same spatial size, so PyTorch's
    # F.upsample(..., mode='bilinear') to an identical size is the identity.
    assert (x_nhwc.shape[1], x_nhwc.shape[2]) == tuple(size_hw)
    return x_nhwc


# ----------------------------------------------------------------------------
# ViT backbone (pre-LN attention + FFN, cls token, pos emb)
# ----------------------------------------------------------------------------
def vit_backbone(x, bp):
    B, Cin, H, W = x.shape
    P = CFG["patch"]
    E = CFG["embed"]
    nh = CFG["num_heads"]
    Dh = E // nh
    Hp, Wp = H // P, W // P
    Np = Hp * Wp

    # Patch embedding: Conv2d(k=16, s=16) == unfold-into-patches + tiled matmul.
    xp = x.reshape(B, Cin, Hp, P, Wp, P).transpose(0, 2, 4, 1, 3, 5)
    xp = xp.reshape(B * Np, Cin * P * P).astype(jnp.bfloat16)
    tok = fused_matmul(xp, bp["patch_w"], bp["patch_b"], out_dtype=jnp.float32)
    tok = tok.reshape(B, Np, E)

    cls = jnp.broadcast_to(bp["cls_token"], (B, 1, E))
    x_tok = jnp.concatenate([cls, tok], axis=1) + bp["pos_embed"]   # (B, N, E)
    N = Np + 1

    # Pad the token axis ONCE to a tile-friendly length; every subsequent
    # kernel tiles cleanly and the attention masks the padded keys.
    tok_tile, Npad = _token_tiling(N)
    if Npad != N:
        x_tok = jnp.pad(x_tok, ((0, 0), (0, Npad - N), (0, 0)))

    outs = []
    for li, lp in enumerate(bp["layers"]):
        # --- Attention block: x = x + Proj(Attn(LN1(x))), LN+residual fused ---
        x2 = x_tok.reshape(B * Npad, E)                                 # f32
        qkv = fused_matmul(x2, lp["qkv_w"], lp["qkv_b"],
                           ln=(lp["ln1_g"], lp["ln1_b"]))               # bf16
        a = attention(qkv.reshape(B, Npad, 3 * E), nh, Dh,
                      n_valid=N, tok_tile=tok_tile)                     # bf16
        x_tok = fused_matmul(a.reshape(B * Npad, E), lp["proj_w"], lp["proj_b"],
                             residual=x2,
                             out_dtype=jnp.float32).reshape(B, Npad, E)

        # --- FFN block: x = x + FC2(GELU(FC1(LN2(x)))), LN+residual fused ---
        x2 = x_tok.reshape(B * Npad, E)
        hid = fused_matmul(x2, lp["fc1_w"], lp["fc1_b"],
                           ln=(lp["ln2_g"], lp["ln2_b"]), activation="gelu")
        x_tok = fused_matmul(hid, lp["fc2_w"], lp["fc2_b"],
                             residual=x2,
                             out_dtype=jnp.float32).reshape(B, Npad, E)

        if li in CFG["out_indices"]:
            # Drop cls token and padding; keep NHWC (B, Hp, Wp, E).
            outs.append(x_tok[:, 1:N].reshape(B, Hp, Wp, E))
    return outs


# ----------------------------------------------------------------------------
# Full vit_encoder forward
# ----------------------------------------------------------------------------
def vit_encoder_forward(x, params):
    feats = vit_backbone(x, params["backbone"])
    h0, w0 = feats[0].shape[1], feats[0].shape[2]
    ups = [feats[0]] + [bilinear_upsample(f, (h0, w0)) for f in feats[1:]]
    feat = jnp.concatenate(ups, axis=-1)            # (B, Hp, Wp, 4E) NHWC
    # TODO(synk): `self.deconv` is referenced in the reference forward() but never
    # defined in __init__; treated as identity here.
    head_names = list(CFG["heads"].keys())
    outs_nhwc = detection_heads(feat, params["heads"], head_names)
    ret = {h: outs_nhwc[h].transpose(0, 3, 1, 2) for h in head_names}   # NCHW
    return [ret]


# ----------------------------------------------------------------------------
# Deterministic parameter initialization (synthetic — matches shapes, not ckpt)
# Weights are stored pre-transposed in matmul-ready (K, N) layout and bf16.
# ----------------------------------------------------------------------------
def init_params(key):
    E = CFG["embed"]
    Cin = CFG["in_ch"]
    P = CFG["patch"]
    Hp = CFG["img_hw"][0] // P
    Wp = CFG["img_hw"][1] // P
    Np = Hp * Wp
    mlp = CFG["mlp_ratio"] * E
    nh = CFG["num_heads"]
    dh = E // nh
    sum_out_dim = E * len(CFG["out_indices"])
    hc = CFG["head_conv"]

    def nrm(k, shape, std, dtype=jnp.float32):
        return (std * jax.random.normal(k, shape, dtype=jnp.float32)).astype(dtype)

    keys = iter(jax.random.split(key, 512))
    backbone = dict(
        # Conv2d(3, E, 16, 16).weight reshaped/transposed to (Cin*P*P, E).
        patch_w=nrm(next(keys), (Cin * P * P, E), 0.02, jnp.bfloat16),
        patch_b=jnp.zeros((E,), jnp.float32),
        cls_token=nrm(next(keys), (1, 1, E), 0.02),
        pos_embed=nrm(next(keys), (1, Np + 1, E), 0.02),
        layers=[],
    )
    attn_scale = 1.0 / math.sqrt(dh)
    for _ in range(CFG["depth"]):
        # Fold the 1/sqrt(dh) softmax scale into the q projection (weights and
        # bias) so the flash kernel never rescales the resident q tile.
        qkv_w = 0.02 * jax.random.normal(next(keys), (E, 3 * E), dtype=jnp.float32)
        qkv_w = qkv_w.at[:, :E].multiply(attn_scale)
        qkv_b = jnp.zeros((3 * E,), jnp.float32)
        qkv_b = qkv_b.at[:E].multiply(attn_scale)
        backbone["layers"].append(dict(
            ln1_g=jnp.ones((E,), jnp.float32), ln1_b=jnp.zeros((E,), jnp.float32),
            qkv_w=qkv_w.astype(jnp.bfloat16),
            qkv_b=qkv_b,
            proj_w=nrm(next(keys), (E, E), 0.02, jnp.bfloat16),
            proj_b=jnp.zeros((E,), jnp.float32),
            ln2_g=jnp.ones((E,), jnp.float32), ln2_b=jnp.zeros((E,), jnp.float32),
            fc1_w=nrm(next(keys), (E, mlp), 0.02, jnp.bfloat16),
            fc1_b=jnp.zeros((mlp,), jnp.float32),
            fc2_w=nrm(next(keys), (mlp, E), 0.02, jnp.bfloat16),
            fc2_b=jnp.zeros((E,), jnp.float32),
        ))

    heads = {}
    for head, classes in CFG["heads"].items():
        std = 0.02 if "hm" in head else 0.001          # fill_fc_weights for non-hm
        heads[head] = dict(
            # 3x3 conv weight stored tap-major as (9, Cin, hc) for in-kernel
            # shifted accumulation; 1x1 conv as (hc, classes).
            w1=nrm(next(keys), (9, sum_out_dim, hc), std, jnp.bfloat16),
            b1=jnp.zeros((hc,), jnp.float32),
            w2=nrm(next(keys), (hc, classes), std, jnp.bfloat16),
            b2=(jnp.full((classes,), -2.19, jnp.float32) if "hm" in head
                else jnp.zeros((classes,), jnp.float32)),   # fc[-1].bias.fill_(-2.19)
        )
    return dict(backbone=backbone, heads=heads)


# ----------------------------------------------------------------------------
if __name__ == "__main__":
    key = jax.random.PRNGKey(0)
    k_param, k_x = jax.random.split(key)
    params = init_params(k_param)
    x = jax.random.normal(k_x, (2, CFG["in_ch"]) + CFG["img_hw"], dtype=jnp.float32)

    fwd = jax.jit(vit_encoder_forward)
    out = jax.block_until_ready(fwd(x, params))

    Hp = CFG["img_hw"][0] // CFG["patch"]
    Wp = CFG["img_hw"][1] // CFG["patch"]
    for head, classes in CFG["heads"].items():
        assert out[0][head].shape == (2, classes, Hp, Wp), out[0][head].shape
        assert bool(jnp.all(jnp.isfinite(out[0][head])))
    print("KERNEL_OK")
</pallas_src>

<mosaic_0001>
module attributes {stable_mosaic.version = 11 : i64} {
  func.func @_fused_matmul_kernel(%arg0: i32, %arg1: i32, %arg2: i32, %arg3: memref<16x256xbf16, #tpu.memory_space<vmem>>, %arg4: memref<256x128xbf16, #tpu.memory_space<vmem>>, %arg5: memref<1x128xf32, #tpu.memory_space<vmem>>, %arg6: memref<16x128xf32, #tpu.memory_space<vmem>>, %arg7: memref<16x128xf32, #tpu.memory_space<vmem>>) attributes {dimension_semantics = [#tpu.dimension_semantics<parallel>, #tpu.dimension_semantics<parallel>, #tpu.dimension_semantics<arbitrary>], iteration_bounds = array<i64: 1, 1, 3>, scalar_prefetch = 0 : i64, scratch_operands = 1 : i64, tpu.core_type = #tpu.core_type<tc>, window_params = [{transform_indices = @transform_0, window_bounds = array<i64: 16, 256>}, {transform_indices = @transform_1, window_bounds = array<i64: 256, 128>}, {transform_indices = @transform_2, window_bounds = array<i64: 1, 128>}, {transform_indices = @transform_3, window_bounds = array<i64: 16, 128>}]} {
    %c0 = arith.constant 0 : index
    %c0_0 = arith.constant 0 : index
    %0 = vector.load %arg3[%c0, %c0_0] : memref<16x256xbf16, #tpu.memory_space<vmem>>, vector<16x256xbf16>
    %c0_1 = arith.constant 0 : index
    %c0_2 = arith.constant 0 : index
    %1 = vector.load %arg4[%c0_1, %c0_2] : memref<256x128xbf16, #tpu.memory_space<vmem>>, vector<256x128xbf16>
    %cst = arith.constant dense<0.000000e+00> : vector<16x128xf32>
    %2 = tpu.matmul %0, %1, %cst {dimension_numbers = #tpu.dot_dimension_numbers<[1], [0], [0], [1], [0, 0, 1, 1], [], []>} : vector<16x256xbf16>, vector<256x128xbf16>, vector<16x128xf32> -> vector<16x128xf32>
    %c0_i32 = arith.constant 0 : i32
    %3 = arith.cmpi eq, %arg2, %c0_i32 : i32
    %4 = arith.extui %3 : i1 to i32
    %c0_i32_3 = arith.constant 0 : i32
    %5 = arith.cmpi ne, %4, %c0_i32_3 : i32
    scf.if %5 {
      %cst_9 = arith.constant 0.000000e+00 : f32
      %12 = vector.broadcast %cst_9 : f32 to vector<16x128xf32>
      %c0_10 = arith.constant 0 : index
      %c0_11 = arith.constant 0 : index
      %13 = vector.load %arg7[%c0_10, %c0_11] : memref<16x128xf32, #tpu.memory_space<vmem>>, vector<16x128xf32>
      tpu.vector_store %arg7[%c0_10, %c0_11], %12 {strides = array<i32>} : memref<16x128xf32, #tpu.memory_space<vmem>>, vector<16x128xf32>,
    } else {
    }
    %c0_4 = arith.constant 0 : index
    %c0_5 = arith.constant 0 : index
    %6 = vector.load %arg7[%c0_4, %c0_5] : memref<16x128xf32, #tpu.memory_space<vmem>>, vector<16x128xf32>
    %7 = arith.addf %6, %2 : vector<16x128xf32>
    %c0_6 = arith.constant 0 : index
    %c0_7 = arith.constant 0 : index
    %8 = vector.load %arg7[%c0_6, %c0_7] : memref<16x128xf32, #tpu.memory_space<vmem>>, vector<16x128xf32>
    tpu.vector_store %arg7[%c0_6, %c0_7], %7 {strides = array<i32>} : memref<16x128xf32, #tpu.memory_space<vmem>>, vector<16x128xf32>,
    %c2_i32 = arith.constant 2 : i32
    %9 = arith.cmpi eq, %arg2, %c2_i32 : i32
    %10 = arith.extui %9 : i1 to i32
    %c0_i32_8 = arith.constant 0 : i32
    %11 = arith.cmpi ne, %10, %c0_i32_8 : i32
    scf.if %11 {
      %c0_9 = arith.constant 0 : index
      %c0_10 = arith.constant 0 : index
      %12 = vector.load %arg7[%c0_9, %c0_10] : memref<16x128xf32, #tpu.memory_space<vmem>>, vector<16x128xf32>
      %c0_11 = arith.constant 0 : index
      %c0_12 = arith.constant 0 : index
      %13 = vector.load %arg5[%c0_11, %c0_12] : memref<1x128xf32, #tpu.memory_space<vmem>>, vector<1x128xf32>
      %14 = vector.broadcast %13 : vector<1x128xf32> to vector<16x128xf32>
      %15 = arith.addf %12, %14 : vector<16x128xf32>
      %c0_13 = arith.constant 0 : index
      %c0_14 = arith.constant 0 : index
      %16 = vector.load %arg6[%c0_13, %c0_14] : memref<16x128xf32, #tpu.memory_space<vmem>>, vector<16x128xf32>
      tpu.vector_store %arg6[%c0_13, %c0_14], %15 {strides = array<i32>} : memref<16x128xf32, #tpu.memory_space<vmem>>, vector<16x128xf32>,
    } else {
    }
    return
  }
  func.func @transform_0(%arg0: i32, %arg1: i32, %arg2: i32) -> (i32, i32) {
    %c0_i32 = arith.constant 0 : i32
    return %arg0, %arg2 : i32, i32
  }
  func.func @transform_1(%arg0: i32, %arg1: i32, %arg2: i32) -> (i32, i32) {
    %c0_i32 = arith.constant 0 : i32
    return %arg2, %arg1 : i32, i32
  }
  func.func @transform_2(%arg0: i32, %arg1: i32, %arg2: i32) -> (i32, i32) {
    %c0_i32 = arith.constant 0 : i32
    %c0_i32_0 = arith.constant 0 : i32
    return %c0_i32, %arg1 : i32, i32
  }
  func.func @transform_3(%arg0: i32, %arg1: i32, %arg2: i32) -> (i32, i32) {
    %c0_i32 = arith.constant 0 : i32
    return %arg0, %arg1 : i32, i32
  }
}

module attributes {stable_mosaic.version = 11 : i64} {
  func.func @_fused_matmul_kernel(%arg0: i32, %arg1: i32, %arg2: i32, %arg3: memref<32x128xf32, #tpu.memory_space<vmem>>, %arg4: memref<128x128xbf16, #tpu.memory_space<vmem>>, %arg5: memref<1x128xf32, #tpu.memory_space<vmem>>, %arg6: memref<1x128xf32, #tpu.memory_space<vmem>>, %arg7: memref<1x128xf32, #tpu.memory_space<vmem>>, %arg8: memref<32x128xbf16, #tpu.memory_space<vmem>>, %arg9: memref<32x128xbf16, #tpu.memory_space<vmem>>) attributes {dimension_semantics = [#tpu.dimension_semantics<parallel>, #tpu.dimension_semantics<arbitrary>, #tpu.dimension_semantics<arbitrary>], iteration_bounds = array<i64: 1, 3, 1>, scalar_prefetch = 0 : i64, scratch_operands = 1 : i64, tpu.core_type = #tpu.core_type<tc>, window_params = [{transform_indices = @transform_0, window_bounds = array<i64: 32, 128>}, {transform_indices = @transform_1, window_bounds = array<i64: 128, 128>}, {transform_indices = @transform_2, window_bounds = array<i64: 1, 128>}, {pipeline_mode = #tpu.pipeline_mode<synchronous>, transform_indices = @transform_3, window_bounds = array<i64: 1, 128>}, {pipeline_mode = #tpu.pipeline_mode<synchronous>, transform_indices = @transform_4, window_bounds = array<i64: 1, 128>}, {transform_indices = @transform_5, window_bounds = array<i64: 32, 128>}]} {
    %c0_i32 = arith.constant 0 : i32
    %0 = arith.cmpi eq, %arg1, %c0_i32 : i32
    %1 = arith.extui %0 : i1 to i32
    %c0_i32_0 = arith.constant 0 : i32
    %2 = arith.cmpi ne, %1, %c0_i32_0 : i32
    scf.if %2 {
      %c0_8 = arith.constant 0 : index
      %c0_9 = arith.constant 0 : index
      %11 = vector.load %arg3[%c0_8, %c0_9] : memref<32x128xf32, #tpu.memory_space<vmem>>, vector<32x128xf32>
      %cst_10 = arith.constant dense<0.000000e+00> : vector<32xf32>
      %12 = vector.multi_reduction <add>, %11, %cst_10 [1] : vector<32x128xf32> to vector<32xf32>
      %13 = vector.shape_cast %12 : vector<32xf32> to vector<32x1xf32>
      %cst_11 = arith.constant 1.280000e+02 : f32
      %14 = vector.broadcast %cst_11 : f32 to vector<32x1xf32>
      %15 = arith.divf %13, %14 : vector<32x1xf32>
      %16 = vector.broadcast %15 : vector<32x1xf32> to vector<32x128xf32>
      %17 = arith.subf %11, %16 : vector<32x128xf32>
      %18 = arith.mulf %17, %17 : vector<32x128xf32>
      %cst_12 = arith.constant dense<0.000000e+00> : vector<32xf32>
      %19 = vector.multi_reduction <add>, %18, %cst_12 [1] : vector<32x128xf32> to vector<32xf32>
      %20 = vector.shape_cast %19 : vector<32xf32> to vector<32x1xf32>
      %cst_13 = arith.constant 1.280000e+02 : f32
      %21 = vector.broadcast %cst_13 : f32 to vector<32x1xf32>
      %22 = arith.divf %20, %21 : vector<32x1xf32>
      %cst_14 = arith.constant 9.99999997E-7 : f32
      %23 = vector.broadcast %cst_14 : f32 to vector<32x1xf32>
      %24 = arith.addf %22, %23 : vector<32x1xf32>
      %25 = math.rsqrt %24 : vector<32x1xf32>
      %26 = vector.broadcast %25 : vector<32x1xf32> to vector<32x128xf32>
      %27 = arith.mulf %17, %26 : vector<32x128xf32>
      %c0_15 = arith.constant 0 : index
      %c0_16 = arith.constant 0 : index
      %28 = vector.load %arg6[%c0_15, %c0_16] : memref<1x128xf32, #tpu.memory_space<vmem>>, vector<1x128xf32>
      %29 = vector.broadcast %28 : vector<1x128xf32> to vector<32x128xf32>
      %30 = arith.mulf %27, %29 : vector<32x128xf32>
      %c0_17 = arith.constant 0 : index
      %c0_18 = arith.constant 0 : index
      %31 = vector.load %arg7[%c0_17, %c0_18] : memref<1x128xf32, #tpu.memory_space<vmem>>, vector<1x128xf32>
      %32 = vector.broadcast %31 : vector<1x128xf32> to vector<32x128xf32>
      %33 = arith.addf %30, %32 : vector<32x128xf32>
      %34 = arith.truncf %33 : vector<32x128xf32> to vector<32x128xbf16>
      %c0_19 = arith.constant 0 : index
      %c0_20 = arith.constant 0 : index
      %35 = vector.load %arg9[%c0_19, %c0_20] : memref<32x128xbf16, #tpu.memory_space<vmem>>, vector<32x128xbf16>
      tpu.vector_store %arg9[%c0_19, %c0_20], %34 {strides = array<i32>} : memref<32x128xbf16, #tpu.memory_space<vmem>>, vector<32x128xbf16>,
    } else {
    }
    %c0 = arith.constant 0 : index
    %c0_1 = arith.constant 0 : index
    %3 = vector.load %arg9[%c0, %c0_1] : memref<32x128xbf16, #tpu.memory_space<vmem>>, vector<32x128xbf16>
    %c0_2 = arith.constant 0 : index
    %c0_3 = arith.constant 0 : index
    %4 = vector.load %arg4[%c0_2, %c0_3] : memref<128x128xbf16, #tpu.memory_space<vmem>>, vector<128x128xbf16>
    %cst = arith.constant dense<0.000000e+00> : vector<32x128xf32>
    %5 = tpu.matmul %3, %4, %cst {dimension_numbers = #tpu.dot_dimension_numbers<[1], [0], [0], [1], [0, 0, 1, 1], [], []>} : vector<32x128xbf16>, vector<128x128xbf16>, vector<32x128xf32> -> vector<32x128xf32>
    %c0_4 = arith.constant 0 : index
    %c0_5 = arith.constant 0 : index
    %6 = vector.load %arg5[%c0_4, %c0_5] : memref<1x128xf32, #tpu.memory_space<vmem>>, vector<1x128xf32>
    %7 = vector.broadcast %6 : vector<1x128xf32> to vector<32x128xf32>
    %8 = arith.addf %5, %7 : vector<32x128xf32>
    %9 = arith.truncf %8 : vector<32x128xf32> to vector<32x128xbf16>
    %c0_6 = arith.constant 0 : index
    %c0_7 = arith.constant 0 : index
    %10 = vector.load %arg8[%c0_6, %c0_7] : memref<32x128xbf16, #tpu.memory_space<vmem>>, vector<32x128xbf16>
    tpu.vector_store %arg8[%c0_6, %c0_7], %9 {strides = array<i32>} : memref<32x128xbf16, #tpu.memory_space<vmem>>, vector<32x128xbf16>,
    return
  }
  func.func @transform_0(%arg0: i32, %arg1: i32, %arg2: i32) -> (i32, i32) {
    %c0_i32 = arith.constant 0 : i32
    return %arg0, %arg2 : i32, i32
  }
  func.func @transform_1(%arg0: i32, %arg1: i32, %arg2: i32) -> (i32, i32) {
    %c0_i32 = arith.constant 0 : i32
    return %arg2, %arg1 : i32, i32
  }
  func.func @transform_2(%arg0: i32, %arg1: i32, %arg2: i32) -> (i32, i32) {
    %c0_i32 = arith.constant 0 : i32
    %c0_i32_0 = arith.constant 0 : i32
    return %c0_i32, %arg1 : i32, i32
  }
  func.func @transform_3(%arg0: i32, %arg1: i32, %arg2: i32) -> (i32, i32) {
    %c0_i32 = arith.constant 0 : i32
    %c0_i32_0 = arith.constant 0 : i32
    %c0_i32_1 = arith.constant 0 : i32
    return %c0_i32, %c0_i32_0 : i32, i32
  }
  func.func @transform_4(%arg0: i32, %arg1: i32, %arg2: i32) -> (i32, i32) {
    %c0_i32 = arith.constant 0 : i32
    %c0_i32_0 = arith.constant 0 : i32
    %c0_i32_1 = arith.constant 0 : i32
    return %c0_i32, %c0_i32_0 : i32, i32
  }
  func.func @transform_5(%arg0: i32, %arg1: i32, %arg2: i32) -> (i32, i32) {
    %c0_i32 = arith.constant 0 : i32
    return %arg0, %arg1 : i32, i32
  }
}

module attributes {stable_mosaic.version = 11 : i64} {
  func.func @_flash_attn_kernel(%arg0: i32, %arg1: i32, %arg2: i32, %arg3: memref<1x16x128xbf16, #tpu.memory_space<vmem>>, %arg4: memref<1x16x128xbf16, #tpu.memory_space<vmem>>, %arg5: memref<1x16x128xbf16, #tpu.memory_space<vmem>>, %arg6: memref<1x16x128xbf16, #tpu.memory_space<vmem>>, %arg7: memref<16x4xf32, #tpu.memory_space<vmem>>, %arg8: memref<16x4xf32, #tpu.memory_space<vmem>>, %arg9: memref<16x128xf32, #tpu.memory_space<vmem>>) attributes {dimension_semantics = [#tpu.dimension_semantics<parallel>, #tpu.dimension_semantics<parallel>, #tpu.dimension_semantics<arbitrary>], iteration_bounds = array<i64: 2, 1, 1>, scalar_prefetch = 0 : i64, scratch_operands = 3 : i64, tpu.core_type = #tpu.core_type<tc>, window_params = [{transform_indices = @transform_0, window_bounds = array<i64: 1, 16, 128>}, {transform_indices = @transform_1, window_bounds = array<i64: 1, 16, 128>}, {transform_indices = @transform_2, window_bounds = array<i64: 1, 16, 128>}, {transform_indices = @transform_3, window_bounds = array<i64: 1, 16, 128>}]} {
    %c0_i32 = arith.constant 0 : i32
    %0 = arith.cmpi eq, %arg2, %c0_i32 : i32
    %1 = arith.extui %0 : i1 to i32
    %c0_i32_0 = arith.constant 0 : i32
    %2 = arith.cmpi ne, %1, %c0_i32_0 : i32
    scf.if %2 {
      %cst_72 = arith.constant -1.000000e+30 : f32
      %142 = vector.broadcast %cst_72 : f32 to vector<16x4xf32>
      %c0_73 = arith.constant 0 : index
      %c0_74 = arith.constant 0 : index
      %143 = vector.load %arg7[%c0_73, %c0_74] : memref<16x4xf32, #tpu.memory_space<vmem>>, vector<16x4xf32>
      tpu.vector_store %arg7[%c0_73, %c0_74], %142 {strides = array<i32>} : memref<16x4xf32, #tpu.memory_space<vmem>>, vector<16x4xf32>,
      %cst_75 = arith.constant 0.000000e+00 : f32
      %144 = vector.broadcast %cst_75 : f32 to vector<16x4xf32>
      %c0_76 = arith.constant 0 : index
      %c0_77 = arith.constant 0 : index
      %145 = vector.load %arg8[%c0_76, %c0_77] : memref<16x4xf32, #tpu.memory_space<vmem>>, vector<16x4xf32>
      tpu.vector_store %arg8[%c0_76, %c0_77], %144 {strides = array<i32>} : memref<16x4xf32, #tpu.memory_space<vmem>>, vector<16x4xf32>,
      %cst_78 = arith.constant 0.000000e+00 : f32
      %146 = vector.broadcast %cst_78 : f32 to vector<16x128xf32>
      %c0_79 = arith.constant 0 : index
      %c0_80 = arith.constant 0 : index
      %147 = vector.load %arg9[%c0_79, %c0_80] : memref<16x128xf32, #tpu.memory_space<vmem>>, vector<16x128xf32>
      tpu.vector_store %arg9[%c0_79, %c0_80], %146 {strides = array<i32>} : memref<16x128xf32, #tpu.memory_space<vmem>>, vector<16x128xf32>,
    } else {
    }
    %c0 = arith.constant 0 : index
    %c0_1 = arith.constant 0 : index
    %c0_2 = arith.constant 0 : index
    %3 = vector.load %arg3[%c0, %c0_1, %c0_2] : memref<1x16x128xbf16, #tpu.memory_space<vmem>>, vector<1x16x128xbf16>
    %4 = vector.shape_cast %3 : vector<1x16x128xbf16> to vector<16x128xbf16>
    %c0_3 = arith.constant 0 : index
    %c0_4 = arith.constant 0 : index
    %c0_5 = arith.constant 0 : index
    %5 = vector.load %arg4[%c0_3, %c0_4, %c0_5] : memref<1x16x128xbf16, #tpu.memory_space<vmem>>, vector<1x16x128xbf16>
    %6 = vector.shape_cast %5 : vector<1x16x128xbf16> to vector<16x128xbf16>
    %c0_6 = arith.constant 0 : index
    %c0_7 = arith.constant 0 : index
    %c0_8 = arith.constant 0 : index
    %7 = vector.load %arg5[%c0_6, %c0_7, %c0_8] : memref<1x16x128xbf16, #tpu.memory_space<vmem>>, vector<1x16x128xbf16>
    %8 = vector.shape_cast %7 : vector<1x16x128xbf16> to vector<16x128xbf16>
    %c16_i32 = arith.constant 16 : i32
    %9 = arith.muli %arg2, %c16_i32 : i32
    %10 = tpu.iota {dimensions = array<i32: 1>} : vector<1x16xi32>
    %11 = vector.broadcast %9 : i32 to vector<1x16xi32>
    %12 = arith.addi %11, %10 : vector<1x16xi32>
    %c9_i32 = arith.constant 9 : i32
    %13 = vector.broadcast %c9_i32 : i32 to vector<1x16xi32>
    %14 = arith.cmpi slt, %12, %13 : vector<1x16xi32>
    %15 = vector.extract_strided_slice %4 {offsets = [0, 0], sizes = [16, 32], strides = [1, 1]} : vector<16x128xbf16> to vector<16x32xbf16>
    %16 = vector.extract_strided_slice %6 {offsets = [0, 0], sizes = [16, 32], strides = [1, 1]} : vector<16x128xbf16> to vector<16x32xbf16>
    %cst = arith.constant dense<0.000000e+00> : vector<16x16xf32>
    %17 = tpu.matmul %15, %16, %cst {dimension_numbers = #tpu.dot_dimension_numbers<[1], [1], [0], [0], [0, 0, 1, 0], [], []>} : vector<16x32xbf16>, vector<16x32xbf16>, vector<16x16xf32> -> vector<16x16xf32>
    %cst_9 = arith.constant -1.000000e+30 : f32
    %18 = vector.shape_cast %14 : vector<1x16xi1> to vector<1x16xi1>
    %19 = vector.broadcast %18 : vector<1x16xi1> to vector<16x16xi1>
    %20 = vector.broadcast %cst_9 : f32 to vector<16x16xf32>
    %21 = arith.select %19, %17, %20 : vector<16x16xi1>, vector<16x16xf32>
    %c0_10 = arith.constant 0 : index
    %c0_11 = arith.constant 0 : index
    %22 = vector.load %arg7[%c0_10, %c0_11] : memref<16x4xf32, #tpu.memory_space<vmem>>, vector<16x1xf32>
    %cst_12 = arith.constant dense<0xFF800000> : vector<16xf32>
    %23 = vector.multi_reduction <maximumf>, %21, %cst_12 [1] : vector<16x16xf32> to vector<16xf32>
    %24 = vector.shape_cast %23 : vector<16xf32> to vector<16x1xf32>
    %25 = arith.maximumf %22, %24 : vector<16x1xf32>
    %26 = arith.subf %22, %25 : vector<16x1xf32>
    %27 = math.exp %26 : vector<16x1xf32>
    %28 = vector.broadcast %25 : vector<16x1xf32> to vector<16x16xf32>
    %29 = arith.subf %21, %28 : vector<16x16xf32>
    %30 = math.exp %29 : vector<16x16xf32>
    %c0_13 = arith.constant 0 : index
    %c0_14 = arith.constant 0 : index
    %31 = vector.load %arg8[%c0_13, %c0_14] : memref<16x4xf32, #tpu.memory_space<vmem>>, vector<16x1xf32>
    %32 = arith.mulf %27, %31 : vector<16x1xf32>
    %cst_15 = arith.constant dense<0.000000e+00> : vector<16xf32>
    %33 = vector.multi_reduction <add>, %30, %cst_15 [1] : vector<16x16xf32> to vector<16xf32>
    %34 = vector.shape_cast %33 : vector<16xf32> to vector<16x1xf32>
    %35 = arith.addf %32, %34 : vector<16x1xf32>
    %c0_16 = arith.constant 0 : index
    %c0_17 = arith.constant 0 : index
    %36 = vector.load %arg8[%c0_16, %c0_17] : memref<16x4xf32, #tpu.memory_space<vmem>>, vector<16x1xf32>
    tpu.vector_store %arg8[%c0_16, %c0_17], %35 {strides = array<i32>} : memref<16x4xf32, #tpu.memory_space<vmem>>, vector<16x1xf32>,
    %37 = arith.truncf %30 : vector<16x16xf32> to vector<16x16xbf16>
    %38 = vector.extract_strided_slice %8 {offsets = [0, 0], sizes = [16, 32], strides = [1, 1]} : vector<16x128xbf16> to vector<16x32xbf16>
    %cst_18 = arith.constant dense<0.000000e+00> : vector<16x32xf32>
    %39 = tpu.matmul %37, %38, %cst_18 {dimension_numbers = #tpu.dot_dimension_numbers<[1], [0], [0], [1], [0, 0, 1, 1], [], []>} : vector<16x16xbf16>, vector<16x32xbf16>, vector<16x32xf32> -> vector<16x32xf32>
    %c0_19 = arith.constant 0 : index
    %c0_20 = arith.constant 0 : index
    %40 = vector.load %arg9[%c0_19, %c0_20] : memref<16x128xf32, #tpu.memory_space<vmem>>, vector<16x32xf32>
    %41 = vector.broadcast %27 : vector<16x1xf32> to vector<16x32xf32>
    %42 = arith.mulf %41, %40 : vector<16x32xf32>
    %43 = arith.addf %42, %39 : vector<16x32xf32>
    %c0_21 = arith.constant 0 : index
    %c0_22 = arith.constant 0 : index
    %44 = vector.load %arg9[%c0_21, %c0_22] : memref<16x128xf32, #tpu.memory_space<vmem>>, vector<16x32xf32>
    tpu.vector_store %arg9[%c0_21, %c0_22], %43 {strides = array<i32>} : memref<16x128xf32, #tpu.memory_space<vmem>>, vector<16x32xf32>,
    %c0_23 = arith.constant 0 : index
    %c0_24 = arith.constant 0 : index
    %45 = vector.load %arg7[%c0_23, %c0_24] : memref<16x4xf32, #tpu.memory_space<vmem>>, vector<16x1xf32>
    tpu.vector_store %arg7[%c0_23, %c0_24], %25 {strides = array<i32>} : memref<16x4xf32, #tpu.memory_space<vmem>>, vector<16x1xf32>,
    %46 = vector.extract_strided_slice %4 {offsets = [0, 32], sizes = [16, 32], strides = [1, 1]} : vector<16x128xbf16> to vector<16x32xbf16>
    %47 = vector.extract_strided_slice %6 {offsets = [0, 32], sizes = [16, 32], strides = [1, 1]} : vector<16x128xbf16> to vector<16x32xbf16>
    %cst_25 = arith.constant dense<0.000000e+00> : vector<16x16xf32>
    %48 = tpu.matmul %46, %47, %cst_25 {dimension_numbers = #tpu.dot_dimension_numbers<[1], [1], [0], [0], [0, 0, 1, 0], [], []>} : vector<16x32xbf16>, vector<16x32xbf16>, vector<16x16xf32> -> vector<16x16xf32>
    %cst_26 = arith.constant -1.000000e+30 : f32
    %49 = vector.shape_cast %14 : vector<1x16xi1> to vector<1x16xi1>
    %50 = vector.broadcast %49 : vector<1x16xi1> to vector<16x16xi1>
    %51 = vector.broadcast %cst_26 : f32 to vector<16x16xf32>
    %52 = arith.select %50, %48, %51 : vector<16x16xi1>, vector<16x16xf32>
    %c0_27 = arith.constant 0 : index
    %c1 = arith.constant 1 : index
    %53 = vector.load %arg7[%c0_27, %c1] : memref<16x4xf32, #tpu.memory_space<vmem>>, vector<16x1xf32>
    %cst_28 = arith.constant dense<0xFF800000> : vector<16xf32>
    %54 = vector.multi_reduction <maximumf>, %52, %cst_28 [1] : vector<16x16xf32> to vector<16xf32>
    %55 = vector.shape_cast %54 : vector<16xf32> to vector<16x1xf32>
    %56 = arith.maximumf %53, %55 : vector<16x1xf32>
    %57 = arith.subf %53, %56 : vector<16x1xf32>
    %58 = math.exp %57 : vector<16x1xf32>
    %59 = vector.broadcast %56 : vector<16x1xf32> to vector<16x16xf32>
    %60 = arith.subf %52, %59 : vector<16x16xf32>
    %61 = math.exp %60 : vector<16x16xf32>
    %c0_29 = arith.constant 0 : index
    %c1_30 = arith.constant 1 : index
    %62 = vector.load %arg8[%c0_29, %c1_30] : memref<16x4xf32, #tpu.memory_space<vmem>>, vector<16x1xf32>
    %63 = arith.mulf %58, %62 : vector<16x1xf32>
    %cst_31 = arith.constant dense<0.000000e+00> : vector<16xf32>
    %64 = vector.multi_reduction <add>, %61, %cst_31 [1] : vector<16x16xf32> to vector<16xf32>
    %65 = vector.shape_cast %64 : vector<16xf32> to vector<16x1xf32>
    %66 = arith.addf %63, %65 : vector<16x1xf32>
    %c0_32 = arith.constant 0 : index
    %c1_33 = arith.constant 1 : index
    %67 = vector.load %arg8[%c0_32, %c1_33] : memref<16x4xf32, #tpu.memory_space<vmem>>, vector<16x1xf32>
    tpu.vector_store %arg8[%c0_32, %c1_33], %66 {strides = array<i32>} : memref<16x4xf32, #tpu.memory_space<vmem>>, vector<16x1xf32>,
    %68 = arith.truncf %61 : vector<16x16xf32> to vector<16x16xbf16>
    %69 = vector.extract_strided_slice %8 {offsets = [0, 32], sizes = [16, 32], strides = [1, 1]} : vector<16x128xbf16> to vector<16x32xbf16>
    %cst_34 = arith.constant dense<0.000000e+00> : vector<16x32xf32>
    %70 = tpu.matmul %68, %69, %cst_34 {dimension_numbers = #tpu.dot_dimension_numbers<[1], [0], [0], [1], [0, 0, 1, 1], [], []>} : vector<16x16xbf16>, vector<16x32xbf16>, vector<16x32xf32> -> vector<16x32xf32>
    %c0_35 = arith.constant 0 : index
    %c32 = arith.constant 32 : index
    %71 = vector.load %arg9[%c0_35, %c32] : memref<16x128xf32, #tpu.memory_space<vmem>>, vector<16x32xf32>
    %72 = vector.broadcast %58 : vector<16x1xf32> to vector<16x32xf32>
    %73 = arith.mulf %72, %71 : vector<16x32xf32>
    %74 = arith.addf %73, %70 : vector<16x32xf32>
    %c0_36 = arith.constant 0 : index
    %c32_37 = arith.constant 32 : index
    %75 = vector.load %arg9[%c0_36, %c32_37] : memref<16x128xf32, #tpu.memory_space<vmem>>, vector<16x32xf32>
    tpu.vector_store %arg9[%c0_36, %c32_37], %74 {strides = array<i32>} : memref<16x128xf32, #tpu.memory_space<vmem>>, vector<16x32xf32>,
    %c0_38 = arith.constant 0 : index
    %c1_39 = arith.constant 1 : index
    %76 = vector.load %arg7[%c0_38, %c1_39] : memref<16x4xf32, #tpu.memory_space<vmem>>, vector<16x1xf32>
    tpu.vector_store %arg7[%c0_38, %c1_39], %56 {strides = array<i32>} : memref<16x4xf32, #tpu.memory_space<vmem>>, vector<16x1xf32>,
    %77 = vector.extract_strided_slice %4 {offsets = [0, 64], sizes = [16, 32], strides = [1, 1]} : vector<16x128xbf16> to vector<16x32xbf16>
    %78 = vector.extract_strided_slice %6 {offsets = [0, 64], sizes = [16, 32], strides = [1, 1]} : vector<16x128xbf16> to vector<16x32xbf16>
    %cst_40 = arith.constant dense<0.000000e+00> : vector<16x16xf32>
    %79 = tpu.matmul %77, %78, %cst_40 {dimension_numbers = #tpu.dot_dimension_numbers<[1], [1], [0], [0], [0, 0, 1, 0], [], []>} : vector<16x32xbf16>, vector<16x32xbf16>, vector<16x16xf32> -> vector<16x16xf32>
    %cst_41 = arith.constant -1.000000e+30 : f32
    %80 = vector.shape_cast %14 : vector<1x16xi1> to vector<1x16xi1>
    %81 = vector.broadcast %80 : vector<1x16xi1> to vector<16x16xi1>
    %82 = vector.broadcast %cst_41 : f32 to vector<16x16xf32>
    %83 = arith.select %81, %79, %82 : vector<16x16xi1>, vector<16x16xf32>
    %c0_42 = arith.constant 0 : index
    %c2 = arith.constant 2 : index
    %84 = vector.load %arg7[%c0_42, %c2] : memref<16x4xf32, #tpu.memory_space<vmem>>, vector<16x1xf32>
    %cst_43 = arith.constant dense<0xFF800000> : vector<16xf32>
    %85 = vector.multi_reduction <maximumf>, %83, %cst_43 [1] : vector<16x16xf32> to vector<16xf32>
    %86 = vector.shape_cast %85 : vector<16xf32> to vector<16x1xf32>
    %87 = arith.maximumf %84, %86 : vector<16x1xf32>
    %88 = arith.subf %84, %87 : vector<16x1xf32>
    %89 = math.exp %88 : vector<16x1xf32>
    %90 = vector.broadcast %87 : vector<16x1xf32> to vector<16x16xf32>
    %91 = arith.subf %83, %90 : vector<16x16xf32>
    %92 = math.exp %91 : vector<16x16xf32>
    %c0_44 = arith.constant 0 : index
    %c2_45 = arith.constant 2 : index
    %93 = vector.load %arg8[%c0_44, %c2_45] : memref<16x4xf32, #tpu.memory_space<vmem>>, vector<16x1xf32>
    %94 = arith.mulf %89, %93 : vector<16x1xf32>
    %cst_46 = arith.constant dense<0.000000e+00> : vector<16xf32>
    %95 = vector.multi_reduction <add>, %92, %cst_46 [1] : vector<16x16xf32> to vector<16xf32>
    %96 = vector.shape_cast %95 : vector<16xf32> to vector<16x1xf32>
    %97 = arith.addf %94, %96 : vector<16x1xf32>
    %c0_47 = arith.constant 0 : index
    %c2_48 = arith.constant 2 : index
    %98 = vector.load %arg8[%c0_47, %c2_48] : memref<16x4xf32, #tpu.memory_space<vmem>>, vector<16x1xf32>
    tpu.vector_store %arg8[%c0_47, %c2_48], %97 {strides = array<i32>} : memref<16x4xf32, #tpu.memory_space<vmem>>, vector<16x1xf32>,
    %99 = arith.truncf %92 : vector<16x16xf32> to vector<16x16xbf16>
    %100 = vector.extract_strided_slice %8 {offsets = [0, 64], sizes = [16, 32], strides = [1, 1]} : vector<16x128xbf16> to vector<16x32xbf16>
    %cst_49 = arith.constant dense<0.000000e+00> : vector<16x32xf32>
    %101 = tpu.matmul %99, %100, %cst_49 {dimension_numbers = #tpu.dot_dimension_numbers<[1], [0], [0], [1], [0, 0, 1, 1], [], []>} : vector<16x16xbf16>, vector<16x32xbf16>, vector<16x32xf32> -> vector<16x32xf32>
    %c0_50 = arith.constant 0 : index
    %c64 = arith.constant 64 : index
    %102 = vector.load %arg9[%c0_50, %c64] : memref<16x128xf32, #tpu.memory_space<vmem>>, vector<16x32xf32>
    %103 = vector.broadcast %89 : vector<16x1xf32> to vector<16x32xf32>
    %104 = arith.mulf %103, %102 : vector<16x32xf32>
    %105 = arith.addf %104, %101 : vector<16x32xf32>
    %c0_51 = arith.constant 0 : index
    %c64_52 = arith.constant 64 : index
    %106 = vector.load %arg9[%c0_51, %c64_52] : memref<16x128xf32, #tpu.memory_space<vmem>>, vector<16x32xf32>
    tpu.vector_store %arg9[%c0_51, %c64_52], %105 {strides = array<i32>} : memref<16x128xf32, #tpu.memory_space<vmem>>, vector<16x32xf32>,
    %c0_53 = arith.constant 0 : index
    %c2_54 = arith.constant 2 : index
    %107 = vector.load %arg7[%c0_53, %c2_54] : memref<16x4xf32, #tpu.memory_space<vmem>>, vector<16x1xf32>
    tpu.vector_store %arg7[%c0_53, %c2_54], %87 {strides = array<i32>} : memref<16x4xf32, #tpu.memory_space<vmem>>, vector<16x1xf32>,
    %108 = vector.extract_strided_slice %4 {offsets = [0, 96], sizes = [16, 32], strides = [1, 1]} : vector<16x128xbf16> to vector<16x32xbf16>
    %109 = vector.extract_strided_slice %6 {offsets = [0, 96], sizes = [16, 32], strides = [1, 1]} : vector<16x128xbf16> to vector<16x32xbf16>
    %cst_55 = arith.constant dense<0.000000e+00> : vector<16x16xf32>
    %110 = tpu.matmul %108, %109, %cst_55 {dimension_numbers = #tpu.dot_dimension_numbers<[1], [1], [0], [0], [0, 0, 1, 0], [], []>} : vector<16x32xbf16>, vector<16x32xbf16>, vector<16x16xf32> -> vector<16x16xf32>
    %cst_56 = arith.constant -1.000000e+30 : f32
    %111 = vector.shape_cast %14 : vector<1x16xi1> to vector<1x16xi1>
    %112 = vector.broadcast %111 : vector<1x16xi1> to vector<16x16xi1>
    %113 = vector.broadcast %cst_56 : f32 to vector<16x16xf32>
    %114 = arith.select %112, %110, %113 : vector<16x16xi1>, vector<16x16xf32>
    %c0_57 = arith.constant 0 : index
    %c3 = arith.constant 3 : index
    %115 = vector.load %arg7[%c0_57, %c3] : memref<16x4xf32, #tpu.memory_space<vmem>>, vector<16x1xf32>
    %cst_58 = arith.constant dense<0xFF800000> : vector<16xf32>
    %116 = vector.multi_reduction <maximumf>, %114, %cst_58 [1] : vector<16x16xf32> to vector<16xf32>
    %117 = vector.shape_cast %116 : vector<16xf32> to vector<16x1xf32>
    %118 = arith.maximumf %115, %117 : vector<16x1xf32>
    %119 = arith.subf %115, %118 : vector<16x1xf32>
    %120 = math.exp %119 : vector<16x1xf32>
    %121 = vector.broadcast %118 : vector<16x1xf32> to vector<16x16xf32>
    %122 = arith.subf %114, %121 : vector<16x16xf32>
    %123 = math.exp %122 : vector<16x16xf32>
    %c0_59 = arith.constant 0 : index
    %c3_60 = arith.constant 3 : index
    %124 = vector.load %arg8[%c0_59, %c3_60] : memref<16x4xf32, #tpu.memory_space<vmem>>, vector<16x1xf32>
    %125 = arith.mulf %120, %124 : vector<16x1xf32>
    %cst_61 = arith.constant dense<0.000000e+00> : vector<16xf32>
    %126 = vector.multi_reduction <add>, %123, %cst_61 [1] : vector<16x16xf32> to vector<16xf32>
    %127 = vector.shape_cast %126 : vector<16xf32> to vector<16x1xf32>
    %128 = arith.addf %125, %127 : vector<16x1xf32>
    %c0_62 = arith.constant 0 : index
    %c3_63 = arith.constant 3 : index
    %129 = vector.load %arg8[%c0_62, %c3_63] : memref<16x4xf32, #tpu.memory_space<vmem>>, vector<16x1xf32>
    tpu.vector_store %arg8[%c0_62, %c3_63], %128 {strides = array<i32>} : memref<16x4xf32, #tpu.memory_space<vmem>>, vector<16x1xf32>,
    %130 = arith.truncf %123 : vector<16x16xf32> to vector<16x16xbf16>
    %131 = vector.extract_strided_slice %8 {offsets = [0, 96], sizes = [16, 32], strides = [1, 1]} : vector<16x128xbf16> to vector<16x32xbf16>
    %cst_64 = arith.constant dense<0.000000e+00> : vector<16x32xf32>
    %132 = tpu.matmul %130, %131, %cst_64 {dimension_numbers = #tpu.dot_dimension_numbers<[1], [0], [0], [1], [0, 0, 1, 1], [], []>} : vector<16x16xbf16>, vector<16x32xbf16>, vector<16x32xf32> -> vector<16x32xf32>
    %c0_65 = arith.constant 0 : index
    %c96 = arith.constant 96 : index
    %133 = vector.load %arg9[%c0_65, %c96] : memref<16x128xf32, #tpu.memory_space<vmem>>, vector<16x32xf32>
    %134 = vector.broadcast %120 : vector<16x1xf32> to vector<16x32xf32>
    %135 = arith.mulf %134, %133 : vector<16x32xf32>
    %136 = arith.addf %135, %132 : vector<16x32xf32>
    %c0_66 = arith.constant 0 : index
    %c96_67 = arith.constant 96 : index
    %137 = vector.load %arg9[%c0_66, %c96_67] : memref<16x128xf32, #tpu.memory_space<vmem>>, vector<16x32xf32>
    tpu.vector_store %arg9[%c0_66, %c96_67], %136 {strides = array<i32>} : memref<16x128xf32, #tpu.memory_space<vmem>>, vector<16x32xf32>,
    %c0_68 = arith.constant 0 : index
    %c3_69 = arith.constant 3 : index
    %138 = vector.load %arg7[%c0_68, %c3_69] : memref<16x4xf32, #tpu.memory_space<vmem>>, vector<16x1xf32>
    tpu.vector_store %arg7[%c0_68, %c3_69], %118 {strides = array<i32>} : memref<16x4xf32, #tpu.memory_space<vmem>>, vector<16x1xf32>,
    %c0_i32_70 = arith.constant 0 : i32
    %139 = arith.cmpi eq, %arg2, %c0_i32_70 : i32
    %140 = arith.extui %139 : i1 to i32
    %c0_i32_71 = arith.constant 0 : i32
    %141 = arith.cmpi ne, %140, %c0_i32_71 : i32
    scf.if %141 {
      %c0_72 = arith.constant 0 : index
      %c0_73 = arith.constant 0 : index
      %142 = vector.load %arg8[%c0_72, %c0_73] : memref<16x4xf32, #tpu.memory_space<vmem>>, vector<16x4xf32>
      %143 = tpu.reciprocal %142 {approx = true} : vector<16x4xf32> -> vector<16x4xf32>
      %c0_74 = arith.constant 0 : index
      %c0_75 = arith.constant 0 : index
      %144 = vector.load %arg9[%c0_74, %c0_75] : memref<16x128xf32, #tpu.memory_space<vmem>>, vector<16x32xf32>
      %145 = vector.extract_strided_slice %143 {offsets = [0, 0], sizes = [16, 1], strides = [1, 1]} : vector<16x4xf32> to vector<16x1xf32>
      %146 = vector.broadcast %145 : vector<16x1xf32> to vector<16x32xf32>
      %147 = arith.mulf %144, %146 : vector<16x32xf32>
      %148 = arith.truncf %147 : vector<16x32xf32> to vector<16x32xbf16>
      %c0_76 = arith.constant 0 : index
      %c0_77 = arith.constant 0 : index
      %c0_78 = arith.constant 0 : index
      %149 = vector.load %arg6[%c0_76, %c0_77, %c0_78] : memref<1x16x128xbf16, #tpu.memory_space<vmem>>, vector<1x16x32xbf16>
      %150 = vector.shape_cast %149 : vector<1x16x32xbf16> to vector<16x32xbf16>
      %151 = vector.shape_cast %148 : vector<16x32xbf16> to vector<1x16x32xbf16>
      tpu.vector_store %arg6[%c0_76, %c0_77, %c0_78], %151 {strides = array<i32>} : memref<1x16x128xbf16, #tpu.memory_space<vmem>>, vector<1x16x32xbf16>,
      %c0_79 = arith.constant 0 : index
      %c32_80 = arith.constant 32 : index
      %152 = vector.load %arg9[%c0_79, %c32_80] : memref<16x128xf32, #tpu.memory_space<vmem>>, vector<16x32xf32>
      %153 = vector.extract_strided_slice %143 {offsets = [0, 1], sizes = [16, 1], strides = [1, 1]} : vector<16x4xf32> to vector<16x1xf32>
      %154 = vector.broadcast %153 : vector<16x1xf32> to vector<16x32xf32>
      %155 = arith.mulf %152, %154 : vector<16x32xf32>
      %156 = arith.truncf %155 : vector<16x32xf32> to vector<16x32xbf16>
      %c0_81 = arith.constant 0 : index
      %c0_82 = arith.constant 0 : index
      %c32_83 = arith.constant 32 : index
      %157 = vector.load %arg6[%c0_81, %c0_82, %c32_83] : memref<1x16x128xbf16, #tpu.memory_space<vmem>>, vector<1x16x32xbf16>
      %158 = vector.shape_cast %157 : vector<1x16x32xbf16> to vector<16x32xbf16>
      %159 = vector.shape_cast %156 : vector<16x32xbf16> to vector<1x16x32xbf16>
      tpu.vector_store %arg6[%c0_81, %c0_82, %c32_83], %159 {strides = array<i32>} : memref<1x16x128xbf16, #tpu.memory_space<vmem>>, vector<1x16x32xbf16>,
      %c0_84 = arith.constant 0 : index
      %c64_85 = arith.constant 64 : index
      %160 = vector.load %arg9[%c0_84, %c64_85] : memref<16x128xf32, #tpu.memory_space<vmem>>, vector<16x32xf32>
      %161 = vector.extract_strided_slice %143 {offsets = [0, 2], sizes = [16, 1], strides = [1, 1]} : vector<16x4xf32> to vector<16x1xf32>
      %162 = vector.broadcast %161 : vector<16x1xf32> to vector<16x32xf32>
      %163 = arith.mulf %160, %162 : vector<16x32xf32>
      %164 = arith.truncf %163 : vector<16x32xf32> to vector<16x32xbf16>
      %c0_86 = arith.constant 0 : index
      %c0_87 = arith.constant 0 : index
      %c64_88 = arith.constant 64 : index
      %165 = vector.load %arg6[%c0_86, %c0_87, %c64_88] : memref<1x16x128xbf16, #tpu.memory_space<vmem>>, vector<1x16x32xbf16>
      %166 = vector.shape_cast %165 : vector<1x16x32xbf16> to vector<16x32xbf16>
      %167 = vector.shape_cast %164 : vector<16x32xbf16> to vector<1x16x32xbf16>
      tpu.vector_store %arg6[%c0_86, %c0_87, %c64_88], %167 {strides = array<i32>} : memref<1x16x128xbf16, #tpu.memory_space<vmem>>, vector<1x16x32xbf16>,
      %c0_89 = arith.constant 0 : index
      %c96_90 = arith.constant 96 : index
      %168 = vector.load %arg9[%c0_89, %c96_90] : memref<16x128xf32, #tpu.memory_space<vmem>>, vector<16x32xf32>
      %169 = vector.extract_strided_slice %143 {offsets = [0, 3], sizes = [16, 1], strides = [1, 1]} : vector<16x4xf32> to vector<16x1xf32>
      %170 = vector.broadcast %169 : vector<16x1xf32> to vector<16x32xf32>
      %171 = arith.mulf %168, %170 : vector<16x32xf32>
      %172 = arith.truncf %171 : vector<16x32xf32> to vector<16x32xbf16>
      %c0_91 = arith.constant 0 : index
      %c0_92 = arith.constant 0 : index
      %c96_93 = arith.constant 96 : index
      %173 = vector.load %arg6[%c0_91, %c0_92, %c96_93] : memref<1x16x128xbf16, #tpu.memory_space<vmem>>, vector<1x16x32xbf16>
      %174 = vector.shape_cast %173 : vector<1x16x32xbf16> to vector<16x32xbf16>
      %175 = vector.shape_cast %172 : vector<16x32xbf16> to vector<1x16x32xbf16>
      tpu.vector_store %arg6[%c0_91, %c0_92, %c96_93], %175 {strides = array<i32>} : memref<1x16x128xbf16, #tpu.memory_space<vmem>>, vector<1x16x32xbf16>,
    } else {
    }
    return
  }
  func.func @transform_0(%arg0: i32, %arg1: i32, %arg2: i32) -> (i32, i32, i32) {
    %c0_i32 = arith.constant 0 : i32
    %c0_i32_0 = arith.constant 0 : i32
    return %arg0, %arg1, %c0_i32 : i32, i32, i32
  }
  func.func @transform_1(%arg0: i32, %arg1: i32, %arg2: i32) -> (i32, i32, i32) {
    %c1_i32 = arith.constant 1 : i32
    %c0_i32 = arith.constant 0 : i32
    return %arg0, %arg2, %c1_i32 : i32, i32, i32
  }
  func.func @transform_2(%arg0: i32, %arg1: i32, %arg2: i32) -> (i32, i32, i32) {
    %c2_i32 = arith.constant 2 : i32
    %c0_i32 = arith.constant 0 : i32
    return %arg0, %arg2, %c2_i32 : i32, i32, i32
  }
  func.func @transform_3(%arg0: i32, %arg1: i32, %arg2: i32) -> (i32, i32, i32) {
    %c0_i32 = arith.constant 0 : i32
    %c0_i32_0 = arith.constant 0 : i32
    return %arg0, %arg1, %c0_i32 : i32, i32, i32
  }
}

module attributes {stable_mosaic.version = 11 : i64} {
  func.func @_fused_matmul_kernel(%arg0: i32, %arg1: i32, %arg2: i32, %arg3: memref<32x128xbf16, #tpu.memory_space<vmem>>, %arg4: memref<128x128xbf16, #tpu.memory_space<vmem>>, %arg5: memref<1x128xf32, #tpu.memory_space<vmem>>, %arg6: memref<32x128xf32, #tpu.memory_space<vmem>>, %arg7: memref<32x128xf32, #tpu.memory_space<vmem>>) attributes {dimension_semantics = [#tpu.dimension_semantics<parallel>, #tpu.dimension_semantics<parallel>, #tpu.dimension_semantics<arbitrary>], iteration_bounds = array<i64: 1, 1, 1>, scalar_prefetch = 0 : i64, scratch_operands = 0 : i64, tpu.core_type = #tpu.core_type<tc>, window_params = [{transform_indices = @transform_0, window_bounds = array<i64: 32, 128>}, {transform_indices = @transform_1, window_bounds = array<i64: 128, 128>}, {transform_indices = @transform_2, window_bounds = array<i64: 1, 128>}, {transform_indices = @transform_3, window_bounds = array<i64: 32, 128>}, {transform_indices = @transform_4, window_bounds = array<i64: 32, 128>}]} {
    %c0 = arith.constant 0 : index
    %c0_0 = arith.constant 0 : index
    %0 = vector.load %arg3[%c0, %c0_0] : memref<32x128xbf16, #tpu.memory_space<vmem>>, vector<32x128xbf16>
    %c0_1 = arith.constant 0 : index
    %c0_2 = arith.constant 0 : index
    %1 = vector.load %arg4[%c0_1, %c0_2] : memref<128x128xbf16, #tpu.memory_space<vmem>>, vector<128x128xbf16>
    %cst = arith.constant dense<0.000000e+00> : vector<32x128xf32>
    %2 = tpu.matmul %0, %1, %cst {dimension_numbers = #tpu.dot_dimension_numbers<[1], [0], [0], [1], [0, 0, 1, 1], [], []>} : vector<32x128xbf16>, vector<128x128xbf16>, vector<32x128xf32> -> vector<32x128xf32>
    %c0_3 = arith.constant 0 : index
    %c0_4 = arith.constant 0 : index
    %3 = vector.load %arg5[%c0_3, %c0_4] : memref<1x128xf32, #tpu.memory_space<vmem>>, vector<1x128xf32>
    %4 = vector.broadcast %3 : vector<1x128xf32> to vector<32x128xf32>
    %5 = arith.addf %2, %4 : vector<32x128xf32>
    %c0_5 = arith.constant 0 : index
    %c0_6 = arith.constant 0 : index
    %6 = vector.load %arg6[%c0_5, %c0_6] : memref<32x128xf32, #tpu.memory_space<vmem>>, vector<32x128xf32>
    %7 = arith.addf %5, %6 : vector<32x128xf32>
    %c0_7 = arith.constant 0 : index
    %c0_8 = arith.constant 0 : index
    %8 = vector.load %arg7[%c0_7, %c0_8] : memref<32x128xf32, #tpu.memory_space<vmem>>, vector<32x128xf32>
    tpu.vector_store %arg7[%c0_7, %c0_8], %7 {strides = array<i32>} : memref<32x128xf32, #tpu.memory_space<vmem>>, vector<32x128xf32>,
    return
  }
  func.func @transform_0(%arg0: i32, %arg1: i32, %arg2: i32) -> (i32, i32) {
    %c0_i32 = arith.constant 0 : i32
    return %arg0, %arg2 : i32, i32
  }
  func.func @transform_1(%arg0: i32, %arg1: i32, %arg2: i32) -> (i32, i32) {
    %c0_i32 = arith.constant 0 : i32
    return %arg2, %arg1 : i32, i32
  }
  func.func @transform_2(%arg0: i32, %arg1: i32, %arg2: i32) -> (i32, i32) {
    %c0_i32 = arith.constant 0 : i32
    %c0_i32_0 = arith.constant 0 : i32
    return %c0_i32, %arg1 : i32, i32
  }
  func.func @transform_3(%arg0: i32, %arg1: i32, %arg2: i32) -> (i32, i32) {
    %c0_i32 = arith.constant 0 : i32
    return %arg0, %arg1 : i32, i32
  }
  func.func @transform_4(%arg0: i32, %arg1: i32, %arg2: i32) -> (i32, i32) {
    %c0_i32 = arith.constant 0 : i32
    return %arg0, %arg1 : i32, i32
  }
}

module attributes {stable_mosaic.version = 11 : i64} {
  func.func @_fused_matmul_kernel(%arg0: i32, %arg1: i32, %arg2: i32, %arg3: memref<32x128xf32, #tpu.memory_space<vmem>>, %arg4: memref<128x512xbf16, #tpu.memory_space<vmem>>, %arg5: memref<1x512xf32, #tpu.memory_space<vmem>>, %arg6: memref<1x128xf32, #tpu.memory_space<vmem>>, %arg7: memref<1x128xf32, #tpu.memory_space<vmem>>, %arg8: memref<32x512xbf16, #tpu.memory_space<vmem>>, %arg9: memref<32x128xbf16, #tpu.memory_space<vmem>>) attributes {dimension_semantics = [#tpu.dimension_semantics<parallel>, #tpu.dimension_semantics<arbitrary>, #tpu.dimension_semantics<arbitrary>], iteration_bounds = array<i64: 1, 1, 1>, scalar_prefetch = 0 : i64, scratch_operands = 1 : i64, tpu.core_type = #tpu.core_type<tc>, window_params = [{transform_indices = @transform_0, window_bounds = array<i64: 32, 128>}, {transform_indices = @transform_1, window_bounds = array<i64: 128, 512>}, {transform_indices = @transform_2, window_bounds = array<i64: 1, 512>}, {pipeline_mode = #tpu.pipeline_mode<synchronous>, transform_indices = @transform_3, window_bounds = array<i64: 1, 128>}, {pipeline_mode = #tpu.pipeline_mode<synchronous>, transform_indices = @transform_4, window_bounds = array<i64: 1, 128>}, {transform_indices = @transform_5, window_bounds = array<i64: 32, 512>}]} {
    %c0_i32 = arith.constant 0 : i32
    %0 = arith.cmpi eq, %arg1, %c0_i32 : i32
    %1 = arith.extui %0 : i1 to i32
    %c0_i32_0 = arith.constant 0 : i32
    %2 = arith.cmpi ne, %1, %c0_i32_0 : i32
    scf.if %2 {
      %c0_11 = arith.constant 0 : index
      %c0_12 = arith.constant 0 : index
      %19 = vector.load %arg3[%c0_11, %c0_12] : memref<32x128xf32, #tpu.memory_space<vmem>>, vector<32x128xf32>
      %cst_13 = arith.constant dense<0.000000e+00> : vector<32xf32>
      %20 = vector.multi_reduction <add>, %19, %cst_13 [1] : vector<32x128xf32> to vector<32xf32>
      %21 = vector.shape_cast %20 : vector<32xf32> to vector<32x1xf32>
      %cst_14 = arith.constant 1.280000e+02 : f32
      %22 = vector.broadcast %cst_14 : f32 to vector<32x1xf32>
      %23 = arith.divf %21, %22 : vector<32x1xf32>
      %24 = vector.broadcast %23 : vector<32x1xf32> to vector<32x128xf32>
      %25 = arith.subf %19, %24 : vector<32x128xf32>
      %26 = arith.mulf %25, %25 : vector<32x128xf32>
      %cst_15 = arith.constant dense<0.000000e+00> : vector<32xf32>
      %27 = vector.multi_reduction <add>, %26, %cst_15 [1] : vector<32x128xf32> to vector<32xf32>
      %28 = vector.shape_cast %27 : vector<32xf32> to vector<32x1xf32>
      %cst_16 = arith.constant 1.280000e+02 : f32
      %29 = vector.broadcast %cst_16 : f32 to vector<32x1xf32>
      %30 = arith.divf %28, %29 : vector<32x1xf32>
      %cst_17 = arith.constant 9.99999997E-7 : f32
      %31 = vector.broadcast %cst_17 : f32 to vector<32x1xf32>
      %32 = arith.addf %30, %31 : vector<32x1xf32>
      %33 = math.rsqrt %32 : vector<32x1xf32>
      %34 = vector.broadcast %33 : vector<32x1xf32> to vector<32x128xf32>
      %35 = arith.mulf %25, %34 : vector<32x128xf32>
      %c0_18 = arith.constant 0 : index
      %c0_19 = arith.constant 0 : index
      %36 = vector.load %arg6[%c0_18, %c0_19] : memref<1x128xf32, #tpu.memory_space<vmem>>, vector<1x128xf32>
      %37 = vector.broadcast %36 : vector<1x128xf32> to vector<32x128xf32>
      %38 = arith.mulf %35, %37 : vector<32x128xf32>
      %c0_20 = arith.constant 0 : index
      %c0_21 = arith.constant 0 : index
      %39 = vector.load %arg7[%c0_20, %c0_21] : memref<1x128xf32, #tpu.memory_space<vmem>>, vector<1x128xf32>
      %40 = vector.broadcast %39 : vector<1x128xf32> to vector<32x128xf32>
      %41 = arith.addf %38, %40 : vector<32x128xf32>
      %42 = arith.truncf %41 : vector<32x128xf32> to vector<32x128xbf16>
      %c0_22 = arith.constant 0 : index
      %c0_23 = arith.constant 0 : index
      %43 = vector.load %arg9[%c0_22, %c0_23] : memref<32x128xbf16, #tpu.memory_space<vmem>>, vector<32x128xbf16>
      tpu.vector_store %arg9[%c0_22, %c0_23], %42 {strides = array<i32>} : memref<32x128xbf16, #tpu.memory_space<vmem>>, vector<32x128xbf16>,
    } else {
    }
    %c0 = arith.constant 0 : index
    %c0_1 = arith.constant 0 : index
    %3 = vector.load %arg9[%c0, %c0_1] : memref<32x128xbf16, #tpu.memory_space<vmem>>, vector<32x128xbf16>
    %c0_2 = arith.constant 0 : index
    %c0_3 = arith.constant 0 : index
    %4 = vector.load %arg4[%c0_2, %c0_3] : memref<128x512xbf16, #tpu.memory_space<vmem>>, vector<128x512xbf16>
    %cst = arith.constant dense<0.000000e+00> : vector<32x512xf32>
    %5 = tpu.matmul %3, %4, %cst {dimension_numbers = #tpu.dot_dimension_numbers<[1], [0], [0], [1], [0, 0, 1, 1], [], []>} : vector<32x128xbf16>, vector<128x512xbf16>, vector<32x512xf32> -> vector<32x512xf32>
    %c0_4 = arith.constant 0 : index
    %c0_5 = arith.constant 0 : index
    %6 = vector.load %arg5[%c0_4, %c0_5] : memref<1x512xf32, #tpu.memory_space<vmem>>, vector<1x512xf32>
    %7 = vector.broadcast %6 : vector<1x512xf32> to vector<32x512xf32>
    %8 = arith.addf %5, %7 : vector<32x512xf32>
    %cst_6 = arith.constant 5.000000e-01 : f32
    %9 = vector.broadcast %cst_6 : f32 to vector<32x512xf32>
    %10 = arith.mulf %9, %8 : vector<32x512xf32>
    %cst_7 = arith.constant 0.707106769 : f32
    %11 = vector.broadcast %cst_7 : f32 to vector<32x512xf32>
    %12 = arith.mulf %8, %11 : vector<32x512xf32>
    %13 = math.erf %12 : vector<32x512xf32>
    %cst_8 = arith.constant 1.000000e+00 : f32
    %14 = vector.broadcast %cst_8 : f32 to vector<32x512xf32>
    %15 = arith.addf %14, %13 : vector<32x512xf32>
    %16 = arith.mulf %10, %15 : vector<32x512xf32>
    %17 = arith.truncf %16 : vector<32x512xf32> to vector<32x512xbf16>
    %c0_9 = arith.constant 0 : index
    %c0_10 = arith.constant 0 : index
    %18 = vector.load %arg8[%c0_9, %c0_10] : memref<32x512xbf16, #tpu.memory_space<vmem>>, vector<32x512xbf16>
    tpu.vector_store %arg8[%c0_9, %c0_10], %17 {strides = array<i32>} : memref<32x512xbf16, #tpu.memory_space<vmem>>, vector<32x512xbf16>,
    return
  }
  func.func @transform_0(%arg0: i32, %arg1: i32, %arg2: i32) -> (i32, i32) {
    %c0_i32 = arith.constant 0 : i32
    return %arg0, %arg2 : i32, i32
  }
  func.func @transform_1(%arg0: i32, %arg1: i32, %arg2: i32) -> (i32, i32) {
    %c0_i32 = arith.constant 0 : i32
    return %arg2, %arg1 : i32, i32
  }
  func.func @transform_2(%arg0: i32, %arg1: i32, %arg2: i32) -> (i32, i32) {
    %c0_i32 = arith.constant 0 : i32
    %c0_i32_0 = arith.constant 0 : i32
    return %c0_i32, %arg1 : i32, i32
  }
  func.func @transform_3(%arg0: i32, %arg1: i32, %arg2: i32) -> (i32, i32) {
    %c0_i32 = arith.constant 0 : i32
    %c0_i32_0 = arith.constant 0 : i32
    %c0_i32_1 = arith.constant 0 : i32
    return %c0_i32, %c0_i32_0 : i32, i32
  }
  func.func @transform_4(%arg0: i32, %arg1: i32, %arg2: i32) -> (i32, i32) {
    %c0_i32 = arith.constant 0 : i32
    %c0_i32_0 = arith.constant 0 : i32
    %c0_i32_1 = arith.constant 0 : i32
    return %c0_i32, %c0_i32_0 : i32, i32
  }
  func.func @transform_5(%arg0: i32, %arg1: i32, %arg2: i32) -> (i32, i32) {
    %c0_i32 = arith.constant 0 : i32
    return %arg0, %arg1 : i32, i32
  }
}

module attributes {stable_mosaic.version = 11 : i64} {
  func.func @_fused_matmul_kernel(%arg0: i32, %arg1: i32, %arg2: i32, %arg3: memref<32x512xbf16, #tpu.memory_space<vmem>>, %arg4: memref<512x128xbf16, #tpu.memory_space<vmem>>, %arg5: memref<1x128xf32, #tpu.memory_space<vmem>>, %arg6: memref<32x128xf32, #tpu.memory_space<vmem>>, %arg7: memref<32x128xf32, #tpu.memory_space<vmem>>) attributes {dimension_semantics = [#tpu.dimension_semantics<parallel>, #tpu.dimension_semantics<parallel>, #tpu.dimension_semantics<arbitrary>], iteration_bounds = array<i64: 1, 1, 1>, scalar_prefetch = 0 : i64, scratch_operands = 0 : i64, tpu.core_type = #tpu.core_type<tc>, window_params = [{transform_indices = @transform_0, window_bounds = array<i64: 32, 512>}, {transform_indices = @transform_1, window_bounds = array<i64: 512, 128>}, {transform_indices = @transform_2, window_bounds = array<i64: 1, 128>}, {transform_indices = @transform_3, window_bounds = array<i64: 32, 128>}, {transform_indices = @transform_4, window_bounds = array<i64: 32, 128>}]} {
    %c0 = arith.constant 0 : index
    %c0_0 = arith.constant 0 : index
    %0 = vector.load %arg3[%c0, %c0_0] : memref<32x512xbf16, #tpu.memory_space<vmem>>, vector<32x512xbf16>
    %c0_1 = arith.constant 0 : index
    %c0_2 = arith.constant 0 : index
    %1 = vector.load %arg4[%c0_1, %c0_2] : memref<512x128xbf16, #tpu.memory_space<vmem>>, vector<512x128xbf16>
    %cst = arith.constant dense<0.000000e+00> : vector<32x128xf32>
    %2 = tpu.matmul %0, %1, %cst {dimension_numbers = #tpu.dot_dimension_numbers<[1], [0], [0], [1], [0, 0, 1, 1], [], []>} : vector<32x512xbf16>, vector<512x128xbf16>, vector<32x128xf32> -> vector<32x128xf32>
    %c0_3 = arith.constant 0 : index
    %c0_4 = arith.constant 0 : index
    %3 = vector.load %arg5[%c0_3, %c0_4] : memref<1x128xf32, #tpu.memory_space<vmem>>, vector<1x128xf32>
    %4 = vector.broadcast %3 : vector<1x128xf32> to vector<32x128xf32>
    %5 = arith.addf %2, %4 : vector<32x128xf32>
    %c0_5 = arith.constant 0 : index
    %c0_6 = arith.constant 0 : index
    %6 = vector.load %arg6[%c0_5, %c0_6] : memref<32x128xf32, #tpu.memory_space<vmem>>, vector<32x128xf32>
    %7 = arith.addf %5, %6 : vector<32x128xf32>
    %c0_7 = arith.constant 0 : index
    %c0_8 = arith.constant 0 : index
    %8 = vector.load %arg7[%c0_7, %c0_8] : memref<32x128xf32, #tpu.memory_space<vmem>>, vector<32x128xf32>
    tpu.vector_store %arg7[%c0_7, %c0_8], %7 {strides = array<i32>} : memref<32x128xf32, #tpu.memory_space<vmem>>, vector<32x128xf32>,
    return
  }
  func.func @transform_0(%arg0: i32, %arg1: i32, %arg2: i32) -> (i32, i32) {
    %c0_i32 = arith.constant 0 : i32
    return %arg0, %arg2 : i32, i32
  }
  func.func @transform_1(%arg0: i32, %arg1: i32, %arg2: i32) -> (i32, i32) {
    %c0_i32 = arith.constant 0 : i32
    return %arg2, %arg1 : i32, i32
  }
  func.func @transform_2(%arg0: i32, %arg1: i32, %arg2: i32) -> (i32, i32) {
    %c0_i32 = arith.constant 0 : i32
    %c0_i32_0 = arith.constant 0 : i32
    return %c0_i32, %arg1 : i32, i32
  }
  func.func @transform_3(%arg0: i32, %arg1: i32, %arg2: i32) -> (i32, i32) {
    %c0_i32 = arith.constant 0 : i32
    return %arg0, %arg1 : i32, i32
  }
  func.func @transform_4(%arg0: i32, %arg1: i32, %arg2: i32) -> (i32, i32) {
    %c0_i32 = arith.constant 0 : i32
    return %arg0, %arg1 : i32, i32
  }
}

module attributes {stable_mosaic.version = 11 : i64} {
  func.func @_heads_kernel(%arg0: i32, %arg1: i32, %arg2: memref<1x30x512xbf16, #tpu.memory_space<vmem>>, %arg3: memref<9x512x64xbf16, #tpu.memory_space<vmem>>, %arg4: memref<1x64xf32, #tpu.memory_space<vmem>>, %arg5: memref<64x4xbf16, #tpu.memory_space<vmem>>, %arg6: memref<1x4xf32, #tpu.memory_space<vmem>>, %arg7: memref<1x12x4xf32, #tpu.memory_space<vmem>>, %arg8: memref<12x64xf32, #tpu.memory_space<vmem>>) attributes {dimension_semantics = [#tpu.dimension_semantics<parallel>, #tpu.dimension_semantics<arbitrary>], iteration_bounds = array<i64: 2, 1>, scalar_prefetch = 0 : i64, scratch_operands = 1 : i64, tpu.core_type = #tpu.core_type<tc>, window_params = [{transform_indices = @transform_0, window_bounds = array<i64: 1, 30, 512>}, {transform_indices = @transform_1, window_bounds = array<i64: 9, 512, 64>}, {pipeline_mode = #tpu.pipeline_mode<synchronous>, transform_indices = @transform_2, window_bounds = array<i64: 1, 64>}, {pipeline_mode = #tpu.pipeline_mode<synchronous>, transform_indices = @transform_3, window_bounds = array<i64: 64, 4>}, {pipeline_mode = #tpu.pipeline_mode<synchronous>, transform_indices = @transform_4, window_bounds = array<i64: 1, 4>}, {transform_indices = @transform_5, window_bounds = array<i64: 1, 12, 4>}]} {
    %c0_i32 = arith.constant 0 : i32
    %0 = arith.cmpi eq, %arg1, %c0_i32 : i32
    %1 = arith.extui %0 : i1 to i32
    %c0_i32_0 = arith.constant 0 : i32
    %2 = arith.cmpi ne, %1, %c0_i32_0 : i32
    scf.if %2 {
      %cst_89 = arith.constant 0.000000e+00 : f32
      %78 = vector.broadcast %cst_89 : f32 to vector<12x64xf32>
      %c0_90 = arith.constant 0 : index
      %c0_91 = arith.constant 0 : index
      %79 = vector.load %arg8[%c0_90, %c0_91] : memref<12x64xf32, #tpu.memory_space<vmem>>, vector<12x64xf32>
      tpu.vector_store %arg8[%c0_90, %c0_91], %78 {strides = array<i32>} : memref<12x64xf32, #tpu.memory_space<vmem>>, vector<12x64xf32>,
    } else {
    }
    %c0 = arith.constant 0 : index
    %c0_1 = arith.constant 0 : index
    %c0_2 = arith.constant 0 : index
    %3 = vector.load %arg2[%c0, %c0_1, %c0_2] : memref<1x30x512xbf16, #tpu.memory_space<vmem>>, vector<1x12x512xbf16>
    %4 = vector.shape_cast %3 : vector<1x12x512xbf16> to vector<12x512xbf16>
    %c0_3 = arith.constant 0 : index
    %c0_4 = arith.constant 0 : index
    %5 = vector.load %arg8[%c0_3, %c0_4] : memref<12x64xf32, #tpu.memory_space<vmem>>, vector<12x64xf32>
    %c0_5 = arith.constant 0 : index
    %c0_6 = arith.constant 0 : index
    %c0_7 = arith.constant 0 : index
    %6 = vector.load %arg3[%c0_5, %c0_6, %c0_7] : memref<9x512x64xbf16, #tpu.memory_space<vmem>>, vector<1x512x64xbf16>
    %7 = vector.shape_cast %6 : vector<1x512x64xbf16> to vector<512x64xbf16>
    %cst = arith.constant dense<0.000000e+00> : vector<12x64xf32>
    %8 = tpu.matmul %4, %7, %cst {dimension_numbers = #tpu.dot_dimension_numbers<[1], [0], [0], [1], [0, 0, 1, 1], [], []>} : vector<12x512xbf16>, vector<512x64xbf16>, vector<12x64xf32> -> vector<12x64xf32>
    %9 = arith.addf %5, %8 : vector<12x64xf32>
    %c0_8 = arith.constant 0 : index
    %c0_9 = arith.constant 0 : index
    %10 = vector.load %arg8[%c0_8, %c0_9] : memref<12x64xf32, #tpu.memory_space<vmem>>, vector<12x64xf32>
    tpu.vector_store %arg8[%c0_8, %c0_9], %9 {strides = array<i32>} : memref<12x64xf32, #tpu.memory_space<vmem>>, vector<12x64xf32>,
    %c0_10 = arith.constant 0 : index
    %c1 = arith.constant 1 : index
    %c0_11 = arith.constant 0 : index
    %11 = vector.load %arg2[%c0_10, %c1, %c0_11] : memref<1x30x512xbf16, #tpu.memory_space<vmem>>, vector<1x12x512xbf16>
    %12 = vector.shape_cast %11 : vector<1x12x512xbf16> to vector<12x512xbf16>
    %c0_12 = arith.constant 0 : index
    %c0_13 = arith.constant 0 : index
    %13 = vector.load %arg8[%c0_12, %c0_13] : memref<12x64xf32, #tpu.memory_space<vmem>>, vector<12x64xf32>
    %c1_14 = arith.constant 1 : index
    %c0_15 = arith.constant 0 : index
    %c0_16 = arith.constant 0 : index
    %14 = vector.load %arg3[%c1_14, %c0_15, %c0_16] : memref<9x512x64xbf16, #tpu.memory_space<vmem>>, vector<1x512x64xbf16>
    %15 = vector.shape_cast %14 : vector<1x512x64xbf16> to vector<512x64xbf16>
    %cst_17 = arith.constant dense<0.000000e+00> : vector<12x64xf32>
    %16 = tpu.matmul %12, %15, %cst_17 {dimension_numbers = #tpu.dot_dimension_numbers<[1], [0], [0], [1], [0, 0, 1, 1], [], []>} : vector<12x512xbf16>, vector<512x64xbf16>, vector<12x64xf32> -> vector<12x64xf32>
    %17 = arith.addf %13, %16 : vector<12x64xf32>
    %c0_18 = arith.constant 0 : index
    %c0_19 = arith.constant 0 : index
    %18 = vector.load %arg8[%c0_18, %c0_19] : memref<12x64xf32, #tpu.memory_space<vmem>>, vector<12x64xf32>
    tpu.vector_store %arg8[%c0_18, %c0_19], %17 {strides = array<i32>} : memref<12x64xf32, #tpu.memory_space<vmem>>, vector<12x64xf32>,
    %c0_20 = arith.constant 0 : index
    %c2 = arith.constant 2 : index
    %c0_21 = arith.constant 0 : index
    %19 = vector.load %arg2[%c0_20, %c2, %c0_21] : memref<1x30x512xbf16, #tpu.memory_space<vmem>>, vector<1x12x512xbf16>
    %20 = vector.shape_cast %19 : vector<1x12x512xbf16> to vector<12x512xbf16>
    %c0_22 = arith.constant 0 : index
    %c0_23 = arith.constant 0 : index
    %21 = vector.load %arg8[%c0_22, %c0_23] : memref<12x64xf32, #tpu.memory_space<vmem>>, vector<12x64xf32>
    %c2_24 = arith.constant 2 : index
    %c0_25 = arith.constant 0 : index
    %c0_26 = arith.constant 0 : index
    %22 = vector.load %arg3[%c2_24, %c0_25, %c0_26] : memref<9x512x64xbf16, #tpu.memory_space<vmem>>, vector<1x512x64xbf16>
    %23 = vector.shape_cast %22 : vector<1x512x64xbf16> to vector<512x64xbf16>
    %cst_27 = arith.constant dense<0.000000e+00> : vector<12x64xf32>
    %24 = tpu.matmul %20, %23, %cst_27 {dimension_numbers = #tpu.dot_dimension_numbers<[1], [0], [0], [1], [0, 0, 1, 1], [], []>} : vector<12x512xbf16>, vector<512x64xbf16>, vector<12x64xf32> -> vector<12x64xf32>
    %25 = arith.addf %21, %24 : vector<12x64xf32>
    %c0_28 = arith.constant 0 : index
    %c0_29 = arith.constant 0 : index
    %26 = vector.load %arg8[%c0_28, %c0_29] : memref<12x64xf32, #tpu.memory_space<vmem>>, vector<12x64xf32>
    tpu.vector_store %arg8[%c0_28, %c0_29], %25 {strides = array<i32>} : memref<12x64xf32, #tpu.memory_space<vmem>>, vector<12x64xf32>,
    %c0_30 = arith.constant 0 : index
    %c6 = arith.constant 6 : index
    %c0_31 = arith.constant 0 : index
    %27 = vector.load %arg2[%c0_30, %c6, %c0_31] : memref<1x30x512xbf16, #tpu.memory_space<vmem>>, vector<1x12x512xbf16>
    %28 = vector.shape_cast %27 : vector<1x12x512xbf16> to vector<12x512xbf16>
    %c0_32 = arith.constant 0 : index
    %c0_33 = arith.constant 0 : index
    %29 = vector.load %arg8[%c0_32, %c0_33] : memref<12x64xf32, #tpu.memory_space<vmem>>, vector<12x64xf32>
    %c3 = arith.constant 3 : index
    %c0_34 = arith.constant 0 : index
    %c0_35 = arith.constant 0 : index
    %30 = vector.load %arg3[%c3, %c0_34, %c0_35] : memref<9x512x64xbf16, #tpu.memory_space<vmem>>, vector<1x512x64xbf16>
    %31 = vector.shape_cast %30 : vector<1x512x64xbf16> to vector<512x64xbf16>
    %cst_36 = arith.constant dense<0.000000e+00> : vector<12x64xf32>
    %32 = tpu.matmul %28, %31, %cst_36 {dimension_numbers = #tpu.dot_dimension_numbers<[1], [0], [0], [1], [0, 0, 1, 1], [], []>} : vector<12x512xbf16>, vector<512x64xbf16>, vector<12x64xf32> -> vector<12x64xf32>
    %33 = arith.addf %29, %32 : vector<12x64xf32>
    %c0_37 = arith.constant 0 : index
    %c0_38 = arith.constant 0 : index
    %34 = vector.load %arg8[%c0_37, %c0_38] : memref<12x64xf32, #tpu.memory_space<vmem>>, vector<12x64xf32>
    tpu.vector_store %arg8[%c0_37, %c0_38], %33 {strides = array<i32>} : memref<12x64xf32, #tpu.memory_space<vmem>>, vector<12x64xf32>,
    %c0_39 = arith.constant 0 : index
    %c7 = arith.constant 7 : index
    %c0_40 = arith.constant 0 : index
    %35 = vector.load %arg2[%c0_39, %c7, %c0_40] : memref<1x30x512xbf16, #tpu.memory_space<vmem>>, vector<1x12x512xbf16>
    %36 = vector.shape_cast %35 : vector<1x12x512xbf16> to vector<12x512xbf16>
    %c0_41 = arith.constant 0 : index
    %c0_42 = arith.constant 0 : index
    %37 = vector.load %arg8[%c0_41, %c0_42] : memref<12x64xf32, #tpu.memory_space<vmem>>, vector<12x64xf32>
    %c4 = arith.constant 4 : index
    %c0_43 = arith.constant 0 : index
    %c0_44 = arith.constant 0 : index
    %38 = vector.load %arg3[%c4, %c0_43, %c0_44] : memref<9x512x64xbf16, #tpu.memory_space<vmem>>, vector<1x512x64xbf16>
    %39 = vector.shape_cast %38 : vector<1x512x64xbf16> to vector<512x64xbf16>
    %cst_45 = arith.constant dense<0.000000e+00> : vector<12x64xf32>
    %40 = tpu.matmul %36, %39, %cst_45 {dimension_numbers = #tpu.dot_dimension_numbers<[1], [0], [0], [1], [0, 0, 1, 1], [], []>} : vector<12x512xbf16>, vector<512x64xbf16>, vector<12x64xf32> -> vector<12x64xf32>
    %41 = arith.addf %37, %40 : vector<12x64xf32>
    %c0_46 = arith.constant 0 : index
    %c0_47 = arith.constant 0 : index
    %42 = vector.load %arg8[%c0_46, %c0_47] : memref<12x64xf32, #tpu.memory_space<vmem>>, vector<12x64xf32>
    tpu.vector_store %arg8[%c0_46, %c0_47], %41 {strides = array<i32>} : memref<12x64xf32, #tpu.memory_space<vmem>>, vector<12x64xf32>,
    %c0_48 = arith.constant 0 : index
    %c8 = arith.constant 8 : index
    %c0_49 = arith.constant 0 : index
    %43 = vector.load %arg2[%c0_48, %c8, %c0_49] : memref<1x30x512xbf16, #tpu.memory_space<vmem>>, vector<1x12x512xbf16>
    %44 = vector.shape_cast %43 : vector<1x12x512xbf16> to vector<12x512xbf16>
    %c0_50 = arith.constant 0 : index
    %c0_51 = arith.constant 0 : index
    %45 = vector.load %arg8[%c0_50, %c0_51] : memref<12x64xf32, #tpu.memory_space<vmem>>, vector<12x64xf32>
    %c5 = arith.constant 5 : index
    %c0_52 = arith.constant 0 : index
    %c0_53 = arith.constant 0 : index
    %46 = vector.load %arg3[%c5, %c0_52, %c0_53] : memref<9x512x64xbf16, #tpu.memory_space<vmem>>, vector<1x512x64xbf16>
    %47 = vector.shape_cast %46 : vector<1x512x64xbf16> to vector<512x64xbf16>
    %cst_54 = arith.constant dense<0.000000e+00> : vector<12x64xf32>
    %48 = tpu.matmul %44, %47, %cst_54 {dimension_numbers = #tpu.dot_dimension_numbers<[1], [0], [0], [1], [0, 0, 1, 1], [], []>} : vector<12x512xbf16>, vector<512x64xbf16>, vector<12x64xf32> -> vector<12x64xf32>
    %49 = arith.addf %45, %48 : vector<12x64xf32>
    %c0_55 = arith.constant 0 : index
    %c0_56 = arith.constant 0 : index
    %50 = vector.load %arg8[%c0_55, %c0_56] : memref<12x64xf32, #tpu.memory_space<vmem>>, vector<12x64xf32>
    tpu.vector_store %arg8[%c0_55, %c0_56], %49 {strides = array<i32>} : memref<12x64xf32, #tpu.memory_space<vmem>>, vector<12x64xf32>,
    %c0_57 = arith.constant 0 : index
    %c12 = arith.constant 12 : index
    %c0_58 = arith.constant 0 : index
    %51 = vector.load %arg2[%c0_57, %c12, %c0_58] : memref<1x30x512xbf16, #tpu.memory_space<vmem>>, vector<1x12x512xbf16>
    %52 = vector.shape_cast %51 : vector<1x12x512xbf16> to vector<12x512xbf16>
    %c0_59 = arith.constant 0 : index
    %c0_60 = arith.constant 0 : index
    %53 = vector.load %arg8[%c0_59, %c0_60] : memref<12x64xf32, #tpu.memory_space<vmem>>, vector<12x64xf32>
    %c6_61 = arith.constant 6 : index
    %c0_62 = arith.constant 0 : index
    %c0_63 = arith.constant 0 : index
    %54 = vector.load %arg3[%c6_61, %c0_62, %c0_63] : memref<9x512x64xbf16, #tpu.memory_space<vmem>>, vector<1x512x64xbf16>
    %55 = vector.shape_cast %54 : vector<1x512x64xbf16> to vector<512x64xbf16>
    %cst_64 = arith.constant dense<0.000000e+00> : vector<12x64xf32>
    %56 = tpu.matmul %52, %55, %cst_64 {dimension_numbers = #tpu.dot_dimension_numbers<[1], [0], [0], [1], [0, 0, 1, 1], [], []>} : vector<12x512xbf16>, vector<512x64xbf16>, vector<12x64xf32> -> vector<12x64xf32>
    %57 = arith.addf %53, %56 : vector<12x64xf32>
    %c0_65 = arith.constant 0 : index
    %c0_66 = arith.constant 0 : index
    %58 = vector.load %arg8[%c0_65, %c0_66] : memref<12x64xf32, #tpu.memory_space<vmem>>, vector<12x64xf32>
    tpu.vector_store %arg8[%c0_65, %c0_66], %57 {strides = array<i32>} : memref<12x64xf32, #tpu.memory_space<vmem>>, vector<12x64xf32>,
    %c0_67 = arith.constant 0 : index
    %c13 = arith.constant 13 : index
    %c0_68 = arith.constant 0 : index
    %59 = vector.load %arg2[%c0_67, %c13, %c0_68] : memref<1x30x512xbf16, #tpu.memory_space<vmem>>, vector<1x12x512xbf16>
    %60 = vector.shape_cast %59 : vector<1x12x512xbf16> to vector<12x512xbf16>
    %c0_69 = arith.constant 0 : index
    %c0_70 = arith.constant 0 : index
    %61 = vector.load %arg8[%c0_69, %c0_70] : memref<12x64xf32, #tpu.memory_space<vmem>>, vector<12x64xf32>
    %c7_71 = arith.constant 7 : index
    %c0_72 = arith.constant 0 : index
    %c0_73 = arith.constant 0 : index
    %62 = vector.load %arg3[%c7_71, %c0_72, %c0_73] : memref<9x512x64xbf16, #tpu.memory_space<vmem>>, vector<1x512x64xbf16>
    %63 = vector.shape_cast %62 : vector<1x512x64xbf16> to vector<512x64xbf16>
    %cst_74 = arith.constant dense<0.000000e+00> : vector<12x64xf32>
    %64 = tpu.matmul %60, %63, %cst_74 {dimension_numbers = #tpu.dot_dimension_numbers<[1], [0], [0], [1], [0, 0, 1, 1], [], []>} : vector<12x512xbf16>, vector<512x64xbf16>, vector<12x64xf32> -> vector<12x64xf32>
    %65 = arith.addf %61, %64 : vector<12x64xf32>
    %c0_75 = arith.constant 0 : index
    %c0_76 = arith.constant 0 : index
    %66 = vector.load %arg8[%c0_75, %c0_76] : memref<12x64xf32, #tpu.memory_space<vmem>>, vector<12x64xf32>
    tpu.vector_store %arg8[%c0_75, %c0_76], %65 {strides = array<i32>} : memref<12x64xf32, #tpu.memory_space<vmem>>, vector<12x64xf32>,
    %c0_77 = arith.constant 0 : index
    %c14 = arith.constant 14 : index
    %c0_78 = arith.constant 0 : index
    %67 = vector.load %arg2[%c0_77, %c14, %c0_78] : memref<1x30x512xbf16, #tpu.memory_space<vmem>>, vector<1x12x512xbf16>
    %68 = vector.shape_cast %67 : vector<1x12x512xbf16> to vector<12x512xbf16>
    %c0_79 = arith.constant 0 : index
    %c0_80 = arith.constant 0 : index
    %69 = vector.load %arg8[%c0_79, %c0_80] : memref<12x64xf32, #tpu.memory_space<vmem>>, vector<12x64xf32>
    %c8_81 = arith.constant 8 : index
    %c0_82 = arith.constant 0 : index
    %c0_83 = arith.constant 0 : index
    %70 = vector.load %arg3[%c8_81, %c0_82, %c0_83] : memref<9x512x64xbf16, #tpu.memory_space<vmem>>, vector<1x512x64xbf16>
    %71 = vector.shape_cast %70 : vector<1x512x64xbf16> to vector<512x64xbf16>
    %cst_84 = arith.constant dense<0.000000e+00> : vector<12x64xf32>
    %72 = tpu.matmul %68, %71, %cst_84 {dimension_numbers = #tpu.dot_dimension_numbers<[1], [0], [0], [1], [0, 0, 1, 1], [], []>} : vector<12x512xbf16>, vector<512x64xbf16>, vector<12x64xf32> -> vector<12x64xf32>
    %73 = arith.addf %69, %72 : vector<12x64xf32>
    %c0_85 = arith.constant 0 : index
    %c0_86 = arith.constant 0 : index
    %74 = vector.load %arg8[%c0_85, %c0_86] : memref<12x64xf32, #tpu.memory_space<vmem>>, vector<12x64xf32>
    tpu.vector_store %arg8[%c0_85, %c0_86], %73 {strides = array<i32>} : memref<12x64xf32, #tpu.memory_space<vmem>>, vector<12x64xf32>,
    %c0_i32_87 = arith.constant 0 : i32
    %75 = arith.cmpi eq, %arg1, %c0_i32_87 : i32
    %76 = arith.extui %75 : i1 to i32
    %c0_i32_88 = arith.constant 0 : i32
    %77 = arith.cmpi ne, %76, %c0_i32_88 : i32
    scf.if %77 {
      %c0_89 = arith.constant 0 : index
      %c0_90 = arith.constant 0 : index
      %78 = vector.load %arg8[%c0_89, %c0_90] : memref<12x64xf32, #tpu.memory_space<vmem>>, vector<12x64xf32>
      %c0_91 = arith.constant 0 : index
      %c0_92 = arith.constant 0 : index
      %79 = vector.load %arg4[%c0_91, %c0_92] : memref<1x64xf32, #tpu.memory_space<vmem>>, vector<1x64xf32>
      %80 = vector.broadcast %79 : vector<1x64xf32> to vector<12x64xf32>
      %81 = arith.addf %78, %80 : vector<12x64xf32>
      %cst_93 = arith.constant 0.000000e+00 : f32
      %82 = vector.broadcast %cst_93 : f32 to vector<12x64xf32>
      %83 = arith.maximumf %81, %82 : vector<12x64xf32>
      %84 = arith.truncf %83 : vector<12x64xf32> to vector<12x64xbf16>
      %c0_94 = arith.constant 0 : index
      %c0_95 = arith.constant 0 : index
      %85 = vector.load %arg5[%c0_94, %c0_95] : memref<64x4xbf16, #tpu.memory_space<vmem>>, vector<64x4xbf16>
      %cst_96 = arith.constant dense<0.000000e+00> : vector<12x4xf32>
      %86 = tpu.matmul %84, %85, %cst_96 {dimension_numbers = #tpu.dot_dimension_numbers<[1], [0], [0], [1], [0, 0, 1, 1], [], []>} : vector<12x64xbf16>, vector<64x4xbf16>, vector<12x4xf32> -> vector<12x4xf32>
      %c0_97 = arith.constant 0 : index
      %c0_98 = arith.constant 0 : index
      %87 = vector.load %arg6[%c0_97, %c0_98] : memref<1x4xf32, #tpu.memory_space<vmem>>, vector<1x4xf32>
      %88 = vector.broadcast %87 : vector<1x4xf32> to vector<12x4xf32>
      %89 = arith.addf %86, %88 : vector<12x4xf32>
      %c0_99 = arith.constant 0 : index
      %c0_100 = arith.constant 0 : index
      %c0_101 = arith.constant 0 : index
      %90 = vector.load %arg7[%c0_99, %c0_100, %c0_101] : memref<1x12x4xf32, #tpu.memory_space<vmem>>, vector<1x12x4xf32>
      %91 = vector.shape_cast %90 : vector<1x12x4xf32> to vector<12x4xf32>
      %92 = vector.shape_cast %89 : vector<12x4xf32> to vector<1x12x4xf32>
      tpu.vector_store %arg7[%c0_99, %c0_100, %c0_101], %92 {strides = array<i32>} : memref<1x12x4xf32, #tpu.memory_space<vmem>>, vector<1x12x4xf32>,
    } else {
    }
    return
  }
  func.func @transform_0(%arg0: i32, %arg1: i32) -> (i32, i32, i32) {
    %c0_i32 = arith.constant 0 : i32
    %c0_i32_0 = arith.constant 0 : i32
    return %arg0, %c0_i32, %arg1 : i32, i32, i32
  }
  func.func @transform_1(%arg0: i32, %arg1: i32) -> (i32, i32, i32) {
    %c0_i32 = arith.constant 0 : i32
    %c0_i32_0 = arith.constant 0 : i32
    %c0_i32_1 = arith.constant 0 : i32
    return %c0_i32, %arg1, %c0_i32_0 : i32, i32, i32
  }
  func.func @transform_2(%arg0: i32, %arg1: i32) -> (i32, i32) {
    %c0_i32 = arith.constant 0 : i32
    %c0_i32_0 = arith.constant 0 : i32
    %c0_i32_1 = arith.constant 0 : i32
    return %c0_i32, %c0_i32_0 : i32, i32
  }
  func.func @transform_3(%arg0: i32, %arg1: i32) -> (i32, i32) {
    %c0_i32 = arith.constant 0 : i32
    %c0_i32_0 = arith.constant 0 : i32
    %c0_i32_1 = arith.constant 0 : i32
    return %c0_i32, %c0_i32_0 : i32, i32
  }
  func.func @transform_4(%arg0: i32, %arg1: i32) -> (i32, i32) {
    %c0_i32 = arith.constant 0 : i32
    %c0_i32_0 = arith.constant 0 : i32
    %c0_i32_1 = arith.constant 0 : i32
    return %c0_i32, %c0_i32_0 : i32, i32
  }
  func.func @transform_5(%arg0: i32, %arg1: i32) -> (i32, i32, i32) {
    %c0_i32 = arith.constant 0 : i32
    %c0_i32_0 = arith.constant 0 : i32
    %c0_i32_1 = arith.constant 0 : i32
    return %arg0, %c0_i32, %c0_i32_0 : i32, i32, i32
  }
}

</mosaic_0001>

<llo_original>
// kernel: vit_encoder_forward.22
$region0: #{vit_encoder_forward.22}
  #allocation0 [shape = 'u32[]', space=smem, size = 0x4, offset = 0x4, fixed_abs, tag = 'smem constant byte address 0x4 - core index']
  #allocation1 [shape = 'u32[72,128]{1,0:T(1,128)}', space=vmem, size = 0x9000, scoped, tag = 'internal scratch']
  #allocation2 [shape = 'f32[16,128]{1,0:T(8,128)}', space=vmem, size = 0x2000, scoped, tag = 'scratch operand']
  %s0 = inlined_call_operand.vmem [shape: bf16[16,768], index: 0, kind: input, shape index: {}]
  %s1 = inlined_call_operand.hbm [shape: bf16[768,128], index: 1, kind: input, shape index: {}]
  %s2 = inlined_call_operand.hbm [shape: f32[1,128], index: 2, kind: input, shape index: {}]
  %s3 = inlined_call_operand.vmem [shape: f32[16,128], index: 3, kind: output, shape index: {}]
  %s4 = sld [smem:[#allocation0]]
  $region99: #{vit_encoder_forward.22} parent=0
    _
  %s6 = ssub.s32 1, %s4
  %s7 = scalar_select 0, %s6, %s4
  $region1: #{vit_encoder_forward.22} parent=0
    #allocation3 [shape = 'u8[16384]{0}', space=vmem, size = 0x4000, scoped, tag = 'input window, operand 0']
    #allocation4 [shape = 'u8[131072]{0}', space=vmem, size = 0x20000, scoped, tag = 'input window, operand 1']
    #allocation5 [shape = 's32[2]{0}', space=sflag, size = 0x8, scoped, tag = 'scoped memory for vit_encoder_forward.22']
    #allocation6 [shape = 'u8[512]{0}', space=vmem, size = 0x400, scoped, tag = 'input window, operand 2, single buffered']
    #allocation7 [shape = 's32[1]{0}', space=sflag, size = 0x4, scoped, tag = 'scoped memory for vit_encoder_forward.22']
    %8 = vsyncpa [#allocation5], 0
    %s9 = scalar_lea.sflag [#allocation5], 1
    %10 = vsyncpa %s9, 0
    %11 = vsyncpa [#allocation7], 0
    loop: start=0, step=1, limit=5
    $region2: #{vit_encoder_forward.22} parent=1 // loop_pre_header
      _
    $region3: #{vit_encoder_forward.22} parent=1 // loop_header
      %s13 = sphi 0, %s17
      %p14 = scmp.ge.s32.totalorder %s13, 5
      %s20 = sphi 0, %s39
      %s21 = sphi 0, %s35
      %s22 = sphi 0, %s31
      %s23 = sphi 0, %s20
      %s24 = sphi 0, %s21
      %s25 = sphi 0, %s22
      %s26 = sphi 0, %s23
      %s27 = sphi 0, %s24
      %s28 = sphi 0, %s25
      %s44 = sphi 0, %s46
      %s47 = sphi 0, %s44
      %s48 = sphi 0, %s47
      %s64 = sphi 0, %s48
      %s72 = sphi 0, %s74
      %s75 = sphi 0, %s72
      %s76 = sphi 0, %s75
      %s92 = sphi 0, %s76
      %s98 = sphi 0, %s100
      %s101 = sphi 0, %s98
      %s102 = sphi 0, %s101
      %s118 = sphi 0, %s102
      %s126 = sphi 0, %s128
      %s129 = sphi 0, %s126
      %s130 = sphi 0, %s129
      %s146 = sphi 0, %s130
    $region4: #{vit_encoder_forward.22} parent=1 // loop_header_branch
      %16 = sbr.rel (%p14) target = $region8
    $region5: #{vit_encoder_forward.22} parent=1 // loop_body
      %s18 = ssub.s32 %s13, 1
      %s19 = ssub.s32 %s13, 2
      %s29 = sadd.s32 1, %s22
      %p30 = scmp.ge.s32.totalorder %s29, 3
      %s31 = scalar_select %p30, 0, %s29
      %s32 = sadd.s32 1, %s21
      %s33 = scalar_select %p30, %s32, %s21
      %p34 = scmp.ge.s32.totalorder %s33, 1
      %s35 = scalar_select %p34, 0, %s33
      %s36 = sadd.s32 1, %s20
      %s37 = scalar_select %p34, %s36, %s20
      %p38 = scmp.ge.s32.totalorder %s37, 1
      %s39 = scalar_select %p38, 0, %s37
      %s40 = ssub.s32 %s20, %s39
      %s41 = ssub.s32 %s22, %s31
      %s42 = sor.u32 %s40, %s41
      %p43 = scmp.eq.s32.totalorder %s42, 0
      %s45 = sadd.s32 %s44, 1
      %s46 = scalar_select %p43, %s44, %s45
      %p49 = pneg %p43
      %p50 = scmp.eq.s32.totalorder %s13, 2
      %p51 = por %p49, %p50
      %p52 = scmp.ne.s32.totalorder %s44, %s47
      %p53 = scmp.eq.s32.totalorder %s13, 0
      %p54 = por %p52, %p53
      %p55 = scmp.ne.s32.totalorder %s44, %s47
      %p56 = scmp.eq.s32.totalorder %s18, 2
      %p57 = por %p55, %p56
      %p58 = scmp.ne.s32.totalorder %s47, %s48
      %p59 = scmp.eq.s32.totalorder %s18, 0
      %p60 = por %p58, %p59
      %p61 = scmp.ne.s32.totalorder %s47, %s48
      %p62 = scmp.eq.s32.totalorder %s19, 2
      %p63 = por %p61, %p62
      %p65 = scmp.ne.s32.totalorder %s48, %s64
      %p66 = scmp.eq.s32.totalorder %s19, 0
      %p67 = por %p65, %p66
      %s68 = ssub.s32 %s22, %s31
      %s69 = ssub.s32 %s21, %s35
      %s70 = sor.u32 %s68, %s69
      %p71 = scmp.eq.s32.totalorder %s70, 0
      %s73 = sadd.s32 %s72, 1
      %s74 = scalar_select %p71, %s72, %s73
      %p77 = pneg %p71
      %p78 = scmp.eq.s32.totalorder %s13, 2
      %p79 = por %p77, %p78
      %p80 = scmp.ne.s32.totalorder %s72, %s75
      %p81 = scmp.eq.s32.totalorder %s13, 0
      %p82 = por %p80, %p81
      %p83 = scmp.ne.s32.totalorder %s72, %s75
      %p84 = scmp.eq.s32.totalorder %s18, 2
      %p85 = por %p83, %p84
      %p86 = scmp.ne.s32.totalorder %s75, %s76
      %p87 = scmp.eq.s32.totalorder %s18, 0
      %p88 = por %p86, %p87
      %p89 = scmp.ne.s32.totalorder %s75, %s76
      %p90 = scmp.eq.s32.totalorder %s19, 2
      %p91 = por %p89, %p90
      %p93 = scmp.ne.s32.totalorder %s76, %s92
      %p94 = scmp.eq.s32.totalorder %s19, 0
      %p95 = por %p93, %p94
      %s96 = ssub.s32 %s21, %s35
      %p97 = scmp.eq.s32.totalorder %s96, 0
      %s99 = sadd.s32 %s98, 1
      %s100 = scalar_select %p97, %s98, %s99
      %p103 = pneg %p97
      %p104 = scmp.eq.s32.totalorder %s13, 2
      %p105 = por %p103, %p104
      %p106 = scmp.ne.s32.totalorder %s98, %s101
      %p107 = scmp.eq.s32.totalorder %s13, 0
      %p108 = por %p106, %p107
      %p109 = scmp.ne.s32.totalorder %s98, %s101
      %p110 = scmp.eq.s32.totalorder %s18, 2
      %p111 = por %p109, %p110
      %p112 = scmp.ne.s32.totalorder %s101, %s102
      %p113 = scmp.eq.s32.totalorder %s18, 0
      %p114 = por %p112, %p113
      %p115 = scmp.ne.s32.totalorder %s101, %s102
      %p116 = scmp.eq.s32.totalorder %s19, 2
      %p117 = por %p115, %p116
      %p119 = scmp.ne.s32.totalorder %s102, %s118
      %p120 = scmp.eq.s32.totalorder %s19, 0
      %p121 = por %p119, %p120
      %s122 = ssub.s32 %s20, %s39
      %s123 = ssub.s32 %s21, %s35
      %s124 = sor.u32 %s122, %s123
      %p125 = scmp.eq.s32.totalorder %s124, 0
      %s127 = sadd.s32 %s126, 1
      %s128 = scalar_select %p125, %s126, %s127
      %p131 = pneg %p125
      %p132 = scmp.eq.s32.totalorder %s13, 2
      %p133 = por %p131, %p132
      %p134 = scmp.ne.s32.totalorder %s126, %s129
      %p135 = scmp.eq.s32.totalorder %s13, 0
      %p136 = por %p134, %p135
      %p137 = scmp.ne.s32.totalorder %s126, %s129
      %p138 = scmp.eq.s32.totalorder %s18, 2
      %p139 = por %p137, %p138
      %p140 = scmp.ne.s32.totalorder %s129, %s130
      %p141 = scmp.eq.s32.totalorder %s18, 0
      %p142 = por %p140, %p141
      %p143 = scmp.ne.s32.totalorder %s129, %s130
      %p144 = scmp.eq.s32.totalorder %s19, 2
      %p145 = por %p143, %p144
      %p147 = scmp.ne.s32.totalorder %s130, %s146
      %p148 = scmp.eq.s32.totalorder %s19, 0
      %p149 = por %p147, %p148
      %p150 = scmp.le.s32.totalorder 1, %s13
      %p151 = scmp.lt.s32.totalorder %s13, 4
      %p152 = pnand %p150, %p151
      %p153 = pneg %p152
      // Predicated region
      $region9: #{vit_encoder_forward.22} parent=5 // pred_check
        _
      $region10: #{vit_encoder_forward.22} parent=5 // pred_check_branch
        %155 = sbr.rel (%p152) target = $region12
      $region11: #{vit_encoder_forward.22} parent=5 // pred_region
        %s156 = ssub.s32 %s13, 1
        // Predicated region
        $region13: #{vit_encoder_forward.22} parent=11 // pred_check
          %p157 = pneg %p114
        $region14: #{vit_encoder_forward.22} parent=11 // pred_check_branch
          %159 = sbr.rel (%p157) target = $region16
        $region15: #{vit_encoder_forward.22} parent=11 // pred_region
          %161 = vsyncadd [#allocation7], 0
          %s162 = scalar_lea.hbm %s2, %s24
          %s164 = sshll.u32 %s162, 4
          %s165 = int_to_ptr.hbm [resolvable:$true] %s164
          %s166 = sshll.u32 [#allocation6], 4
          %s167 = int_to_ptr.vmem [resolvable:$true] %s166
          %169 = dma.hbm_to_vmem [thread:$0]  %s165, 16, %s167, [#allocation7]
        $region16: #{vit_encoder_forward.22} parent=11 // pred_fallthru
          _
      $region12: #{vit_encoder_forward.22} parent=5 // pred_fallthru
        _
      %p170 = scmp.lt.s32.totalorder %s13, 3
      // Predicated region
      $region17: #{vit_encoder_forward.22} parent=5 // pred_check
        %p171 = pneg %p170
      $region18: #{vit_encoder_forward.22} parent=5 // pred_check_branch
        %173 = sbr.rel (%p171) target = $region20
      $region19: #{vit_encoder_forward.22} parent=5 // pred_region
        // Predicated region
        $region21: #{vit_encoder_forward.22} parent=19 // pred_check
          %p174 = pneg %p54
        $region22: #{vit_encoder_forward.22} parent=19 // pred_check_branch
          %176 = sbr.rel (%p174) target = $region24
        $region23: #{vit_encoder_forward.22} parent=19 // pred_region
          %s177 = sand.u32 %s44, 1
          %s178 = sand.u32 %s44, 1
          %s179 = smul.addr %s178, 16
          %s180 = scalar_lea.vmem [#allocation3], %s179
          %s181 = smul.u32 2, %s20
          %s182 = smul.u32 2, %s22
          %s183 = smul.addr %s181, 6
          %s184 = sadd.s32 %s182, %s183
          %s185 = smul.addr %s184, 4
          %s186 = scalar_lea.vmem %s0, %s185
          // Predicated region
          $region25: #{vit_encoder_forward.22} parent=23 // pred_check
            _
          $region26: #{vit_encoder_forward.22} parent=23 // pred_check_branch
            %188 = sbr.rel (0) target = $region28
          $region27: #{vit_encoder_forward.22} parent=23 // pred_region
            // Predicated region
            $region29: #{vit_encoder_forward.22} parent=27 // pred_check
              _
            $region30: #{vit_encoder_forward.22} parent=27 // pred_check_branch
              %190 = sbr.rel (0) target = $region32
            $region31: #{vit_encoder_forward.22} parent=27 // pred_region
              // Predicated region
              $region44: #{vit_encoder_forward.22} parent=31 // pred_check
                _
              $region45: #{vit_encoder_forward.22} parent=31 // pred_check_branch
                %208 = sbr.rel (0) target = $region47
              $region46: #{vit_encoder_forward.22} parent=31 // pred_region
                loop: start=0, step=1, limit=1
                $region48: #{vit_encoder_forward.22} parent=46 // loop_pre_header
                  _
                $region49: #{vit_encoder_forward.22} parent=46 // loop_header
                  %s210 = sphi 0, %s214
                  %p211 = scmp.ge.s32.totalorder %s210, 1
                  %s215 = sphi %s186, %s186
                  %s216 = sphi %s180, %s180
                $region50: #{vit_encoder_forward.22} parent=46 // loop_header_branch
                  %213 = sbr.rel (%p211) target = $region54
                $region51: #{vit_encoder_forward.22} parent=46 // loop_body
                  %v217 = vld [vmem:[%s215] sm:$0xff]
                  %218 = vst [vmem:[%s216] sm:$0xff] %v217
                  %v219 = vld [vmem:[%s215 + $0x18] sm:$0xff]
                  %220 = vst [vmem:[%s216 + $0x8] sm:$0xff] %v219
                $region52: #{vit_encoder_forward.22} parent=46 // loop_footer
                  %s214 = sadd.s32 1, %s210
                $region53: #{vit_encoder_forward.22} parent=46 // loop_footer_branch
                  %209 = sbr.rel target = $region49
                $region54: #{vit_encoder_forward.22} parent=46 // loop_exit
                  _
              $region47: #{vit_encoder_forward.22} parent=31 // pred_fallthru
                _
              // Predicated region
              $region55: #{vit_encoder_forward.22} parent=31 // pred_check
                _
              $region56: #{vit_encoder_forward.22} parent=31 // pred_check_branch
                %222 = sbr.rel target = $region58
              $region57: #{vit_encoder_forward.22} parent=31 // pred_region
                _
              $region58: #{vit_encoder_forward.22} parent=31 // pred_fallthru
                _
            $region32: #{vit_encoder_forward.22} parent=27 // pred_fallthru
              _
            // Predicated region
            $region33: #{vit_encoder_forward.22} parent=27 // pred_check
              _
            $region34: #{vit_encoder_forward.22} parent=27 // pred_check_branch
              %192 = sbr.rel target = $region36
            $region35: #{vit_encoder_forward.22} parent=27 // pred_region
              %s194 = ssub.s32 256, 1
              loop: start=0, step=1, limit=1
              $region37: #{vit_encoder_forward.22} parent=35 // loop_pre_header
                _
              $region38: #{vit_encoder_forward.22} parent=35 // loop_header
                %s196 = sphi 0, %s200
                %p197 = scmp.ge.s32.totalorder %s196, 1
                %s201 = sphi %s186, %s186
                %s202 = sphi %s180, %s180
              $region39: #{vit_encoder_forward.22} parent=35 // loop_header_branch
                %199 = sbr.rel (%p197) target = $region43
              $region40: #{vit_encoder_forward.22} parent=35 // loop_body
                %v203 = vld [vmem:[%s201] sm:%s194]
                %204 = vst [vmem:[%s202] sm:%s194] %v203
                %v205 = vld [vmem:[%s201 + $0x18] sm:%s194]
                %206 = vst [vmem:[%s202 + $0x8] sm:%s194] %v205
              $region41: #{vit_encoder_forward.22} parent=35 // loop_footer
                %s200 = sadd.s32 1, %s196
              $region42: #{vit_encoder_forward.22} parent=35 // loop_footer_branch
                %195 = sbr.rel target = $region38
              $region43: #{vit_encoder_forward.22} parent=35 // loop_exit
                _
            $region36: #{vit_encoder_forward.22} parent=27 // pred_fallthru
              _
          $region28: #{vit_encoder_forward.22} parent=23 // pred_fallthru
            _
          %223 = vnop
        $region24: #{vit_encoder_forward.22} parent=19 // pred_fallthru
          _
        // Predicated region
        $region59: #{vit_encoder_forward.22} parent=19 // pred_check
          %p224 = pneg %p82
        $region60: #{vit_encoder_forward.22} parent=19 // pred_check_branch
          %226 = sbr.rel (%p224) target = $region62
        $region61: #{vit_encoder_forward.22} parent=19 // pred_region
          %s227 = sand.u32 %s72, 1
          %s228 = scalar_lea.sflag [#allocation5], %s227
          %s229 = sand.u32 %s72, 1
          %s230 = smul.addr %s229, 128
          %s231 = scalar_lea.vmem [#allocation4], %s230
          %s232 = smul.u32 32, %s22
          %234 = vsyncadd %s228, 0
          %s235 = sadd.s32 %s21, %s232
          %s236 = smul.addr %s235, 4
          %s237 = scalar_lea.hbm %s1, %s236
          %s238 = sshll.u32 %s237, 4
          %s239 = int_to_ptr.hbm [resolvable:$true] %s238
          %s240 = sshll.u32 %s231, 4
          %s241 = int_to_ptr.vmem [resolvable:$true] %s240
          %246 = dma.hbm_to_vmem [thread:$0]  %s239, 2048, %s241, %s228, 64, 64, 4
        $region62: #{vit_encoder_forward.22} parent=19 // pred_fallthru
          _
      $region20: #{vit_encoder_forward.22} parent=5 // pred_fallthru
        _
      %p247 = scmp.le.s32.totalorder 1, %s13
      %p248 = scmp.lt.s32.totalorder %s13, 4
      %p249 = pnand %p247, %p248
      %p250 = pneg %p249
      // Predicated region
      $region63: #{vit_encoder_forward.22} parent=5 // pred_check
        _
      $region64: #{vit_encoder_forward.22} parent=5 // pred_check_branch
        %252 = sbr.rel (%p249) target = $region66
      $region65: #{vit_encoder_forward.22} parent=5 // pred_region
        %s253 = ssub.s32 %s13, 1
        %s254 = sand.u32 %s47, 1
        %s255 = sand.u32 %s47, 1
        %s256 = smul.addr %s255, 16
        %s257 = scalar_lea.vmem [#allocation3], %s256
        // Predicated region
        $region67: #{vit_encoder_forward.22} parent=65 // pred_check
          %p258 = pneg %p60
        $region68: #{vit_encoder_forward.22} parent=65 // pred_check_branch
          %260 = sbr.rel (%p258) target = $region70
        $region69: #{vit_encoder_forward.22} parent=65 // pred_region
          _
        $region70: #{vit_encoder_forward.22} parent=65 // pred_fallthru
          _
        %s261 = sand.u32 %s75, 1
        %s262 = scalar_lea.sflag [#allocation5], %s261
        %s263 = sand.u32 %s75, 1
        %s264 = smul.addr %s263, 128
        %s265 = scalar_lea.vmem [#allocation4], %s264
        // Predicated region
        $region71: #{vit_encoder_forward.22} parent=65 // pred_check
          %p266 = pneg %p88
        $region72: #{vit_encoder_forward.22} parent=65 // pred_check_branch
          %268 = sbr.rel (%p266) target = $region74
        $region73: #{vit_encoder_forward.22} parent=65 // pred_region
          %270 = dma.done %s262, 2048
        $region74: #{vit_encoder_forward.22} parent=65 // pred_fallthru
          _
        // Predicated region
        $region75: #{vit_encoder_forward.22} parent=65 // pred_check
          %p271 = pneg %p114
        $region76: #{vit_encoder_forward.22} parent=65 // pred_check_branch
          %273 = sbr.rel (%p271) target = $region78
        $region77: #{vit_encoder_forward.22} parent=65 // pred_region
          %275 = dma.done [#allocation7], 16
        $region78: #{vit_encoder_forward.22} parent=65 // pred_fallthru
          _
        %s276 = sand.u32 %s47, 1
        %s277 = sand.u32 %s47, 1
        %s278 = smul.addr %s277, 16
        %s279 = scalar_lea.vmem [#allocation3], %s278
        %p280 = pneg %p60
        %p281 = pneg %p57
        %s282 = sand.u32 %s75, 1
        %s283 = scalar_lea.sflag [#allocation5], %s282
        %s284 = sand.u32 %s75, 1
        %s285 = smul.addr %s284, 128
        %s286 = scalar_lea.vmem [#allocation4], %s285
        %p287 = pneg %p88
        %p288 = pneg %p85
        %p289 = pneg %p114
        %p290 = pneg %p111
        %p291 = pneg %p142
        %p292 = pneg %p139
        %s293 = smul.u32 2, %s23
        %p294 = scmp.lt.s32.totalorder %s293, 1
        %s295 = scalar_select %p294, %s293, 1
        %p296 = scmp.lt.s32.totalorder %s24, 0
        %s297 = scalar_select %p296, %s24, 0
        %s298 = sadd.s32 %s297, %s295
        %s299 = smul.addr %s298, 8
        %s300 = scalar_lea.vmem %s3, %s299
        %s301 = smul.u32 2, %s23
        %s302 = smul.u32 2, %s25
        %s303 = smul.u32 32, %s25
        %s304 = smul.u32 2, %s23
        %p305 = scmp.lt.s32.totalorder %s304, 1
        %s306 = scalar_select %p305, %s304, 1
        %p307 = scmp.lt.s32.totalorder %s24, 0
        %s308 = scalar_select %p307, %s24, 0
        %s309 = sadd.s32 %s308, %s306
        %s310 = smul.addr %s309, 8
        %s311 = scalar_lea.vmem %s3, %s310
        %s312 = smul.u32 2, %s23
        %v313 = vld [vmem:[%s257] sm:$0xff]
        %v314 = vld [vmem:[%s257 + $0x8] sm:$0xff]
        %v315 = vld [vmem:[%s265] sm:$0xf]
        %v316 = vld [vmem:[%s265 + $0x4] sm:$0xf]
        %v317 = vld [vmem:[%s265 + $0x8] sm:$0xf]
        %v318 = vld [vmem:[%s265 + $0xc] sm:$0xf]
        %v319 = vld [vmem:[%s265 + $0x10] sm:$0xf]
        %v320 = vld [vmem:[%s265 + $0x14] sm:$0xf]
        %v321 = vld [vmem:[%s265 + $0x18] sm:$0xf]
        %v322 = vld [vmem:[%s265 + $0x1c] sm:$0xf]
        %v323 = vld [vmem:[%s265 + $0x20] sm:$0xf]
        %v324 = vld [vmem:[%s265 + $0x24] sm:$0xf]
        %v325 = vld [vmem:[%s265 + $0x28] sm:$0xf]
        %v326 = vld [vmem:[%s265 + $0x2c] sm:$0xf]
        %v327 = vld [vmem:[%s265 + $0x30] sm:$0xf]
        %v328 = vld [vmem:[%s265 + $0x34] sm:$0xf]
        %v329 = vld [vmem:[%s265 + $0x38] sm:$0xf]
        %v330 = vld [vmem:[%s265 + $0x3c] sm:$0xf]
        %v331 = vld [vmem:[%s265 + $0x40] sm:$0xf]
        %v332 = vld [vmem:[%s265 + $0x44] sm:$0xf]
        %v333 = vld [vmem:[%s265 + $0x48] sm:$0xf]
        %v334 = vld [vmem:[%s265 + $0x4c] sm:$0xf]
        %v335 = vld [vmem:[%s265 + $0x50] sm:$0xf]
        %v336 = vld [vmem:[%s265 + $0x54] sm:$0xf]
        %v337 = vld [vmem:[%s265 + $0x58] sm:$0xf]
        %v338 = vld [vmem:[%s265 + $0x5c] sm:$0xf]
        %v339 = vld [vmem:[%s265 + $0x60] sm:$0xf]
        %v340 = vld [vmem:[%s265 + $0x64] sm:$0xf]
        %v341 = vld [vmem:[%s265 + $0x68] sm:$0xf]
        %v342 = vld [vmem:[%s265 + $0x6c] sm:$0xf]
        %v343 = vld [vmem:[%s265 + $0x70] sm:$0xf]
        %v344 = vld [vmem:[%s265 + $0x74] sm:$0xf]
        %v345 = vld [vmem:[%s265 + $0x78] sm:$0xf]
        %v346 = vld [vmem:[%s265 + $0x7c] sm:$0xf]
        %v349 = vunpack.c.l.b16 %v313
        %v350 = vunpack.c.h.b16 %v313
        %v351 = vunpack.c.l.b16 %v314
        %v352 = vunpack.c.h.b16 %v314
        %v353 = vpack.c.b16 %v351, %v349
        %v354 = vpack.c.b16 %v352, %v350
        %v389 = vunpack.c.l.b16 %v315
        %v390 = vunpack.c.l.b16 %v316
        %v391 = vunpack.c.l.b16 %v317
        %v392 = vunpack.c.l.b16 %v318
        %v393 = vunpack.c.l.b16 %v319
        %v394 = vunpack.c.l.b16 %v320
        %v395 = vunpack.c.l.b16 %v321
        %v396 = vunpack.c.l.b16 %v322
        %v397 = vunpack.c.l.b16 %v323
        %v398 = vunpack.c.l.b16 %v324
        %v399 = vunpack.c.l.b16 %v325
        %v400 = vunpack.c.l.b16 %v326
        %v401 = vunpack.c.l.b16 %v327
        %v402 = vunpack.c.l.b16 %v328
        %v403 = vunpack.c.l.b16 %v329
        %v404 = vunpack.c.l.b16 %v330
        %v405 = vunpack.c.l.b16 %v331
        %v406 = vunpack.c.l.b16 %v332
        %v407 = vunpack.c.l.b16 %v333
        %v408 = vunpack.c.l.b16 %v334
        %v409 = vunpack.c.l.b16 %v335
        %v410 = vunpack.c.l.b16 %v336
        %v411 = vunpack.c.l.b16 %v337
        %v412 = vunpack.c.l.b16 %v338
        %v413 = vunpack.c.l.b16 %v339
        %v414 = vunpack.c.l.b16 %v340
        %v415 = vunpack.c.l.b16 %v341
        %v416 = vunpack.c.l.b16 %v342
        %v417 = vunpack.c.l.b16 %v343
        %v418 = vunpack.c.l.b16 %v344
        %v419 = vunpack.c.l.b16 %v345
        %v420 = vunpack.c.l.b16 %v346
        %v421 = vpack.c.b16 %v390, %v389
        %v422 = vpack.c.b16 %v392, %v391
        %v423 = vpack.c.b16 %v394, %v393
        %v424 = vpack.c.b16 %v396, %v395
        %v425 = vpack.c.b16 %v398, %v397
        %v426 = vpack.c.b16 %v400, %v399
        %v427 = vpack.c.b16 %v402, %v401
        %v428 = vpack.c.b16 %v404, %v403
        %v429 = vpack.c.b16 %v406, %v405
        %v430 = vpack.c.b16 %v408, %v407
        %v431 = vpack.c.b16 %v410, %v409
        %v432 = vpack.c.b16 %v412, %v411
        %v433 = vpack.c.b16 %v414, %v413
        %v434 = vpack.c.b16 %v416, %v415
        %v435 = vpack.c.b16 %v418, %v417
        %v436 = vpack.c.b16 %v420, %v419
        %453 = vmatpush.bf16.msra.mxu0 %v428
        %454 = vmatpush.bf16.msra.mxu0 %v427
        %455 = vmatpush.bf16.msra.mxu0 %v426
        %456 = vmatpush.bf16.msra.mxu0 %v425
        %457 = vmatpush.bf16.msra.mxu0 %v424
        %458 = vmatpush.bf16.msra.mxu0 %v423
        %459 = vmatpush.bf16.msra.mxu0 %v422
        %460 = vmatpush.bf16.msra.mxu0 %v421
        %461 = vmatmul.bf16.gmra.mxu0 %v353
        %v462 = vpop.f32.mrf.mxu0
        %v463 = vadd.f32 0.0, %v462
        %v464 = vpop.f32.mrf.mxu0
        %v465 = vadd.f32 0.0, %v464
        %466 = vdwg.mxu0
        %467 = vmatpush.bf16.msra.mxu0 %v436
        %468 = vmatpush.bf16.msra.mxu0 %v435
        %469 = vmatpush.bf16.msra.mxu0 %v434
        %470 = vmatpush.bf16.msra.mxu0 %v433
        %471 = vmatpush.bf16.msra.mxu0 %v432
        %472 = vmatpush.bf16.msra.mxu0 %v431
        %473 = vmatpush.bf16.msra.mxu0 %v430
        %474 = vmatpush.bf16.msra.mxu0 %v429
        %475 = vmatmul.bf16.gmra.mxu0 %v354
        %v476 = vpop.f32.mrf.mxu0
        %v477 = vadd.f32 %v463, %v476
        %v478 = vpop.f32.mrf.mxu0
        %v479 = vadd.f32 %v465, %v478
        %480 = vdwg.mxu0
        %p481 = scmp.eq.s32.totalorder %s25, 0
        // Predicated region
        $region79: #{vit_encoder_forward.22} parent=65 // pred_check
          %p482 = pneg %p481
        $region80: #{vit_encoder_forward.22} parent=65 // pred_check_branch
          %484 = sbr.rel (%p482) target = $region82
        $region81: #{vit_encoder_forward.22} parent=65 // pred_region
          %485 = vst [vmem:[#allocation2] sm:$0xff] 0.0
          %486 = vst [vmem:[#allocation2 + $0x8] sm:$0xff] 0.0
        $region82: #{vit_encoder_forward.22} parent=65 // pred_fallthru
          _
        %v487 = vld [vmem:[#allocation2] sm:$0xff]
        %v488 = vld [vmem:[#allocation2 + $0x8] sm:$0xff]
        %v489 = vadd.f32 %v487, %v477
        %v490 = vadd.f32 %v488, %v479
        %491 = vst [vmem:[#allocation2] sm:$0xff] %v489
        %492 = vst [vmem:[#allocation2 + $0x8] sm:$0xff] %v490
        %p493 = scmp.eq.s32.totalorder %s25, 2
        // Predicated region
        $region83: #{vit_encoder_forward.22} parent=65 // pred_check
          %p494 = pneg %p493
        $region84: #{vit_encoder_forward.22} parent=65 // pred_check_branch
          %496 = sbr.rel (%p494) target = $region86
        $region85: #{vit_encoder_forward.22} parent=65 // pred_region
          %v497 = vld [vmem:[#allocation2] sm:$0xff]
          %v498 = vld [vmem:[#allocation2 + $0x8] sm:$0xff]
          %v499 = vld [vmem:[#allocation6] sm:$0x1]
          %v501 = vperm.slane %v499, 0
          %v503 = vadd.f32 %v497, %v501
          %v504 = vadd.f32 %v498, %v501
          %505 = vst [vmem:[%s311] sm:$0xff] %v503
          %506 = vst [vmem:[%s311 + $0x8] sm:$0xff] %v504
        $region86: #{vit_encoder_forward.22} parent=65 // pred_fallthru
          _
        %s507 = smul.u32 2, %s23
        %p508 = scmp.lt.s32.totalorder %s507, 1
        %s509 = scalar_select %p508, %s507, 1
        %p510 = scmp.lt.s32.totalorder %s24, 0
        %s511 = scalar_select %p510, %s24, 0
        %s512 = sadd.s32 %s511, %s509
        %s513 = smul.addr %s512, 8
        %s514 = scalar_lea.vmem %s3, %s513
        // Predicated region
        $region87: #{vit_encoder_forward.22} parent=65 // pred_check
          %p515 = pneg %p139
        $region88: #{vit_encoder_forward.22} parent=65 // pred_check_branch
          %517 = sbr.rel (%p515) target = $region90
        $region89: #{vit_encoder_forward.22} parent=65 // pred_region
          %s518 = smul.u32 2, %s23
        $region90: #{vit_encoder_forward.22} parent=65 // pred_fallthru
          _
        // Predicated region
        $region91: #{vit_encoder_forward.22} parent=65 // pred_check
          %p519 = pneg %p139
        $region92: #{vit_encoder_forward.22} parent=65 // pred_check_branch
          %521 = sbr.rel (%p519) target = $region94
        $region93: #{vit_encoder_forward.22} parent=65 // pred_region
          %s522 = smul.u32 2, %s23
          %p523 = scmp.lt.s32.totalorder %s522, 1
          %s524 = scalar_select %p523, %s522, 1
          %p525 = scmp.lt.s32.totalorder %s24, 0
          %s526 = scalar_select %p525, %s24, 0
          %s527 = sadd.s32 %s526, %s524
          %s528 = smul.addr %s527, 8
          %s529 = scalar_lea.vmem %s3, %s528
        $region94: #{vit_encoder_forward.22} parent=65 // pred_fallthru
          _
      $region66: #{vit_encoder_forward.22} parent=5 // pred_fallthru
        _
      %p530 = scmp.le.s32.totalorder 2, %s13
      // Predicated region
      $region95: #{vit_encoder_forward.22} parent=5 // pred_check
        %p531 = pneg %p530
      $region96: #{vit_encoder_forward.22} parent=5 // pred_check_branch
        %533 = sbr.rel (%p531) target = $region98
      $region97: #{vit_encoder_forward.22} parent=5 // pred_region
        %s534 = ssub.s32 %s13, 2
      $region98: #{vit_encoder_forward.22} parent=5 // pred_fallthru
        _
    $region6: #{vit_encoder_forward.22} parent=1 // loop_footer
      %s17 = sadd.s32 1, %s13
    $region7: #{vit_encoder_forward.22} parent=1 // loop_footer_branch
      %12 = sbr.rel target = $region3
    $region8: #{vit_encoder_forward.22} parent=1 // loop_exit
      _
    %535 = vsyncpa [#allocation5], 1
    %s536 = scalar_lea.sflag [#allocation5], 1
    %537 = vsyncpa %s536, 1
    %538 = vsyncpa [#allocation7], 1

// kernel: vit_encoder_forward.23
$region0: #{vit_encoder_forward.23}
  #allocation0 [shape = 'u32[]', space=smem, size = 0x4, offset = 0x4, fixed_abs, tag = 'smem constant byte address 0x4 - core index']
  #allocation1 [shape = 'u32[72,128]{1,0:T(1,128)}', space=vmem, size = 0x9000, scoped, tag = 'internal scratch']
  #allocation2 [shape = 'bf16[32,128]{1,0:T(8,128)(2,1)}', space=vmem, size = 0x2000, scoped, tag = 'scratch operand']
  %s0 = inlined_call_operand.vmem [shape: f32[32,128], index: 0, kind: input, shape index: {}]
  %s1 = inlined_call_operand.hbm [shape: bf16[128,384], index: 1, kind: input, shape index: {}]
  %s2 = inlined_call_operand.vmem [shape: f32[1,384], index: 2, kind: input, shape index: {}]
  %s3 = inlined_call_operand.hbm [shape: f32[1,128], index: 3, kind: input, shape index: {}]
  %s4 = inlined_call_operand.hbm [shape: f32[1,128], index: 4, kind: input, shape index: {}]
  %s5 = inlined_call_operand.vmem [shape: bf16[32,384], index: 5, kind: output, shape index: {}]
  %s6 = sld [smem:[#allocation0]]
  $region106: #{vit_encoder_forward.23} parent=0
    _
  %s8 = ssub.s32 1, %s6
  %s9 = scalar_select 0, %s8, %s6
  $region1: #{vit_encoder_forward.23} parent=0
    #allocation3 [shape = 'u8[65536]{0}', space=vmem, size = 0x10000, scoped, tag = 'input window, operand 1']
    #allocation4 [shape = 's32[2]{0}', space=sflag, size = 0x8, scoped, tag = 'scoped memory for vit_encoder_forward.23']
    #allocation5 [shape = 'u8[512]{0}', space=vmem, size = 0x400, scoped, tag = 'input window, operand 3, single buffered']
    #allocation6 [shape = 's32[1]{0}', space=sflag, size = 0x4, scoped, tag = 'scoped memory for vit_encoder_forward.23']
    #allocation7 [shape = 'u8[512]{0}', space=vmem, size = 0x400, scoped, tag = 'input window, operand 4, single buffered']
    #allocation8 [shape = 'u8[16384]{0}', space=vmem, size = 0x4000, scoped, tag = 'output window, operand 0']
    %10 = vsyncpa [#allocation4], 0
    %s11 = scalar_lea.sflag [#allocation4], 1
    %12 = vsyncpa %s11, 0
    %13 = vsyncpa [#allocation6], 0
    loop: start=0, step=1, limit=5
    $region2: #{vit_encoder_forward.23} parent=1 // loop_pre_header
      _
    $region3: #{vit_encoder_forward.23} parent=1 // loop_header
      %s15 = sphi 0, %s19
      %p16 = scmp.ge.s32.totalorder %s15, 5
      %s22 = sphi 0, %s41
      %s23 = sphi 0, %s37
      %s24 = sphi 0, %s33
      %s25 = sphi 0, %s22
      %s26 = sphi 0, %s23
      %s27 = sphi 0, %s24
      %s28 = sphi 0, %s25
      %s29 = sphi 0, %s26
      %s30 = sphi 0, %s27
      %s46 = sphi 0, %s48
      %s49 = sphi 0, %s46
      %s50 = sphi 0, %s49
      %s66 = sphi 0, %s50
      %s74 = sphi 0, %s76
      %s77 = sphi 0, %s74
      %s78 = sphi 0, %s77
      %s94 = sphi 0, %s78
      %s100 = sphi 0, %s102
      %s103 = sphi 0, %s100
      %s104 = sphi 0, %s103
      %s120 = sphi 0, %s104
      %s124 = sphi 0, %s124
      %s126 = sphi 0, %s124
      %s127 = sphi 0, %s126
      %s141 = sphi 0, %s127
      %s145 = sphi 0, %s145
      %s147 = sphi 0, %s145
      %s148 = sphi 0, %s147
      %s162 = sphi 0, %s148
      %s170 = sphi 0, %s172
      %s173 = sphi 0, %s170
      %s174 = sphi 0, %s173
      %s190 = sphi 0, %s174
    $region4: #{vit_encoder_forward.23} parent=1 // loop_header_branch
      %18 = sbr.rel (%p16) target = $region8
    $region5: #{vit_encoder_forward.23} parent=1 // loop_body
      %s20 = ssub.s32 %s15, 1
      %s21 = ssub.s32 %s15, 2
      %s31 = sadd.s32 1, %s24
      %p32 = scmp.ge.s32.totalorder %s31, 1
      %s33 = scalar_select %p32, 0, %s31
      %s34 = sadd.s32 1, %s23
      %s35 = scalar_select %p32, %s34, %s23
      %p36 = scmp.ge.s32.totalorder %s35, 3
      %s37 = scalar_select %p36, 0, %s35
      %s38 = sadd.s32 1, %s22
      %s39 = scalar_select %p36, %s38, %s22
      %p40 = scmp.ge.s32.totalorder %s39, 1
      %s41 = scalar_select %p40, 0, %s39
      %s42 = ssub.s32 %s22, %s41
      %s43 = ssub.s32 %s24, %s33
      %s44 = sor.u32 %s42, %s43
      %p45 = scmp.eq.s32.totalorder %s44, 0
      %s47 = sadd.s32 %s46, 1
      %s48 = scalar_select %p45, %s46, %s47
      %p51 = pneg %p45
      %p52 = scmp.eq.s32.totalorder %s15, 2
      %p53 = por %p51, %p52
      %p54 = scmp.ne.s32.totalorder %s46, %s49
      %p55 = scmp.eq.s32.totalorder %s15, 0
      %p56 = por %p54, %p55
      %p57 = scmp.ne.s32.totalorder %s46, %s49
      %p58 = scmp.eq.s32.totalorder %s20, 2
      %p59 = por %p57, %p58
      %p60 = scmp.ne.s32.totalorder %s49, %s50
      %p61 = scmp.eq.s32.totalorder %s20, 0
      %p62 = por %p60, %p61
      %p63 = scmp.ne.s32.totalorder %s49, %s50
      %p64 = scmp.eq.s32.totalorder %s21, 2
      %p65 = por %p63, %p64
      %p67 = scmp.ne.s32.totalorder %s50, %s66
      %p68 = scmp.eq.s32.totalorder %s21, 0
      %p69 = por %p67, %p68
      %s70 = ssub.s32 %s24, %s33
      %s71 = ssub.s32 %s23, %s37
      %s72 = sor.u32 %s70, %s71
      %p73 = scmp.eq.s32.totalorder %s72, 0
      %s75 = sadd.s32 %s74, 1
      %s76 = scalar_select %p73, %s74, %s75
      %p79 = pneg %p73
      %p80 = scmp.eq.s32.totalorder %s15, 2
      %p81 = por %p79, %p80
      %p82 = scmp.ne.s32.totalorder %s74, %s77
      %p83 = scmp.eq.s32.totalorder %s15, 0
      %p84 = por %p82, %p83
      %p85 = scmp.ne.s32.totalorder %s74, %s77
      %p86 = scmp.eq.s32.totalorder %s20, 2
      %p87 = por %p85, %p86
      %p88 = scmp.ne.s32.totalorder %s77, %s78
      %p89 = scmp.eq.s32.totalorder %s20, 0
      %p90 = por %p88, %p89
      %p91 = scmp.ne.s32.totalorder %s77, %s78
      %p92 = scmp.eq.s32.totalorder %s21, 2
      %p93 = por %p91, %p92
      %p95 = scmp.ne.s32.totalorder %s78, %s94
      %p96 = scmp.eq.s32.totalorder %s21, 0
      %p97 = por %p95, %p96
      %s98 = ssub.s32 %s23, %s37
      %p99 = scmp.eq.s32.totalorder %s98, 0
      %s101 = sadd.s32 %s100, 1
      %s102 = scalar_select %p99, %s100, %s101
      %p105 = pneg %p99
      %p106 = scmp.eq.s32.totalorder %s15, 2
      %p107 = por %p105, %p106
      %p108 = scmp.ne.s32.totalorder %s100, %s103
      %p109 = scmp.eq.s32.totalorder %s15, 0
      %p110 = por %p108, %p109
      %p111 = scmp.ne.s32.totalorder %s100, %s103
      %p112 = scmp.eq.s32.totalorder %s20, 2
      %p113 = por %p111, %p112
      %p114 = scmp.ne.s32.totalorder %s103, %s104
      %p115 = scmp.eq.s32.totalorder %s20, 0
      %p116 = por %p114, %p115
      %p117 = scmp.ne.s32.totalorder %s103, %s104
      %p118 = scmp.eq.s32.totalorder %s21, 2
      %p119 = por %p117, %p118
      %p121 = scmp.ne.s32.totalorder %s104, %s120
      %p122 = scmp.eq.s32.totalorder %s21, 0
      %p123 = por %p121, %p122
      %s125 = sadd.s32 %s124, 1
      %p128 = scmp.eq.s32.totalorder %s15, 2
      %p129 = scmp.ne.s32.totalorder %s124, %s126
      %p130 = scmp.eq.s32.totalorder %s15, 0
      %p131 = por %p129, %p130
      %p132 = scmp.ne.s32.totalorder %s124, %s126
      %p133 = scmp.eq.s32.totalorder %s20, 2
      %p134 = por %p132, %p133
      %p135 = scmp.ne.s32.totalorder %s126, %s127
      %p136 = scmp.eq.s32.totalorder %s20, 0
      %p137 = por %p135, %p136
      %p138 = scmp.ne.s32.totalorder %s126, %s127
      %p139 = scmp.eq.s32.totalorder %s21, 2
      %p140 = por %p138, %p139
      %p142 = scmp.ne.s32.totalorder %s127, %s141
      %p143 = scmp.eq.s32.totalorder %s21, 0
      %p144 = por %p142, %p143
      %s146 = sadd.s32 %s145, 1
      %p149 = scmp.eq.s32.totalorder %s15, 2
      %p150 = scmp.ne.s32.totalorder %s145, %s147
      %p151 = scmp.eq.s32.totalorder %s15, 0
      %p152 = por %p150, %p151
      %p153 = scmp.ne.s32.totalorder %s145, %s147
      %p154 = scmp.eq.s32.totalorder %s20, 2
      %p155 = por %p153, %p154
      %p156 = scmp.ne.s32.totalorder %s147, %s148
      %p157 = scmp.eq.s32.totalorder %s20, 0
      %p158 = por %p156, %p157
      %p159 = scmp.ne.s32.totalorder %s147, %s148
      %p160 = scmp.eq.s32.totalorder %s21, 2
      %p161 = por %p159, %p160
      %p163 = scmp.ne.s32.totalorder %s148, %s162
      %p164 = scmp.eq.s32.totalorder %s21, 0
      %p165 = por %p163, %p164
      %s166 = ssub.s32 %s22, %s41
      %s167 = ssub.s32 %s23, %s37
      %s168 = sor.u32 %s166, %s167
      %p169 = scmp.eq.s32.totalorder %s168, 0
      %s171 = sadd.s32 %s170, 1
      %s172 = scalar_select %p169, %s170, %s171
      %p175 = pneg %p169
      %p176 = scmp.eq.s32.totalorder %s15, 2
      %p177 = por %p175, %p176
      %p178 = scmp.ne.s32.totalorder %s170, %s173
      %p179 = scmp.eq.s32.totalorder %s15, 0
      %p180 = por %p178, %p179
      %p181 = scmp.ne.s32.totalorder %s170, %s173
      %p182 = scmp.eq.s32.totalorder %s20, 2
      %p183 = por %p181, %p182
      %p184 = scmp.ne.s32.totalorder %s173, %s174
      %p185 = scmp.eq.s32.totalorder %s20, 0
      %p186 = por %p184, %p185
      %p187 = scmp.ne.s32.totalorder %s173, %s174
      %p188 = scmp.eq.s32.totalorder %s21, 2
      %p189 = por %p187, %p188
      %p191 = scmp.ne.s32.totalorder %s174, %s190
      %p192 = scmp.eq.s32.totalorder %s21, 0
      %p193 = por %p191, %p192
      %p194 = scmp.le.s32.totalorder 1, %s15
      %p195 = scmp.lt.s32.totalorder %s15, 4
      %p196 = pnand %p194, %p195
      %p197 = pneg %p196
      // Predicated region
      $region9: #{vit_encoder_forward.23} parent=5 // pred_check
        _
      $region10: #{vit_encoder_forward.23} parent=5 // pred_check_branch
        %199 = sbr.rel (%p196) target = $region12
      $region11: #{vit_encoder_forward.23} parent=5 // pred_region
        %s200 = ssub.s32 %s15, 1
        // Predicated region
        $region13: #{vit_encoder_forward.23} parent=11 // pred_check
          %p201 = pneg %p62
        $region14: #{vit_encoder_forward.23} parent=11 // pred_check_branch
          %203 = sbr.rel (%p201) target = $region16
        $region15: #{vit_encoder_forward.23} parent=11 // pred_region
          %s204 = smul.u32 4, %s25
          %p205 = scmp.lt.s32.totalorder %s204, 3
          %s206 = scalar_select %p205, %s204, 3
          %p207 = scmp.lt.s32.totalorder %s27, 0
          %s208 = scalar_select %p207, %s27, 0
          %s209 = sadd.s32 %s208, %s206
          %s210 = smul.addr %s209, 8
          %s211 = scalar_lea.vmem %s0, %s210
          %s212 = smul.u32 4, %s25
        $region16: #{vit_encoder_forward.23} parent=11 // pred_fallthru
          _
        // Predicated region
        $region17: #{vit_encoder_forward.23} parent=11 // pred_check
          %p213 = pneg %p137
        $region18: #{vit_encoder_forward.23} parent=11 // pred_check_branch
          %215 = sbr.rel (%p213) target = $region20
        $region19: #{vit_encoder_forward.23} parent=11 // pred_region
          %217 = vsyncadd [#allocation6], 0
          %s219 = sshll.u32 %s3, 4
          %s220 = int_to_ptr.hbm [resolvable:$true] %s219
          %s221 = sshll.u32 [#allocation5], 4
          %s222 = int_to_ptr.vmem [resolvable:$true] %s221
          %224 = dma.hbm_to_vmem [thread:$0]  %s220, 16, %s222, [#allocation6]
        $region20: #{vit_encoder_forward.23} parent=11 // pred_fallthru
          _
        // Predicated region
        $region21: #{vit_encoder_forward.23} parent=11 // pred_check
          %p225 = pneg %p158
        $region22: #{vit_encoder_forward.23} parent=11 // pred_check_branch
          %227 = sbr.rel (%p225) target = $region24
        $region23: #{vit_encoder_forward.23} parent=11 // pred_region
          %229 = vsyncadd [#allocation6], 0
          %s231 = sshll.u32 %s4, 4
          %s232 = int_to_ptr.hbm [resolvable:$true] %s231
          %s233 = sshll.u32 [#allocation7], 4
          %s234 = int_to_ptr.vmem [resolvable:$true] %s233
          %236 = dma.hbm_to_vmem [thread:$0]  %s232, 16, %s234, [#allocation6]
        $region24: #{vit_encoder_forward.23} parent=11 // pred_fallthru
          _
      $region12: #{vit_encoder_forward.23} parent=5 // pred_fallthru
        _
      %p237 = scmp.lt.s32.totalorder %s15, 3
      // Predicated region
      $region25: #{vit_encoder_forward.23} parent=5 // pred_check
        %p238 = pneg %p237
      $region26: #{vit_encoder_forward.23} parent=5 // pred_check_branch
        %240 = sbr.rel (%p238) target = $region28
      $region27: #{vit_encoder_forward.23} parent=5 // pred_region
        // Predicated region
        $region29: #{vit_encoder_forward.23} parent=27 // pred_check
          %p241 = pneg %p84
        $region30: #{vit_encoder_forward.23} parent=27 // pred_check_branch
          %243 = sbr.rel (%p241) target = $region32
        $region31: #{vit_encoder_forward.23} parent=27 // pred_region
          %s244 = sand.u32 %s74, 1
          %s245 = scalar_lea.sflag [#allocation4], %s244
          %s246 = sand.u32 %s74, 1
          %s247 = smul.addr %s246, 64
          %s248 = scalar_lea.vmem [#allocation3], %s247
          %s249 = smul.u32 16, %s24
          %251 = vsyncadd %s245, 0
          %s252 = smul.addr %s249, 3
          %s253 = sadd.s32 %s23, %s252
          %s254 = smul.addr %s253, 4
          %s255 = scalar_lea.hbm %s1, %s254
          %s256 = sshll.u32 %s255, 4
          %s257 = int_to_ptr.hbm [resolvable:$true] %s256
          %s258 = sshll.u32 %s248, 4
          %s259 = int_to_ptr.vmem [resolvable:$true] %s258
          %264 = dma.hbm_to_vmem [thread:$0]  %s257, 1024, %s259, %s245, 192, 64, 4
        $region32: #{vit_encoder_forward.23} parent=27 // pred_fallthru
          _
        // Predicated region
        $region33: #{vit_encoder_forward.23} parent=27 // pred_check
          %p265 = pneg %p110
        $region34: #{vit_encoder_forward.23} parent=27 // pred_check_branch
          %267 = sbr.rel (%p265) target = $region36
        $region35: #{vit_encoder_forward.23} parent=27 // pred_region
          %p268 = scmp.lt.s32.totalorder %s23, 2
          %s269 = scalar_select %p268, %s23, 2
          %s270 = scalar_lea.vmem %s2, %s269
        $region36: #{vit_encoder_forward.23} parent=27 // pred_fallthru
          _
      $region28: #{vit_encoder_forward.23} parent=5 // pred_fallthru
        _
      %p271 = scmp.le.s32.totalorder 1, %s15
      %p272 = scmp.lt.s32.totalorder %s15, 4
      %p273 = pnand %p271, %p272
      %p274 = pneg %p273
      // Predicated region
      $region37: #{vit_encoder_forward.23} parent=5 // pred_check
        _
      $region38: #{vit_encoder_forward.23} parent=5 // pred_check_branch
        %276 = sbr.rel (%p273) target = $region40
      $region39: #{vit_encoder_forward.23} parent=5 // pred_region
        %s277 = ssub.s32 %s15, 1
        %s278 = sand.u32 %s77, 1
        %s279 = scalar_lea.sflag [#allocation4], %s278
        %s280 = sand.u32 %s77, 1
        %s281 = smul.addr %s280, 64
        %s282 = scalar_lea.vmem [#allocation3], %s281
        // Predicated region
        $region41: #{vit_encoder_forward.23} parent=39 // pred_check
          %p283 = pneg %p90
        $region42: #{vit_encoder_forward.23} parent=39 // pred_check_branch
          %285 = sbr.rel (%p283) target = $region44
        $region43: #{vit_encoder_forward.23} parent=39 // pred_region
          %287 = dma.done %s279, 1024
        $region44: #{vit_encoder_forward.23} parent=39 // pred_fallthru
          _
        // Predicated region
        $region45: #{vit_encoder_forward.23} parent=39 // pred_check
          %p288 = pneg %p137
        $region46: #{vit_encoder_forward.23} parent=39 // pred_check_branch
          %290 = sbr.rel (%p288) target = $region48
        $region47: #{vit_encoder_forward.23} parent=39 // pred_region
          %292 = dma.done [#allocation6], 16
        $region48: #{vit_encoder_forward.23} parent=39 // pred_fallthru
          _
        // Predicated region
        $region49: #{vit_encoder_forward.23} parent=39 // pred_check
          %p293 = pneg %p158
        $region50: #{vit_encoder_forward.23} parent=39 // pred_check_branch
          %295 = sbr.rel (%p293) target = $region52
        $region51: #{vit_encoder_forward.23} parent=39 // pred_region
          %297 = dma.done [#allocation6], 16
        $region52: #{vit_encoder_forward.23} parent=39 // pred_fallthru
          _
        %s298 = smul.u32 4, %s25
        %p299 = scmp.lt.s32.totalorder %s298, 3
        %s300 = scalar_select %p299, %s298, 3
        %p301 = scmp.lt.s32.totalorder %s27, 0
        %s302 = scalar_select %p301, %s27, 0
        %s303 = sadd.s32 %s302, %s300
        %s304 = smul.addr %s303, 8
        %s305 = scalar_lea.vmem %s0, %s304
        %p306 = pneg %p62
        %p307 = pneg %p59
        %s308 = sand.u32 %s77, 1
        %s309 = scalar_lea.sflag [#allocation4], %s308
        %s310 = sand.u32 %s77, 1
        %s311 = smul.addr %s310, 64
        %s312 = scalar_lea.vmem [#allocation3], %s311
        %p313 = pneg %p90
        %p314 = pneg %p87
        %p315 = scmp.lt.s32.totalorder %s26, 2
        %s316 = scalar_select %p315, %s26, 2
        %s317 = scalar_lea.vmem %s2, %s316
        %p318 = pneg %p116
        %p319 = pneg %p113
        %p320 = pneg %p137
        %p321 = pneg %p134
        %p322 = pneg %p158
        %p323 = pneg %p155
        %p324 = pneg %p186
        %p325 = pneg %p183
        %s326 = sand.u32 %s173, 1
        %s327 = sand.u32 %s173, 1
        %s328 = smul.addr %s327, 16
        %s329 = scalar_lea.vmem [#allocation8], %s328
        %s330 = smul.u32 4, %s25
        %p331 = scmp.lt.s32.totalorder %s330, 3
        %s332 = scalar_select %p331, %s330, 3
        %p333 = scmp.lt.s32.totalorder %s27, 0
        %s334 = scalar_select %p333, %s27, 0
        %s335 = sadd.s32 %s334, %s332
        %s336 = smul.addr %s335, 8
        %s337 = scalar_lea.vmem %s0, %s336
        %s338 = smul.u32 4, %s25
        %s339 = smul.u32 16, %s27
        %p340 = scmp.lt.s32.totalorder %s26, 2
        %s341 = scalar_select %p340, %s26, 2
        %s342 = scalar_lea.vmem %s2, %s341
        %s343 = smul.u32 4, %s25
        %p344 = scmp.eq.s32.totalorder %s26, 0
        // Predicated region
        $region53: #{vit_encoder_forward.23} parent=39 // pred_check
          %p345 = pneg %p344
        $region54: #{vit_encoder_forward.23} parent=39 // pred_check_branch
          %347 = sbr.rel (%p345) target = $region56
        $region55: #{vit_encoder_forward.23} parent=39 // pred_region
          %v348 = vld [vmem:[%s337] sm:$0xff]
          %v349 = vld [vmem:[%s337 + $0x8] sm:$0xff]
          %v350 = vld [vmem:[%s337 + $0x10] sm:$0xff]
          %v351 = vld [vmem:[%s337 + $0x18] sm:$0xff]
          %352 = vadd.xlane.f32.xlu0 %v348
          %v353 = vpop.xlane.xlu0 %352
          %354 = vadd.xlane.f32.xlu0 %v349
          %v355 = vpop.xlane.xlu0 %354
          %356 = vadd.xlane.f32.xlu0 %v350
          %v357 = vpop.xlane.xlu0 %356
          %358 = vadd.xlane.f32.xlu0 %v351
          %v359 = vpop.xlane.xlu0 %358
          %v360 = vrcp.pop 128.0
          %v361 = vmul.f32 128.0, %v360
          %v362 = vsub.f32 1.0, %v361
          %v363 = vmul.f32 %v360, %v362
          %v364 = vadd.f32 %v360, %v363
          %vm365 = vweird.f32 %v360
          %v366 = vsel %vm365, %v360, %v364
          %v367 = vmul.f32 %v353, %v366
          %v368 = vmul.f32 %v355, %v366
          %v369 = vmul.f32 %v357, %v366
          %v370 = vmul.f32 %v359, %v366
          %v371 = vsub.f32 %v348, %v367
          %v372 = vsub.f32 %v349, %v368
          %v373 = vsub.f32 %v350, %v369
          %v374 = vsub.f32 %v351, %v370
          %v375 = vmul.f32 %v371, %v371
          %v376 = vmul.f32 %v372, %v372
          %v377 = vmul.f32 %v373, %v373
          %v378 = vmul.f32 %v374, %v374
          %379 = vadd.xlane.f32.xlu0 %v375
          %v380 = vpop.xlane.xlu0 %379
          %381 = vadd.xlane.f32.xlu0 %v376
          %v382 = vpop.xlane.xlu0 %381
          %383 = vadd.xlane.f32.xlu0 %v377
          %v384 = vpop.xlane.xlu0 %383
          %385 = vadd.xlane.f32.xlu0 %v378
          %v386 = vpop.xlane.xlu0 %385
          %v387 = vmul.f32 %v380, %v366
          %v388 = vmul.f32 %v382, %v366
          %v389 = vmul.f32 %v384, %v366
          %v390 = vmul.f32 %v386, %v366
          %v391 = vadd.f32 %v387, 1e-06
          %v392 = vadd.f32 %v388, 1e-06
          %v393 = vadd.f32 %v389, 1e-06
          %v394 = vadd.f32 %v390, 1e-06
          %v395 = vrsqrt.pop %v391
          %v396 = vmul.f32 %v395, %v391
          %v397 = vmul.f32 %v396, %v395
          %v398 = vmul.f32 0.5, %v397
          %v399 = vsub.f32 1.5, %v398
          %v400 = vmul.f32 %v395, %v399
          %vm401 = vweird.f32 %v391
          %vm402 = vweird.f32 %v395
          %vm403 = vmor %vm401, %vm402
          %v404 = vsel %vm403, %v395, %v400
          %v405 = vrsqrt.pop %v392
          %v406 = vmul.f32 %v405, %v392
          %v407 = vmul.f32 %v406, %v405
          %v408 = vmul.f32 0.5, %v407
          %v409 = vsub.f32 1.5, %v408
          %v410 = vmul.f32 %v405, %v409
          %vm411 = vweird.f32 %v392
          %vm412 = vweird.f32 %v405
          %vm413 = vmor %vm411, %vm412
          %v414 = vsel %vm413, %v405, %v410
          %v415 = vrsqrt.pop %v393
          %v416 = vmul.f32 %v415, %v393
          %v417 = vmul.f32 %v416, %v415
          %v418 = vmul.f32 0.5, %v417
          %v419 = vsub.f32 1.5, %v418
          %v420 = vmul.f32 %v415, %v419
          %vm421 = vweird.f32 %v393
          %vm422 = vweird.f32 %v415
          %vm423 = vmor %vm421, %vm422
          %v424 = vsel %vm423, %v415, %v420
          %v425 = vrsqrt.pop %v394
          %v426 = vmul.f32 %v425, %v394
          %v427 = vmul.f32 %v426, %v425
          %v428 = vmul.f32 0.5, %v427
          %v429 = vsub.f32 1.5, %v428
          %v430 = vmul.f32 %v425, %v429
          %vm431 = vweird.f32 %v394
          %vm432 = vweird.f32 %v425
          %vm433 = vmor %vm431, %vm432
          %v434 = vsel %vm433, %v425, %v430
          %v435 = vmul.f32 %v371, %v404
          %v436 = vmul.f32 %v372, %v414
          %v437 = vmul.f32 %v373, %v424
          %v438 = vmul.f32 %v374, %v434
          %v439 = vld [vmem:[#allocation5] sm:$0x1]
          %v441 = vperm.slane %v439, 0
          %v443 = vmul.f32 %v435, %v441
          %v444 = vmul.f32 %v436, %v441
          %v445 = vmul.f32 %v437, %v441
          %v446 = vmul.f32 %v438, %v441
          %v447 = vld [vmem:[#allocation7] sm:$0x1]
          %v449 = vperm.slane %v447, 0
          %v451 = vadd.f32 %v443, %v449
          %v452 = vadd.f32 %v444, %v449
          %v453 = vadd.f32 %v445, %v449
          %v454 = vadd.f32 %v446, %v449
          %v455 = vpack.c.bf16 %v451, %v451
          %v456 = vpack.c.bf16 %v452, %v452
          %v457 = vpack.c.bf16 %v453, %v453
          %v458 = vpack.c.bf16 %v454, %v454
          %459 = vst [vmem:[#allocation2] sm:$0xf] %v455
          %460 = vst [vmem:[#allocation2 + $0x4] sm:$0xf] %v456
          %461 = vst [vmem:[#allocation2 + $0x8] sm:$0xf] %v457
          %462 = vst [vmem:[#allocation2 + $0xc] sm:$0xf] %v458
        $region56: #{vit_encoder_forward.23} parent=39 // pred_fallthru
          _
        %v463 = vld [vmem:[#allocation2] sm:$0xf]
        %v464 = vld [vmem:[#allocation2 + $0x4] sm:$0xf]
        %v465 = vld [vmem:[#allocation2 + $0x8] sm:$0xf]
        %v466 = vld [vmem:[#allocation2 + $0xc] sm:$0xf]
        %v467 = vld [vmem:[%s282] sm:$0xf]
        %v468 = vld [vmem:[%s282 + $0x4] sm:$0xf]
        %v469 = vld [vmem:[%s282 + $0x8] sm:$0xf]
        %v470 = vld [vmem:[%s282 + $0xc] sm:$0xf]
        %v471 = vld [vmem:[%s282 + $0x10] sm:$0xf]
        %v472 = vld [vmem:[%s282 + $0x14] sm:$0xf]
        %v473 = vld [vmem:[%s282 + $0x18] sm:$0xf]
        %v474 = vld [vmem:[%s282 + $0x1c] sm:$0xf]
        %v475 = vld [vmem:[%s282 + $0x20] sm:$0xf]
        %v476 = vld [vmem:[%s282 + $0x24] sm:$0xf]
        %v477 = vld [vmem:[%s282 + $0x28] sm:$0xf]
        %v478 = vld [vmem:[%s282 + $0x2c] sm:$0xf]
        %v479 = vld [vmem:[%s282 + $0x30] sm:$0xf]
        %v480 = vld [vmem:[%s282 + $0x34] sm:$0xf]
        %v481 = vld [vmem:[%s282 + $0x38] sm:$0xf]
        %v482 = vld [vmem:[%s282 + $0x3c] sm:$0xf]
        %v483 = vld [vmem:[%s342] sm:$0x1]
        %v485 = vperm.slane %v483, 0
        %v491 = vunpack.c.l.b16 %v463
        %v492 = vunpack.c.l.b16 %v464
        %v493 = vunpack.c.l.b16 %v465
        %v494 = vunpack.c.l.b16 %v466
        %v495 = vpack.c.b16 %v492, %v491
        %v496 = vpack.c.b16 %v494, %v493
        %v515 = vunpack.c.l.b16 %v467
        %v516 = vunpack.c.l.b16 %v468
        %v517 = vunpack.c.l.b16 %v469
        %v518 = vunpack.c.l.b16 %v470
        %v519 = vunpack.c.l.b16 %v471
        %v520 = vunpack.c.l.b16 %v472
        %v521 = vunpack.c.l.b16 %v473
        %v522 = vunpack.c.l.b16 %v474
        %v523 = vunpack.c.l.b16 %v475
        %v524 = vunpack.c.l.b16 %v476
        %v525 = vunpack.c.l.b16 %v477
        %v526 = vunpack.c.l.b16 %v478
        %v527 = vunpack.c.l.b16 %v479
        %v528 = vunpack.c.l.b16 %v480
        %v529 = vunpack.c.l.b16 %v481
        %v530 = vunpack.c.l.b16 %v482
        %v531 = vpack.c.b16 %v516, %v515
        %v532 = vpack.c.b16 %v518, %v517
        %v533 = vpack.c.b16 %v520, %v519
        %v534 = vpack.c.b16 %v522, %v521
        %v535 = vpack.c.b16 %v524, %v523
        %v536 = vpack.c.b16 %v526, %v525
        %v537 = vpack.c.b16 %v528, %v527
        %v538 = vpack.c.b16 %v530, %v529
        %547 = vmatpush.bf16.msra.mxu0 %v538
        %548 = vmatpush.bf16.msra.mxu0 %v537
        %549 = vmatpush.bf16.msra.mxu0 %v536
        %550 = vmatpush.bf16.msra.mxu0 %v535
        %551 = vmatpush.bf16.msra.mxu0 %v534
        %552 = vmatpush.bf16.msra.mxu0 %v533
        %553 = vmatpush.bf16.msra.mxu0 %v532
        %554 = vmatpush.bf16.msra.mxu0 %v531
        %555 = vmatmul.bf16.gmra.mxu0 %v495
        %v556 = vpop.f32.mrf.mxu0
        %v557 = vadd.f32 %v485, %v556
        %v558 = vpop.f32.mrf.mxu0
        %v559 = vadd.f32 %v485, %v558
        %560 = vmatmul.bf16.gmra.mxu0 %v496
        %v561 = vpop.f32.mrf.mxu0
        %v562 = vadd.f32 %v485, %v561
        %v563 = vpop.f32.mrf.mxu0
        %v564 = vadd.f32 %v485, %v563
        %565 = vdwg.mxu0
        %v566 = vpack.c.bf16 %v557, %v557
        %v567 = vpack.c.bf16 %v559, %v559
        %v568 = vpack.c.bf16 %v562, %v562
        %v569 = vpack.c.bf16 %v564, %v564
        %570 = vst [vmem:[%s329] sm:$0xf] %v566
        %571 = vst [vmem:[%s329 + $0x4] sm:$0xf] %v567
        %572 = vst [vmem:[%s329 + $0x8] sm:$0xf] %v568
        %573 = vst [vmem:[%s329 + $0xc] sm:$0xf] %v569
        %s574 = sand.u32 %s173, 1
        %s575 = sand.u32 %s173, 1
        %s576 = smul.addr %s575, 16
        %s577 = scalar_lea.vmem [#allocation8], %s576
        // Predicated region
        $region57: #{vit_encoder_forward.23} parent=39 // pred_check
          %p578 = pneg %p183
        $region58: #{vit_encoder_forward.23} parent=39 // pred_check_branch
          %580 = sbr.rel (%p578) target = $region60
        $region59: #{vit_encoder_forward.23} parent=39 // pred_region
          %s581 = smul.u32 4, %s25
          %s582 = smul.addr %s581, 3
          %s583 = sadd.s32 %s26, %s582
          %s584 = smul.addr %s583, 4
          %s585 = scalar_lea.vmem %s5, %s584
          // Predicated region
          $region61: #{vit_encoder_forward.23} parent=59 // pred_check
            _
          $region62: #{vit_encoder_forward.23} parent=59 // pred_check_branch
            %587 = sbr.rel (0) target = $region64
          $region63: #{vit_encoder_forward.23} parent=59 // pred_region
            // Predicated region
            $region65: #{vit_encoder_forward.23} parent=63 // pred_check
              _
            $region66: #{vit_encoder_forward.23} parent=63 // pred_check_branch
              %589 = sbr.rel target = $region68
            $region67: #{vit_encoder_forward.23} parent=63 // pred_region
              // Predicated region
              $region80: #{vit_encoder_forward.23} parent=67 // pred_check
                _
              $region81: #{vit_encoder_forward.23} parent=67 // pred_check_branch
                %611 = sbr.rel (0) target = $region83
              $region82: #{vit_encoder_forward.23} parent=67 // pred_region
                loop: start=0, step=1, limit=1
                $region84: #{vit_encoder_forward.23} parent=82 // loop_pre_header
                  _
                $region85: #{vit_encoder_forward.23} parent=82 // loop_header
                  %s613 = sphi 0, %s617
                  %p614 = scmp.ge.s32.totalorder %s613, 1
                  %s618 = sphi %s577, %s577
                  %s619 = sphi %s585, %s585
                $region86: #{vit_encoder_forward.23} parent=82 // loop_header_branch
                  %616 = sbr.rel (%p614) target = $region90
                $region87: #{vit_encoder_forward.23} parent=82 // loop_body
                  _
                $region88: #{vit_encoder_forward.23} parent=82 // loop_footer
                  %s617 = sadd.s32 1, %s613
                $region89: #{vit_encoder_forward.23} parent=82 // loop_footer_branch
                  %612 = sbr.rel target = $region85
                $region90: #{vit_encoder_forward.23} parent=82 // loop_exit
                  _
                %s621 = ssub.s32 16, 1
                loop: start=0, step=1, limit=1
                $region91: #{vit_encoder_forward.23} parent=82 // loop_pre_header
                  _
                $region92: #{vit_encoder_forward.23} parent=82 // loop_header
                  %s623 = sphi 0, %s627
                  %p624 = scmp.ge.s32.totalorder %s623, 1
                  %s628 = sphi %s577, %s577
                  %s629 = sphi %s585, %s585
                $region93: #{vit_encoder_forward.23} parent=82 // loop_header_branch
                  %626 = sbr.rel (%p624) target = $region97
                $region94: #{vit_encoder_forward.23} parent=82 // loop_body
                  %v630 = vld [vmem:[%s628] sm:%s621]
                  %631 = vst [vmem:[%s629] sm:%s621] %v630
                  %v632 = vld [vmem:[%s628 + $0x4] sm:%s621]
                  %633 = vst [vmem:[%s629 + $0xc] sm:%s621] %v632
                  %v634 = vld [vmem:[%s628 + $0x8] sm:%s621]
                  %635 = vst [vmem:[%s629 + $0x18] sm:%s621] %v634
                  %v636 = vld [vmem:[%s628 + $0xc] sm:%s621]
                  %637 = vst [vmem:[%s629 + $0x24] sm:%s621] %v636
                $region95: #{vit_encoder_forward.23} parent=82 // loop_footer
                  %s627 = sadd.s32 1, %s623
                $region96: #{vit_encoder_forward.23} parent=82 // loop_footer_branch
                  %622 = sbr.rel target = $region92
                $region97: #{vit_encoder_forward.23} parent=82 // loop_exit
                  _
              $region83: #{vit_encoder_forward.23} parent=67 // pred_fallthru
                _
            $region68: #{vit_encoder_forward.23} parent=63 // pred_fallthru
              _
            // Predicated region
            $region69: #{vit_encoder_forward.23} parent=63 // pred_check
              _
            $region70: #{vit_encoder_forward.23} parent=63 // pred_check_branch
              %591 = sbr.rel (0) target = $region72
            $region71: #{vit_encoder_forward.23} parent=63 // pred_region
              %s593 = ssub.s32 16, 1
              loop: start=0, step=1, limit=1
              $region73: #{vit_encoder_forward.23} parent=71 // loop_pre_header
                _
              $region74: #{vit_encoder_forward.23} parent=71 // loop_header
                %s595 = sphi 0, %s599
                %p596 = scmp.ge.s32.totalorder %s595, 1
                %s600 = sphi %s577, %s577
                %s601 = sphi %s585, %s585
              $region75: #{vit_encoder_forward.23} parent=71 // loop_header_branch
                %598 = sbr.rel (%p596) target = $region79
              $region76: #{vit_encoder_forward.23} parent=71 // loop_body
                %v602 = vld [vmem:[%s600] sm:%s593]
                %603 = vst [vmem:[%s601] sm:%s593] %v602
                %v604 = vld [vmem:[%s600 + $0x4] sm:%s593]
                %605 = vst [vmem:[%s601 + $0xc] sm:%s593] %v604
                %v606 = vld [vmem:[%s600 + $0x8] sm:%s593]
                %607 = vst [vmem:[%s601 + $0x18] sm:%s593] %v606
                %v608 = vld [vmem:[%s600 + $0xc] sm:%s593]
                %609 = vst [vmem:[%s601 + $0x24] sm:%s593] %v608
              $region77: #{vit_encoder_forward.23} parent=71 // loop_footer
                %s599 = sadd.s32 1, %s595
              $region78: #{vit_encoder_forward.23} parent=71 // loop_footer_branch
                %594 = sbr.rel target = $region74
              $region79: #{vit_encoder_forward.23} parent=71 // loop_exit
                _
            $region72: #{vit_encoder_forward.23} parent=63 // pred_fallthru
              _
          $region64: #{vit_encoder_forward.23} parent=59 // pred_fallthru
            _
          %638 = vnop
        $region60: #{vit_encoder_forward.23} parent=39 // pred_fallthru
          _
      $region40: #{vit_encoder_forward.23} parent=5 // pred_fallthru
        _
      %p639 = scmp.le.s32.totalorder 2, %s15
      // Predicated region
      $region98: #{vit_encoder_forward.23} parent=5 // pred_check
        %p640 = pneg %p639
      $region99: #{vit_encoder_forward.23} parent=5 // pred_check_branch
        %642 = sbr.rel (%p640) target = $region101
      $region100: #{vit_encoder_forward.23} parent=5 // pred_region
        %s643 = ssub.s32 %s15, 2
        // Predicated region
        $region102: #{vit_encoder_forward.23} parent=100 // pred_check
          %p644 = pneg %p189
        $region103: #{vit_encoder_forward.23} parent=100 // pred_check_branch
          %646 = sbr.rel (%p644) target = $region105
        $region104: #{vit_encoder_forward.23} parent=100 // pred_region
          %s647 = sand.u32 %s174, 1
          %s648 = sand.u32 %s174, 1
          %s649 = smul.addr %s648, 16
          %s650 = scalar_lea.vmem [#allocation8], %s649
        $region105: #{vit_encoder_forward.23} parent=100 // pred_fallthru
          _
      $region101: #{vit_encoder_forward.23} parent=5 // pred_fallthru
        _
    $region6: #{vit_encoder_forward.23} parent=1 // loop_footer
      %s19 = sadd.s32 1, %s15
    $region7: #{vit_encoder_forward.23} parent=1 // loop_footer_branch
      %14 = sbr.rel target = $region3
    $region8: #{vit_encoder_forward.23} parent=1 // loop_exit
      _
    %651 = vsyncpa [#allocation4], 1
    %s652 = scalar_lea.sflag [#allocation4], 1
    %653 = vsyncpa %s652, 1
    %654 = vsyncpa [#allocation6], 1

// kernel: vit_encoder_forward.25
$region0: #{vit_encoder_forward.25}
  #allocation0 [shape = 'u32[]', space=smem, size = 0x4, offset = 0x4, fixed_abs, tag = 'smem constant byte address 0x4 - core index']
  #allocation1 [shape = 'u32[72,128]{1,0:T(1,128)}', space=vmem, size = 0x9000, scoped, tag = 'internal scratch']
  %s0 = inlined_call_operand.vmem [shape: bf16[32,128], index: 0, kind: input, shape index: {}]
  %s1 = inlined_call_operand.hbm [shape: bf16[128,128], index: 1, kind: input, shape index: {}]
  %s2 = inlined_call_operand.hbm [shape: f32[1,128], index: 2, kind: input, shape index: {}]
  %s3 = inlined_call_operand.vmem [shape: f32[32,128], index: 3, kind: input, shape index: {}]
  %s4 = inlined_call_operand.vmem [shape: f32[32,128], index: 4, kind: output, shape index: {}]
  %s5 = sld [smem:[#allocation0]]
  $region34: #{vit_encoder_forward.25} parent=0
    _
  %s7 = ssub.s32 1, %s5
  %s8 = scalar_select 0, %s7, %s5
  $region1: #{vit_encoder_forward.25} parent=0
    #allocation2 [shape = 'u8[32768]{0}', space=vmem, size = 0x8000, scoped, tag = 'input window, operand 1, single buffered']
    #allocation3 [shape = 's32[1]{0}', space=sflag, size = 0x4, scoped, tag = 'scoped memory for vit_encoder_forward.25']
    #allocation4 [shape = 'u8[512]{0}', space=vmem, size = 0x400, scoped, tag = 'input window, operand 2, single buffered']
    #allocation5 [shape = 's32[1]{0}', space=sflag, size = 0x4, scoped, tag = 'scoped memory for vit_encoder_forward.25']
    %9 = vsyncpa [#allocation3], 0
    %10 = vsyncpa [#allocation5], 0
    // Predicated region
    $region2: #{vit_encoder_forward.25} parent=1 // pred_check
      _
    $region3: #{vit_encoder_forward.25} parent=1 // pred_check_branch
      %12 = sbr.rel (0) target = $region5
    $region4: #{vit_encoder_forward.25} parent=1 // pred_region
      _
    $region5: #{vit_encoder_forward.25} parent=1 // pred_fallthru
      _
    // Predicated region
    $region6: #{vit_encoder_forward.25} parent=1 // pred_check
      _
    $region7: #{vit_encoder_forward.25} parent=1 // pred_check_branch
      %14 = sbr.rel (0) target = $region9
    $region8: #{vit_encoder_forward.25} parent=1 // pred_region
      %16 = vsyncadd [#allocation3], 0
      %s17 = sshll.u32 %s1, 4
      %s18 = int_to_ptr.hbm [resolvable:$true] %s17
      %s19 = sshll.u32 [#allocation2], 4
      %s20 = int_to_ptr.vmem [resolvable:$true] %s19
      %25 = dma.hbm_to_vmem [thread:$0]  %s18, 1024, %s20, [#allocation3], 64, 64, 4
    $region9: #{vit_encoder_forward.25} parent=1 // pred_fallthru
      _
    // Predicated region
    $region10: #{vit_encoder_forward.25} parent=1 // pred_check
      _
    $region11: #{vit_encoder_forward.25} parent=1 // pred_check_branch
      %27 = sbr.rel (0) target = $region13
    $region12: #{vit_encoder_forward.25} parent=1 // pred_region
      %29 = vsyncadd [#allocation5], 0
      %s31 = sshll.u32 %s2, 4
      %s32 = int_to_ptr.hbm [resolvable:$true] %s31
      %s33 = sshll.u32 [#allocation4], 4
      %s34 = int_to_ptr.vmem [resolvable:$true] %s33
      %36 = dma.hbm_to_vmem [thread:$0]  %s32, 16, %s34, [#allocation5]
    $region13: #{vit_encoder_forward.25} parent=1 // pred_fallthru
      _
    // Predicated region
    $region14: #{vit_encoder_forward.25} parent=1 // pred_check
      _
    $region15: #{vit_encoder_forward.25} parent=1 // pred_check_branch
      %38 = sbr.rel (0) target = $region17
    $region16: #{vit_encoder_forward.25} parent=1 // pred_region
      _
    $region17: #{vit_encoder_forward.25} parent=1 // pred_fallthru
      _
    // Predicated region
    $region18: #{vit_encoder_forward.25} parent=1 // pred_check
      _
    $region19: #{vit_encoder_forward.25} parent=1 // pred_check_branch
      %40 = sbr.rel (0) target = $region21
    $region20: #{vit_encoder_forward.25} parent=1 // pred_region
      %42 = dma.done [#allocation3], 1024
    $region21: #{vit_encoder_forward.25} parent=1 // pred_fallthru
      _
    // Predicated region
    $region22: #{vit_encoder_forward.25} parent=1 // pred_check
      _
    $region23: #{vit_encoder_forward.25} parent=1 // pred_check_branch
      %44 = sbr.rel (0) target = $region25
    $region24: #{vit_encoder_forward.25} parent=1 // pred_region
      %46 = dma.done [#allocation5], 16
    $region25: #{vit_encoder_forward.25} parent=1 // pred_fallthru
      _
    %v47 = vld [vmem:[%s0] sm:$0xf]
    %v48 = vld [vmem:[%s0 + $0x4] sm:$0xf]
    %v49 = vld [vmem:[%s0 + $0x8] sm:$0xf]
    %v50 = vld [vmem:[%s0 + $0xc] sm:$0xf]
    %v51 = vld [vmem:[#allocation2] sm:$0xf]
    %v52 = vld [vmem:[#allocation2 + $0x4] sm:$0xf]
    %v53 = vld [vmem:[#allocation2 + $0x8] sm:$0xf]
    %v54 = vld [vmem:[#allocation2 + $0xc] sm:$0xf]
    %v55 = vld [vmem:[#allocation2 + $0x10] sm:$0xf]
    %v56 = vld [vmem:[#allocation2 + $0x14] sm:$0xf]
    %v57 = vld [vmem:[#allocation2 + $0x18] sm:$0xf]
    %v58 = vld [vmem:[#allocation2 + $0x1c] sm:$0xf]
    %v59 = vld [vmem:[#allocation2 + $0x20] sm:$0xf]
    %v60 = vld [vmem:[#allocation2 + $0x24] sm:$0xf]
    %v61 = vld [vmem:[#allocation2 + $0x28] sm:$0xf]
    %v62 = vld [vmem:[#allocation2 + $0x2c] sm:$0xf]
    %v63 = vld [vmem:[#allocation2 + $0x30] sm:$0xf]
    %v64 = vld [vmem:[#allocation2 + $0x34] sm:$0xf]
    %v65 = vld [vmem:[#allocation2 + $0x38] sm:$0xf]
    %v66 = vld [vmem:[#allocation2 + $0x3c] sm:$0xf]
    %v67 = vld [vmem:[#allocation4] sm:$0x1]
    %v69 = vperm.slane %v67, 0
    %v75 = vunpack.c.l.b16 %v47
    %v76 = vunpack.c.l.b16 %v48
    %v77 = vunpack.c.l.b16 %v49
    %v78 = vunpack.c.l.b16 %v50
    %v79 = vpack.c.b16 %v76, %v75
    %v80 = vpack.c.b16 %v78, %v77
    %v99 = vunpack.c.l.b16 %v51
    %v100 = vunpack.c.l.b16 %v52
    %v101 = vunpack.c.l.b16 %v53
    %v102 = vunpack.c.l.b16 %v54
    %v103 = vunpack.c.l.b16 %v55
    %v104 = vunpack.c.l.b16 %v56
    %v105 = vunpack.c.l.b16 %v57
    %v106 = vunpack.c.l.b16 %v58
    %v107 = vunpack.c.l.b16 %v59
    %v108 = vunpack.c.l.b16 %v60
    %v109 = vunpack.c.l.b16 %v61
    %v110 = vunpack.c.l.b16 %v62
    %v111 = vunpack.c.l.b16 %v63
    %v112 = vunpack.c.l.b16 %v64
    %v113 = vunpack.c.l.b16 %v65
    %v114 = vunpack.c.l.b16 %v66
    %v115 = vpack.c.b16 %v100, %v99
    %v116 = vpack.c.b16 %v102, %v101
    %v117 = vpack.c.b16 %v104, %v103
    %v118 = vpack.c.b16 %v106, %v105
    %v119 = vpack.c.b16 %v108, %v107
    %v120 = vpack.c.b16 %v110, %v109
    %v121 = vpack.c.b16 %v112, %v111
    %v122 = vpack.c.b16 %v114, %v113
    %131 = vmatpush.bf16.msra.mxu0 %v122
    %132 = vmatpush.bf16.msra.mxu0 %v121
    %133 = vmatpush.bf16.msra.mxu0 %v120
    %134 = vmatpush.bf16.msra.mxu0 %v119
    %135 = vmatpush.bf16.msra.mxu0 %v118
    %136 = vmatpush.bf16.msra.mxu0 %v117
    %137 = vmatpush.bf16.msra.mxu0 %v116
    %138 = vmatpush.bf16.msra.mxu0 %v115
    %139 = vmatmul.bf16.gmra.mxu0 %v79
    %v140 = vpop.f32.mrf.mxu0
    %v141 = vadd.f32 %v69, %v140
    %v142 = vpop.f32.mrf.mxu0
    %v143 = vadd.f32 %v69, %v142
    %144 = vmatmul.bf16.gmra.mxu0 %v80
    %v145 = vpop.f32.mrf.mxu0
    %v146 = vadd.f32 %v69, %v145
    %v147 = vpop.f32.mrf.mxu0
    %v148 = vadd.f32 %v69, %v147
    %149 = vdwg.mxu0
    %v150 = vld [vmem:[%s3] sm:$0xff]
    %v151 = vld [vmem:[%s3 + $0x8] sm:$0xff]
    %v152 = vld [vmem:[%s3 + $0x10] sm:$0xff]
    %v153 = vld [vmem:[%s3 + $0x18] sm:$0xff]
    %v154 = vadd.f32 %v141, %v150
    %v155 = vadd.f32 %v143, %v151
    %v156 = vadd.f32 %v146, %v152
    %v157 = vadd.f32 %v148, %v153
    %158 = vst [vmem:[%s4] sm:$0xff] %v154
    %159 = vst [vmem:[%s4 + $0x8] sm:$0xff] %v155
    %160 = vst [vmem:[%s4 + $0x10] sm:$0xff] %v156
    %161 = vst [vmem:[%s4 + $0x18] sm:$0xff] %v157
    // Predicated region
    $region26: #{vit_encoder_forward.25} parent=1 // pred_check
      _
    $region27: #{vit_encoder_forward.25} parent=1 // pred_check_branch
      %163 = sbr.rel (0) target = $region29
    $region28: #{vit_encoder_forward.25} parent=1 // pred_region
      _
    $region29: #{vit_encoder_forward.25} parent=1 // pred_fallthru
      _
    // Predicated region
    $region30: #{vit_encoder_forward.25} parent=1 // pred_check
      _
    $region31: #{vit_encoder_forward.25} parent=1 // pred_check_branch
      %165 = sbr.rel (0) target = $region33
    $region32: #{vit_encoder_forward.25} parent=1 // pred_region
      _
    $region33: #{vit_encoder_forward.25} parent=1 // pred_fallthru
      _
    %166 = vsyncpa [#allocation3], 1
    %167 = vsyncpa [#allocation5], 1

// kernel: vit_encoder_forward.24
$region0: #{vit_encoder_forward.24}
  #allocation0 [shape = 'u32[]', space=smem, size = 0x4, offset = 0x4, fixed_abs, tag = 'smem constant byte address 0x4 - core index']
  #allocation1 [shape = 'u32[72,128]{1,0:T(1,128)}', space=vmem, size = 0x9000, scoped, tag = 'internal scratch']
  #allocation2 [shape = 'f32[16,4]{1,0:T(8,128)}', space=vmem, size = 0x2000, scoped, tag = 'scratch operand']
  #allocation3 [shape = 'f32[16,4]{1,0:T(8,128)}', space=vmem, size = 0x2000, scoped, tag = 'scratch operand']
  #allocation4 [shape = 'f32[16,128]{1,0:T(8,128)}', space=vmem, size = 0x2000, scoped, tag = 'scratch operand']
  %s0 = inlined_call_operand.vmem [shape: bf16[2,16,384], index: 0, kind: input, shape index: {}, may-alias: {0,1,2}]
  %s1 = inlined_call_operand.vmem [shape: bf16[2,16,384], index: 1, kind: input, shape index: {}, may-alias: {0,1,2}]
  %s2 = inlined_call_operand.vmem [shape: bf16[2,16,384], index: 2, kind: input, shape index: {}, may-alias: {0,1,2}]
  %s3 = inlined_call_operand.vmem [shape: bf16[2,16,128], index: 3, kind: output, shape index: {}]
  %s4 = sld [smem:[#allocation0]]
  $region176: #{vit_encoder_forward.24} parent=0
    _
  %s6 = ssub.s32 1, %s4
  %s7 = scalar_select 0, %s6, %s4
  $region1: #{vit_encoder_forward.24} parent=0
    #allocation5 [shape = 'u8[8192]{0}', space=vmem, size = 0x2000, scoped, tag = 'input window, operand 0']
    #allocation6 [shape = 'u8[8192]{0}', space=vmem, size = 0x2000, scoped, tag = 'input window, operand 1']
    #allocation7 [shape = 'u8[8192]{0}', space=vmem, size = 0x2000, scoped, tag = 'input window, operand 2']
    loop: start=0, step=1, limit=4
    $region2: #{vit_encoder_forward.24} parent=1 // loop_pre_header
      _
    $region3: #{vit_encoder_forward.24} parent=1 // loop_header
      %s9 = sphi 0, %s13
      %p10 = scmp.ge.s32.totalorder %s9, 4
      %s16 = sphi 0, %s35
      %s17 = sphi 0, %s31
      %s18 = sphi 0, %s27
      %s19 = sphi 0, %s16
      %s20 = sphi 0, %s17
      %s21 = sphi 0, %s18
      %s22 = sphi 0, %s19
      %s23 = sphi 0, %s20
      %s24 = sphi 0, %s21
      %s40 = sphi 0, %s42
      %s43 = sphi 0, %s40
      %s44 = sphi 0, %s43
      %s60 = sphi 0, %s44
      %s68 = sphi 0, %s70
      %s71 = sphi 0, %s68
      %s72 = sphi 0, %s71
      %s88 = sphi 0, %s72
      %s96 = sphi 0, %s98
      %s99 = sphi 0, %s96
      %s100 = sphi 0, %s99
      %s116 = sphi 0, %s100
      %s124 = sphi 0, %s126
      %s127 = sphi 0, %s124
      %s128 = sphi 0, %s127
      %s144 = sphi 0, %s128
    $region4: #{vit_encoder_forward.24} parent=1 // loop_header_branch
      %12 = sbr.rel (%p10) target = $region8
    $region5: #{vit_encoder_forward.24} parent=1 // loop_body
      %s14 = ssub.s32 %s9, 1
      %s15 = ssub.s32 %s9, 2
      %s25 = sadd.s32 1, %s18
      %p26 = scmp.ge.s32.totalorder %s25, 1
      %s27 = scalar_select %p26, 0, %s25
      %s28 = sadd.s32 1, %s17
      %s29 = scalar_select %p26, %s28, %s17
      %p30 = scmp.ge.s32.totalorder %s29, 1
      %s31 = scalar_select %p30, 0, %s29
      %s32 = sadd.s32 1, %s16
      %s33 = scalar_select %p30, %s32, %s16
      %p34 = scmp.ge.s32.totalorder %s33, 2
      %s35 = scalar_select %p34, 0, %s33
      %s36 = ssub.s32 %s16, %s35
      %s37 = ssub.s32 %s17, %s31
      %s38 = sor.u32 %s36, %s37
      %p39 = scmp.eq.s32.totalorder %s38, 0
      %s41 = sadd.s32 %s40, 1
      %s42 = scalar_select %p39, %s40, %s41
      %p45 = pneg %p39
      %p46 = scmp.eq.s32.totalorder %s9, 1
      %p47 = por %p45, %p46
      %p48 = scmp.ne.s32.totalorder %s40, %s43
      %p49 = scmp.eq.s32.totalorder %s9, 0
      %p50 = por %p48, %p49
      %p51 = scmp.ne.s32.totalorder %s40, %s43
      %p52 = scmp.eq.s32.totalorder %s14, 1
      %p53 = por %p51, %p52
      %p54 = scmp.ne.s32.totalorder %s43, %s44
      %p55 = scmp.eq.s32.totalorder %s14, 0
      %p56 = por %p54, %p55
      %p57 = scmp.ne.s32.totalorder %s43, %s44
      %p58 = scmp.eq.s32.totalorder %s15, 1
      %p59 = por %p57, %p58
      %p61 = scmp.ne.s32.totalorder %s44, %s60
      %p62 = scmp.eq.s32.totalorder %s15, 0
      %p63 = por %p61, %p62
      %s64 = ssub.s32 %s16, %s35
      %s65 = ssub.s32 %s18, %s27
      %s66 = sor.u32 %s64, %s65
      %p67 = scmp.eq.s32.totalorder %s66, 0
      %s69 = sadd.s32 %s68, 1
      %s70 = scalar_select %p67, %s68, %s69
      %p73 = pneg %p67
      %p74 = scmp.eq.s32.totalorder %s9, 1
      %p75 = por %p73, %p74
      %p76 = scmp.ne.s32.totalorder %s68, %s71
      %p77 = scmp.eq.s32.totalorder %s9, 0
      %p78 = por %p76, %p77
      %p79 = scmp.ne.s32.totalorder %s68, %s71
      %p80 = scmp.eq.s32.totalorder %s14, 1
      %p81 = por %p79, %p80
      %p82 = scmp.ne.s32.totalorder %s71, %s72
      %p83 = scmp.eq.s32.totalorder %s14, 0
      %p84 = por %p82, %p83
      %p85 = scmp.ne.s32.totalorder %s71, %s72
      %p86 = scmp.eq.s32.totalorder %s15, 1
      %p87 = por %p85, %p86
      %p89 = scmp.ne.s32.totalorder %s72, %s88
      %p90 = scmp.eq.s32.totalorder %s15, 0
      %p91 = por %p89, %p90
      %s92 = ssub.s32 %s16, %s35
      %s93 = ssub.s32 %s18, %s27
      %s94 = sor.u32 %s92, %s93
      %p95 = scmp.eq.s32.totalorder %s94, 0
      %s97 = sadd.s32 %s96, 1
      %s98 = scalar_select %p95, %s96, %s97
      %p101 = pneg %p95
      %p102 = scmp.eq.s32.totalorder %s9, 1
      %p103 = por %p101, %p102
      %p104 = scmp.ne.s32.totalorder %s96, %s99
      %p105 = scmp.eq.s32.totalorder %s9, 0
      %p106 = por %p104, %p105
      %p107 = scmp.ne.s32.totalorder %s96, %s99
      %p108 = scmp.eq.s32.totalorder %s14, 1
      %p109 = por %p107, %p108
      %p110 = scmp.ne.s32.totalorder %s99, %s100
      %p111 = scmp.eq.s32.totalorder %s14, 0
      %p112 = por %p110, %p111
      %p113 = scmp.ne.s32.totalorder %s99, %s100
      %p114 = scmp.eq.s32.totalorder %s15, 1
      %p115 = por %p113, %p114
      %p117 = scmp.ne.s32.totalorder %s100, %s116
      %p118 = scmp.eq.s32.totalorder %s15, 0
      %p119 = por %p117, %p118
      %s120 = ssub.s32 %s16, %s35
      %s121 = ssub.s32 %s17, %s31
      %s122 = sor.u32 %s120, %s121
      %p123 = scmp.eq.s32.totalorder %s122, 0
      %s125 = sadd.s32 %s124, 1
      %s126 = scalar_select %p123, %s124, %s125
      %p129 = pneg %p123
      %p130 = scmp.eq.s32.totalorder %s9, 1
      %p131 = por %p129, %p130
      %p132 = scmp.ne.s32.totalorder %s124, %s127
      %p133 = scmp.eq.s32.totalorder %s9, 0
      %p134 = por %p132, %p133
      %p135 = scmp.ne.s32.totalorder %s124, %s127
      %p136 = scmp.eq.s32.totalorder %s14, 1
      %p137 = por %p135, %p136
      %p138 = scmp.ne.s32.totalorder %s127, %s128
      %p139 = scmp.eq.s32.totalorder %s14, 0
      %p140 = por %p138, %p139
      %p141 = scmp.ne.s32.totalorder %s127, %s128
      %p142 = scmp.eq.s32.totalorder %s15, 1
      %p143 = por %p141, %p142
      %p145 = scmp.ne.s32.totalorder %s128, %s144
      %p146 = scmp.eq.s32.totalorder %s15, 0
      %p147 = por %p145, %p146
      %p148 = scmp.le.s32.totalorder 1, %s9
      %p149 = scmp.lt.s32.totalorder %s9, 3
      %p150 = pnand %p148, %p149
      %p151 = pneg %p150
      // Predicated region
      $region9: #{vit_encoder_forward.24} parent=5 // pred_check
        _
      $region10: #{vit_encoder_forward.24} parent=5 // pred_check_branch
        %153 = sbr.rel (%p150) target = $region12
      $region11: #{vit_encoder_forward.24} parent=5 // pred_region
        %s154 = ssub.s32 %s9, 1
      $region12: #{vit_encoder_forward.24} parent=5 // pred_fallthru
        _
      %p155 = scmp.lt.s32.totalorder %s9, 2
      // Predicated region
      $region13: #{vit_encoder_forward.24} parent=5 // pred_check
        %p156 = pneg %p155
      $region14: #{vit_encoder_forward.24} parent=5 // pred_check_branch
        %158 = sbr.rel (%p156) target = $region16
      $region15: #{vit_encoder_forward.24} parent=5 // pred_region
        // Predicated region
        $region17: #{vit_encoder_forward.24} parent=15 // pred_check
          %p159 = pneg %p50
        $region18: #{vit_encoder_forward.24} parent=15 // pred_check_branch
          %161 = sbr.rel (%p159) target = $region20
        $region19: #{vit_encoder_forward.24} parent=15 // pred_region
          %s162 = sand.u32 %s40, 1
          %s163 = sand.u32 %s40, 1
          %s164 = smul.addr %s163, 8
          %s165 = scalar_lea.vmem [#allocation5], %s164
          %s166 = smul.u32 2, %s17
          %s167 = smul.addr %s166, 3
          %s168 = smul.addr %s16, 6
          %s169 = sadd.s32 %s167, %s168
          %s170 = smul.addr %s169, 4
          %s171 = scalar_lea.vmem %s0, %s170
          // Predicated region
          $region21: #{vit_encoder_forward.24} parent=19 // pred_check
            _
          $region22: #{vit_encoder_forward.24} parent=19 // pred_check_branch
            %173 = sbr.rel (0) target = $region24
          $region23: #{vit_encoder_forward.24} parent=19 // pred_region
            // Predicated region
            $region25: #{vit_encoder_forward.24} parent=23 // pred_check
              _
            $region26: #{vit_encoder_forward.24} parent=23 // pred_check_branch
              %175 = sbr.rel target = $region28
            $region27: #{vit_encoder_forward.24} parent=23 // pred_region
              // Predicated region
              $region40: #{vit_encoder_forward.24} parent=27 // pred_check
                _
              $region41: #{vit_encoder_forward.24} parent=27 // pred_check_branch
                %193 = sbr.rel (0) target = $region43
              $region42: #{vit_encoder_forward.24} parent=27 // pred_region
                loop: start=0, step=1, limit=1
                $region44: #{vit_encoder_forward.24} parent=42 // loop_pre_header
                  _
                $region45: #{vit_encoder_forward.24} parent=42 // loop_header
                  %s195 = sphi 0, %s199
                  %p196 = scmp.ge.s32.totalorder %s195, 1
                  %s200 = sphi %s171, %s171
                  %s201 = sphi %s165, %s165
                $region46: #{vit_encoder_forward.24} parent=42 // loop_header_branch
                  %198 = sbr.rel (%p196) target = $region50
                $region47: #{vit_encoder_forward.24} parent=42 // loop_body
                  _
                $region48: #{vit_encoder_forward.24} parent=42 // loop_footer
                  %s199 = sadd.s32 1, %s195
                $region49: #{vit_encoder_forward.24} parent=42 // loop_footer_branch
                  %194 = sbr.rel target = $region45
                $region50: #{vit_encoder_forward.24} parent=42 // loop_exit
                  _
                %s203 = ssub.s32 16, 1
                loop: start=0, step=1, limit=1
                $region51: #{vit_encoder_forward.24} parent=42 // loop_pre_header
                  _
                $region52: #{vit_encoder_forward.24} parent=42 // loop_header
                  %s205 = sphi 0, %s209
                  %p206 = scmp.ge.s32.totalorder %s205, 1
                  %s210 = sphi %s171, %s171
                  %s211 = sphi %s165, %s165
                $region53: #{vit_encoder_forward.24} parent=42 // loop_header_branch
                  %208 = sbr.rel (%p206) target = $region57
                $region54: #{vit_encoder_forward.24} parent=42 // loop_body
                  %v212 = vld [vmem:[%s210] sm:%s203]
                  %213 = vst [vmem:[%s211] sm:%s203] %v212
                  %v214 = vld [vmem:[%s210 + $0xc] sm:%s203]
                  %215 = vst [vmem:[%s211 + $0x4] sm:%s203] %v214
                $region55: #{vit_encoder_forward.24} parent=42 // loop_footer
                  %s209 = sadd.s32 1, %s205
                $region56: #{vit_encoder_forward.24} parent=42 // loop_footer_branch
                  %204 = sbr.rel target = $region52
                $region57: #{vit_encoder_forward.24} parent=42 // loop_exit
                  _
              $region43: #{vit_encoder_forward.24} parent=27 // pred_fallthru
                _
            $region28: #{vit_encoder_forward.24} parent=23 // pred_fallthru
              _
            // Predicated region
            $region29: #{vit_encoder_forward.24} parent=23 // pred_check
              _
            $region30: #{vit_encoder_forward.24} parent=23 // pred_check_branch
              %177 = sbr.rel (0) target = $region32
            $region31: #{vit_encoder_forward.24} parent=23 // pred_region
              %s179 = ssub.s32 16, 1
              loop: start=0, step=1, limit=1
              $region33: #{vit_encoder_forward.24} parent=31 // loop_pre_header
                _
              $region34: #{vit_encoder_forward.24} parent=31 // loop_header
                %s181 = sphi 0, %s185
                %p182 = scmp.ge.s32.totalorder %s181, 1
                %s186 = sphi %s171, %s171
                %s187 = sphi %s165, %s165
              $region35: #{vit_encoder_forward.24} parent=31 // loop_header_branch
                %184 = sbr.rel (%p182) target = $region39
              $region36: #{vit_encoder_forward.24} parent=31 // loop_body
                %v188 = vld [vmem:[%s186] sm:%s179]
                %189 = vst [vmem:[%s187] sm:%s179] %v188
                %v190 = vld [vmem:[%s186 + $0xc] sm:%s179]
                %191 = vst [vmem:[%s187 + $0x4] sm:%s179] %v190
              $region37: #{vit_encoder_forward.24} parent=31 // loop_footer
                %s185 = sadd.s32 1, %s181
              $region38: #{vit_encoder_forward.24} parent=31 // loop_footer_branch
                %180 = sbr.rel target = $region34
              $region39: #{vit_encoder_forward.24} parent=31 // loop_exit
                _
            $region32: #{vit_encoder_forward.24} parent=23 // pred_fallthru
              _
          $region24: #{vit_encoder_forward.24} parent=19 // pred_fallthru
            _
          %216 = vnop
        $region20: #{vit_encoder_forward.24} parent=15 // pred_fallthru
          _
        // Predicated region
        $region58: #{vit_encoder_forward.24} parent=15 // pred_check
          %p217 = pneg %p78
        $region59: #{vit_encoder_forward.24} parent=15 // pred_check_branch
          %219 = sbr.rel (%p217) target = $region61
        $region60: #{vit_encoder_forward.24} parent=15 // pred_region
          %s220 = sand.u32 %s68, 1
          %s221 = sand.u32 %s68, 1
          %s222 = smul.addr %s221, 8
          %s223 = scalar_lea.vmem [#allocation6], %s222
          %s224 = smul.u32 2, %s18
          %s225 = smul.addr %s224, 3
          %s226 = sadd.s32 1, %s225
          %s227 = smul.addr %s16, 6
          %s228 = sadd.s32 %s226, %s227
          %s229 = smul.addr %s228, 4
          %s230 = scalar_lea.vmem %s1, %s229
          // Predicated region
          $region62: #{vit_encoder_forward.24} parent=60 // pred_check
            _
          $region63: #{vit_encoder_forward.24} parent=60 // pred_check_branch
            %232 = sbr.rel (0) target = $region65
          $region64: #{vit_encoder_forward.24} parent=60 // pred_region
            // Predicated region
            $region66: #{vit_encoder_forward.24} parent=64 // pred_check
              _
            $region67: #{vit_encoder_forward.24} parent=64 // pred_check_branch
              %234 = sbr.rel target = $region69
            $region68: #{vit_encoder_forward.24} parent=64 // pred_region
              // Predicated region
              $region81: #{vit_encoder_forward.24} parent=68 // pred_check
                _
              $region82: #{vit_encoder_forward.24} parent=68 // pred_check_branch
                %252 = sbr.rel (0) target = $region84
              $region83: #{vit_encoder_forward.24} parent=68 // pred_region
                loop: start=0, step=1, limit=1
                $region85: #{vit_encoder_forward.24} parent=83 // loop_pre_header
                  _
                $region86: #{vit_encoder_forward.24} parent=83 // loop_header
                  %s254 = sphi 0, %s258
                  %p255 = scmp.ge.s32.totalorder %s254, 1
                  %s259 = sphi %s230, %s230
                  %s260 = sphi %s223, %s223
                $region87: #{vit_encoder_forward.24} parent=83 // loop_header_branch
                  %257 = sbr.rel (%p255) target = $region91
                $region88: #{vit_encoder_forward.24} parent=83 // loop_body
                  _
                $region89: #{vit_encoder_forward.24} parent=83 // loop_footer
                  %s258 = sadd.s32 1, %s254
                $region90: #{vit_encoder_forward.24} parent=83 // loop_footer_branch
                  %253 = sbr.rel target = $region86
                $region91: #{vit_encoder_forward.24} parent=83 // loop_exit
                  _
                %s262 = ssub.s32 16, 1
                loop: start=0, step=1, limit=1
                $region92: #{vit_encoder_forward.24} parent=83 // loop_pre_header
                  _
                $region93: #{vit_encoder_forward.24} parent=83 // loop_header
                  %s264 = sphi 0, %s268
                  %p265 = scmp.ge.s32.totalorder %s264, 1
                  %s269 = sphi %s230, %s230
                  %s270 = sphi %s223, %s223
                $region94: #{vit_encoder_forward.24} parent=83 // loop_header_branch
                  %267 = sbr.rel (%p265) target = $region98
                $region95: #{vit_encoder_forward.24} parent=83 // loop_body
                  %v271 = vld [vmem:[%s269] sm:%s262]
                  %272 = vst [vmem:[%s270] sm:%s262] %v271
                  %v273 = vld [vmem:[%s269 + $0xc] sm:%s262]
                  %274 = vst [vmem:[%s270 + $0x4] sm:%s262] %v273
                $region96: #{vit_encoder_forward.24} parent=83 // loop_footer
                  %s268 = sadd.s32 1, %s264
                $region97: #{vit_encoder_forward.24} parent=83 // loop_footer_branch
                  %263 = sbr.rel target = $region93
                $region98: #{vit_encoder_forward.24} parent=83 // loop_exit
                  _
              $region84: #{vit_encoder_forward.24} parent=68 // pred_fallthru
                _
            $region69: #{vit_encoder_forward.24} parent=64 // pred_fallthru
              _
            // Predicated region
            $region70: #{vit_encoder_forward.24} parent=64 // pred_check
              _
            $region71: #{vit_encoder_forward.24} parent=64 // pred_check_branch
              %236 = sbr.rel (0) target = $region73
            $region72: #{vit_encoder_forward.24} parent=64 // pred_region
              %s238 = ssub.s32 16, 1
              loop: start=0, step=1, limit=1
              $region74: #{vit_encoder_forward.24} parent=72 // loop_pre_header
                _
              $region75: #{vit_encoder_forward.24} parent=72 // loop_header
                %s240 = sphi 0, %s244
                %p241 = scmp.ge.s32.totalorder %s240, 1
                %s245 = sphi %s230, %s230
                %s246 = sphi %s223, %s223
              $region76: #{vit_encoder_forward.24} parent=72 // loop_header_branch
                %243 = sbr.rel (%p241) target = $region80
              $region77: #{vit_encoder_forward.24} parent=72 // loop_body
                %v247 = vld [vmem:[%s245] sm:%s238]
                %248 = vst [vmem:[%s246] sm:%s238] %v247
                %v249 = vld [vmem:[%s245 + $0xc] sm:%s238]
                %250 = vst [vmem:[%s246 + $0x4] sm:%s238] %v249
              $region78: #{vit_encoder_forward.24} parent=72 // loop_footer
                %s244 = sadd.s32 1, %s240
              $region79: #{vit_encoder_forward.24} parent=72 // loop_footer_branch
                %239 = sbr.rel target = $region75
              $region80: #{vit_encoder_forward.24} parent=72 // loop_exit
                _
            $region73: #{vit_encoder_forward.24} parent=64 // pred_fallthru
              _
          $region65: #{vit_encoder_forward.24} parent=60 // pred_fallthru
            _
          %275 = vnop
        $region61: #{vit_encoder_forward.24} parent=15 // pred_fallthru
          _
        // Predicated region
        $region99: #{vit_encoder_forward.24} parent=15 // pred_check
          %p276 = pneg %p106
        $region100: #{vit_encoder_forward.24} parent=15 // pred_check_branch
          %278 = sbr.rel (%p276) target = $region102
        $region101: #{vit_encoder_forward.24} parent=15 // pred_region
          %s279 = sand.u32 %s96, 1
          %s280 = sand.u32 %s96, 1
          %s281 = smul.addr %s280, 8
          %s282 = scalar_lea.vmem [#allocation7], %s281
          %s283 = smul.u32 2, %s18
          %s284 = smul.addr %s283, 3
          %s285 = sadd.s32 2, %s284
          %s286 = smul.addr %s16, 6
          %s287 = sadd.s32 %s285, %s286
          %s288 = smul.addr %s287, 4
          %s289 = scalar_lea.vmem %s2, %s288
          // Predicated region
          $region103: #{vit_encoder_forward.24} parent=101 // pred_check
            _
          $region104: #{vit_encoder_forward.24} parent=101 // pred_check_branch
            %291 = sbr.rel (0) target = $region106
          $region105: #{vit_encoder_forward.24} parent=101 // pred_region
            // Predicated region
            $region107: #{vit_encoder_forward.24} parent=105 // pred_check
              _
            $region108: #{vit_encoder_forward.24} parent=105 // pred_check_branch
              %293 = sbr.rel target = $region110
            $region109: #{vit_encoder_forward.24} parent=105 // pred_region
              // Predicated region
              $region122: #{vit_encoder_forward.24} parent=109 // pred_check
                _
              $region123: #{vit_encoder_forward.24} parent=109 // pred_check_branch
                %311 = sbr.rel (0) target = $region125
              $region124: #{vit_encoder_forward.24} parent=109 // pred_region
                loop: start=0, step=1, limit=1
                $region126: #{vit_encoder_forward.24} parent=124 // loop_pre_header
                  _
                $region127: #{vit_encoder_forward.24} parent=124 // loop_header
                  %s313 = sphi 0, %s317
                  %p314 = scmp.ge.s32.totalorder %s313, 1
                  %s318 = sphi %s289, %s289
                  %s319 = sphi %s282, %s282
                $region128: #{vit_encoder_forward.24} parent=124 // loop_header_branch
                  %316 = sbr.rel (%p314) target = $region132
                $region129: #{vit_encoder_forward.24} parent=124 // loop_body
                  _
                $region130: #{vit_encoder_forward.24} parent=124 // loop_footer
                  %s317 = sadd.s32 1, %s313
                $region131: #{vit_encoder_forward.24} parent=124 // loop_footer_branch
                  %312 = sbr.rel target = $region127
                $region132: #{vit_encoder_forward.24} parent=124 // loop_exit
                  _
                %s321 = ssub.s32 16, 1
                loop: start=0, step=1, limit=1
                $region133: #{vit_encoder_forward.24} parent=124 // loop_pre_header
                  _
                $region134: #{vit_encoder_forward.24} parent=124 // loop_header
                  %s323 = sphi 0, %s327
                  %p324 = scmp.ge.s32.totalorder %s323, 1
                  %s328 = sphi %s289, %s289
                  %s329 = sphi %s282, %s282
                $region135: #{vit_encoder_forward.24} parent=124 // loop_header_branch
                  %326 = sbr.rel (%p324) target = $region139
                $region136: #{vit_encoder_forward.24} parent=124 // loop_body
                  %v330 = vld [vmem:[%s328] sm:%s321]
                  %331 = vst [vmem:[%s329] sm:%s321] %v330
                  %v332 = vld [vmem:[%s328 + $0xc] sm:%s321]
                  %333 = vst [vmem:[%s329 + $0x4] sm:%s321] %v332
                $region137: #{vit_encoder_forward.24} parent=124 // loop_footer
                  %s327 = sadd.s32 1, %s323
                $region138: #{vit_encoder_forward.24} parent=124 // loop_footer_branch
                  %322 = sbr.rel target = $region134
                $region139: #{vit_encoder_forward.24} parent=124 // loop_exit
                  _
              $region125: #{vit_encoder_forward.24} parent=109 // pred_fallthru
                _
            $region110: #{vit_encoder_forward.24} parent=105 // pred_fallthru
              _
            // Predicated region
            $region111: #{vit_encoder_forward.24} parent=105 // pred_check
              _
            $region112: #{vit_encoder_forward.24} parent=105 // pred_check_branch
              %295 = sbr.rel (0) target = $region114
            $region113: #{vit_encoder_forward.24} parent=105 // pred_region
              %s297 = ssub.s32 16, 1
              loop: start=0, step=1, limit=1
              $region115: #{vit_encoder_forward.24} parent=113 // loop_pre_header
                _
              $region116: #{vit_encoder_forward.24} parent=113 // loop_header
                %s299 = sphi 0, %s303
                %p300 = scmp.ge.s32.totalorder %s299, 1
                %s304 = sphi %s289, %s289
                %s305 = sphi %s282, %s282
              $region117: #{vit_encoder_forward.24} parent=113 // loop_header_branch
                %302 = sbr.rel (%p300) target = $region121
              $region118: #{vit_encoder_forward.24} parent=113 // loop_body
                %v306 = vld [vmem:[%s304] sm:%s297]
                %307 = vst [vmem:[%s305] sm:%s297] %v306
                %v308 = vld [vmem:[%s304 + $0xc] sm:%s297]
                %309 = vst [vmem:[%s305 + $0x4] sm:%s297] %v308
              $region119: #{vit_encoder_forward.24} parent=113 // loop_footer
                %s303 = sadd.s32 1, %s299
              $region120: #{vit_encoder_forward.24} parent=113 // loop_footer_branch
                %298 = sbr.rel target = $region116
              $region121: #{vit_encoder_forward.24} parent=113 // loop_exit
                _
            $region114: #{vit_encoder_forward.24} parent=105 // pred_fallthru
              _
          $region106: #{vit_encoder_forward.24} parent=101 // pred_fallthru
            _
          %334 = vnop
        $region102: #{vit_encoder_forward.24} parent=15 // pred_fallthru
          _
      $region16: #{vit_encoder_forward.24} parent=5 // pred_fallthru
        _
      %p335 = scmp.le.s32.totalorder 1, %s9
      %p336 = scmp.lt.s32.totalorder %s9, 3
      %p337 = pnand %p335, %p336
      %p338 = pneg %p337
      // Predicated region
      $region140: #{vit_encoder_forward.24} parent=5 // pred_check
        _
      $region141: #{vit_encoder_forward.24} parent=5 // pred_check_branch
        %340 = sbr.rel (%p337) target = $region143
      $region142: #{vit_encoder_forward.24} parent=5 // pred_region
        %s341 = ssub.s32 %s9, 1
        %s342 = sand.u32 %s43, 1
        %s343 = sand.u32 %s43, 1
        %s344 = smul.addr %s343, 8
        %s345 = scalar_lea.vmem [#allocation5], %s344
        // Predicated region
        $region144: #{vit_encoder_forward.24} parent=142 // pred_check
          %p346 = pneg %p56
        $region145: #{vit_encoder_forward.24} parent=142 // pred_check_branch
          %348 = sbr.rel (%p346) target = $region147
        $region146: #{vit_encoder_forward.24} parent=142 // pred_region
          _
        $region147: #{vit_encoder_forward.24} parent=142 // pred_fallthru
          _
        %s349 = sand.u32 %s71, 1
        %s350 = sand.u32 %s71, 1
        %s351 = smul.addr %s350, 8
        %s352 = scalar_lea.vmem [#allocation6], %s351
        // Predicated region
        $region148: #{vit_encoder_forward.24} parent=142 // pred_check
          %p353 = pneg %p84
        $region149: #{vit_encoder_forward.24} parent=142 // pred_check_branch
          %355 = sbr.rel (%p353) target = $region151
        $region150: #{vit_encoder_forward.24} parent=142 // pred_region
          _
        $region151: #{vit_encoder_forward.24} parent=142 // pred_fallthru
          _
        %s356 = sand.u32 %s99, 1
        %s357 = sand.u32 %s99, 1
        %s358 = smul.addr %s357, 8
        %s359 = scalar_lea.vmem [#allocation7], %s358
        // Predicated region
        $region152: #{vit_encoder_forward.24} parent=142 // pred_check
          %p360 = pneg %p112
        $region153: #{vit_encoder_forward.24} parent=142 // pred_check_branch
          %362 = sbr.rel (%p360) target = $region155
        $region154: #{vit_encoder_forward.24} parent=142 // pred_region
          _
        $region155: #{vit_encoder_forward.24} parent=142 // pred_fallthru
          _
        %s363 = sand.u32 %s43, 1
        %s364 = sand.u32 %s43, 1
        %s365 = smul.addr %s364, 8
        %s366 = scalar_lea.vmem [#allocation5], %s365
        %p367 = pneg %p56
        %p368 = pneg %p53
        %s369 = sand.u32 %s71, 1
        %s370 = sand.u32 %s71, 1
        %s371 = smul.addr %s370, 8
        %s372 = scalar_lea.vmem [#allocation6], %s371
        %p373 = pneg %p84
        %p374 = pneg %p81
        %s375 = sand.u32 %s99, 1
        %s376 = sand.u32 %s99, 1
        %s377 = smul.addr %s376, 8
        %s378 = scalar_lea.vmem [#allocation7], %s377
        %p379 = pneg %p112
        %p380 = pneg %p109
        %p381 = pneg %p140
        %p382 = pneg %p137
        %s383 = smul.u32 2, %s20
        %p384 = scmp.lt.s32.totalorder %s19, 1
        %s385 = scalar_select %p384, %s19, 1
        %p386 = scmp.lt.s32.totalorder %s383, 1
        %s387 = scalar_select %p386, %s383, 1
        %s388 = smul.addr %s385, 2
        %s389 = sadd.s32 %s387, %s388
        %s390 = smul.addr %s389, 4
        %s391 = scalar_lea.vmem %s3, %s390
        %s392 = smul.u32 2, %s20
        %s393 = smul.u32 2, %s21
        %s394 = smul.u32 2, %s21
        %s395 = smul.u32 2, %s20
        %p396 = scmp.lt.s32.totalorder %s19, 1
        %s397 = scalar_select %p396, %s19, 1
        %p398 = scmp.lt.s32.totalorder %s395, 1
        %s399 = scalar_select %p398, %s395, 1
        %s400 = smul.addr %s397, 2
        %s401 = sadd.s32 %s399, %s400
        %s402 = smul.addr %s401, 4
        %s403 = scalar_lea.vmem %s3, %s402
        %s404 = smul.u32 2, %s20
        %p406 = scmp.eq.s32.totalorder %s21, 0
        // Predicated region
        $region156: #{vit_encoder_forward.24} parent=142 // pred_check
          %p407 = pneg %p406
        $region157: #{vit_encoder_forward.24} parent=142 // pred_check_branch
          %409 = sbr.rel (%p407) target = $region159
        $region158: #{vit_encoder_forward.24} parent=142 // pred_region
          %vm410 = vcmask 31744
          %411 = vst.msk [vmem:[#allocation2] sm:$0xff] %vm410, -1e+30
          %412 = vst.msk [vmem:[#allocation2 + $0x8] sm:$0xff] %vm410, -1e+30
          %413 = vst.msk [vmem:[#allocation3] sm:$0xff] %vm410, 0.0
          %414 = vst.msk [vmem:[#allocation3 + $0x8] sm:$0xff] %vm410, 0.0
          %415 = vst [vmem:[#allocation4] sm:$0xff] 0.0
          %416 = vst [vmem:[#allocation4 + $0x8] sm:$0xff] 0.0
        $region159: #{vit_encoder_forward.24} parent=142 // pred_fallthru
          _
        %v417 = vld [vmem:[%s345] sm:$0xf]
        %v418 = vld [vmem:[%s345 + $0x4] sm:$0xf]
        %v419 = vld [vmem:[%s352] sm:$0xf]
        %v420 = vld [vmem:[%s352 + $0x4] sm:$0xf]
        %v421 = vld [vmem:[%s359] sm:$0xf]
        %v422 = vld [vmem:[%s359 + $0x4] sm:$0xf]
        %s423 = smul.u32 %s21, 16
        %v424 = vlaneseq
        %v425 = vand.u32 %v424, 127
        %v426 = vstv %s423
        %v427 = vadd.s32 %v426, %v425
        %vm428 = vcmp.lt.s32.totalorder %v427, 9
        %v431 = vunpack.c.l.b16 %v417
        %v432 = vunpack.c.l.b16 %v418
        %v433 = vpack.c.b16 %v432, %v431
        %v436 = vunpack.c.l.b16 %v419
        %v437 = vunpack.c.l.b16 %v420
        %v438 = vpack.c.b16 %v437, %v436
        %vm439 = vcmask 261120
        %v441 = vsel %vm439, %v433, 0
        %v444 = vsel %vm439, %v438, 0
        %446 = vmatpush.bf16.xpose.msra.mxu0 0
        %447 = vmatpush.bf16.xpose.msra.mxu0 0
        %448 = vmatpush.bf16.xpose.msra.mxu0 0
        %449 = vmatpush.bf16.xpose.msra.mxu0 0
        %450 = vmatpush.bf16.xpose.msra.mxu0 0
        %451 = vmatpush.bf16.xpose.msra.mxu0 0
        %452 = vmatpush.bf16.xpose.msra.mxu0 0
        %453 = vmatpush.bf16.xpose.msra.mxu0 %v444
        %454 = vmatmul.bf16.gmra.mxu0 %v441
        %v455 = vpop.f32.mrf.mxu0
        %v456 = vadd.f32 0.0, %v455
        %v457 = vpop.f32.mrf.mxu0
        %v458 = vadd.f32 0.0, %v457
        %459 = vdwg.mxu0
        %v460 = vsel %vm428, 1, 0
        %vm461 = vcmp.eq.s32.totalorder %v460, 1
        %v462 = vsel %vm461, %v456, -1e+30
        %v463 = vsel %vm461, %v458, -1e+30
        %v464 = vld [vmem:[#allocation2] sm:$0xff]
        %v465 = vld [vmem:[#allocation2 + $0x8] sm:$0xff]
        %vm466 = vcmask 130048
        %v467 = vsel %vm466, %v462, -inf
        %468 = vmax.xlane.f32.xlu0 %v467
        %v469 = vpop.xlane.xlu0 %468
        %v470 = vsel %vm466, %v463, -inf
        %471 = vmax.xlane.f32.xlu0 %v470
        %v472 = vpop.xlane.xlu0 %471
        %v473 = vmax.f32 %v464, %v469
        %v474 = vmax.f32 %v465, %v472
        %v475 = vsub.f32 %v464, %v473
        %v476 = vsub.f32 %v465, %v474
        %v477 = vmul.f32 %v475, 1.442695
        %v478 = vpow.pop %v477
        %v479 = vmul.f32 %v476, 1.442695
        %v480 = vpow.pop %v479
        %482 = vset.pattern.permute.xlu0 0
        %483 = vperm.xlu0 %482, %v473
        %v484 = vpop.permute.xlu0 %483
        %487 = vset.pattern.permute.xlu0 0
        %488 = vperm.xlu0 %487, %v474
        %v489 = vpop.permute.xlu0 %488
        %v491 = vsub.f32 %v462, %v484
        %v492 = vsub.f32 %v463, %v489
        %v493 = vmul.f32 %v491, 1.442695
        %v494 = vpow.pop %v493
        %v495 = vmul.f32 %v492, 1.442695
        %v496 = vpow.pop %v495
        %v497 = vld [vmem:[#allocation3] sm:$0xff]
        %v498 = vld [vmem:[#allocation3 + $0x8] sm:$0xff]
        %v499 = vmul.f32 %v478, %v497
        %v500 = vmul.f32 %v480, %v498
        %v501 = vsel %vm466, %v494, 0.0
        %502 = vadd.xlane.f32.xlu0 %v501
        %v503 = vpop.xlane.xlu0 %502
        %v504 = vsel %vm466, %v496, 0.0
        %505 = vadd.xlane.f32.xlu0 %v504
        %v506 = vpop.xlane.xlu0 %505
        %v507 = vadd.f32 %v499, %v503
        %v508 = vadd.f32 %v500, %v506
        %vm509 = vcmask 7168
        %510 = vst.msk [vmem:[#allocation3] sm:$0xff] %vm509, %v507
        %511 = vst.msk [vmem:[#allocation3 + $0x8] sm:$0xff] %vm509, %v508
        %v512 = vpack.c.bf16 %v496, %v494
        %v515 = vunpack.c.l.b16 %v421
        %v516 = vunpack.c.l.b16 %v422
        %v517 = vpack.c.b16 %v516, %v515
        %v520 = vsel %vm466, %v512, 0
        %522 = vmatpush.bf16.msra.mxu0 0
        %523 = vmatpush.bf16.msra.mxu0 0
        %524 = vmatpush.bf16.msra.mxu0 0
        %525 = vmatpush.bf16.msra.mxu0 0
        %526 = vmatpush.bf16.msra.mxu0 0
        %527 = vmatpush.bf16.msra.mxu0 0
        %528 = vmatpush.bf16.msra.mxu0 0
        %529 = vmatpush.bf16.msra.mxu0 %v517
        %530 = vmatmul.bf16.gmra.mxu0 %v520
        %v531 = vpop.f32.mrf.mxu0
        %v532 = vadd.f32 0.0, %v531
        %v533 = vpop.f32.mrf.mxu0
        %v534 = vadd.f32 0.0, %v533
        %535 = vdwg.mxu0
        %v536 = vld [vmem:[#allocation4] sm:$0xff]
        %v537 = vld [vmem:[#allocation4 + $0x8] sm:$0xff]
        %539 = vset.pattern.permute.xlu0 0
        %540 = vperm.xlu0 %539, %v478
        %v541 = vpop.permute.xlu0 %540
        %544 = vset.pattern.permute.xlu0 0
        %545 = vperm.xlu0 %544, %v480
        %v546 = vpop.permute.xlu0 %545
        %v548 = vmul.f32 %v541, %v536
        %v549 = vmul.f32 %v546, %v537
        %v550 = vadd.f32 %v548, %v532
        %v551 = vadd.f32 %v549, %v534
        %552 = vst.msk [vmem:[#allocation4] sm:$0xff] %vm439, %v550
        %553 = vst.msk [vmem:[#allocation4 + $0x8] sm:$0xff] %vm439, %v551
        %554 = vst.msk [vmem:[#allocation2] sm:$0xff] %vm509, %v473
        %555 = vst.msk [vmem:[#allocation2 + $0x8] sm:$0xff] %vm509, %v474
        %556 = vrot.lane.b32.xlu0 %v433, 96
        %v557 = vpop.permute.xlu0 %556
        %558 = vrot.lane.b32.xlu0 %v438, 96
        %v559 = vpop.permute.xlu0 %558
        %v561 = vsel %vm439, %v557, 0
        %v564 = vsel %vm439, %v559, 0
        %566 = vmatpush.bf16.xpose.msra.mxu0 0
        %567 = vmatpush.bf16.xpose.msra.mxu0 0
        %568 = vmatpush.bf16.xpose.msra.mxu0 0
        %569 = vmatpush.bf16.xpose.msra.mxu0 0
        %570 = vmatpush.bf16.xpose.msra.mxu0 0
        %571 = vmatpush.bf16.xpose.msra.mxu0 0
        %572 = vmatpush.bf16.xpose.msra.mxu0 0
        %573 = vmatpush.bf16.xpose.msra.mxu0 %v564
        %574 = vmatmul.bf16.gmra.mxu0 %v561
        %v575 = vpop.f32.mrf.mxu0
        %v576 = vadd.f32 0.0, %v575
        %v577 = vpop.f32.mrf.mxu0
        %v578 = vadd.f32 0.0, %v577
        %579 = vdwg.mxu0
        %v580 = vsel %vm461, %v576, -1e+30
        %v581 = vsel %vm461, %v578, -1e+30
        %v582 = vld [vmem:[#allocation2] sm:$0xff]
        %v583 = vld [vmem:[#allocation2 + $0x8] sm:$0xff]
        %v584 = vsel %vm466, %v580, -inf
        %585 = vmax.xlane.f32.xlu0 %v584
        %v586 = vpop.xlane.xlu0 %585
        %v587 = vsel %vm466, %v581, -inf
        %588 = vmax.xlane.f32.xlu0 %v587
        %v589 = vpop.xlane.xlu0 %588
        %v590 = vmax.f32 %v582, %v586
        %v591 = vmax.f32 %v583, %v589
        %v592 = vsub.f32 %v582, %v590
        %v593 = vsub.f32 %v583, %v591
        %v594 = vmul.f32 %v592, 1.442695
        %v595 = vpow.pop %v594
        %v596 = vmul.f32 %v593, 1.442695
        %v597 = vpow.pop %v596
        %599 = vset.pattern.permute.xlu0 1
        %600 = vperm.xlu0 %599, %v590
        %v601 = vpop.permute.xlu0 %600
        %604 = vset.pattern.permute.xlu0 1
        %605 = vperm.xlu0 %604, %v591
        %v606 = vpop.permute.xlu0 %605
        %v608 = vsub.f32 %v580, %v601
        %v609 = vsub.f32 %v581, %v606
        %v610 = vmul.f32 %v608, 1.442695
        %v611 = vpow.pop %v610
        %v612 = vmul.f32 %v609, 1.442695
        %v613 = vpow.pop %v612
        %v614 = vld [vmem:[#allocation3] sm:$0xff]
        %v615 = vld [vmem:[#allocation3 + $0x8] sm:$0xff]
        %v616 = vmul.f32 %v595, %v614
        %v617 = vmul.f32 %v597, %v615
        %v618 = vsel %vm466, %v611, 0.0
        %619 = vadd.xlane.f32.xlu0 %v618
        %v620 = vpop.xlane.xlu0 %619
        %v621 = vsel %vm466, %v613, 0.0
        %622 = vadd.xlane.f32.xlu0 %v621
        %v623 = vpop.xlane.xlu0 %622
        %v624 = vadd.f32 %v616, %v620
        %v625 = vadd.f32 %v617, %v623
        %vm626 = vcmask 15368
        %627 = vst.msk [vmem:[#allocation3] sm:$0xff] %vm626, %v624
        %628 = vst.msk [vmem:[#allocation3 + $0x8] sm:$0xff] %vm626, %v625
        %v629 = vpack.c.bf16 %v613, %v611
        %630 = vrot.lane.b32.xlu0 %v517, 96
        %v631 = vpop.permute.xlu0 %630
        %v634 = vsel %vm466, %v629, 0
        %636 = vmatpush.bf16.msra.mxu0 0
        %637 = vmatpush.bf16.msra.mxu0 0
        %638 = vmatpush.bf16.msra.mxu0 0
        %639 = vmatpush.bf16.msra.mxu0 0
        %640 = vmatpush.bf16.msra.mxu0 0
        %641 = vmatpush.bf16.msra.mxu0 0
        %642 = vmatpush.bf16.msra.mxu0 0
        %643 = vmatpush.bf16.msra.mxu0 %v631
        %644 = vmatmul.bf16.gmra.mxu0 %v634
        %v645 = vpop.f32.mrf.mxu0
        %v646 = vadd.f32 0.0, %v645
        %v647 = vpop.f32.mrf.mxu0
        %v648 = vadd.f32 0.0, %v647
        %649 = vdwg.mxu0
        %v650 = vld [vmem:[#allocation4] sm:$0xff]
        %v651 = vld [vmem:[#allocation4 + $0x8] sm:$0xff]
        %653 = vset.pattern.permute.xlu0 1
        %654 = vperm.xlu0 %653, %v595
        %v655 = vpop.permute.xlu0 %654
        %658 = vset.pattern.permute.xlu0 1
        %659 = vperm.xlu0 %658, %v597
        %v660 = vpop.permute.xlu0 %659
        %v662 = vmul.f32 %v655, %v650
        %v663 = vmul.f32 %v660, %v651
        %666 = vrot.lane.b32.xlu0 %v646, 32
        %v667 = vpop.permute.xlu0 %666
        %668 = vrot.lane.b32.xlu0 %v648, 32
        %v669 = vpop.permute.xlu0 %668
        %v672 = vadd.f32 %v662, %v667
        %v673 = vadd.f32 %v663, %v669
        %vm674 = vcmask 523520
        %675 = vst.msk [vmem:[#allocation4] sm:$0xff] %vm674, %v672
        %676 = vst.msk [vmem:[#allocation4 + $0x8] sm:$0xff] %vm674, %v673
        %677 = vst.msk [vmem:[#allocation2] sm:$0xff] %vm626, %v590
        %678 = vst.msk [vmem:[#allocation2 + $0x8] sm:$0xff] %vm626, %v591
        %679 = vrot.lane.b32.xlu0 %v433, 64
        %v680 = vpop.permute.xlu0 %679
        %681 = vrot.lane.b32.xlu0 %v438, 64
        %v682 = vpop.permute.xlu0 %681
        %v684 = vsel %vm439, %v680, 0
        %v687 = vsel %vm439, %v682, 0
        %689 = vmatpush.bf16.xpose.msra.mxu0 0
        %690 = vmatpush.bf16.xpose.msra.mxu0 0
        %691 = vmatpush.bf16.xpose.msra.mxu0 0
        %692 = vmatpush.bf16.xpose.msra.mxu0 0
        %693 = vmatpush.bf16.xpose.msra.mxu0 0
        %694 = vmatpush.bf16.xpose.msra.mxu0 0
        %695 = vmatpush.bf16.xpose.msra.mxu0 0
        %696 = vmatpush.bf16.xpose.msra.mxu0 %v687
        %697 = vmatmul.bf16.gmra.mxu0 %v684
        %v698 = vpop.f32.mrf.mxu0
        %v699 = vadd.f32 0.0, %v698
        %v700 = vpop.f32.mrf.mxu0
        %v701 = vadd.f32 0.0, %v700
        %702 = vdwg.mxu0
        %v703 = vsel %vm461, %v699, -1e+30
        %v704 = vsel %vm461, %v701, -1e+30
        %v705 = vld [vmem:[#allocation2] sm:$0xff]
        %v706 = vld [vmem:[#allocation2 + $0x8] sm:$0xff]
        %v707 = vsel %vm466, %v703, -inf
        %708 = vmax.xlane.f32.xlu0 %v707
        %v709 = vpop.xlane.xlu0 %708
        %v710 = vsel %vm466, %v704, -inf
        %711 = vmax.xlane.f32.xlu0 %v710
        %v712 = vpop.xlane.xlu0 %711
        %v713 = vmax.f32 %v705, %v709
        %v714 = vmax.f32 %v706, %v712
        %v715 = vsub.f32 %v705, %v713
        %v716 = vsub.f32 %v706, %v714
        %v717 = vmul.f32 %v715, 1.442695
        %v718 = vpow.pop %v717
        %v719 = vmul.f32 %v716, 1.442695
        %v720 = vpow.pop %v719
        %722 = vset.pattern.permute.xlu0 2
        %723 = vperm.xlu0 %722, %v713
        %v724 = vpop.permute.xlu0 %723
        %727 = vset.pattern.permute.xlu0 2
        %728 = vperm.xlu0 %727, %v714
        %v729 = vpop.permute.xlu0 %728
        %v731 = vsub.f32 %v703, %v724
        %v732 = vsub.f32 %v704, %v729
        %v733 = vmul.f32 %v731, 1.442695
        %v734 = vpow.pop %v733
        %v735 = vmul.f32 %v732, 1.442695
        %v736 = vpow.pop %v735
        %v737 = vld [vmem:[#allocation3] sm:$0xff]
        %v738 = vld [vmem:[#allocation3 + $0x8] sm:$0xff]
        %v739 = vmul.f32 %v718, %v737
        %v740 = vmul.f32 %v720, %v738
        %v741 = vsel %vm466, %v734, 0.0
        %742 = vadd.xlane.f32.xlu0 %v741
        %v743 = vpop.xlane.xlu0 %742
        %v744 = vsel %vm466, %v736, 0.0
        %745 = vadd.xlane.f32.xlu0 %v744
        %v746 = vpop.xlane.xlu0 %745
        %v747 = vadd.f32 %v739, %v743
        %v748 = vadd.f32 %v740, %v746
        %vm749 = vcmask 23568
        %750 = vst.msk [vmem:[#allocation3] sm:$0xff] %vm749, %v747
        %751 = vst.msk [vmem:[#allocation3 + $0x8] sm:$0xff] %vm749, %v748
        %v752 = vpack.c.bf16 %v736, %v734
        %753 = vrot.lane.b32.xlu0 %v517, 64
        %v754 = vpop.permute.xlu0 %753
        %v757 = vsel %vm466, %v752, 0
        %759 = vmatpush.bf16.msra.mxu0 0
        %760 = vmatpush.bf16.msra.mxu0 0
        %761 = vmatpush.bf16.msra.mxu0 0
        %762 = vmatpush.bf16.msra.mxu0 0
        %763 = vmatpush.bf16.msra.mxu0 0
        %764 = vmatpush.bf16.msra.mxu0 0
        %765 = vmatpush.bf16.msra.mxu0 0
        %766 = vmatpush.bf16.msra.mxu0 %v754
        %767 = vmatmul.bf16.gmra.mxu0 %v757
        %v768 = vpop.f32.mrf.mxu0
        %v769 = vadd.f32 0.0, %v768
        %v770 = vpop.f32.mrf.mxu0
        %v771 = vadd.f32 0.0, %v770
        %772 = vdwg.mxu0
        %v773 = vld [vmem:[#allocation4] sm:$0xff]
        %v774 = vld [vmem:[#allocation4 + $0x8] sm:$0xff]
        %776 = vset.pattern.permute.xlu0 2
        %777 = vperm.xlu0 %776, %v718
        %v778 = vpop.permute.xlu0 %777
        %781 = vset.pattern.permute.xlu0 2
        %782 = vperm.xlu0 %781, %v720
        %v783 = vpop.permute.xlu0 %782
        %v785 = vmul.f32 %v778, %v773
        %v786 = vmul.f32 %v783, %v774
        %789 = vrot.lane.b32.xlu0 %v769, 64
        %v790 = vpop.permute.xlu0 %789
        %791 = vrot.lane.b32.xlu0 %v771, 64
        %v792 = vpop.permute.xlu0 %791
        %v795 = vadd.f32 %v785, %v790
        %v796 = vadd.f32 %v786, %v792
        %vm797 = vcmask 785920
        %798 = vst.msk [vmem:[#allocation4] sm:$0xff] %vm797, %v795
        %799 = vst.msk [vmem:[#allocation4 + $0x8] sm:$0xff] %vm797, %v796
        %800 = vst.msk [vmem:[#allocation2] sm:$0xff] %vm749, %v713
        %801 = vst.msk [vmem:[#allocation2 + $0x8] sm:$0xff] %vm749, %v714
        %802 = vrot.lane.b32.xlu0 %v433, 32
        %v803 = vpop.permute.xlu0 %802
        %804 = vrot.lane.b32.xlu0 %v438, 32
        %v805 = vpop.permute.xlu0 %804
        %v807 = vsel %vm439, %v803, 0
        %v810 = vsel %vm439, %v805, 0
        %812 = vmatpush.bf16.xpose.msra.mxu0 0
        %813 = vmatpush.bf16.xpose.msra.mxu0 0
        %814 = vmatpush.bf16.xpose.msra.mxu0 0
        %815 = vmatpush.bf16.xpose.msra.mxu0 0
        %816 = vmatpush.bf16.xpose.msra.mxu0 0
        %817 = vmatpush.bf16.xpose.msra.mxu0 0
        %818 = vmatpush.bf16.xpose.msra.mxu0 0
        %819 = vmatpush.bf16.xpose.msra.mxu0 %v810
        %820 = vmatmul.bf16.gmra.mxu0 %v807
        %v821 = vpop.f32.mrf.mxu0
        %v822 = vadd.f32 0.0, %v821
        %v823 = vpop.f32.mrf.mxu0
        %v824 = vadd.f32 0.0, %v823
        %825 = vdwg.mxu0
        %v826 = vsel %vm461, %v822, -1e+30
        %v827 = vsel %vm461, %v824, -1e+30
        %v828 = vld [vmem:[#allocation2] sm:$0xff]
        %v829 = vld [vmem:[#allocation2 + $0x8] sm:$0xff]
        %v830 = vsel %vm466, %v826, -inf
        %831 = vmax.xlane.f32.xlu0 %v830
        %v832 = vpop.xlane.xlu0 %831
        %v833 = vsel %vm466, %v827, -inf
        %834 = vmax.xlane.f32.xlu0 %v833
        %v835 = vpop.xlane.xlu0 %834
        %v836 = vmax.f32 %v828, %v832
        %v837 = vmax.f32 %v829, %v835
        %v838 = vsub.f32 %v828, %v836
        %v839 = vsub.f32 %v829, %v837
        %v840 = vmul.f32 %v838, 1.442695
        %v841 = vpow.pop %v840
        %v842 = vmul.f32 %v839, 1.442695
        %v843 = vpow.pop %v842
        %845 = vset.pattern.permute.xlu0 3
        %846 = vperm.xlu0 %845, %v836
        %v847 = vpop.permute.xlu0 %846
        %850 = vset.pattern.permute.xlu0 3
        %851 = vperm.xlu0 %850, %v837
        %v852 = vpop.permute.xlu0 %851
        %v854 = vsub.f32 %v826, %v847
        %v855 = vsub.f32 %v827, %v852
        %v856 = vmul.f32 %v854, 1.442695
        %v857 = vpow.pop %v856
        %v858 = vmul.f32 %v855, 1.442695
        %v859 = vpow.pop %v858
        %v860 = vld [vmem:[#allocation3] sm:$0xff]
        %v861 = vld [vmem:[#allocation3 + $0x8] sm:$0xff]
        %v862 = vmul.f32 %v841, %v860
        %v863 = vmul.f32 %v843, %v861
        %v864 = vsel %vm466, %v857, 0.0
        %865 = vadd.xlane.f32.xlu0 %v864
        %v866 = vpop.xlane.xlu0 %865
        %v867 = vsel %vm466, %v859, 0.0
        %868 = vadd.xlane.f32.xlu0 %v867
        %v869 = vpop.xlane.xlu0 %868
        %v870 = vadd.f32 %v862, %v866
        %v871 = vadd.f32 %v863, %v869
        %vm872 = vcmask 31768
        %873 = vst.msk [vmem:[#allocation3] sm:$0xff] %vm872, %v870
        %874 = vst.msk [vmem:[#allocation3 + $0x8] sm:$0xff] %vm872, %v871
        %v875 = vpack.c.bf16 %v859, %v857
        %876 = vrot.lane.b32.xlu0 %v517, 32
        %v877 = vpop.permute.xlu0 %876
        %v880 = vsel %vm466, %v875, 0
        %882 = vmatpush.bf16.msra.mxu0 0
        %883 = vmatpush.bf16.msra.mxu0 0
        %884 = vmatpush.bf16.msra.mxu0 0
        %885 = vmatpush.bf16.msra.mxu0 0
        %886 = vmatpush.bf16.msra.mxu0 0
        %887 = vmatpush.bf16.msra.mxu0 0
        %888 = vmatpush.bf16.msra.mxu0 0
        %889 = vmatpush.bf16.msra.mxu0 %v877
        %890 = vmatmul.bf16.gmra.mxu0 %v880
        %v891 = vpop.f32.mrf.mxu0
        %v892 = vadd.f32 0.0, %v891
        %v893 = vpop.f32.mrf.mxu0
        %v894 = vadd.f32 0.0, %v893
        %895 = vdwg.mxu0
        %v896 = vld [vmem:[#allocation4] sm:$0xff]
        %v897 = vld [vmem:[#allocation4 + $0x8] sm:$0xff]
        %899 = vset.pattern.permute.xlu0 3
        %900 = vperm.xlu0 %899, %v841
        %v901 = vpop.permute.xlu0 %900
        %904 = vset.pattern.permute.xlu0 3
        %905 = vperm.xlu0 %904, %v843
        %v906 = vpop.permute.xlu0 %905
        %v908 = vmul.f32 %v901, %v896
        %v909 = vmul.f32 %v906, %v897
        %912 = vrot.lane.b32.xlu0 %v892, 96
        %v913 = vpop.permute.xlu0 %912
        %914 = vrot.lane.b32.xlu0 %v894, 96
        %v915 = vpop.permute.xlu0 %914
        %v918 = vadd.f32 %v908, %v913
        %v919 = vadd.f32 %v909, %v915
        %vm920 = vcmask 1048320
        %921 = vst.msk [vmem:[#allocation4] sm:$0xff] %vm920, %v918
        %922 = vst.msk [vmem:[#allocation4 + $0x8] sm:$0xff] %vm920, %v919
        %923 = vst.msk [vmem:[#allocation2] sm:$0xff] %vm872, %v836
        %924 = vst.msk [vmem:[#allocation2 + $0x8] sm:$0xff] %vm872, %v837
        // Predicated region
        $region160: #{vit_encoder_forward.24} parent=142 // pred_check
          %p925 = pneg %p406
        $region161: #{vit_encoder_forward.24} parent=142 // pred_check_branch
          %927 = sbr.rel (%p925) target = $region163
        $region162: #{vit_encoder_forward.24} parent=142 // pred_region
          %v928 = vld [vmem:[#allocation3] sm:$0xff]
          %v929 = vld [vmem:[#allocation3 + $0x8] sm:$0xff]
          %v930 = vrcp.pop %v928
          %v931 = vrcp.pop %v929
          %v932 = vld [vmem:[#allocation4] sm:$0xff]
          %v933 = vld [vmem:[#allocation4 + $0x8] sm:$0xff]
          %935 = vset.pattern.permute.xlu0 0
          %936 = vperm.xlu0 %935, %v930
          %v937 = vpop.permute.xlu0 %936
          %940 = vset.pattern.permute.xlu0 0
          %941 = vperm.xlu0 %940, %v931
          %v942 = vpop.permute.xlu0 %941
          %v944 = vmul.f32 %v932, %v937
          %v945 = vmul.f32 %v933, %v942
          %v946 = vpack.c.bf16 %v944, %v944
          %v947 = vpack.c.bf16 %v945, %v945
          %vm948 = vcmask 257024
          %949 = vst.msk [vmem:[%s403] sm:$0xf] %vm948, %v946
          %950 = vst.msk [vmem:[%s403 + $0x4] sm:$0xf] %vm948, %v947
          %v951 = vld [vmem:[#allocation4] sm:$0xff]
          %v952 = vld [vmem:[#allocation4 + $0x8] sm:$0xff]
          %953 = vset.pattern.permute.xlu0 1
          %954 = vperm.xlu0 %953, %v930
          %v955 = vpop.permute.xlu0 %954
          %957 = vset.pattern.permute.xlu0 1
          %958 = vperm.xlu0 %957, %v931
          %v959 = vpop.permute.xlu0 %958
          %v961 = vmul.f32 %v951, %v955
          %v962 = vmul.f32 %v952, %v959
          %v963 = vpack.c.bf16 %v961, %v961
          %v964 = vpack.c.bf16 %v962, %v962
          %vm965 = vcmask 519424
          %966 = vst.msk [vmem:[%s403] sm:$0xf] %vm965, %v963
          %967 = vst.msk [vmem:[%s403 + $0x4] sm:$0xf] %vm965, %v964
          %v968 = vld [vmem:[#allocation4] sm:$0xff]
          %v969 = vld [vmem:[#allocation4 + $0x8] sm:$0xff]
          %970 = vset.pattern.permute.xlu0 2
          %971 = vperm.xlu0 %970, %v930
          %v972 = vpop.permute.xlu0 %971
          %974 = vset.pattern.permute.xlu0 2
          %975 = vperm.xlu0 %974, %v931
          %v976 = vpop.permute.xlu0 %975
          %v978 = vmul.f32 %v968, %v972
          %v979 = vmul.f32 %v969, %v976
          %v980 = vpack.c.bf16 %v978, %v978
          %v981 = vpack.c.bf16 %v979, %v979
          %vm982 = vcmask 781824
          %983 = vst.msk [vmem:[%s403] sm:$0xf] %vm982, %v980
          %984 = vst.msk [vmem:[%s403 + $0x4] sm:$0xf] %vm982, %v981
          %v985 = vld [vmem:[#allocation4] sm:$0xff]
          %v986 = vld [vmem:[#allocation4 + $0x8] sm:$0xff]
          %987 = vset.pattern.permute.xlu0 3
          %988 = vperm.xlu0 %987, %v930
          %v989 = vpop.permute.xlu0 %988
          %991 = vset.pattern.permute.xlu0 3
          %992 = vperm.xlu0 %991, %v931
          %v993 = vpop.permute.xlu0 %992
          %v995 = vmul.f32 %v985, %v989
          %v996 = vmul.f32 %v986, %v993
          %v997 = vpack.c.bf16 %v995, %v995
          %v998 = vpack.c.bf16 %v996, %v996
          %vm999 = vcmask 1044224
          %1000 = vst.msk [vmem:[%s403] sm:$0xf] %vm999, %v997
          %1001 = vst.msk [vmem:[%s403 + $0x4] sm:$0xf] %vm999, %v998
        $region163: #{vit_encoder_forward.24} parent=142 // pred_fallthru
          _
        %s1002 = smul.u32 2, %s20
        %p1003 = scmp.lt.s32.totalorder %s19, 1
        %s1004 = scalar_select %p1003, %s19, 1
        %p1005 = scmp.lt.s32.totalorder %s1002, 1
        %s1006 = scalar_select %p1005, %s1002, 1
        %s1007 = smul.addr %s1004, 2
        %s1008 = sadd.s32 %s1006, %s1007
        %s1009 = smul.addr %s1008, 4
        %s1010 = scalar_lea.vmem %s3, %s1009
        // Predicated region
        $region164: #{vit_encoder_forward.24} parent=142 // pred_check
          %p1011 = pneg %p137
        $region165: #{vit_encoder_forward.24} parent=142 // pred_check_branch
          %1013 = sbr.rel (%p1011) target = $region167
        $region166: #{vit_encoder_forward.24} parent=142 // pred_region
          %s1014 = smul.u32 2, %s20
        $region167: #{vit_encoder_forward.24} parent=142 // pred_fallthru
          _
      $region143: #{vit_encoder_forward.24} parent=5 // pred_fallthru
        _
      %p1015 = scmp.le.s32.totalorder 2, %s9
      // Predicated region
      $region168: #{vit_encoder_forward.24} parent=5 // pred_check
        %p1016 = pneg %p1015
      $region169: #{vit_encoder_forward.24} parent=5 // pred_check_branch
        %1018 = sbr.rel (%p1016) target = $region171
      $region170: #{vit_encoder_forward.24} parent=5 // pred_region
        %s1019 = ssub.s32 %s9, 2
        // Predicated region
        $region172: #{vit_encoder_forward.24} parent=170 // pred_check
          %p1020 = pneg %p143
        $region173: #{vit_encoder_forward.24} parent=170 // pred_check_branch
          %1022 = sbr.rel (%p1020) target = $region175
        $region174: #{vit_encoder_forward.24} parent=170 // pred_region
          %s1023 = smul.u32 2, %s23
          %p1024 = scmp.lt.s32.totalorder %s22, 1
          %s1025 = scalar_select %p1024, %s22, 1
          %p1026 = scmp.lt.s32.totalorder %s1023, 1
          %s1027 = scalar_select %p1026, %s1023, 1
          %s1028 = smul.addr %s1025, 2
          %s1029 = sadd.s32 %s1027, %s1028
          %s1030 = smul.addr %s1029, 4
          %s1031 = scalar_lea.vmem %s3, %s1030
        $region175: #{vit_encoder_forward.24} parent=170 // pred_fallthru
          _
      $region171: #{vit_encoder_forward.24} parent=5 // pred_fallthru
        _
    $region6: #{vit_encoder_forward.24} parent=1 // loop_footer
      %s13 = sadd.s32 1, %s9
    $region7: #{vit_encoder_forward.24} parent=1 // loop_footer_branch
      %8 = sbr.rel target = $region3
    $region8: #{vit_encoder_forward.24} parent=1 // loop_exit
      _

// kernel: vit_encoder_forward.26
$region0: #{vit_encoder_forward.26}
  #allocation0 [shape = 'u32[]', space=smem, size = 0x4, offset = 0x4, fixed_abs, tag = 'smem constant byte address 0x4 - core index']
  #allocation1 [shape = 'u32[72,128]{1,0:T(1,128)}', space=vmem, size = 0x9000, scoped, tag = 'internal scratch']
  #allocation2 [shape = 'bf16[32,128]{1,0:T(8,128)(2,1)}', space=vmem, size = 0x2000, scoped, tag = 'scratch operand']
  %s0 = inlined_call_operand.vmem [shape: f32[32,128], index: 0, kind: input, shape index: {}]
  %s1 = inlined_call_operand.hbm [shape: bf16[128,512], index: 1, kind: input, shape index: {}]
  %s2 = inlined_call_operand.hbm [shape: f32[1,512], index: 2, kind: input, shape index: {}]
  %s3 = inlined_call_operand.hbm [shape: f32[1,128], index: 3, kind: input, shape index: {}]
  %s4 = inlined_call_operand.hbm [shape: f32[1,128], index: 4, kind: input, shape index: {}]
  %s5 = inlined_call_operand.vmem [shape: bf16[32,512], index: 5, kind: output, shape index: {}]
  %s6 = sld [smem:[#allocation0]]
  $region50: #{vit_encoder_forward.26} parent=0
    _
  %s8 = ssub.s32 1, %s6
  %s9 = scalar_select 0, %s8, %s6
  $region1: #{vit_encoder_forward.26} parent=0
    #allocation3 [shape = 'u8[131072]{0}', space=vmem, size = 0x20000, scoped, tag = 'input window, operand 1, single buffered']
    #allocation4 [shape = 's32[1]{0}', space=sflag, size = 0x4, scoped, tag = 'scoped memory for vit_encoder_forward.26']
    #allocation5 [shape = 'u8[2048]{0}', space=vmem, size = 0x800, scoped, tag = 'input window, operand 2, single buffered']
    #allocation6 [shape = 's32[1]{0}', space=sflag, size = 0x4, scoped, tag = 'scoped memory for vit_encoder_forward.26']
    #allocation7 [shape = 'u8[512]{0}', space=vmem, size = 0x400, scoped, tag = 'input window, operand 3, single buffered']
    #allocation8 [shape = 'u8[512]{0}', space=vmem, size = 0x400, scoped, tag = 'input window, operand 4, single buffered']
    #allocation9 [shape = 's32[1]{0}', space=sflag, size = 0x4, scoped, tag = 'scoped memory for vit_encoder_forward.26']
    %10 = vsyncpa [#allocation4], 0
    %11 = vsyncpa [#allocation6], 0
    %12 = vsyncpa [#allocation9], 0
    // Predicated region
    $region2: #{vit_encoder_forward.26} parent=1 // pred_check
      _
    $region3: #{vit_encoder_forward.26} parent=1 // pred_check_branch
      %14 = sbr.rel (0) target = $region5
    $region4: #{vit_encoder_forward.26} parent=1 // pred_region
      _
    $region5: #{vit_encoder_forward.26} parent=1 // pred_fallthru
      _
    // Predicated region
    $region6: #{vit_encoder_forward.26} parent=1 // pred_check
      _
    $region7: #{vit_encoder_forward.26} parent=1 // pred_check_branch
      %16 = sbr.rel (0) target = $region9
    $region8: #{vit_encoder_forward.26} parent=1 // pred_region
      %18 = vsyncadd [#allocation4], 0
      %s19 = sshll.u32 %s1, 4
      %s20 = int_to_ptr.hbm [resolvable:$true] %s19
      %s21 = sshll.u32 [#allocation3], 4
      %s22 = int_to_ptr.vmem [resolvable:$true] %s21
      %27 = dma.hbm_to_vmem [thread:$0]  %s20, 4096, %s22, [#allocation4], 256, 256, 16
    $region9: #{vit_encoder_forward.26} parent=1 // pred_fallthru
      _
    // Predicated region
    $region10: #{vit_encoder_forward.26} parent=1 // pred_check
      _
    $region11: #{vit_encoder_forward.26} parent=1 // pred_check_branch
      %29 = sbr.rel (0) target = $region13
    $region12: #{vit_encoder_forward.26} parent=1 // pred_region
      %31 = vsyncadd [#allocation6], 0
      %s33 = sshll.u32 %s2, 4
      %s34 = int_to_ptr.hbm [resolvable:$true] %s33
      %s35 = sshll.u32 [#allocation5], 4
      %s36 = int_to_ptr.vmem [resolvable:$true] %s35
      %38 = dma.hbm_to_vmem [thread:$0]  %s34, 64, %s36, [#allocation6]
    $region13: #{vit_encoder_forward.26} parent=1 // pred_fallthru
      _
    // Predicated region
    $region14: #{vit_encoder_forward.26} parent=1 // pred_check
      _
    $region15: #{vit_encoder_forward.26} parent=1 // pred_check_branch
      %40 = sbr.rel (0) target = $region17
    $region16: #{vit_encoder_forward.26} parent=1 // pred_region
      %42 = vsyncadd [#allocation6], 0
      %s44 = sshll.u32 %s3, 4
      %s45 = int_to_ptr.hbm [resolvable:$true] %s44
      %s46 = sshll.u32 [#allocation7], 4
      %s47 = int_to_ptr.vmem [resolvable:$true] %s46
      %49 = dma.hbm_to_vmem [thread:$0]  %s45, 16, %s47, [#allocation6]
    $region17: #{vit_encoder_forward.26} parent=1 // pred_fallthru
      _
    // Predicated region
    $region18: #{vit_encoder_forward.26} parent=1 // pred_check
      _
    $region19: #{vit_encoder_forward.26} parent=1 // pred_check_branch
      %51 = sbr.rel (0) target = $region21
    $region20: #{vit_encoder_forward.26} parent=1 // pred_region
      %53 = vsyncadd [#allocation9], 0
      %s55 = sshll.u32 %s4, 4
      %s56 = int_to_ptr.hbm [resolvable:$true] %s55
      %s57 = sshll.u32 [#allocation8], 4
      %s58 = int_to_ptr.vmem [resolvable:$true] %s57
      %60 = dma.hbm_to_vmem [thread:$0]  %s56, 16, %s58, [#allocation9]
    $region21: #{vit_encoder_forward.26} parent=1 // pred_fallthru
      _
    // Predicated region
    $region22: #{vit_encoder_forward.26} parent=1 // pred_check
      _
    $region23: #{vit_encoder_forward.26} parent=1 // pred_check_branch
      %62 = sbr.rel (0) target = $region25
    $region24: #{vit_encoder_forward.26} parent=1 // pred_region
      %64 = dma.done [#allocation4], 4096
    $region25: #{vit_encoder_forward.26} parent=1 // pred_fallthru
      _
    // Predicated region
    $region26: #{vit_encoder_forward.26} parent=1 // pred_check
      _
    $region27: #{vit_encoder_forward.26} parent=1 // pred_check_branch
      %66 = sbr.rel (0) target = $region29
    $region28: #{vit_encoder_forward.26} parent=1 // pred_region
      %68 = dma.done [#allocation6], 64
    $region29: #{vit_encoder_forward.26} parent=1 // pred_fallthru
      _
    // Predicated region
    $region30: #{vit_encoder_forward.26} parent=1 // pred_check
      _
    $region31: #{vit_encoder_forward.26} parent=1 // pred_check_branch
      %70 = sbr.rel (0) target = $region33
    $region32: #{vit_encoder_forward.26} parent=1 // pred_region
      %72 = dma.done [#allocation6], 16
    $region33: #{vit_encoder_forward.26} parent=1 // pred_fallthru
      _
    // Predicated region
    $region34: #{vit_encoder_forward.26} parent=1 // pred_check
      _
    $region35: #{vit_encoder_forward.26} parent=1 // pred_check_branch
      %74 = sbr.rel (0) target = $region37
    $region36: #{vit_encoder_forward.26} parent=1 // pred_region
      %76 = dma.done [#allocation9], 16
    $region37: #{vit_encoder_forward.26} parent=1 // pred_fallthru
      _
    %p77 = scmp.eq.s32.totalorder 0, 0
    // Predicated region
    $region38: #{vit_encoder_forward.26} parent=1 // pred_check
      %p78 = pneg %p77
    $region39: #{vit_encoder_forward.26} parent=1 // pred_check_branch
      %80 = sbr.rel (%p78) target = $region41
    $region40: #{vit_encoder_forward.26} parent=1 // pred_region
      %v81 = vld [vmem:[%s0] sm:$0xff]
      %v82 = vld [vmem:[%s0 + $0x8] sm:$0xff]
      %v83 = vld [vmem:[%s0 + $0x10] sm:$0xff]
      %v84 = vld [vmem:[%s0 + $0x18] sm:$0xff]
      %85 = vadd.xlane.f32.xlu0 %v81
      %v86 = vpop.xlane.xlu0 %85
      %87 = vadd.xlane.f32.xlu0 %v82
      %v88 = vpop.xlane.xlu0 %87
      %89 = vadd.xlane.f32.xlu0 %v83
      %v90 = vpop.xlane.xlu0 %89
      %91 = vadd.xlane.f32.xlu0 %v84
      %v92 = vpop.xlane.xlu0 %91
      %v93 = vrcp.pop 128.0
      %v94 = vmul.f32 128.0, %v93
      %v95 = vsub.f32 1.0, %v94
      %v96 = vmul.f32 %v93, %v95
      %v97 = vadd.f32 %v93, %v96
      %vm98 = vweird.f32 %v93
      %v99 = vsel %vm98, %v93, %v97
      %v100 = vmul.f32 %v86, %v99
      %v101 = vmul.f32 %v88, %v99
      %v102 = vmul.f32 %v90, %v99
      %v103 = vmul.f32 %v92, %v99
      %v104 = vsub.f32 %v81, %v100
      %v105 = vsub.f32 %v82, %v101
      %v106 = vsub.f32 %v83, %v102
      %v107 = vsub.f32 %v84, %v103
      %v108 = vmul.f32 %v104, %v104
      %v109 = vmul.f32 %v105, %v105
      %v110 = vmul.f32 %v106, %v106
      %v111 = vmul.f32 %v107, %v107
      %112 = vadd.xlane.f32.xlu0 %v108
      %v113 = vpop.xlane.xlu0 %112
      %114 = vadd.xlane.f32.xlu0 %v109
      %v115 = vpop.xlane.xlu0 %114
      %116 = vadd.xlane.f32.xlu0 %v110
      %v117 = vpop.xlane.xlu0 %116
      %118 = vadd.xlane.f32.xlu0 %v111
      %v119 = vpop.xlane.xlu0 %118
      %v120 = vmul.f32 %v113, %v99
      %v121 = vmul.f32 %v115, %v99
      %v122 = vmul.f32 %v117, %v99
      %v123 = vmul.f32 %v119, %v99
      %v124 = vadd.f32 %v120, 1e-06
      %v125 = vadd.f32 %v121, 1e-06
      %v126 = vadd.f32 %v122, 1e-06
      %v127 = vadd.f32 %v123, 1e-06
      %v128 = vrsqrt.pop %v124
      %v129 = vmul.f32 %v128, %v124
      %v130 = vmul.f32 %v129, %v128
      %v131 = vmul.f32 0.5, %v130
      %v132 = vsub.f32 1.5, %v131
      %v133 = vmul.f32 %v128, %v132
      %vm134 = vweird.f32 %v124
      %vm135 = vweird.f32 %v128
      %vm136 = vmor %vm134, %vm135
      %v137 = vsel %vm136, %v128, %v133
      %v138 = vrsqrt.pop %v125
      %v139 = vmul.f32 %v138, %v125
      %v140 = vmul.f32 %v139, %v138
      %v141 = vmul.f32 0.5, %v140
      %v142 = vsub.f32 1.5, %v141
      %v143 = vmul.f32 %v138, %v142
      %vm144 = vweird.f32 %v125
      %vm145 = vweird.f32 %v138
      %vm146 = vmor %vm144, %vm145
      %v147 = vsel %vm146, %v138, %v143
      %v148 = vrsqrt.pop %v126
      %v149 = vmul.f32 %v148, %v126
      %v150 = vmul.f32 %v149, %v148
      %v151 = vmul.f32 0.5, %v150
      %v152 = vsub.f32 1.5, %v151
      %v153 = vmul.f32 %v148, %v152
      %vm154 = vweird.f32 %v126
      %vm155 = vweird.f32 %v148
      %vm156 = vmor %vm154, %vm155
      %v157 = vsel %vm156, %v148, %v153
      %v158 = vrsqrt.pop %v127
      %v159 = vmul.f32 %v158, %v127
      %v160 = vmul.f32 %v159, %v158
      %v161 = vmul.f32 0.5, %v160
      %v162 = vsub.f32 1.5, %v161
      %v163 = vmul.f32 %v158, %v162
      %vm164 = vweird.f32 %v127
      %vm165 = vweird.f32 %v158
      %vm166 = vmor %vm164, %vm165
      %v167 = vsel %vm166, %v158, %v163
      %v168 = vmul.f32 %v104, %v137
      %v169 = vmul.f32 %v105, %v147
      %v170 = vmul.f32 %v106, %v157
      %v171 = vmul.f32 %v107, %v167
      %v172 = vld [vmem:[#allocation7] sm:$0x1]
      %v174 = vperm.slane %v172, 0
      %v176 = vmul.f32 %v168, %v174
      %v177 = vmul.f32 %v169, %v174
      %v178 = vmul.f32 %v170, %v174
      %v179 = vmul.f32 %v171, %v174
      %v180 = vld [vmem:[#allocation8] sm:$0x1]
      %v182 = vperm.slane %v180, 0
      %v184 = vadd.f32 %v176, %v182
      %v185 = vadd.f32 %v177, %v182
      %v186 = vadd.f32 %v178, %v182
      %v187 = vadd.f32 %v179, %v182
      %v188 = vpack.c.bf16 %v184, %v184
      %v189 = vpack.c.bf16 %v185, %v185
      %v190 = vpack.c.bf16 %v186, %v186
      %v191 = vpack.c.bf16 %v187, %v187
      %192 = vst [vmem:[#allocation2] sm:$0xf] %v188
      %193 = vst [vmem:[#allocation2 + $0x4] sm:$0xf] %v189
      %194 = vst [vmem:[#allocation2 + $0x8] sm:$0xf] %v190
      %195 = vst [vmem:[#allocation2 + $0xc] sm:$0xf] %v191
    $region41: #{vit_encoder_forward.26} parent=1 // pred_fallthru
      _
    %v196 = vld [vmem:[#allocation2] sm:$0xf]
    %v197 = vld [vmem:[#allocation2 + $0x4] sm:$0xf]
    %v198 = vld [vmem:[#allocation2 + $0x8] sm:$0xf]
    %v199 = vld [vmem:[#allocation2 + $0xc] sm:$0xf]
    %v200 = vld [vmem:[#allocation3] sm:$0xff]
    %v201 = vld [vmem:[#allocation3 + $0x8] sm:$0xff]
    %v202 = vld [vmem:[#allocation3 + $0x10] sm:$0xff]
    %v203 = vld [vmem:[#allocation3 + $0x18] sm:$0xff]
    %v204 = vld [vmem:[#allocation3 + $0x20] sm:$0xff]
    %v205 = vld [vmem:[#allocation3 + $0x28] sm:$0xff]
    %v206 = vld [vmem:[#allocation3 + $0x30] sm:$0xff]
    %v207 = vld [vmem:[#allocation3 + $0x38] sm:$0xff]
    %v208 = vld [vmem:[#allocation3 + $0x40] sm:$0xff]
    %v209 = vld [vmem:[#allocation3 + $0x48] sm:$0xff]
    %v210 = vld [vmem:[#allocation3 + $0x50] sm:$0xff]
    %v211 = vld [vmem:[#allocation3 + $0x58] sm:$0xff]
    %v212 = vld [vmem:[#allocation3 + $0x60] sm:$0xff]
    %v213 = vld [vmem:[#allocation3 + $0x68] sm:$0xff]
    %v214 = vld [vmem:[#allocation3 + $0x70] sm:$0xff]
    %v215 = vld [vmem:[#allocation3 + $0x78] sm:$0xff]
    %v216 = vld [vmem:[#allocation3 + $0x80] sm:$0xff]
    %v217 = vld [vmem:[#allocation3 + $0x88] sm:$0xff]
    %v218 = vld [vmem:[#allocation3 + $0x90] sm:$0xff]
    %v219 = vld [vmem:[#allocation3 + $0x98] sm:$0xff]
    %v220 = vld [vmem:[#allocation3 + $0xa0] sm:$0xff]
    %v221 = vld [vmem:[#allocation3 + $0xa8] sm:$0xff]
    %v222 = vld [vmem:[#allocation3 + $0xb0] sm:$0xff]
    %v223 = vld [vmem:[#allocation3 + $0xb8] sm:$0xff]
    %v224 = vld [vmem:[#allocation3 + $0xc0] sm:$0xff]
    %v225 = vld [vmem:[#allocation3 + $0xc8] sm:$0xff]
    %v226 = vld [vmem:[#allocation3 + $0xd0] sm:$0xff]
    %v227 = vld [vmem:[#allocation3 + $0xd8] sm:$0xff]
    %v228 = vld [vmem:[#allocation3 + $0xe0] sm:$0xff]
    %v229 = vld [vmem:[#allocation3 + $0xe8] sm:$0xff]
    %v230 = vld [vmem:[#allocation3 + $0xf0] sm:$0xff]
    %v231 = vld [vmem:[#allocation3 + $0xf8] sm:$0xff]
    %v232 = vld [vmem:[#allocation5] sm:$0xf]
    %v234 = vperm.slane %v232, 0
    %v235 = vperm.slane %v232, 1
    %v236 = vperm.slane %v232, 2
    %v237 = vperm.slane %v232, 3
    %v246 = vunpack.c.l.b16 %v196
    %v247 = vunpack.c.l.b16 %v197
    %v248 = vunpack.c.l.b16 %v198
    %v249 = vunpack.c.l.b16 %v199
    %v250 = vpack.c.b16 %v247, %v246
    %v251 = vpack.c.b16 %v249, %v248
    %v286 = vunpack.c.l.b16 %v200
    %v287 = vunpack.c.h.b16 %v200
    %v288 = vunpack.c.l.b16 %v201
    %v289 = vunpack.c.h.b16 %v201
    %v290 = vunpack.c.l.b16 %v202
    %v291 = vunpack.c.h.b16 %v202
    %v292 = vunpack.c.l.b16 %v203
    %v293 = vunpack.c.h.b16 %v203
    %v294 = vunpack.c.l.b16 %v204
    %v295 = vunpack.c.h.b16 %v204
    %v296 = vunpack.c.l.b16 %v205
    %v297 = vunpack.c.h.b16 %v205
    %v298 = vunpack.c.l.b16 %v206
    %v299 = vunpack.c.h.b16 %v206
    %v300 = vunpack.c.l.b16 %v207
    %v301 = vunpack.c.h.b16 %v207
    %v302 = vunpack.c.l.b16 %v208
    %v303 = vunpack.c.h.b16 %v208
    %v304 = vunpack.c.l.b16 %v209
    %v305 = vunpack.c.h.b16 %v209
    %v306 = vunpack.c.l.b16 %v210
    %v307 = vunpack.c.h.b16 %v210
    %v308 = vunpack.c.l.b16 %v211
    %v309 = vunpack.c.h.b16 %v211
    %v310 = vunpack.c.l.b16 %v212
    %v311 = vunpack.c.h.b16 %v212
    %v312 = vunpack.c.l.b16 %v213
    %v313 = vunpack.c.h.b16 %v213
    %v314 = vunpack.c.l.b16 %v214
    %v315 = vunpack.c.h.b16 %v214
    %v316 = vunpack.c.l.b16 %v215
    %v317 = vunpack.c.h.b16 %v215
    %v318 = vunpack.c.l.b16 %v216
    %v319 = vunpack.c.h.b16 %v216
    %v320 = vunpack.c.l.b16 %v217
    %v321 = vunpack.c.h.b16 %v217
    %v322 = vunpack.c.l.b16 %v218
    %v323 = vunpack.c.h.b16 %v218
    %v324 = vunpack.c.l.b16 %v219
    %v325 = vunpack.c.h.b16 %v219
    %v326 = vunpack.c.l.b16 %v220
    %v327 = vunpack.c.h.b16 %v220
    %v328 = vunpack.c.l.b16 %v221
    %v329 = vunpack.c.h.b16 %v221
    %v330 = vunpack.c.l.b16 %v222
    %v331 = vunpack.c.h.b16 %v222
    %v332 = vunpack.c.l.b16 %v223
    %v333 = vunpack.c.h.b16 %v223
    %v334 = vunpack.c.l.b16 %v224
    %v335 = vunpack.c.h.b16 %v224
    %v336 = vunpack.c.l.b16 %v225
    %v337 = vunpack.c.h.b16 %v225
    %v338 = vunpack.c.l.b16 %v226
    %v339 = vunpack.c.h.b16 %v226
    %v340 = vunpack.c.l.b16 %v227
    %v341 = vunpack.c.h.b16 %v227
    %v342 = vunpack.c.l.b16 %v228
    %v343 = vunpack.c.h.b16 %v228
    %v344 = vunpack.c.l.b16 %v229
    %v345 = vunpack.c.h.b16 %v229
    %v346 = vunpack.c.l.b16 %v230
    %v347 = vunpack.c.h.b16 %v230
    %v348 = vunpack.c.l.b16 %v231
    %v349 = vunpack.c.h.b16 %v231
    %v350 = vpack.c.b16 %v290, %v286
    %v351 = vpack.c.b16 %v291, %v287
    %v352 = vpack.c.b16 %v292, %v288
    %v353 = vpack.c.b16 %v293, %v289
    %v354 = vpack.c.b16 %v298, %v294
    %v355 = vpack.c.b16 %v299, %v295
    %v356 = vpack.c.b16 %v300, %v296
    %v357 = vpack.c.b16 %v301, %v297
    %v358 = vpack.c.b16 %v306, %v302
    %v359 = vpack.c.b16 %v307, %v303
    %v360 = vpack.c.b16 %v308, %v304
    %v361 = vpack.c.b16 %v309, %v305
    %v362 = vpack.c.b16 %v314, %v310
    %v363 = vpack.c.b16 %v315, %v311
    %v364 = vpack.c.b16 %v316, %v312
    %v365 = vpack.c.b16 %v317, %v313
    %v366 = vpack.c.b16 %v322, %v318
    %v367 = vpack.c.b16 %v323, %v319
    %v368 = vpack.c.b16 %v324, %v320
    %v369 = vpack.c.b16 %v325, %v321
    %v370 = vpack.c.b16 %v330, %v326
    %v371 = vpack.c.b16 %v331, %v327
    %v372 = vpack.c.b16 %v332, %v328
    %v373 = vpack.c.b16 %v333, %v329
    %v374 = vpack.c.b16 %v338, %v334
    %v375 = vpack.c.b16 %v339, %v335
    %v376 = vpack.c.b16 %v340, %v336
    %v377 = vpack.c.b16 %v341, %v337
    %v378 = vpack.c.b16 %v346, %v342
    %v379 = vpack.c.b16 %v347, %v343
    %v380 = vpack.c.b16 %v348, %v344
    %v381 = vpack.c.b16 %v349, %v345
    %414 = vmatpush.bf16.msra.mxu0 %v378
    %415 = vmatpush.bf16.msra.mxu0 %v374
    %416 = vmatpush.bf16.msra.mxu0 %v370
    %417 = vmatpush.bf16.msra.mxu0 %v366
    %418 = vmatpush.bf16.msra.mxu0 %v362
    %419 = vmatpush.bf16.msra.mxu0 %v358
    %420 = vmatpush.bf16.msra.mxu0 %v354
    %421 = vmatpush.bf16.msra.mxu0 %v350
    %422 = vmatmul.bf16.gmra.mxu0 %v250
    %v423 = vpop.f32.mrf.mxu0
    %v424 = vadd.f32 %v234, %v423
    %v425 = vpop.f32.mrf.mxu0
    %v426 = vadd.f32 %v234, %v425
    %427 = vmatmul.bf16.gmra.mxu0 %v251
    %v428 = vpop.f32.mrf.mxu0
    %v429 = vadd.f32 %v234, %v428
    %v430 = vpop.f32.mrf.mxu0
    %v431 = vadd.f32 %v234, %v430
    %432 = vdwg.mxu0
    %433 = vmatpush.bf16.msra.mxu0 %v379
    %434 = vmatpush.bf16.msra.mxu0 %v375
    %435 = vmatpush.bf16.msra.mxu0 %v371
    %436 = vmatpush.bf16.msra.mxu0 %v367
    %437 = vmatpush.bf16.msra.mxu0 %v363
    %438 = vmatpush.bf16.msra.mxu0 %v359
    %439 = vmatpush.bf16.msra.mxu0 %v355
    %440 = vmatpush.bf16.msra.mxu0 %v351
    %441 = vmatmul.bf16.gmra.mxu0 %v250
    %v442 = vpop.f32.mrf.mxu0
    %v443 = vadd.f32 %v235, %v442
    %v444 = vpop.f32.mrf.mxu0
    %v445 = vadd.f32 %v235, %v444
    %446 = vmatmul.bf16.gmra.mxu0 %v251
    %v447 = vpop.f32.mrf.mxu0
    %v448 = vadd.f32 %v235, %v447
    %v449 = vpop.f32.mrf.mxu0
    %v450 = vadd.f32 %v235, %v449
    %451 = vdwg.mxu0
    %452 = vmatpush.bf16.msra.mxu0 %v380
    %453 = vmatpush.bf16.msra.mxu0 %v376
    %454 = vmatpush.bf16.msra.mxu0 %v372
    %455 = vmatpush.bf16.msra.mxu0 %v368
    %456 = vmatpush.bf16.msra.mxu0 %v364
    %457 = vmatpush.bf16.msra.mxu0 %v360
    %458 = vmatpush.bf16.msra.mxu0 %v356
    %459 = vmatpush.bf16.msra.mxu0 %v352
    %460 = vmatmul.bf16.gmra.mxu0 %v250
    %v461 = vpop.f32.mrf.mxu0
    %v462 = vadd.f32 %v236, %v461
    %v463 = vpop.f32.mrf.mxu0
    %v464 = vadd.f32 %v236, %v463
    %465 = vmatmul.bf16.gmra.mxu0 %v251
    %v466 = vpop.f32.mrf.mxu0
    %v467 = vadd.f32 %v236, %v466
    %v468 = vpop.f32.mrf.mxu0
    %v469 = vadd.f32 %v236, %v468
    %470 = vdwg.mxu0
    %471 = vmatpush.bf16.msra.mxu0 %v381
    %472 = vmatpush.bf16.msra.mxu0 %v377
    %473 = vmatpush.bf16.msra.mxu0 %v373
    %474 = vmatpush.bf16.msra.mxu0 %v369
    %475 = vmatpush.bf16.msra.mxu0 %v365
    %476 = vmatpush.bf16.msra.mxu0 %v361
    %477 = vmatpush.bf16.msra.mxu0 %v357
    %478 = vmatpush.bf16.msra.mxu0 %v353
    %479 = vmatmul.bf16.gmra.mxu0 %v250
    %v480 = vpop.f32.mrf.mxu0
    %v481 = vadd.f32 %v237, %v480
    %v482 = vpop.f32.mrf.mxu0
    %v483 = vadd.f32 %v237, %v482
    %484 = vmatmul.bf16.gmra.mxu0 %v251
    %v485 = vpop.f32.mrf.mxu0
    %v486 = vadd.f32 %v237, %v485
    %v487 = vpop.f32.mrf.mxu0
    %v488 = vadd.f32 %v237, %v487
    %489 = vdwg.mxu0
    %v490 = vmul.f32 %v424, 0.5
    %v491 = vmul.f32 %v443, 0.5
    %v492 = vmul.f32 %v462, 0.5
    %v493 = vmul.f32 %v481, 0.5
    %v494 = vmul.f32 %v426, 0.5
    %v495 = vmul.f32 %v445, 0.5
    %v496 = vmul.f32 %v464, 0.5
    %v497 = vmul.f32 %v483, 0.5
    %v498 = vmul.f32 %v429, 0.5
    %v499 = vmul.f32 %v448, 0.5
    %v500 = vmul.f32 %v467, 0.5
    %v501 = vmul.f32 %v486, 0.5
    %v502 = vmul.f32 %v431, 0.5
    %v503 = vmul.f32 %v450, 0.5
    %v504 = vmul.f32 %v469, 0.5
    %v505 = vmul.f32 %v488, 0.5
    %v506 = vmul.f32 %v424, 0.70710677
    %v507 = vmul.f32 %v443, 0.70710677
    %v508 = vmul.f32 %v462, 0.70710677
    %v509 = vmul.f32 %v481, 0.70710677
    %v510 = vmul.f32 %v426, 0.70710677
    %v511 = vmul.f32 %v445, 0.70710677
    %v512 = vmul.f32 %v464, 0.70710677
    %v513 = vmul.f32 %v483, 0.70710677
    %v514 = vmul.f32 %v429, 0.70710677
    %v515 = vmul.f32 %v448, 0.70710677
    %v516 = vmul.f32 %v467, 0.70710677
    %v517 = vmul.f32 %v486, 0.70710677
    %v518 = vmul.f32 %v431, 0.70710677
    %v519 = vmul.f32 %v450, 0.70710677
    %v520 = vmul.f32 %v469, 0.70710677
    %v521 = vmul.f32 %v488, 0.70710677
    %v522 = vmul.f32 %v506, %v506
    %v523 = vmin.f32 16.0, %v522
    %v524 = vmul.f32 %v523, 2.1237322e-06
    %v525 = vadd.f32 %v524, 0.00028619796
    %v526 = vmul.f32 %v523, %v525
    %v527 = vadd.f32 %v526, 0.0036580483
    %v528 = vmul.f32 %v523, %v527
    %v529 = vadd.f32 %v528, 0.05243302
    %v530 = vmul.f32 %v523, %v529
    %v531 = vadd.f32 %v530, 0.18741608
    %v532 = vmul.f32 %v523, %v531
    %v533 = vadd.f32 %v532, 1.1283791
    %v534 = vmul.f32 %v506, %v533
    %v535 = vmul.f32 %v523, 3.8918573e-05
    %v536 = vadd.f32 %v535, 0.001143296
    %v537 = vmul.f32 %v523, %v536
    %v538 = vadd.f32 %v537, 0.014752088
    %v539 = vmul.f32 %v523, %v538
    %v540 = vadd.f32 %v539, 0.112945676
    %v541 = vmul.f32 %v523, %v540
    %v542 = vadd.f32 %v541, 0.4994258
    %v543 = vmul.f32 %v523, %v542
    %v544 = vadd.f32 %v543, 1.0
    %v545 = vrcp.pop %v544
    %v546 = vmul.f32 %v544, %v545
    %v547 = vsub.f32 1.0, %v546
    %v548 = vmul.f32 %v545, %v547
    %v549 = vadd.f32 %v545, %v548
    %vm550 = vweird.f32 %v544
    %vm551 = vweird.f32 %v545
    %vm552 = vmor %vm550, %vm551
    %v553 = vsel %vm552, %v545, %v549
    %v554 = vand.u32 2147483647, %v544
    %vm555 = vcmp.eq.f32.partialorder %v554, 8.507059e+37
    %v556 = vand.u32 %v544, 2147483648
    %v557 = vor.u32 1.1754944e-38, %v556
    %v558 = vsel %vm555, %v557, %v553
    %v559 = vmul.f32 %v534, %v558
    %v560 = vmin.f32 %v559, 1.0
    %v561 = vmax.f32 %v560, -1.0
    %v562 = vmul.f32 %v507, %v507
    %v563 = vmin.f32 16.0, %v562
    %v564 = vmul.f32 %v563, 2.1237322e-06
    %v565 = vadd.f32 %v564, 0.00028619796
    %v566 = vmul.f32 %v563, %v565
    %v567 = vadd.f32 %v566, 0.0036580483
    %v568 = vmul.f32 %v563, %v567
    %v569 = vadd.f32 %v568, 0.05243302
    %v570 = vmul.f32 %v563, %v569
    %v571 = vadd.f32 %v570, 0.18741608
    %v572 = vmul.f32 %v563, %v571
    %v573 = vadd.f32 %v572, 1.1283791
    %v574 = vmul.f32 %v507, %v573
    %v575 = vmul.f32 %v563, 3.8918573e-05
    %v576 = vadd.f32 %v575, 0.001143296
    %v577 = vmul.f32 %v563, %v576
    %v578 = vadd.f32 %v577, 0.014752088
    %v579 = vmul.f32 %v563, %v578
    %v580 = vadd.f32 %v579, 0.112945676
    %v581 = vmul.f32 %v563, %v580
    %v582 = vadd.f32 %v581, 0.4994258
    %v583 = vmul.f32 %v563, %v582
    %v584 = vadd.f32 %v583, 1.0
    %v585 = vrcp.pop %v584
    %v586 = vmul.f32 %v584, %v585
    %v587 = vsub.f32 1.0, %v586
    %v588 = vmul.f32 %v585, %v587
    %v589 = vadd.f32 %v585, %v588
    %vm590 = vweird.f32 %v584
    %vm591 = vweird.f32 %v585
    %vm592 = vmor %vm590, %vm591
    %v593 = vsel %vm592, %v585, %v589
    %v594 = vand.u32 2147483647, %v584
    %vm595 = vcmp.eq.f32.partialorder %v594, 8.507059e+37
    %v596 = vand.u32 %v584, 2147483648
    %v597 = vor.u32 1.1754944e-38, %v596
    %v598 = vsel %vm595, %v597, %v593
    %v599 = vmul.f32 %v574, %v598
    %v600 = vmin.f32 %v599, 1.0
    %v601 = vmax.f32 %v600, -1.0
    %v602 = vmul.f32 %v508, %v508
    %v603 = vmin.f32 16.0, %v602
    %v604 = vmul.f32 %v603, 2.1237322e-06
    %v605 = vadd.f32 %v604, 0.00028619796
    %v606 = vmul.f32 %v603, %v605
    %v607 = vadd.f32 %v606, 0.0036580483
    %v608 = vmul.f32 %v603, %v607
    %v609 = vadd.f32 %v608, 0.05243302
    %v610 = vmul.f32 %v603, %v609
    %v611 = vadd.f32 %v610, 0.18741608
    %v612 = vmul.f32 %v603, %v611
    %v613 = vadd.f32 %v612, 1.1283791
    %v614 = vmul.f32 %v508, %v613
    %v615 = vmul.f32 %v603, 3.8918573e-05
    %v616 = vadd.f32 %v615, 0.001143296
    %v617 = vmul.f32 %v603, %v616
    %v618 = vadd.f32 %v617, 0.014752088
    %v619 = vmul.f32 %v603, %v618
    %v620 = vadd.f32 %v619, 0.112945676
    %v621 = vmul.f32 %v603, %v620
    %v622 = vadd.f32 %v621, 0.4994258
    %v623 = vmul.f32 %v603, %v622
    %v624 = vadd.f32 %v623, 1.0
    %v625 = vrcp.pop %v624
    %v626 = vmul.f32 %v624, %v625
    %v627 = vsub.f32 1.0, %v626
    %v628 = vmul.f32 %v625, %v627
    %v629 = vadd.f32 %v625, %v628
    %vm630 = vweird.f32 %v624
    %vm631 = vweird.f32 %v625
    %vm632 = vmor %vm630, %vm631
    %v633 = vsel %vm632, %v625, %v629
    %v634 = vand.u32 2147483647, %v624
    %vm635 = vcmp.eq.f32.partialorder %v634, 8.507059e+37
    %v636 = vand.u32 %v624, 2147483648
    %v637 = vor.u32 1.1754944e-38, %v636
    %v638 = vsel %vm635, %v637, %v633
    %v639 = vmul.f32 %v614, %v638
    %v640 = vmin.f32 %v639, 1.0
    %v641 = vmax.f32 %v640, -1.0
    %v642 = vmul.f32 %v509, %v509
    %v643 = vmin.f32 16.0, %v642
    %v644 = vmul.f32 %v643, 2.1237322e-06
    %v645 = vadd.f32 %v644, 0.00028619796
    %v646 = vmul.f32 %v643, %v645
    %v647 = vadd.f32 %v646, 0.0036580483
    %v648 = vmul.f32 %v643, %v647
    %v649 = vadd.f32 %v648, 0.05243302
    %v650 = vmul.f32 %v643, %v649
    %v651 = vadd.f32 %v650, 0.18741608
    %v652 = vmul.f32 %v643, %v651
    %v653 = vadd.f32 %v652, 1.1283791
    %v654 = vmul.f32 %v509, %v653
    %v655 = vmul.f32 %v643, 3.8918573e-05
    %v656 = vadd.f32 %v655, 0.001143296
    %v657 = vmul.f32 %v643, %v656
    %v658 = vadd.f32 %v657, 0.014752088
    %v659 = vmul.f32 %v643, %v658
    %v660 = vadd.f32 %v659, 0.112945676
    %v661 = vmul.f32 %v643, %v660
    %v662 = vadd.f32 %v661, 0.4994258
    %v663 = vmul.f32 %v643, %v662
    %v664 = vadd.f32 %v663, 1.0
    %v665 = vrcp.pop %v664
    %v666 = vmul.f32 %v664, %v665
    %v667 = vsub.f32 1.0, %v666
    %v668 = vmul.f32 %v665, %v667
    %v669 = vadd.f32 %v665, %v668
    %vm670 = vweird.f32 %v664
    %vm671 = vweird.f32 %v665
    %vm672 = vmor %vm670, %vm671
    %v673 = vsel %vm672, %v665, %v669
    %v674 = vand.u32 2147483647, %v664
    %vm675 = vcmp.eq.f32.partialorder %v674, 8.507059e+37
    %v676 = vand.u32 %v664, 2147483648
    %v677 = vor.u32 1.1754944e-38, %v676
    %v678 = vsel %vm675, %v677, %v673
    %v679 = vmul.f32 %v654, %v678
    %v680 = vmin.f32 %v679, 1.0
    %v681 = vmax.f32 %v680, -1.0
    %v682 = vmul.f32 %v510, %v510
    %v683 = vmin.f32 16.0, %v682
    %v684 = vmul.f32 %v683, 2.1237322e-06
    %v685 = vadd.f32 %v684, 0.00028619796
    %v686 = vmul.f32 %v683, %v685
    %v687 = vadd.f32 %v686, 0.0036580483
    %v688 = vmul.f32 %v683, %v687
    %v689 = vadd.f32 %v688, 0.05243302
    %v690 = vmul.f32 %v683, %v689
    %v691 = vadd.f32 %v690, 0.18741608
    %v692 = vmul.f32 %v683, %v691
    %v693 = vadd.f32 %v692, 1.1283791
    %v694 = vmul.f32 %v510, %v693
    %v695 = vmul.f32 %v683, 3.8918573e-05
    %v696 = vadd.f32 %v695, 0.001143296
    %v697 = vmul.f32 %v683, %v696
    %v698 = vadd.f32 %v697, 0.014752088
    %v699 = vmul.f32 %v683, %v698
    %v700 = vadd.f32 %v699, 0.112945676
    %v701 = vmul.f32 %v683, %v700
    %v702 = vadd.f32 %v701, 0.4994258
    %v703 = vmul.f32 %v683, %v702
    %v704 = vadd.f32 %v703, 1.0
    %v705 = vrcp.pop %v704
    %v706 = vmul.f32 %v704, %v705
    %v707 = vsub.f32 1.0, %v706
    %v708 = vmul.f32 %v705, %v707
    %v709 = vadd.f32 %v705, %v708
    %vm710 = vweird.f32 %v704
    %vm711 = vweird.f32 %v705
    %vm712 = vmor %vm710, %vm711
    %v713 = vsel %vm712, %v705, %v709
    %v714 = vand.u32 2147483647, %v704
    %vm715 = vcmp.eq.f32.partialorder %v714, 8.507059e+37
    %v716 = vand.u32 %v704, 2147483648
    %v717 = vor.u32 1.1754944e-38, %v716
    %v718 = vsel %vm715, %v717, %v713
    %v719 = vmul.f32 %v694, %v718
    %v720 = vmin.f32 %v719, 1.0
    %v721 = vmax.f32 %v720, -1.0
    %v722 = vmul.f32 %v511, %v511
    %v723 = vmin.f32 16.0, %v722
    %v724 = vmul.f32 %v723, 2.1237322e-06
    %v725 = vadd.f32 %v724, 0.00028619796
    %v726 = vmul.f32 %v723, %v725
    %v727 = vadd.f32 %v726, 0.0036580483
    %v728 = vmul.f32 %v723, %v727
    %v729 = vadd.f32 %v728, 0.05243302
    %v730 = vmul.f32 %v723, %v729
    %v731 = vadd.f32 %v730, 0.18741608
    %v732 = vmul.f32 %v723, %v731
    %v733 = vadd.f32 %v732, 1.1283791
    %v734 = vmul.f32 %v511, %v733
    %v735 = vmul.f32 %v723, 3.8918573e-05
    %v736 = vadd.f32 %v735, 0.001143296
    %v737 = vmul.f32 %v723, %v736
    %v738 = vadd.f32 %v737, 0.014752088
    %v739 = vmul.f32 %v723, %v738
    %v740 = vadd.f32 %v739, 0.112945676
    %v741 = vmul.f32 %v723, %v740
    %v742 = vadd.f32 %v741, 0.4994258
    %v743 = vmul.f32 %v723, %v742
    %v744 = vadd.f32 %v743, 1.0
    %v745 = vrcp.pop %v744
    %v746 = vmul.f32 %v744, %v745
    %v747 = vsub.f32 1.0, %v746
    %v748 = vmul.f32 %v745, %v747
    %v749 = vadd.f32 %v745, %v748
    %vm750 = vweird.f32 %v744
    %vm751 = vweird.f32 %v745
    %vm752 = vmor %vm750, %vm751
    %v753 = vsel %vm752, %v745, %v749
    %v754 = vand.u32 2147483647, %v744
    %vm755 = vcmp.eq.f32.partialorder %v754, 8.507059e+37
    %v756 = vand.u32 %v744, 2147483648
    %v757 = vor.u32 1.1754944e-38, %v756
    %v758 = vsel %vm755, %v757, %v753
    %v759 = vmul.f32 %v734, %v758
    %v760 = vmin.f32 %v759, 1.0
    %v761 = vmax.f32 %v760, -1.0
    %v762 = vmul.f32 %v512, %v512
    %v763 = vmin.f32 16.0, %v762
    %v764 = vmul.f32 %v763, 2.1237322e-06
    %v765 = vadd.f32 %v764, 0.00028619796
    %v766 = vmul.f32 %v763, %v765
    %v767 = vadd.f32 %v766, 0.0036580483
    %v768 = vmul.f32 %v763, %v767
    %v769 = vadd.f32 %v768, 0.05243302
    %v770 = vmul.f32 %v763, %v769
    %v771 = vadd.f32 %v770, 0.18741608
    %v772 = vmul.f32 %v763, %v771
    %v773 = vadd.f32 %v772, 1.1283791
    %v774 = vmul.f32 %v512, %v773
    %v775 = vmul.f32 %v763, 3.8918573e-05
    %v776 = vadd.f32 %v775, 0.001143296
    %v777 = vmul.f32 %v763, %v776
    %v778 = vadd.f32 %v777, 0.014752088
    %v779 = vmul.f32 %v763, %v778
    %v780 = vadd.f32 %v779, 0.112945676
    %v781 = vmul.f32 %v763, %v780
    %v782 = vadd.f32 %v781, 0.4994258
    %v783 = vmul.f32 %v763, %v782
    %v784 = vadd.f32 %v783, 1.0
    %v785 = vrcp.pop %v784
    %v786 = vmul.f32 %v784, %v785
    %v787 = vsub.f32 1.0, %v786
    %v788 = vmul.f32 %v785, %v787
    %v789 = vadd.f32 %v785, %v788
    %vm790 = vweird.f32 %v784
    %vm791 = vweird.f32 %v785
    %vm792 = vmor %vm790, %vm791
    %v793 = vsel %vm792, %v785, %v789
    %v794 = vand.u32 2147483647, %v784
    %vm795 = vcmp.eq.f32.partialorder %v794, 8.507059e+37
    %v796 = vand.u32 %v784, 2147483648
    %v797 = vor.u32 1.1754944e-38, %v796
    %v798 = vsel %vm795, %v797, %v793
    %v799 = vmul.f32 %v774, %v798
    %v800 = vmin.f32 %v799, 1.0
    %v801 = vmax.f32 %v800, -1.0
    %v802 = vmul.f32 %v513, %v513
    %v803 = vmin.f32 16.0, %v802
    %v804 = vmul.f32 %v803, 2.1237322e-06
    %v805 = vadd.f32 %v804, 0.00028619796
    %v806 = vmul.f32 %v803, %v805
    %v807 = vadd.f32 %v806, 0.0036580483
    %v808 = vmul.f32 %v803, %v807
    %v809 = vadd.f32 %v808, 0.05243302
    %v810 = vmul.f32 %v803, %v809
    %v811 = vadd.f32 %v810, 0.18741608
    %v812 = vmul.f32 %v803, %v811
    %v813 = vadd.f32 %v812, 1.1283791
    %v814 = vmul.f32 %v513, %v813
    %v815 = vmul.f32 %v803, 3.8918573e-05
    %v816 = vadd.f32 %v815, 0.001143296
    %v817 = vmul.f32 %v803, %v816
    %v818 = vadd.f32 %v817, 0.014752088
    %v819 = vmul.f32 %v803, %v818
    %v820 = vadd.f32 %v819, 0.112945676
    %v821 = vmul.f32 %v803, %v820
    %v822 = vadd.f32 %v821, 0.4994258
    %v823 = vmul.f32 %v803, %v822
    %v824 = vadd.f32 %v823, 1.0
    %v825 = vrcp.pop %v824
    %v826 = vmul.f32 %v824, %v825
    %v827 = vsub.f32 1.0, %v826
    %v828 = vmul.f32 %v825, %v827
    %v829 = vadd.f32 %v825, %v828
    %vm830 = vweird.f32 %v824
    %vm831 = vweird.f32 %v825
    %vm832 = vmor %vm830, %vm831
    %v833 = vsel %vm832, %v825, %v829
    %v834 = vand.u32 2147483647, %v824
    %vm835 = vcmp.eq.f32.partialorder %v834, 8.507059e+37
    %v836 = vand.u32 %v824, 2147483648
    %v837 = vor.u32 1.1754944e-38, %v836
    %v838 = vsel %vm835, %v837, %v833
    %v839 = vmul.f32 %v814, %v838
    %v840 = vmin.f32 %v839, 1.0
    %v841 = vmax.f32 %v840, -1.0
    %v842 = vmul.f32 %v514, %v514
    %v843 = vmin.f32 16.0, %v842
    %v844 = vmul.f32 %v843, 2.1237322e-06
    %v845 = vadd.f32 %v844, 0.00028619796
    %v846 = vmul.f32 %v843, %v845
    %v847 = vadd.f32 %v846, 0.0036580483
    %v848 = vmul.f32 %v843, %v847
    %v849 = vadd.f32 %v848, 0.05243302
    %v850 = vmul.f32 %v843, %v849
    %v851 = vadd.f32 %v850, 0.18741608
    %v852 = vmul.f32 %v843, %v851
    %v853 = vadd.f32 %v852, 1.1283791
    %v854 = vmul.f32 %v514, %v853
    %v855 = vmul.f32 %v843, 3.8918573e-05
    %v856 = vadd.f32 %v855, 0.001143296
    %v857 = vmul.f32 %v843, %v856
    %v858 = vadd.f32 %v857, 0.014752088
    %v859 = vmul.f32 %v843, %v858
    %v860 = vadd.f32 %v859, 0.112945676
    %v861 = vmul.f32 %v843, %v860
    %v862 = vadd.f32 %v861, 0.4994258
    %v863 = vmul.f32 %v843, %v862
    %v864 = vadd.f32 %v863, 1.0
    %v865 = vrcp.pop %v864
    %v866 = vmul.f32 %v864, %v865
    %v867 = vsub.f32 1.0, %v866
    %v868 = vmul.f32 %v865, %v867
    %v869 = vadd.f32 %v865, %v868
    %vm870 = vweird.f32 %v864
    %vm871 = vweird.f32 %v865
    %vm872 = vmor %vm870, %vm871
    %v873 = vsel %vm872, %v865, %v869
    %v874 = vand.u32 2147483647, %v864
    %vm875 = vcmp.eq.f32.partialorder %v874, 8.507059e+37
    %v876 = vand.u32 %v864, 2147483648
    %v877 = vor.u32 1.1754944e-38, %v876
    %v878 = vsel %vm875, %v877, %v873
    %v879 = vmul.f32 %v854, %v878
    %v880 = vmin.f32 %v879, 1.0
    %v881 = vmax.f32 %v880, -1.0
    %v882 = vmul.f32 %v515, %v515
    %v883 = vmin.f32 16.0, %v882
    %v884 = vmul.f32 %v883, 2.1237322e-06
    %v885 = vadd.f32 %v884, 0.00028619796
    %v886 = vmul.f32 %v883, %v885
    %v887 = vadd.f32 %v886, 0.0036580483
    %v888 = vmul.f32 %v883, %v887
    %v889 = vadd.f32 %v888, 0.05243302
    %v890 = vmul.f32 %v883, %v889
    %v891 = vadd.f32 %v890, 0.18741608
    %v892 = vmul.f32 %v883, %v891
    %v893 = vadd.f32 %v892, 1.1283791
    %v894 = vmul.f32 %v515, %v893
    %v895 = vmul.f32 %v883, 3.8918573e-05
    %v896 = vadd.f32 %v895, 0.001143296
    %v897 = vmul.f32 %v883, %v896
    %v898 = vadd.f32 %v897, 0.014752088
    %v899 = vmul.f32 %v883, %v898
    %v900 = vadd.f32 %v899, 0.112945676
    %v901 = vmul.f32 %v883, %v900
    %v902 = vadd.f32 %v901, 0.4994258
    %v903 = vmul.f32 %v883, %v902
    %v904 = vadd.f32 %v903, 1.0
    %v905 = vrcp.pop %v904
    %v906 = vmul.f32 %v904, %v905
    %v907 = vsub.f32 1.0, %v906
    %v908 = vmul.f32 %v905, %v907
    %v909 = vadd.f32 %v905, %v908
    %vm910 = vweird.f32 %v904
    %vm911 = vweird.f32 %v905
    %vm912 = vmor %vm910, %vm911
    %v913 = vsel %vm912, %v905, %v909
    %v914 = vand.u32 2147483647, %v904
    %vm915 = vcmp.eq.f32.partialorder %v914, 8.507059e+37
    %v916 = vand.u32 %v904, 2147483648
    %v917 = vor.u32 1.1754944e-38, %v916
    %v918 = vsel %vm915, %v917, %v913
    %v919 = vmul.f32 %v894, %v918
    %v920 = vmin.f32 %v919, 1.0
    %v921 = vmax.f32 %v920, -1.0
    %v922 = vmul.f32 %v516, %v516
    %v923 = vmin.f32 16.0, %v922
    %v924 = vmul.f32 %v923, 2.1237322e-06
    %v925 = vadd.f32 %v924, 0.00028619796
    %v926 = vmul.f32 %v923, %v925
    %v927 = vadd.f32 %v926, 0.0036580483
    %v928 = vmul.f32 %v923, %v927
    %v929 = vadd.f32 %v928, 0.05243302
    %v930 = vmul.f32 %v923, %v929
    %v931 = vadd.f32 %v930, 0.18741608
    %v932 = vmul.f32 %v923, %v931
    %v933 = vadd.f32 %v932, 1.1283791
    %v934 = vmul.f32 %v516, %v933
    %v935 = vmul.f32 %v923, 3.8918573e-05
    %v936 = vadd.f32 %v935, 0.001143296
    %v937 = vmul.f32 %v923, %v936
    %v938 = vadd.f32 %v937, 0.014752088
    %v939 = vmul.f32 %v923, %v938
    %v940 = vadd.f32 %v939, 0.112945676
    %v941 = vmul.f32 %v923, %v940
    %v942 = vadd.f32 %v941, 0.4994258
    %v943 = vmul.f32 %v923, %v942
    %v944 = vadd.f32 %v943, 1.0
    %v945 = vrcp.pop %v944
    %v946 = vmul.f32 %v944, %v945
    %v947 = vsub.f32 1.0, %v946
    %v948 = vmul.f32 %v945, %v947
    %v949 = vadd.f32 %v945, %v948
    %vm950 = vweird.f32 %v944
    %vm951 = vweird.f32 %v945
    %vm952 = vmor %vm950, %vm951
    %v953 = vsel %vm952, %v945, %v949
    %v954 = vand.u32 2147483647, %v944
    %vm955 = vcmp.eq.f32.partialorder %v954, 8.507059e+37
    %v956 = vand.u32 %v944, 2147483648
    %v957 = vor.u32 1.1754944e-38, %v956
    %v958 = vsel %vm955, %v957, %v953
    %v959 = vmul.f32 %v934, %v958
    %v960 = vmin.f32 %v959, 1.0
    %v961 = vmax.f32 %v960, -1.0
    %v962 = vmul.f32 %v517, %v517
    %v963 = vmin.f32 16.0, %v962
    %v964 = vmul.f32 %v963, 2.1237322e-06
    %v965 = vadd.f32 %v964, 0.00028619796
    %v966 = vmul.f32 %v963, %v965
    %v967 = vadd.f32 %v966, 0.0036580483
    %v968 = vmul.f32 %v963, %v967
    %v969 = vadd.f32 %v968, 0.05243302
    %v970 = vmul.f32 %v963, %v969
    %v971 = vadd.f32 %v970, 0.18741608
    %v972 = vmul.f32 %v963, %v971
    %v973 = vadd.f32 %v972, 1.1283791
    %v974 = vmul.f32 %v517, %v973
    %v975 = vmul.f32 %v963, 3.8918573e-05
    %v976 = vadd.f32 %v975, 0.001143296
    %v977 = vmul.f32 %v963, %v976
    %v978 = vadd.f32 %v977, 0.014752088
    %v979 = vmul.f32 %v963, %v978
    %v980 = vadd.f32 %v979, 0.112945676
    %v981 = vmul.f32 %v963, %v980
    %v982 = vadd.f32 %v981, 0.4994258
    %v983 = vmul.f32 %v963, %v982
    %v984 = vadd.f32 %v983, 1.0
    %v985 = vrcp.pop %v984
    %v986 = vmul.f32 %v984, %v985
    %v987 = vsub.f32 1.0, %v986
    %v988 = vmul.f32 %v985, %v987
    %v989 = vadd.f32 %v985, %v988
    %vm990 = vweird.f32 %v984
    %vm991 = vweird.f32 %v985
    %vm992 = vmor %vm990, %vm991
    %v993 = vsel %vm992, %v985, %v989
    %v994 = vand.u32 2147483647, %v984
    %vm995 = vcmp.eq.f32.partialorder %v994, 8.507059e+37
    %v996 = vand.u32 %v984, 2147483648
    %v997 = vor.u32 1.1754944e-38, %v996
    %v998 = vsel %vm995, %v997, %v993
    %v999 = vmul.f32 %v974, %v998
    %v1000 = vmin.f32 %v999, 1.0
    %v1001 = vmax.f32 %v1000, -1.0
    %v1002 = vmul.f32 %v518, %v518
    %v1003 = vmin.f32 16.0, %v1002
    %v1004 = vmul.f32 %v1003, 2.1237322e-06
    %v1005 = vadd.f32 %v1004, 0.00028619796
    %v1006 = vmul.f32 %v1003, %v1005
    %v1007 = vadd.f32 %v1006, 0.0036580483
    %v1008 = vmul.f32 %v1003, %v1007
    %v1009 = vadd.f32 %v1008, 0.05243302
    %v1010 = vmul.f32 %v1003, %v1009
    %v1011 = vadd.f32 %v1010, 0.18741608
    %v1012 = vmul.f32 %v1003, %v1011
    %v1013 = vadd.f32 %v1012, 1.1283791
    %v1014 = vmul.f32 %v518, %v1013
    %v1015 = vmul.f32 %v1003, 3.8918573e-05
    %v1016 = vadd.f32 %v1015, 0.001143296
    %v1017 = vmul.f32 %v1003, %v1016
    %v1018 = vadd.f32 %v1017, 0.014752088
    %v1019 = vmul.f32 %v1003, %v1018
    %v1020 = vadd.f32 %v1019, 0.112945676
    %v1021 = vmul.f32 %v1003, %v1020
    %v1022 = vadd.f32 %v1021, 0.4994258
    %v1023 = vmul.f32 %v1003, %v1022
    %v1024 = vadd.f32 %v1023, 1.0
    %v1025 = vrcp.pop %v1024
    %v1026 = vmul.f32 %v1024, %v1025
    %v1027 = vsub.f32 1.0, %v1026
    %v1028 = vmul.f32 %v1025, %v1027
    %v1029 = vadd.f32 %v1025, %v1028
    %vm1030 = vweird.f32 %v1024
    %vm1031 = vweird.f32 %v1025
    %vm1032 = vmor %vm1030, %vm1031
    %v1033 = vsel %vm1032, %v1025, %v1029
    %v1034 = vand.u32 2147483647, %v1024
    %vm1035 = vcmp.eq.f32.partialorder %v1034, 8.507059e+37
    %v1036 = vand.u32 %v1024, 2147483648
    %v1037 = vor.u32 1.1754944e-38, %v1036
    %v1038 = vsel %vm1035, %v1037, %v1033
    %v1039 = vmul.f32 %v1014, %v1038
    %v1040 = vmin.f32 %v1039, 1.0
    %v1041 = vmax.f32 %v1040, -1.0
    %v1042 = vmul.f32 %v519, %v519
    %v1043 = vmin.f32 16.0, %v1042
    %v1044 = vmul.f32 %v1043, 2.1237322e-06
    %v1045 = vadd.f32 %v1044, 0.00028619796
    %v1046 = vmul.f32 %v1043, %v1045
    %v1047 = vadd.f32 %v1046, 0.0036580483
    %v1048 = vmul.f32 %v1043, %v1047
    %v1049 = vadd.f32 %v1048, 0.05243302
    %v1050 = vmul.f32 %v1043, %v1049
    %v1051 = vadd.f32 %v1050, 0.18741608
    %v1052 = vmul.f32 %v1043, %v1051
    %v1053 = vadd.f32 %v1052, 1.1283791
    %v1054 = vmul.f32 %v519, %v1053
    %v1055 = vmul.f32 %v1043, 3.8918573e-05
    %v1056 = vadd.f32 %v1055, 0.001143296
    %v1057 = vmul.f32 %v1043, %v1056
    %v1058 = vadd.f32 %v1057, 0.014752088
    %v1059 = vmul.f32 %v1043, %v1058
    %v1060 = vadd.f32 %v1059, 0.112945676
    %v1061 = vmul.f32 %v1043, %v1060
    %v1062 = vadd.f32 %v1061, 0.4994258
    %v1063 = vmul.f32 %v1043, %v1062
    %v1064 = vadd.f32 %v1063, 1.0
    %v1065 = vrcp.pop %v1064
    %v1066 = vmul.f32 %v1064, %v1065
    %v1067 = vsub.f32 1.0, %v1066
    %v1068 = vmul.f32 %v1065, %v1067
    %v1069 = vadd.f32 %v1065, %v1068
    %vm1070 = vweird.f32 %v1064
    %vm1071 = vweird.f32 %v1065
    %vm1072 = vmor %vm1070, %vm1071
    %v1073 = vsel %vm1072, %v1065, %v1069
    %v1074 = vand.u32 2147483647, %v1064
    %vm1075 = vcmp.eq.f32.partialorder %v1074, 8.507059e+37
    %v1076 = vand.u32 %v1064, 2147483648
    %v1077 = vor.u32 1.1754944e-38, %v1076
    %v1078 = vsel %vm1075, %v1077, %v1073
    %v1079 = vmul.f32 %v1054, %v1078
    %v1080 = vmin.f32 %v1079, 1.0
    %v1081 = vmax.f32 %v1080, -1.0
    %v1082 = vmul.f32 %v520, %v520
    %v1083 = vmin.f32 16.0, %v1082
    %v1084 = vmul.f32 %v1083, 2.1237322e-06
    %v1085 = vadd.f32 %v1084, 0.00028619796
    %v1086 = vmul.f32 %v1083, %v1085
    %v1087 = vadd.f32 %v1086, 0.0036580483
    %v1088 = vmul.f32 %v1083, %v1087
    %v1089 = vadd.f32 %v1088, 0.05243302
    %v1090 = vmul.f32 %v1083, %v1089
    %v1091 = vadd.f32 %v1090, 0.18741608
    %v1092 = vmul.f32 %v1083, %v1091
    %v1093 = vadd.f32 %v1092, 1.1283791
    %v1094 = vmul.f32 %v520, %v1093
    %v1095 = vmul.f32 %v1083, 3.8918573e-05
    %v1096 = vadd.f32 %v1095, 0.001143296
    %v1097 = vmul.f32 %v1083, %v1096
    %v1098 = vadd.f32 %v1097, 0.014752088
    %v1099 = vmul.f32 %v1083, %v1098
    %v1100 = vadd.f32 %v1099, 0.112945676
    %v1101 = vmul.f32 %v1083, %v1100
    %v1102 = vadd.f32 %v1101, 0.4994258
    %v1103 = vmul.f32 %v1083, %v1102
    %v1104 = vadd.f32 %v1103, 1.0
    %v1105 = vrcp.pop %v1104
    %v1106 = vmul.f32 %v1104, %v1105
    %v1107 = vsub.f32 1.0, %v1106
    %v1108 = vmul.f32 %v1105, %v1107
    %v1109 = vadd.f32 %v1105, %v1108
    %vm1110 = vweird.f32 %v1104
    %vm1111 = vweird.f32 %v1105
    %vm1112 = vmor %vm1110, %vm1111
    %v1113 = vsel %vm1112, %v1105, %v1109
    %v1114 = vand.u32 2147483647, %v1104
    %vm1115 = vcmp.eq.f32.partialorder %v1114, 8.507059e+37
    %v1116 = vand.u32 %v1104, 2147483648
    %v1117 = vor.u32 1.1754944e-38, %v1116
    %v1118 = vsel %vm1115, %v1117, %v1113
    %v1119 = vmul.f32 %v1094, %v1118
    %v1120 = vmin.f32 %v1119, 1.0
    %v1121 = vmax.f32 %v1120, -1.0
    %v1122 = vmul.f32 %v521, %v521
    %v1123 = vmin.f32 16.0, %v1122
    %v1124 = vmul.f32 %v1123, 2.1237322e-06
    %v1125 = vadd.f32 %v1124, 0.00028619796
    %v1126 = vmul.f32 %v1123, %v1125
    %v1127 = vadd.f32 %v1126, 0.0036580483
    %v1128 = vmul.f32 %v1123, %v1127
    %v1129 = vadd.f32 %v1128, 0.05243302
    %v1130 = vmul.f32 %v1123, %v1129
    %v1131 = vadd.f32 %v1130, 0.18741608
    %v1132 = vmul.f32 %v1123, %v1131
    %v1133 = vadd.f32 %v1132, 1.1283791
    %v1134 = vmul.f32 %v521, %v1133
    %v1135 = vmul.f32 %v1123, 3.8918573e-05
    %v1136 = vadd.f32 %v1135, 0.001143296
    %v1137 = vmul.f32 %v1123, %v1136
    %v1138 = vadd.f32 %v1137, 0.014752088
    %v1139 = vmul.f32 %v1123, %v1138
    %v1140 = vadd.f32 %v1139, 0.112945676
    %v1141 = vmul.f32 %v1123, %v1140
    %v1142 = vadd.f32 %v1141, 0.4994258
    %v1143 = vmul.f32 %v1123, %v1142
    %v1144 = vadd.f32 %v1143, 1.0
    %v1145 = vrcp.pop %v1144
    %v1146 = vmul.f32 %v1144, %v1145
    %v1147 = vsub.f32 1.0, %v1146
    %v1148 = vmul.f32 %v1145, %v1147
    %v1149 = vadd.f32 %v1145, %v1148
    %vm1150 = vweird.f32 %v1144
    %vm1151 = vweird.f32 %v1145
    %vm1152 = vmor %vm1150, %vm1151
    %v1153 = vsel %vm1152, %v1145, %v1149
    %v1154 = vand.u32 2147483647, %v1144
    %vm1155 = vcmp.eq.f32.partialorder %v1154, 8.507059e+37
    %v1156 = vand.u32 %v1144, 2147483648
    %v1157 = vor.u32 1.1754944e-38, %v1156
    %v1158 = vsel %vm1155, %v1157, %v1153
    %v1159 = vmul.f32 %v1134, %v1158
    %v1160 = vmin.f32 %v1159, 1.0
    %v1161 = vmax.f32 %v1160, -1.0
    %v1162 = vadd.f32 %v561, 1.0
    %v1163 = vadd.f32 %v601, 1.0
    %v1164 = vadd.f32 %v641, 1.0
    %v1165 = vadd.f32 %v681, 1.0
    %v1166 = vadd.f32 %v721, 1.0
    %v1167 = vadd.f32 %v761, 1.0
    %v1168 = vadd.f32 %v801, 1.0
    %v1169 = vadd.f32 %v841, 1.0
    %v1170 = vadd.f32 %v881, 1.0
    %v1171 = vadd.f32 %v921, 1.0
    %v1172 = vadd.f32 %v961, 1.0
    %v1173 = vadd.f32 %v1001, 1.0
    %v1174 = vadd.f32 %v1041, 1.0
    %v1175 = vadd.f32 %v1081, 1.0
    %v1176 = vadd.f32 %v1121, 1.0
    %v1177 = vadd.f32 %v1161, 1.0
    %v1178 = vmul.f32 %v490, %v1162
    %v1179 = vmul.f32 %v491, %v1163
    %v1180 = vmul.f32 %v492, %v1164
    %v1181 = vmul.f32 %v493, %v1165
    %v1182 = vmul.f32 %v494, %v1166
    %v1183 = vmul.f32 %v495, %v1167
    %v1184 = vmul.f32 %v496, %v1168
    %v1185 = vmul.f32 %v497, %v1169
    %v1186 = vmul.f32 %v498, %v1170
    %v1187 = vmul.f32 %v499, %v1171
    %v1188 = vmul.f32 %v500, %v1172
    %v1189 = vmul.f32 %v501, %v1173
    %v1190 = vmul.f32 %v502, %v1174
    %v1191 = vmul.f32 %v503, %v1175
    %v1192 = vmul.f32 %v504, %v1176
    %v1193 = vmul.f32 %v505, %v1177
    %v1194 = vpack.c.bf16 %v1179, %v1178
    %v1195 = vpack.c.bf16 %v1181, %v1180
    %v1196 = vpack.c.bf16 %v1183, %v1182
    %v1197 = vpack.c.bf16 %v1185, %v1184
    %v1198 = vpack.c.bf16 %v1187, %v1186
    %v1199 = vpack.c.bf16 %v1189, %v1188
    %v1200 = vpack.c.bf16 %v1191, %v1190
    %v1201 = vpack.c.bf16 %v1193, %v1192
    %1202 = vst [vmem:[%s5] sm:$0xff] %v1194
    %1203 = vst [vmem:[%s5 + $0x8] sm:$0xff] %v1195
    %1204 = vst [vmem:[%s5 + $0x10] sm:$0xff] %v1196
    %1205 = vst [vmem:[%s5 + $0x18] sm:$0xff] %v1197
    %1206 = vst [vmem:[%s5 + $0x20] sm:$0xff] %v1198
    %1207 = vst [vmem:[%s5 + $0x28] sm:$0xff] %v1199
    %1208 = vst [vmem:[%s5 + $0x30] sm:$0xff] %v1200
    %1209 = vst [vmem:[%s5 + $0x38] sm:$0xff] %v1201
    // Predicated region
    $region42: #{vit_encoder_forward.26} parent=1 // pred_check
      _
    $region43: #{vit_encoder_forward.26} parent=1 // pred_check_branch
      %1211 = sbr.rel (0) target = $region45
    $region44: #{vit_encoder_forward.26} parent=1 // pred_region
      _
    $region45: #{vit_encoder_forward.26} parent=1 // pred_fallthru
      _
    // Predicated region
    $region46: #{vit_encoder_forward.26} parent=1 // pred_check
      _
    $region47: #{vit_encoder_forward.26} parent=1 // pred_check_branch
      %1213 = sbr.rel (0) target = $region49
    $region48: #{vit_encoder_forward.26} parent=1 // pred_region
      _
    $region49: #{vit_encoder_forward.26} parent=1 // pred_fallthru
      _
    %1214 = vsyncpa [#allocation4], 1
    %1215 = vsyncpa [#allocation6], 1
    %1216 = vsyncpa [#allocation9], 1

// kernel: vit_encoder_forward.27
$region0: #{vit_encoder_forward.27}
  #allocation0 [shape = 'u32[]', space=smem, size = 0x4, offset = 0x4, fixed_abs, tag = 'smem constant byte address 0x4 - core index']
  #allocation1 [shape = 'u32[72,128]{1,0:T(1,128)}', space=vmem, size = 0x9000, scoped, tag = 'internal scratch']
  %s0 = inlined_call_operand.vmem [shape: bf16[32,512], index: 0, kind: input, shape index: {}]
  %s1 = inlined_call_operand.hbm [shape: bf16[512,128], index: 1, kind: input, shape index: {}]
  %s2 = inlined_call_operand.hbm [shape: f32[1,128], index: 2, kind: input, shape index: {}]
  %s3 = inlined_call_operand.vmem [shape: f32[32,128], index: 3, kind: input, shape index: {}]
  %s4 = inlined_call_operand.vmem [shape: f32[32,128], index: 4, kind: output, shape index: {}]
  %s5 = sld [smem:[#allocation0]]
  $region34: #{vit_encoder_forward.27} parent=0
    _
  %s7 = ssub.s32 1, %s5
  %s8 = scalar_select 0, %s7, %s5
  $region1: #{vit_encoder_forward.27} parent=0
    #allocation2 [shape = 'u8[131072]{0}', space=vmem, size = 0x20000, scoped, tag = 'input window, operand 1, single buffered']
    #allocation3 [shape = 's32[1]{0}', space=sflag, size = 0x4, scoped, tag = 'scoped memory for vit_encoder_forward.27']
    #allocation4 [shape = 'u8[512]{0}', space=vmem, size = 0x400, scoped, tag = 'input window, operand 2, single buffered']
    #allocation5 [shape = 's32[1]{0}', space=sflag, size = 0x4, scoped, tag = 'scoped memory for vit_encoder_forward.27']
    %9 = vsyncpa [#allocation3], 0
    %10 = vsyncpa [#allocation5], 0
    // Predicated region
    $region2: #{vit_encoder_forward.27} parent=1 // pred_check
      _
    $region3: #{vit_encoder_forward.27} parent=1 // pred_check_branch
      %12 = sbr.rel (0) target = $region5
    $region4: #{vit_encoder_forward.27} parent=1 // pred_region
      _
    $region5: #{vit_encoder_forward.27} parent=1 // pred_fallthru
      _
    // Predicated region
    $region6: #{vit_encoder_forward.27} parent=1 // pred_check
      _
    $region7: #{vit_encoder_forward.27} parent=1 // pred_check_branch
      %14 = sbr.rel (0) target = $region9
    $region8: #{vit_encoder_forward.27} parent=1 // pred_region
      %16 = vsyncadd [#allocation3], 0
      %s17 = sshll.u32 %s1, 4
      %s18 = int_to_ptr.hbm [resolvable:$true] %s17
      %s19 = sshll.u32 [#allocation2], 4
      %s20 = int_to_ptr.vmem [resolvable:$true] %s19
      %25 = dma.hbm_to_vmem [thread:$0]  %s18, 4096, %s20, [#allocation3], 64, 64, 4
    $region9: #{vit_encoder_forward.27} parent=1 // pred_fallthru
      _
    // Predicated region
    $region10: #{vit_encoder_forward.27} parent=1 // pred_check
      _
    $region11: #{vit_encoder_forward.27} parent=1 // pred_check_branch
      %27 = sbr.rel (0) target = $region13
    $region12: #{vit_encoder_forward.27} parent=1 // pred_region
      %29 = vsyncadd [#allocation5], 0
      %s31 = sshll.u32 %s2, 4
      %s32 = int_to_ptr.hbm [resolvable:$true] %s31
      %s33 = sshll.u32 [#allocation4], 4
      %s34 = int_to_ptr.vmem [resolvable:$true] %s33
      %36 = dma.hbm_to_vmem [thread:$0]  %s32, 16, %s34, [#allocation5]
    $region13: #{vit_encoder_forward.27} parent=1 // pred_fallthru
      _
    // Predicated region
    $region14: #{vit_encoder_forward.27} parent=1 // pred_check
      _
    $region15: #{vit_encoder_forward.27} parent=1 // pred_check_branch
      %38 = sbr.rel (0) target = $region17
    $region16: #{vit_encoder_forward.27} parent=1 // pred_region
      _
    $region17: #{vit_encoder_forward.27} parent=1 // pred_fallthru
      _
    // Predicated region
    $region18: #{vit_encoder_forward.27} parent=1 // pred_check
      _
    $region19: #{vit_encoder_forward.27} parent=1 // pred_check_branch
      %40 = sbr.rel (0) target = $region21
    $region20: #{vit_encoder_forward.27} parent=1 // pred_region
      %42 = dma.done [#allocation3], 4096
    $region21: #{vit_encoder_forward.27} parent=1 // pred_fallthru
      _
    // Predicated region
    $region22: #{vit_encoder_forward.27} parent=1 // pred_check
      _
    $region23: #{vit_encoder_forward.27} parent=1 // pred_check_branch
      %44 = sbr.rel (0) target = $region25
    $region24: #{vit_encoder_forward.27} parent=1 // pred_region
      %46 = dma.done [#allocation5], 16
    $region25: #{vit_encoder_forward.27} parent=1 // pred_fallthru
      _
    %v47 = vld [vmem:[%s0] sm:$0xff]
    %v48 = vld [vmem:[%s0 + $0x8] sm:$0xff]
    %v49 = vld [vmem:[%s0 + $0x10] sm:$0xff]
    %v50 = vld [vmem:[%s0 + $0x18] sm:$0xff]
    %v51 = vld [vmem:[%s0 + $0x20] sm:$0xff]
    %v52 = vld [vmem:[%s0 + $0x28] sm:$0xff]
    %v53 = vld [vmem:[%s0 + $0x30] sm:$0xff]
    %v54 = vld [vmem:[%s0 + $0x38] sm:$0xff]
    %v55 = vld [vmem:[#allocation2] sm:$0xf]
    %v56 = vld [vmem:[#allocation2 + $0x4] sm:$0xf]
    %v57 = vld [vmem:[#allocation2 + $0x8] sm:$0xf]
    %v58 = vld [vmem:[#allocation2 + $0xc] sm:$0xf]
    %v59 = vld [vmem:[#allocation2 + $0x10] sm:$0xf]
    %v60 = vld [vmem:[#allocation2 + $0x14] sm:$0xf]
    %v61 = vld [vmem:[#allocation2 + $0x18] sm:$0xf]
    %v62 = vld [vmem:[#allocation2 + $0x1c] sm:$0xf]
    %v63 = vld [vmem:[#allocation2 + $0x20] sm:$0xf]
    %v64 = vld [vmem:[#allocation2 + $0x24] sm:$0xf]
    %v65 = vld [vmem:[#allocation2 + $0x28] sm:$0xf]
    %v66 = vld [vmem:[#allocation2 + $0x2c] sm:$0xf]
    %v67 = vld [vmem:[#allocation2 + $0x30] sm:$0xf]
    %v68 = vld [vmem:[#allocation2 + $0x34] sm:$0xf]
    %v69 = vld [vmem:[#allocation2 + $0x38] sm:$0xf]
    %v70 = vld [vmem:[#allocation2 + $0x3c] sm:$0xf]
    %v71 = vld [vmem:[#allocation2 + $0x40] sm:$0xf]
    %v72 = vld [vmem:[#allocation2 + $0x44] sm:$0xf]
    %v73 = vld [vmem:[#allocation2 + $0x48] sm:$0xf]
    %v74 = vld [vmem:[#allocation2 + $0x4c] sm:$0xf]
    %v75 = vld [vmem:[#allocation2 + $0x50] sm:$0xf]
    %v76 = vld [vmem:[#allocation2 + $0x54] sm:$0xf]
    %v77 = vld [vmem:[#allocation2 + $0x58] sm:$0xf]
    %v78 = vld [vmem:[#allocation2 + $0x5c] sm:$0xf]
    %v79 = vld [vmem:[#allocation2 + $0x60] sm:$0xf]
    %v80 = vld [vmem:[#allocation2 + $0x64] sm:$0xf]
    %v81 = vld [vmem:[#allocation2 + $0x68] sm:$0xf]
    %v82 = vld [vmem:[#allocation2 + $0x6c] sm:$0xf]
    %v83 = vld [vmem:[#allocation2 + $0x70] sm:$0xf]
    %v84 = vld [vmem:[#allocation2 + $0x74] sm:$0xf]
    %v85 = vld [vmem:[#allocation2 + $0x78] sm:$0xf]
    %v86 = vld [vmem:[#allocation2 + $0x7c] sm:$0xf]
    %v87 = vld [vmem:[#allocation2 + $0x80] sm:$0xf]
    %v88 = vld [vmem:[#allocation2 + $0x84] sm:$0xf]
    %v89 = vld [vmem:[#allocation2 + $0x88] sm:$0xf]
    %v90 = vld [vmem:[#allocation2 + $0x8c] sm:$0xf]
    %v91 = vld [vmem:[#allocation2 + $0x90] sm:$0xf]
    %v92 = vld [vmem:[#allocation2 + $0x94] sm:$0xf]
    %v93 = vld [vmem:[#allocation2 + $0x98] sm:$0xf]
    %v94 = vld [vmem:[#allocation2 + $0x9c] sm:$0xf]
    %v95 = vld [vmem:[#allocation2 + $0xa0] sm:$0xf]
    %v96 = vld [vmem:[#allocation2 + $0xa4] sm:$0xf]
    %v97 = vld [vmem:[#allocation2 + $0xa8] sm:$0xf]
    %v98 = vld [vmem:[#allocation2 + $0xac] sm:$0xf]
    %v99 = vld [vmem:[#allocation2 + $0xb0] sm:$0xf]
    %v100 = vld [vmem:[#allocation2 + $0xb4] sm:$0xf]
    %v101 = vld [vmem:[#allocation2 + $0xb8] sm:$0xf]
    %v102 = vld [vmem:[#allocation2 + $0xbc] sm:$0xf]
    %v103 = vld [vmem:[#allocation2 + $0xc0] sm:$0xf]
    %v104 = vld [vmem:[#allocation2 + $0xc4] sm:$0xf]
    %v105 = vld [vmem:[#allocation2 + $0xc8] sm:$0xf]
    %v106 = vld [vmem:[#allocation2 + $0xcc] sm:$0xf]
    %v107 = vld [vmem:[#allocation2 + $0xd0] sm:$0xf]
    %v108 = vld [vmem:[#allocation2 + $0xd4] sm:$0xf]
    %v109 = vld [vmem:[#allocation2 + $0xd8] sm:$0xf]
    %v110 = vld [vmem:[#allocation2 + $0xdc] sm:$0xf]
    %v111 = vld [vmem:[#allocation2 + $0xe0] sm:$0xf]
    %v112 = vld [vmem:[#allocation2 + $0xe4] sm:$0xf]
    %v113 = vld [vmem:[#allocation2 + $0xe8] sm:$0xf]
    %v114 = vld [vmem:[#allocation2 + $0xec] sm:$0xf]
    %v115 = vld [vmem:[#allocation2 + $0xf0] sm:$0xf]
    %v116 = vld [vmem:[#allocation2 + $0xf4] sm:$0xf]
    %v117 = vld [vmem:[#allocation2 + $0xf8] sm:$0xf]
    %v118 = vld [vmem:[#allocation2 + $0xfc] sm:$0xf]
    %v119 = vld [vmem:[#allocation4] sm:$0x1]
    %v121 = vperm.slane %v119, 0
    %v131 = vunpack.c.l.b16 %v47
    %v132 = vunpack.c.h.b16 %v47
    %v133 = vunpack.c.l.b16 %v48
    %v134 = vunpack.c.h.b16 %v48
    %v135 = vunpack.c.l.b16 %v49
    %v136 = vunpack.c.h.b16 %v49
    %v137 = vunpack.c.l.b16 %v50
    %v138 = vunpack.c.h.b16 %v50
    %v139 = vunpack.c.l.b16 %v51
    %v140 = vunpack.c.h.b16 %v51
    %v141 = vunpack.c.l.b16 %v52
    %v142 = vunpack.c.h.b16 %v52
    %v143 = vunpack.c.l.b16 %v53
    %v144 = vunpack.c.h.b16 %v53
    %v145 = vunpack.c.l.b16 %v54
    %v146 = vunpack.c.h.b16 %v54
    %v147 = vpack.c.b16 %v135, %v131
    %v148 = vpack.c.b16 %v136, %v132
    %v149 = vpack.c.b16 %v137, %v133
    %v150 = vpack.c.b16 %v138, %v134
    %v151 = vpack.c.b16 %v143, %v139
    %v152 = vpack.c.b16 %v144, %v140
    %v153 = vpack.c.b16 %v145, %v141
    %v154 = vpack.c.b16 %v146, %v142
    %v227 = vunpack.c.l.b16 %v55
    %v228 = vunpack.c.l.b16 %v56
    %v229 = vunpack.c.l.b16 %v57
    %v230 = vunpack.c.l.b16 %v58
    %v231 = vunpack.c.l.b16 %v59
    %v232 = vunpack.c.l.b16 %v60
    %v233 = vunpack.c.l.b16 %v61
    %v234 = vunpack.c.l.b16 %v62
    %v235 = vunpack.c.l.b16 %v63
    %v236 = vunpack.c.l.b16 %v64
    %v237 = vunpack.c.l.b16 %v65
    %v238 = vunpack.c.l.b16 %v66
    %v239 = vunpack.c.l.b16 %v67
    %v240 = vunpack.c.l.b16 %v68
    %v241 = vunpack.c.l.b16 %v69
    %v242 = vunpack.c.l.b16 %v70
    %v243 = vunpack.c.l.b16 %v71
    %v244 = vunpack.c.l.b16 %v72
    %v245 = vunpack.c.l.b16 %v73
    %v246 = vunpack.c.l.b16 %v74
    %v247 = vunpack.c.l.b16 %v75
    %v248 = vunpack.c.l.b16 %v76
    %v249 = vunpack.c.l.b16 %v77
    %v250 = vunpack.c.l.b16 %v78
    %v251 = vunpack.c.l.b16 %v79
    %v252 = vunpack.c.l.b16 %v80
    %v253 = vunpack.c.l.b16 %v81
    %v254 = vunpack.c.l.b16 %v82
    %v255 = vunpack.c.l.b16 %v83
    %v256 = vunpack.c.l.b16 %v84
    %v257 = vunpack.c.l.b16 %v85
    %v258 = vunpack.c.l.b16 %v86
    %v259 = vunpack.c.l.b16 %v87
    %v260 = vunpack.c.l.b16 %v88
    %v261 = vunpack.c.l.b16 %v89
    %v262 = vunpack.c.l.b16 %v90
    %v263 = vunpack.c.l.b16 %v91
    %v264 = vunpack.c.l.b16 %v92
    %v265 = vunpack.c.l.b16 %v93
    %v266 = vunpack.c.l.b16 %v94
    %v267 = vunpack.c.l.b16 %v95
    %v268 = vunpack.c.l.b16 %v96
    %v269 = vunpack.c.l.b16 %v97
    %v270 = vunpack.c.l.b16 %v98
    %v271 = vunpack.c.l.b16 %v99
    %v272 = vunpack.c.l.b16 %v100
    %v273 = vunpack.c.l.b16 %v101
    %v274 = vunpack.c.l.b16 %v102
    %v275 = vunpack.c.l.b16 %v103
    %v276 = vunpack.c.l.b16 %v104
    %v277 = vunpack.c.l.b16 %v105
    %v278 = vunpack.c.l.b16 %v106
    %v279 = vunpack.c.l.b16 %v107
    %v280 = vunpack.c.l.b16 %v108
    %v281 = vunpack.c.l.b16 %v109
    %v282 = vunpack.c.l.b16 %v110
    %v283 = vunpack.c.l.b16 %v111
    %v284 = vunpack.c.l.b16 %v112
    %v285 = vunpack.c.l.b16 %v113
    %v286 = vunpack.c.l.b16 %v114
    %v287 = vunpack.c.l.b16 %v115
    %v288 = vunpack.c.l.b16 %v116
    %v289 = vunpack.c.l.b16 %v117
    %v290 = vunpack.c.l.b16 %v118
    %v291 = vpack.c.b16 %v228, %v227
    %v292 = vpack.c.b16 %v230, %v229
    %v293 = vpack.c.b16 %v232, %v231
    %v294 = vpack.c.b16 %v234, %v233
    %v295 = vpack.c.b16 %v236, %v235
    %v296 = vpack.c.b16 %v238, %v237
    %v297 = vpack.c.b16 %v240, %v239
    %v298 = vpack.c.b16 %v242, %v241
    %v299 = vpack.c.b16 %v244, %v243
    %v300 = vpack.c.b16 %v246, %v245
    %v301 = vpack.c.b16 %v248, %v247
    %v302 = vpack.c.b16 %v250, %v249
    %v303 = vpack.c.b16 %v252, %v251
    %v304 = vpack.c.b16 %v254, %v253
    %v305 = vpack.c.b16 %v256, %v255
    %v306 = vpack.c.b16 %v258, %v257
    %v307 = vpack.c.b16 %v260, %v259
    %v308 = vpack.c.b16 %v262, %v261
    %v309 = vpack.c.b16 %v264, %v263
    %v310 = vpack.c.b16 %v266, %v265
    %v311 = vpack.c.b16 %v268, %v267
    %v312 = vpack.c.b16 %v270, %v269
    %v313 = vpack.c.b16 %v272, %v271
    %v314 = vpack.c.b16 %v274, %v273
    %v315 = vpack.c.b16 %v276, %v275
    %v316 = vpack.c.b16 %v278, %v277
    %v317 = vpack.c.b16 %v280, %v279
    %v318 = vpack.c.b16 %v282, %v281
    %v319 = vpack.c.b16 %v284, %v283
    %v320 = vpack.c.b16 %v286, %v285
    %v321 = vpack.c.b16 %v288, %v287
    %v322 = vpack.c.b16 %v290, %v289
    %355 = vmatpush.bf16.msra.mxu0 %v298
    %356 = vmatpush.bf16.msra.mxu0 %v297
    %357 = vmatpush.bf16.msra.mxu0 %v296
    %358 = vmatpush.bf16.msra.mxu0 %v295
    %359 = vmatpush.bf16.msra.mxu0 %v294
    %360 = vmatpush.bf16.msra.mxu0 %v293
    %361 = vmatpush.bf16.msra.mxu0 %v292
    %362 = vmatpush.bf16.msra.mxu0 %v291
    %363 = vmatmul.bf16.gmra.mxu0 %v147
    %v364 = vpop.f32.mrf.mxu0
    %v365 = vadd.f32 %v121, %v364
    %v366 = vpop.f32.mrf.mxu0
    %v367 = vadd.f32 %v121, %v366
    %368 = vmatmul.bf16.gmra.mxu0 %v151
    %v369 = vpop.f32.mrf.mxu0
    %v370 = vadd.f32 %v121, %v369
    %v371 = vpop.f32.mrf.mxu0
    %v372 = vadd.f32 %v121, %v371
    %373 = vdwg.mxu0
    %374 = vmatpush.bf16.msra.mxu0 %v306
    %375 = vmatpush.bf16.msra.mxu0 %v305
    %376 = vmatpush.bf16.msra.mxu0 %v304
    %377 = vmatpush.bf16.msra.mxu0 %v303
    %378 = vmatpush.bf16.msra.mxu0 %v302
    %379 = vmatpush.bf16.msra.mxu0 %v301
    %380 = vmatpush.bf16.msra.mxu0 %v300
    %381 = vmatpush.bf16.msra.mxu0 %v299
    %382 = vmatmul.bf16.gmra.mxu0 %v148
    %v383 = vpop.f32.mrf.mxu0
    %v384 = vadd.f32 %v365, %v383
    %v385 = vpop.f32.mrf.mxu0
    %v386 = vadd.f32 %v367, %v385
    %387 = vmatmul.bf16.gmra.mxu0 %v152
    %v388 = vpop.f32.mrf.mxu0
    %v389 = vadd.f32 %v370, %v388
    %v390 = vpop.f32.mrf.mxu0
    %v391 = vadd.f32 %v372, %v390
    %392 = vdwg.mxu0
    %393 = vmatpush.bf16.msra.mxu0 %v314
    %394 = vmatpush.bf16.msra.mxu0 %v313
    %395 = vmatpush.bf16.msra.mxu0 %v312
    %396 = vmatpush.bf16.msra.mxu0 %v311
    %397 = vmatpush.bf16.msra.mxu0 %v310
    %398 = vmatpush.bf16.msra.mxu0 %v309
    %399 = vmatpush.bf16.msra.mxu0 %v308
    %400 = vmatpush.bf16.msra.mxu0 %v307
    %401 = vmatmul.bf16.gmra.mxu0 %v149
    %v402 = vpop.f32.mrf.mxu0
    %v403 = vadd.f32 %v384, %v402
    %v404 = vpop.f32.mrf.mxu0
    %v405 = vadd.f32 %v386, %v404
    %406 = vmatmul.bf16.gmra.mxu0 %v153
    %v407 = vpop.f32.mrf.mxu0
    %v408 = vadd.f32 %v389, %v407
    %v409 = vpop.f32.mrf.mxu0
    %v410 = vadd.f32 %v391, %v409
    %411 = vdwg.mxu0
    %412 = vmatpush.bf16.msra.mxu0 %v322
    %413 = vmatpush.bf16.msra.mxu0 %v321
    %414 = vmatpush.bf16.msra.mxu0 %v320
    %415 = vmatpush.bf16.msra.mxu0 %v319
    %416 = vmatpush.bf16.msra.mxu0 %v318
    %417 = vmatpush.bf16.msra.mxu0 %v317
    %418 = vmatpush.bf16.msra.mxu0 %v316
    %419 = vmatpush.bf16.msra.mxu0 %v315
    %420 = vmatmul.bf16.gmra.mxu0 %v150
    %v421 = vpop.f32.mrf.mxu0
    %v422 = vadd.f32 %v403, %v421
    %v423 = vpop.f32.mrf.mxu0
    %v424 = vadd.f32 %v405, %v423
    %425 = vmatmul.bf16.gmra.mxu0 %v154
    %v426 = vpop.f32.mrf.mxu0
    %v427 = vadd.f32 %v408, %v426
    %v428 = vpop.f32.mrf.mxu0
    %v429 = vadd.f32 %v410, %v428
    %430 = vdwg.mxu0
    %v431 = vld [vmem:[%s3] sm:$0xff]
    %v432 = vld [vmem:[%s3 + $0x8] sm:$0xff]
    %v433 = vld [vmem:[%s3 + $0x10] sm:$0xff]
    %v434 = vld [vmem:[%s3 + $0x18] sm:$0xff]
    %v435 = vadd.f32 %v422, %v431
    %v436 = vadd.f32 %v424, %v432
    %v437 = vadd.f32 %v427, %v433
    %v438 = vadd.f32 %v429, %v434
    %439 = vst [vmem:[%s4] sm:$0xff] %v435
    %440 = vst [vmem:[%s4 + $0x8] sm:$0xff] %v436
    %441 = vst [vmem:[%s4 + $0x10] sm:$0xff] %v437
    %442 = vst [vmem:[%s4 + $0x18] sm:$0xff] %v438
    // Predicated region
    $region26: #{vit_encoder_forward.27} parent=1 // pred_check
      _
    $region27: #{vit_encoder_forward.27} parent=1 // pred_check_branch
      %444 = sbr.rel (0) target = $region29
    $region28: #{vit_encoder_forward.27} parent=1 // pred_region
      _
    $region29: #{vit_encoder_forward.27} parent=1 // pred_fallthru
      _
    // Predicated region
    $region30: #{vit_encoder_forward.27} parent=1 // pred_check
      _
    $region31: #{vit_encoder_forward.27} parent=1 // pred_check_branch
      %446 = sbr.rel (0) target = $region33
    $region32: #{vit_encoder_forward.27} parent=1 // pred_region
      _
    $region33: #{vit_encoder_forward.27} parent=1 // pred_fallthru
      _
    %447 = vsyncpa [#allocation3], 1
    %448 = vsyncpa [#allocation5], 1

// kernel: vit_encoder_forward.43
$region0: #{vit_encoder_forward.43}
  #allocation0 [shape = 'u32[]', space=smem, size = 0x4, offset = 0x4, fixed_abs, tag = 'smem constant byte address 0x4 - core index']
  #allocation1 [shape = 'u32[72,128]{1,0:T(1,128)}', space=vmem, size = 0x9000, scoped, tag = 'internal scratch']
  #allocation2 [shape = 'f32[12,64]{1,0:T(8,128)}', space=vmem, size = 0x2000, scoped, tag = 'scratch operand']
  %s0 = inlined_call_operand.vmem [shape: bf16[2,30,512], index: 0, kind: input, shape index: {}]
  %s1 = inlined_call_operand.vmem [shape: bf16[9,512,64], index: 1, kind: input, shape index: {}]
  %s2 = inlined_call_operand.vmem [shape: f32[1,64], index: 2, kind: input, shape index: {}]
  %s3 = inlined_call_operand.vmem [shape: bf16[64,4], index: 3, kind: input, shape index: {}]
  %s4 = inlined_call_operand.vmem [shape: f32[1,4], index: 4, kind: input, shape index: {}]
  %s5 = inlined_call_operand.vmem [shape: f32[2,12,4], index: 5, kind: output, shape index: {}]
  %s6 = sld [smem:[#allocation0]]
  $region61: #{vit_encoder_forward.43} parent=0
    _
  %s8 = ssub.s32 1, %s6
  %s9 = scalar_select 0, %s8, %s6
  loop: start=0, step=1, limit=4
  $region2: #{vit_encoder_forward.43} parent=0 // loop_pre_header
    _
  $region3: #{vit_encoder_forward.43} parent=0 // loop_header
    %s11 = sphi 0, %s15
    %p12 = scmp.ge.s32.totalorder %s11, 4
    %s18 = sphi 0, %s30
    %s19 = sphi 0, %s26
    %s20 = sphi 0, %s18
    %s21 = sphi 0, %s19
    %s22 = sphi 0, %s20
    %s23 = sphi 0, %s21
    %s35 = sphi 0, %s37
    %s38 = sphi 0, %s35
    %s39 = sphi 0, %s38
    %s55 = sphi 0, %s39
    %s61 = sphi 0, %s63
    %s64 = sphi 0, %s61
    %s65 = sphi 0, %s64
    %s81 = sphi 0, %s65
    %s85 = sphi 0, %s85
    %s87 = sphi 0, %s85
    %s88 = sphi 0, %s87
    %s102 = sphi 0, %s88
    %s106 = sphi 0, %s106
    %s108 = sphi 0, %s106
    %s109 = sphi 0, %s108
    %s123 = sphi 0, %s109
    %s127 = sphi 0, %s127
    %s129 = sphi 0, %s127
    %s130 = sphi 0, %s129
    %s144 = sphi 0, %s130
    %s150 = sphi 0, %s152
    %s153 = sphi 0, %s150
    %s154 = sphi 0, %s153
    %s170 = sphi 0, %s154
  $region4: #{vit_encoder_forward.43} parent=0 // loop_header_branch
    %14 = sbr.rel (%p12) target = $region8
  $region5: #{vit_encoder_forward.43} parent=0 // loop_body
    %s16 = ssub.s32 %s11, 1
    %s17 = ssub.s32 %s11, 2
    %s24 = sadd.s32 1, %s19
    %p25 = scmp.ge.s32.totalorder %s24, 1
    %s26 = scalar_select %p25, 0, %s24
    %s27 = sadd.s32 1, %s18
    %s28 = scalar_select %p25, %s27, %s18
    %p29 = scmp.ge.s32.totalorder %s28, 2
    %s30 = scalar_select %p29, 0, %s28
    %s31 = ssub.s32 %s18, %s30
    %s32 = ssub.s32 %s19, %s26
    %s33 = sor.u32 %s31, %s32
    %p34 = scmp.eq.s32.totalorder %s33, 0
    %s36 = sadd.s32 %s35, 1
    %s37 = scalar_select %p34, %s35, %s36
    %p40 = pneg %p34
    %p41 = scmp.eq.s32.totalorder %s11, 1
    %p42 = por %p40, %p41
    %p43 = scmp.ne.s32.totalorder %s35, %s38
    %p44 = scmp.eq.s32.totalorder %s11, 0
    %p45 = por %p43, %p44
    %p46 = scmp.ne.s32.totalorder %s35, %s38
    %p47 = scmp.eq.s32.totalorder %s16, 1
    %p48 = por %p46, %p47
    %p49 = scmp.ne.s32.totalorder %s38, %s39
    %p50 = scmp.eq.s32.totalorder %s16, 0
    %p51 = por %p49, %p50
    %p52 = scmp.ne.s32.totalorder %s38, %s39
    %p53 = scmp.eq.s32.totalorder %s17, 1
    %p54 = por %p52, %p53
    %p56 = scmp.ne.s32.totalorder %s39, %s55
    %p57 = scmp.eq.s32.totalorder %s17, 0
    %p58 = por %p56, %p57
    %s59 = ssub.s32 %s19, %s26
    %p60 = scmp.eq.s32.totalorder %s59, 0
    %s62 = sadd.s32 %s61, 1
    %s63 = scalar_select %p60, %s61, %s62
    %p66 = pneg %p60
    %p67 = scmp.eq.s32.totalorder %s11, 1
    %p68 = por %p66, %p67
    %p69 = scmp.ne.s32.totalorder %s61, %s64
    %p70 = scmp.eq.s32.totalorder %s11, 0
    %p71 = por %p69, %p70
    %p72 = scmp.ne.s32.totalorder %s61, %s64
    %p73 = scmp.eq.s32.totalorder %s16, 1
    %p74 = por %p72, %p73
    %p75 = scmp.ne.s32.totalorder %s64, %s65
    %p76 = scmp.eq.s32.totalorder %s16, 0
    %p77 = por %p75, %p76
    %p78 = scmp.ne.s32.totalorder %s64, %s65
    %p79 = scmp.eq.s32.totalorder %s17, 1
    %p80 = por %p78, %p79
    %p82 = scmp.ne.s32.totalorder %s65, %s81
    %p83 = scmp.eq.s32.totalorder %s17, 0
    %p84 = por %p82, %p83
    %s86 = sadd.s32 %s85, 1
    %p89 = scmp.eq.s32.totalorder %s11, 1
    %p90 = scmp.ne.s32.totalorder %s85, %s87
    %p91 = scmp.eq.s32.totalorder %s11, 0
    %p92 = por %p90, %p91
    %p93 = scmp.ne.s32.totalorder %s85, %s87
    %p94 = scmp.eq.s32.totalorder %s16, 1
    %p95 = por %p93, %p94
    %p96 = scmp.ne.s32.totalorder %s87, %s88
    %p97 = scmp.eq.s32.totalorder %s16, 0
    %p98 = por %p96, %p97
    %p99 = scmp.ne.s32.totalorder %s87, %s88
    %p100 = scmp.eq.s32.totalorder %s17, 1
    %p101 = por %p99, %p100
    %p103 = scmp.ne.s32.totalorder %s88, %s102
    %p104 = scmp.eq.s32.totalorder %s17, 0
    %p105 = por %p103, %p104
    %s107 = sadd.s32 %s106, 1
    %p110 = scmp.eq.s32.totalorder %s11, 1
    %p111 = scmp.ne.s32.totalorder %s106, %s108
    %p112 = scmp.eq.s32.totalorder %s11, 0
    %p113 = por %p111, %p112
    %p114 = scmp.ne.s32.totalorder %s106, %s108
    %p115 = scmp.eq.s32.totalorder %s16, 1
    %p116 = por %p114, %p115
    %p117 = scmp.ne.s32.totalorder %s108, %s109
    %p118 = scmp.eq.s32.totalorder %s16, 0
    %p119 = por %p117, %p118
    %p120 = scmp.ne.s32.totalorder %s108, %s109
    %p121 = scmp.eq.s32.totalorder %s17, 1
    %p122 = por %p120, %p121
    %p124 = scmp.ne.s32.totalorder %s109, %s123
    %p125 = scmp.eq.s32.totalorder %s17, 0
    %p126 = por %p124, %p125
    %s128 = sadd.s32 %s127, 1
    %p131 = scmp.eq.s32.totalorder %s11, 1
    %p132 = scmp.ne.s32.totalorder %s127, %s129
    %p133 = scmp.eq.s32.totalorder %s11, 0
    %p134 = por %p132, %p133
    %p135 = scmp.ne.s32.totalorder %s127, %s129
    %p136 = scmp.eq.s32.totalorder %s16, 1
    %p137 = por %p135, %p136
    %p138 = scmp.ne.s32.totalorder %s129, %s130
    %p139 = scmp.eq.s32.totalorder %s16, 0
    %p140 = por %p138, %p139
    %p141 = scmp.ne.s32.totalorder %s129, %s130
    %p142 = scmp.eq.s32.totalorder %s17, 1
    %p143 = por %p141, %p142
    %p145 = scmp.ne.s32.totalorder %s130, %s144
    %p146 = scmp.eq.s32.totalorder %s17, 0
    %p147 = por %p145, %p146
    %s148 = ssub.s32 %s18, %s30
    %p149 = scmp.eq.s32.totalorder %s148, 0
    %s151 = sadd.s32 %s150, 1
    %s152 = scalar_select %p149, %s150, %s151
    %p155 = pneg %p149
    %p156 = scmp.eq.s32.totalorder %s11, 1
    %p157 = por %p155, %p156
    %p158 = scmp.ne.s32.totalorder %s150, %s153
    %p159 = scmp.eq.s32.totalorder %s11, 0
    %p160 = por %p158, %p159
    %p161 = scmp.ne.s32.totalorder %s150, %s153
    %p162 = scmp.eq.s32.totalorder %s16, 1
    %p163 = por %p161, %p162
    %p164 = scmp.ne.s32.totalorder %s153, %s154
    %p165 = scmp.eq.s32.totalorder %s16, 0
    %p166 = por %p164, %p165
    %p167 = scmp.ne.s32.totalorder %s153, %s154
    %p168 = scmp.eq.s32.totalorder %s17, 1
    %p169 = por %p167, %p168
    %p171 = scmp.ne.s32.totalorder %s154, %s170
    %p172 = scmp.eq.s32.totalorder %s17, 0
    %p173 = por %p171, %p172
    %p174 = scmp.le.s32.totalorder 1, %s11
    %p175 = scmp.lt.s32.totalorder %s11, 3
    %p176 = pnand %p174, %p175
    %p177 = pneg %p176
    // Predicated region
    $region9: #{vit_encoder_forward.43} parent=5 // pred_check
      _
    $region10: #{vit_encoder_forward.43} parent=5 // pred_check_branch
      %179 = sbr.rel (%p176) target = $region12
    $region11: #{vit_encoder_forward.43} parent=5 // pred_region
      %s180 = ssub.s32 %s11, 1
      // Predicated region
      $region13: #{vit_encoder_forward.43} parent=11 // pred_check
        %p181 = pneg %p77
      $region14: #{vit_encoder_forward.43} parent=11 // pred_check_branch
        %183 = sbr.rel (%p181) target = $region16
      $region15: #{vit_encoder_forward.43} parent=11 // pred_region
        %s184 = smul.u32 64, %s21
        %p185 = scmp.lt.s32.totalorder %s184, 63
        %s186 = scalar_select %p185, %s184, 63
        %s187 = smul.addr %s186, 4
        %s188 = scalar_lea.vmem %s1, %s187
        %s189 = smul.u32 64, %s21
      $region16: #{vit_encoder_forward.43} parent=11 // pred_fallthru
        _
      // Predicated region
      $region17: #{vit_encoder_forward.43} parent=11 // pred_check
        %p190 = pneg %p98
      $region18: #{vit_encoder_forward.43} parent=11 // pred_check_branch
        %192 = sbr.rel (%p190) target = $region20
      $region19: #{vit_encoder_forward.43} parent=11 // pred_region
        _
      $region20: #{vit_encoder_forward.43} parent=11 // pred_fallthru
        _
      // Predicated region
      $region21: #{vit_encoder_forward.43} parent=11 // pred_check
        %p193 = pneg %p119
      $region22: #{vit_encoder_forward.43} parent=11 // pred_check_branch
        %195 = sbr.rel (%p193) target = $region24
      $region23: #{vit_encoder_forward.43} parent=11 // pred_region
        _
      $region24: #{vit_encoder_forward.43} parent=11 // pred_fallthru
        _
      // Predicated region
      $region25: #{vit_encoder_forward.43} parent=11 // pred_check
        %p196 = pneg %p140
      $region26: #{vit_encoder_forward.43} parent=11 // pred_check_branch
        %198 = sbr.rel (%p196) target = $region28
      $region27: #{vit_encoder_forward.43} parent=11 // pred_region
        _
      $region28: #{vit_encoder_forward.43} parent=11 // pred_fallthru
        _
    $region12: #{vit_encoder_forward.43} parent=5 // pred_fallthru
      _
    %p199 = scmp.lt.s32.totalorder %s11, 2
    // Predicated region
    $region29: #{vit_encoder_forward.43} parent=5 // pred_check
      %p200 = pneg %p199
    $region30: #{vit_encoder_forward.43} parent=5 // pred_check_branch
      %202 = sbr.rel (%p200) target = $region32
    $region31: #{vit_encoder_forward.43} parent=5 // pred_region
      // Predicated region
      $region33: #{vit_encoder_forward.43} parent=31 // pred_check
        %p203 = pneg %p45
      $region34: #{vit_encoder_forward.43} parent=31 // pred_check_branch
        %205 = sbr.rel (%p203) target = $region36
      $region35: #{vit_encoder_forward.43} parent=31 // pred_region
        %s206 = smul.u32 4, %s19
        %p207 = scmp.lt.s32.totalorder %s18, 1
        %s208 = scalar_select %p207, %s18, 1
        %p209 = scmp.lt.s32.totalorder %s206, 3
        %s210 = scalar_select %p209, %s206, 3
        %s211 = smul.addr %s208, 16
        %s212 = sadd.s32 %s210, %s211
        %s213 = smul.addr %s212, 4
        %s214 = scalar_lea.vmem %s0, %s213
        %s215 = smul.u32 4, %s19
      $region36: #{vit_encoder_forward.43} parent=31 // pred_fallthru
        _
    $region32: #{vit_encoder_forward.43} parent=5 // pred_fallthru
      _
    %p216 = scmp.le.s32.totalorder 1, %s11
    %p217 = scmp.lt.s32.totalorder %s11, 3
    %p218 = pnand %p216, %p217
    %p219 = pneg %p218
    // Predicated region
    $region37: #{vit_encoder_forward.43} parent=5 // pred_check
      _
    $region38: #{vit_encoder_forward.43} parent=5 // pred_check_branch
      %221 = sbr.rel (%p218) target = $region40
    $region39: #{vit_encoder_forward.43} parent=5 // pred_region
      %s222 = ssub.s32 %s11, 1
      %s223 = smul.u32 4, %s21
      %p224 = scmp.lt.s32.totalorder %s20, 1
      %s225 = scalar_select %p224, %s20, 1
      %p226 = scmp.lt.s32.totalorder %s223, 3
      %s227 = scalar_select %p226, %s223, 3
      %s228 = smul.addr %s225, 16
      %s229 = sadd.s32 %s227, %s228
      %s230 = smul.addr %s229, 4
      %s231 = scalar_lea.vmem %s0, %s230
      %p232 = pneg %p51
      %p233 = pneg %p48
      %s234 = smul.u32 64, %s21
      %p235 = scmp.lt.s32.totalorder %s234, 63
      %s236 = scalar_select %p235, %s234, 63
      %s237 = smul.addr %s236, 4
      %s238 = scalar_lea.vmem %s1, %s237
      %p239 = pneg %p77
      %p240 = pneg %p74
      %p241 = pneg %p98
      %p242 = pneg %p95
      %p243 = pneg %p119
      %p244 = pneg %p116
      %p245 = pneg %p140
      %p246 = pneg %p137
      %p247 = pneg %p166
      %p248 = pneg %p163
      %p249 = scmp.lt.s32.totalorder %s20, 1
      %s250 = scalar_select %p249, %s20, 1
      %s251 = smul.addr %s250, 2
      %s252 = smul.addr %s251, 8
      %s253 = scalar_lea.vmem %s5, %s252
      %s254 = smul.u32 4, %s21
      %p255 = scmp.lt.s32.totalorder %s20, 1
      %s256 = scalar_select %p255, %s20, 1
      %p257 = scmp.lt.s32.totalorder %s254, 3
      %s258 = scalar_select %p257, %s254, 3
      %s259 = smul.addr %s256, 16
      %s260 = sadd.s32 %s258, %s259
      %s261 = smul.addr %s260, 4
      %s262 = scalar_lea.vmem %s0, %s261
      %s263 = smul.u32 4, %s21
      %s264 = smul.u32 64, %s21
      %p265 = scmp.lt.s32.totalorder %s264, 63
      %s266 = scalar_select %p265, %s264, 63
      %s267 = smul.addr %s266, 4
      %s268 = scalar_lea.vmem %s1, %s267
      %s269 = smul.u32 64, %s21
      %p270 = scmp.lt.s32.totalorder %s20, 1
      %s271 = scalar_select %p270, %s20, 1
      %s272 = smul.addr %s271, 2
      %s273 = smul.addr %s272, 8
      %s274 = scalar_lea.vmem %s5, %s273
      %p276 = scmp.eq.s32.totalorder %s21, 0
      // Predicated region
      $region41: #{vit_encoder_forward.43} parent=39 // pred_check
        %p277 = pneg %p276
      $region42: #{vit_encoder_forward.43} parent=39 // pred_check_branch
        %279 = sbr.rel (%p277) target = $region44
      $region43: #{vit_encoder_forward.43} parent=39 // pred_region
        %vm280 = vcmask 523264
        %281 = vst.msk [vmem:[#allocation2] sm:$0xff] %vm280, 0.0
        %vm282 = vcmask 519168
        %283 = vst.msk [vmem:[#allocation2 + $0x8] sm:$0xf] %vm282, 0.0
      $region44: #{vit_encoder_forward.43} parent=39 // pred_fallthru
        _
      %v284 = vld [vmem:[%s262] sm:$0xff]
      %v285 = vld [vmem:[%s262 + $0x8] sm:$0xff]
      %v286 = vld [vmem:[%s262 + $0x10] sm:$0x33]
      %v287 = vld [vmem:[%s262 + $0x18] sm:$0x33]
      %v288 = vld [vmem:[#allocation2] sm:$0xff]
      %v289 = vld [vmem:[#allocation2 + $0x8] sm:$0xf]
      %v290 = vld [vmem:[%s268] sm:$0xf]
      %v291 = vld [vmem:[%s268 + $0x4] sm:$0xf]
      %v292 = vld [vmem:[%s268 + $0x8] sm:$0xf]
      %v293 = vld [vmem:[%s268 + $0xc] sm:$0xf]
      %v294 = vld [vmem:[%s268 + $0x10] sm:$0xf]
      %v295 = vld [vmem:[%s268 + $0x14] sm:$0xf]
      %v296 = vld [vmem:[%s268 + $0x18] sm:$0xf]
      %v297 = vld [vmem:[%s268 + $0x1c] sm:$0xf]
      %v298 = vld [vmem:[%s268 + $0x20] sm:$0xf]
      %v299 = vld [vmem:[%s268 + $0x24] sm:$0xf]
      %v300 = vld [vmem:[%s268 + $0x28] sm:$0xf]
      %v301 = vld [vmem:[%s268 + $0x2c] sm:$0xf]
      %v302 = vld [vmem:[%s268 + $0x30] sm:$0xf]
      %v303 = vld [vmem:[%s268 + $0x34] sm:$0xf]
      %v304 = vld [vmem:[%s268 + $0x38] sm:$0xf]
      %v305 = vld [vmem:[%s268 + $0x3c] sm:$0xf]
      %v306 = vld [vmem:[%s268 + $0x40] sm:$0xf]
      %v307 = vld [vmem:[%s268 + $0x44] sm:$0xf]
      %v308 = vld [vmem:[%s268 + $0x48] sm:$0xf]
      %v309 = vld [vmem:[%s268 + $0x4c] sm:$0xf]
      %v310 = vld [vmem:[%s268 + $0x50] sm:$0xf]
      %v311 = vld [vmem:[%s268 + $0x54] sm:$0xf]
      %v312 = vld [vmem:[%s268 + $0x58] sm:$0xf]
      %v313 = vld [vmem:[%s268 + $0x5c] sm:$0xf]
      %v314 = vld [vmem:[%s268 + $0x60] sm:$0xf]
      %v315 = vld [vmem:[%s268 + $0x64] sm:$0xf]
      %v316 = vld [vmem:[%s268 + $0x68] sm:$0xf]
      %v317 = vld [vmem:[%s268 + $0x6c] sm:$0xf]
      %v318 = vld [vmem:[%s268 + $0x70] sm:$0xf]
      %v319 = vld [vmem:[%s268 + $0x74] sm:$0xf]
      %v320 = vld [vmem:[%s268 + $0x78] sm:$0xf]
      %v321 = vld [vmem:[%s268 + $0x7c] sm:$0xf]
      %v322 = vld [vmem:[%s268 + $0x80] sm:$0xf]
      %v323 = vld [vmem:[%s268 + $0x84] sm:$0xf]
      %v324 = vld [vmem:[%s268 + $0x88] sm:$0xf]
      %v325 = vld [vmem:[%s268 + $0x8c] sm:$0xf]
      %v326 = vld [vmem:[%s268 + $0x90] sm:$0xf]
      %v327 = vld [vmem:[%s268 + $0x94] sm:$0xf]
      %v328 = vld [vmem:[%s268 + $0x98] sm:$0xf]
      %v329 = vld [vmem:[%s268 + $0x9c] sm:$0xf]
      %v330 = vld [vmem:[%s268 + $0xa0] sm:$0xf]
      %v331 = vld [vmem:[%s268 + $0xa4] sm:$0xf]
      %v332 = vld [vmem:[%s268 + $0xa8] sm:$0xf]
      %v333 = vld [vmem:[%s268 + $0xac] sm:$0xf]
      %v334 = vld [vmem:[%s268 + $0xb0] sm:$0xf]
      %v335 = vld [vmem:[%s268 + $0xb4] sm:$0xf]
      %v336 = vld [vmem:[%s268 + $0xb8] sm:$0xf]
      %v337 = vld [vmem:[%s268 + $0xbc] sm:$0xf]
      %v338 = vld [vmem:[%s268 + $0xc0] sm:$0xf]
      %v339 = vld [vmem:[%s268 + $0xc4] sm:$0xf]
      %v340 = vld [vmem:[%s268 + $0xc8] sm:$0xf]
      %v341 = vld [vmem:[%s268 + $0xcc] sm:$0xf]
      %v342 = vld [vmem:[%s268 + $0xd0] sm:$0xf]
      %v343 = vld [vmem:[%s268 + $0xd4] sm:$0xf]
      %v344 = vld [vmem:[%s268 + $0xd8] sm:$0xf]
      %v345 = vld [vmem:[%s268 + $0xdc] sm:$0xf]
      %v346 = vld [vmem:[%s268 + $0xe0] sm:$0xf]
      %v347 = vld [vmem:[%s268 + $0xe4] sm:$0xf]
      %v348 = vld [vmem:[%s268 + $0xe8] sm:$0xf]
      %v349 = vld [vmem:[%s268 + $0xec] sm:$0xf]
      %v350 = vld [vmem:[%s268 + $0xf0] sm:$0xf]
      %v351 = vld [vmem:[%s268 + $0xf4] sm:$0xf]
      %v352 = vld [vmem:[%s268 + $0xf8] sm:$0xf]
      %v353 = vld [vmem:[%s268 + $0xfc] sm:$0xf]
      %v358 = vunpack.c.l.b16 %v284
      %v359 = vunpack.c.h.b16 %v284
      %v360 = vunpack.c.l.b16 %v285
      %v361 = vunpack.c.h.b16 %v285
      %v362 = vunpack.c.l.b16 %v286
      %v363 = vunpack.c.h.b16 %v286
      %v364 = vunpack.c.l.b16 %v287
      %v365 = vunpack.c.h.b16 %v287
      %v366 = vpack.c.b16 %v362, %v358
      %v367 = vpack.c.b16 %v363, %v359
      %v368 = vpack.c.b16 %v364, %v360
      %v369 = vpack.c.b16 %v365, %v361
      %v438 = vunpack.c.l.b16 %v290
      %v439 = vunpack.c.l.b16 %v291
      %v440 = vunpack.c.l.b16 %v292
      %v441 = vunpack.c.l.b16 %v293
      %v442 = vunpack.c.l.b16 %v294
      %v443 = vunpack.c.l.b16 %v295
      %v444 = vunpack.c.l.b16 %v296
      %v445 = vunpack.c.l.b16 %v297
      %v446 = vunpack.c.l.b16 %v298
      %v447 = vunpack.c.l.b16 %v299
      %v448 = vunpack.c.l.b16 %v300
      %v449 = vunpack.c.l.b16 %v301
      %v450 = vunpack.c.l.b16 %v302
      %v451 = vunpack.c.l.b16 %v303
      %v452 = vunpack.c.l.b16 %v304
      %v453 = vunpack.c.l.b16 %v305
      %v454 = vunpack.c.l.b16 %v306
      %v455 = vunpack.c.l.b16 %v307
      %v456 = vunpack.c.l.b16 %v308
      %v457 = vunpack.c.l.b16 %v309
      %v458 = vunpack.c.l.b16 %v310
      %v459 = vunpack.c.l.b16 %v311
      %v460 = vunpack.c.l.b16 %v312
      %v461 = vunpack.c.l.b16 %v313
      %v462 = vunpack.c.l.b16 %v314
      %v463 = vunpack.c.l.b16 %v315
      %v464 = vunpack.c.l.b16 %v316
      %v465 = vunpack.c.l.b16 %v317
      %v466 = vunpack.c.l.b16 %v318
      %v467 = vunpack.c.l.b16 %v319
      %v468 = vunpack.c.l.b16 %v320
      %v469 = vunpack.c.l.b16 %v321
      %v470 = vunpack.c.l.b16 %v322
      %v471 = vunpack.c.l.b16 %v323
      %v472 = vunpack.c.l.b16 %v324
      %v473 = vunpack.c.l.b16 %v325
      %v474 = vunpack.c.l.b16 %v326
      %v475 = vunpack.c.l.b16 %v327
      %v476 = vunpack.c.l.b16 %v328
      %v477 = vunpack.c.l.b16 %v329
      %v478 = vunpack.c.l.b16 %v330
      %v479 = vunpack.c.l.b16 %v331
      %v480 = vunpack.c.l.b16 %v332
      %v481 = vunpack.c.l.b16 %v333
      %v482 = vunpack.c.l.b16 %v334
      %v483 = vunpack.c.l.b16 %v335
      %v484 = vunpack.c.l.b16 %v336
      %v485 = vunpack.c.l.b16 %v337
      %v486 = vunpack.c.l.b16 %v338
      %v487 = vunpack.c.l.b16 %v339
      %v488 = vunpack.c.l.b16 %v340
      %v489 = vunpack.c.l.b16 %v341
      %v490 = vunpack.c.l.b16 %v342
      %v491 = vunpack.c.l.b16 %v343
      %v492 = vunpack.c.l.b16 %v344
      %v493 = vunpack.c.l.b16 %v345
      %v494 = vunpack.c.l.b16 %v346
      %v495 = vunpack.c.l.b16 %v347
      %v496 = vunpack.c.l.b16 %v348
      %v497 = vunpack.c.l.b16 %v349
      %v498 = vunpack.c.l.b16 %v350
      %v499 = vunpack.c.l.b16 %v351
      %v500 = vunpack.c.l.b16 %v352
      %v501 = vunpack.c.l.b16 %v353
      %v502 = vpack.c.b16 %v439, %v438
      %v503 = vpack.c.b16 %v441, %v440
      %v504 = vpack.c.b16 %v443, %v442
      %v505 = vpack.c.b16 %v445, %v444
      %v506 = vpack.c.b16 %v447, %v446
      %v507 = vpack.c.b16 %v449, %v448
      %v508 = vpack.c.b16 %v451, %v450
      %v509 = vpack.c.b16 %v453, %v452
      %v510 = vpack.c.b16 %v455, %v454
      %v511 = vpack.c.b16 %v457, %v456
      %v512 = vpack.c.b16 %v459, %v458
      %v513 = vpack.c.b16 %v461, %v460
      %v514 = vpack.c.b16 %v463, %v462
      %v515 = vpack.c.b16 %v465, %v464
      %v516 = vpack.c.b16 %v467, %v466
      %v517 = vpack.c.b16 %v469, %v468
      %v518 = vpack.c.b16 %v471, %v470
      %v519 = vpack.c.b16 %v473, %v472
      %v520 = vpack.c.b16 %v475, %v474
      %v521 = vpack.c.b16 %v477, %v476
      %v522 = vpack.c.b16 %v479, %v478
      %v523 = vpack.c.b16 %v481, %v480
      %v524 = vpack.c.b16 %v483, %v482
      %v525 = vpack.c.b16 %v485, %v484
      %v526 = vpack.c.b16 %v487, %v486
      %v527 = vpack.c.b16 %v489, %v488
      %v528 = vpack.c.b16 %v491, %v490
      %v529 = vpack.c.b16 %v493, %v492
      %v530 = vpack.c.b16 %v495, %v494
      %v531 = vpack.c.b16 %v497, %v496
      %v532 = vpack.c.b16 %v499, %v498
      %v533 = vpack.c.b16 %v501, %v500
      %566 = vmatpush.bf16.msra.mxu0 %v509
      %567 = vmatpush.bf16.msra.mxu0 %v508
      %568 = vmatpush.bf16.msra.mxu0 %v507
      %569 = vmatpush.bf16.msra.mxu0 %v506
      %570 = vmatpush.bf16.msra.mxu0 %v505
      %571 = vmatpush.bf16.msra.mxu0 %v504
      %572 = vmatpush.bf16.msra.mxu0 %v503
      %573 = vmatpush.bf16.msra.mxu0 %v502
      %574 = vmatmul.bf16.gmra.mxu0 %v366
      %v575 = vpop.f32.mrf.mxu0
      %v576 = vadd.f32 0.0, %v575
      %v577 = vpop.f32.mrf.mxu0
      %v578 = vadd.f32 0.0, %v577
      %579 = vdwg.mxu0
      %580 = vmatpush.bf16.msra.mxu0 %v517
      %581 = vmatpush.bf16.msra.mxu0 %v516
      %582 = vmatpush.bf16.msra.mxu0 %v515
      %583 = vmatpush.bf16.msra.mxu0 %v514
      %584 = vmatpush.bf16.msra.mxu0 %v513
      %585 = vmatpush.bf16.msra.mxu0 %v512
      %586 = vmatpush.bf16.msra.mxu0 %v511
      %587 = vmatpush.bf16.msra.mxu0 %v510
      %588 = vmatmul.bf16.gmra.mxu0 %v367
      %v589 = vpop.f32.mrf.mxu0
      %v590 = vadd.f32 %v576, %v589
      %v591 = vpop.f32.mrf.mxu0
      %v592 = vadd.f32 %v578, %v591
      %593 = vdwg.mxu0
      %594 = vmatpush.bf16.msra.mxu0 %v525
      %595 = vmatpush.bf16.msra.mxu0 %v524
      %596 = vmatpush.bf16.msra.mxu0 %v523
      %597 = vmatpush.bf16.msra.mxu0 %v522
      %598 = vmatpush.bf16.msra.mxu0 %v521
      %599 = vmatpush.bf16.msra.mxu0 %v520
      %600 = vmatpush.bf16.msra.mxu0 %v519
      %601 = vmatpush.bf16.msra.mxu0 %v518
      %602 = vmatmul.bf16.gmra.mxu0 %v368
      %v603 = vpop.f32.mrf.mxu0
      %v604 = vadd.f32 %v590, %v603
      %v605 = vpop.f32.mrf.mxu0
      %v606 = vadd.f32 %v592, %v605
      %607 = vdwg.mxu0
      %608 = vmatpush.bf16.msra.mxu0 %v533
      %609 = vmatpush.bf16.msra.mxu0 %v532
      %610 = vmatpush.bf16.msra.mxu0 %v531
      %611 = vmatpush.bf16.msra.mxu0 %v530
      %612 = vmatpush.bf16.msra.mxu0 %v529
      %613 = vmatpush.bf16.msra.mxu0 %v528
      %614 = vmatpush.bf16.msra.mxu0 %v527
      %615 = vmatpush.bf16.msra.mxu0 %v526
      %616 = vmatmul.bf16.gmra.mxu0 %v369
      %v617 = vpop.f32.mrf.mxu0
      %v618 = vadd.f32 %v604, %v617
      %v619 = vpop.f32.mrf.mxu0
      %v620 = vadd.f32 %v606, %v619
      %621 = vdwg.mxu0
      %v622 = vadd.f32 %v288, %v618
      %v623 = vadd.f32 %v289, %v620
      %vm624 = vcmask 523264
      %625 = vst.msk [vmem:[#allocation2] sm:$0xff] %vm624, %v622
      %vm626 = vcmask 519168
      %627 = vst.msk [vmem:[#allocation2 + $0x8] sm:$0xf] %vm626, %v623
      %v628 = vld [vmem:[%s262] sm:$0xff]
      %v629 = vld [vmem:[%s262 + $0x8] sm:$0xff]
      %v630 = vld [vmem:[%s262 + $0x10] sm:$0x77]
      %v631 = vld [vmem:[%s262 + $0x18] sm:$0x77]
      %v632 = vld [vmem:[#allocation2] sm:$0xff]
      %v633 = vld [vmem:[#allocation2 + $0x8] sm:$0xf]
      %s634 = scalar_lea.vmem %s268, 256
      %v635 = vld [vmem:[%s634] sm:$0xf]
      %v636 = vld [vmem:[%s634 + $0x4] sm:$0xf]
      %v637 = vld [vmem:[%s634 + $0x8] sm:$0xf]
      %v638 = vld [vmem:[%s634 + $0xc] sm:$0xf]
      %v639 = vld [vmem:[%s634 + $0x10] sm:$0xf]
      %v640 = vld [vmem:[%s634 + $0x14] sm:$0xf]
      %v641 = vld [vmem:[%s634 + $0x18] sm:$0xf]
      %v642 = vld [vmem:[%s634 + $0x1c] sm:$0xf]
      %v643 = vld [vmem:[%s634 + $0x20] sm:$0xf]
      %v644 = vld [vmem:[%s634 + $0x24] sm:$0xf]
      %v645 = vld [vmem:[%s634 + $0x28] sm:$0xf]
      %v646 = vld [vmem:[%s634 + $0x2c] sm:$0xf]
      %v647 = vld [vmem:[%s634 + $0x30] sm:$0xf]
      %v648 = vld [vmem:[%s634 + $0x34] sm:$0xf]
      %v649 = vld [vmem:[%s634 + $0x38] sm:$0xf]
      %v650 = vld [vmem:[%s634 + $0x3c] sm:$0xf]
      %v651 = vld [vmem:[%s634 + $0x40] sm:$0xf]
      %v652 = vld [vmem:[%s634 + $0x44] sm:$0xf]
      %v653 = vld [vmem:[%s634 + $0x48] sm:$0xf]
      %v654 = vld [vmem:[%s634 + $0x4c] sm:$0xf]
      %v655 = vld [vmem:[%s634 + $0x50] sm:$0xf]
      %v656 = vld [vmem:[%s634 + $0x54] sm:$0xf]
      %v657 = vld [vmem:[%s634 + $0x58] sm:$0xf]
      %v658 = vld [vmem:[%s634 + $0x5c] sm:$0xf]
      %v659 = vld [vmem:[%s634 + $0x60] sm:$0xf]
      %v660 = vld [vmem:[%s634 + $0x64] sm:$0xf]
      %v661 = vld [vmem:[%s634 + $0x68] sm:$0xf]
      %v662 = vld [vmem:[%s634 + $0x6c] sm:$0xf]
      %v663 = vld [vmem:[%s634 + $0x70] sm:$0xf]
      %v664 = vld [vmem:[%s634 + $0x74] sm:$0xf]
      %v665 = vld [vmem:[%s634 + $0x78] sm:$0xf]
      %v666 = vld [vmem:[%s634 + $0x7c] sm:$0xf]
      %v667 = vld [vmem:[%s634 + $0x80] sm:$0xf]
      %v668 = vld [vmem:[%s634 + $0x84] sm:$0xf]
      %v669 = vld [vmem:[%s634 + $0x88] sm:$0xf]
      %v670 = vld [vmem:[%s634 + $0x8c] sm:$0xf]
      %v671 = vld [vmem:[%s634 + $0x90] sm:$0xf]
      %v672 = vld [vmem:[%s634 + $0x94] sm:$0xf]
      %v673 = vld [vmem:[%s634 + $0x98] sm:$0xf]
      %v674 = vld [vmem:[%s634 + $0x9c] sm:$0xf]
      %v675 = vld [vmem:[%s634 + $0xa0] sm:$0xf]
      %v676 = vld [vmem:[%s634 + $0xa4] sm:$0xf]
      %v677 = vld [vmem:[%s634 + $0xa8] sm:$0xf]
      %v678 = vld [vmem:[%s634 + $0xac] sm:$0xf]
      %v679 = vld [vmem:[%s634 + $0xb0] sm:$0xf]
      %v680 = vld [vmem:[%s634 + $0xb4] sm:$0xf]
      %v681 = vld [vmem:[%s634 + $0xb8] sm:$0xf]
      %v682 = vld [vmem:[%s634 + $0xbc] sm:$0xf]
      %v683 = vld [vmem:[%s634 + $0xc0] sm:$0xf]
      %v684 = vld [vmem:[%s634 + $0xc4] sm:$0xf]
      %v685 = vld [vmem:[%s634 + $0xc8] sm:$0xf]
      %v686 = vld [vmem:[%s634 + $0xcc] sm:$0xf]
      %v687 = vld [vmem:[%s634 + $0xd0] sm:$0xf]
      %v688 = vld [vmem:[%s634 + $0xd4] sm:$0xf]
      %v689 = vld [vmem:[%s634 + $0xd8] sm:$0xf]
      %v690 = vld [vmem:[%s634 + $0xdc] sm:$0xf]
      %v691 = vld [vmem:[%s634 + $0xe0] sm:$0xf]
      %v692 = vld [vmem:[%s634 + $0xe4] sm:$0xf]
      %v693 = vld [vmem:[%s634 + $0xe8] sm:$0xf]
      %v694 = vld [vmem:[%s634 + $0xec] sm:$0xf]
      %v695 = vld [vmem:[%s634 + $0xf0] sm:$0xf]
      %v696 = vld [vmem:[%s634 + $0xf4] sm:$0xf]
      %v697 = vld [vmem:[%s634 + $0xf8] sm:$0xf]
      %v698 = vld [vmem:[%s634 + $0xfc] sm:$0xf]
      %v703 = vunpack.c.l.b16 %v628
      %v704 = vunpack.c.h.b16 %v628
      %v705 = vunpack.c.l.b16 %v629
      %v706 = vunpack.c.h.b16 %v629
      %v707 = vunpack.c.l.b16 %v630
      %v708 = vunpack.c.h.b16 %v630
      %v709 = vunpack.c.l.b16 %v631
      %v710 = vunpack.c.h.b16 %v631
      %v711 = vpack.c.b16 %v707, %v703
      %v712 = vpack.c.b16 %v708, %v704
      %v713 = vpack.c.b16 %v709, %v705
      %v714 = vpack.c.b16 %v710, %v706
      %v716 = vshrl.u32 %v711, 16
      %v718 = vshll.u32 %v711, 16
      %v720 = vrot.slane %v718, 1
      %v721 = vor.u32 %v716, %v720
      %v723 = vshrl.u32 %v712, 16
      %v725 = vshll.u32 %v712, 16
      %v727 = vrot.slane %v725, 1
      %v728 = vor.u32 %v723, %v727
      %v730 = vshrl.u32 %v713, 16
      %v732 = vshll.u32 %v713, 16
      %v734 = vrot.slane %v732, 1
      %v735 = vor.u32 %v730, %v734
      %v737 = vshrl.u32 %v714, 16
      %v739 = vshll.u32 %v714, 16
      %v741 = vrot.slane %v739, 1
      %v742 = vor.u32 %v737, %v741
      %v811 = vunpack.c.l.b16 %v635
      %v812 = vunpack.c.l.b16 %v636
      %v813 = vunpack.c.l.b16 %v637
      %v814 = vunpack.c.l.b16 %v638
      %v815 = vunpack.c.l.b16 %v639
      %v816 = vunpack.c.l.b16 %v640
      %v817 = vunpack.c.l.b16 %v641
      %v818 = vunpack.c.l.b16 %v642
      %v819 = vunpack.c.l.b16 %v643
      %v820 = vunpack.c.l.b16 %v644
      %v821 = vunpack.c.l.b16 %v645
      %v822 = vunpack.c.l.b16 %v646
      %v823 = vunpack.c.l.b16 %v647
      %v824 = vunpack.c.l.b16 %v648
      %v825 = vunpack.c.l.b16 %v649
      %v826 = vunpack.c.l.b16 %v650
      %v827 = vunpack.c.l.b16 %v651
      %v828 = vunpack.c.l.b16 %v652
      %v829 = vunpack.c.l.b16 %v653
      %v830 = vunpack.c.l.b16 %v654
      %v831 = vunpack.c.l.b16 %v655
      %v832 = vunpack.c.l.b16 %v656
      %v833 = vunpack.c.l.b16 %v657
      %v834 = vunpack.c.l.b16 %v658
      %v835 = vunpack.c.l.b16 %v659
      %v836 = vunpack.c.l.b16 %v660
      %v837 = vunpack.c.l.b16 %v661
      %v838 = vunpack.c.l.b16 %v662
      %v839 = vunpack.c.l.b16 %v663
      %v840 = vunpack.c.l.b16 %v664
      %v841 = vunpack.c.l.b16 %v665
      %v842 = vunpack.c.l.b16 %v666
      %v843 = vunpack.c.l.b16 %v667
      %v844 = vunpack.c.l.b16 %v668
      %v845 = vunpack.c.l.b16 %v669
      %v846 = vunpack.c.l.b16 %v670
      %v847 = vunpack.c.l.b16 %v671
      %v848 = vunpack.c.l.b16 %v672
      %v849 = vunpack.c.l.b16 %v673
      %v850 = vunpack.c.l.b16 %v674
      %v851 = vunpack.c.l.b16 %v675
      %v852 = vunpack.c.l.b16 %v676
      %v853 = vunpack.c.l.b16 %v677
      %v854 = vunpack.c.l.b16 %v678
      %v855 = vunpack.c.l.b16 %v679
      %v856 = vunpack.c.l.b16 %v680
      %v857 = vunpack.c.l.b16 %v681
      %v858 = vunpack.c.l.b16 %v682
      %v859 = vunpack.c.l.b16 %v683
      %v860 = vunpack.c.l.b16 %v684
      %v861 = vunpack.c.l.b16 %v685
      %v862 = vunpack.c.l.b16 %v686
      %v863 = vunpack.c.l.b16 %v687
      %v864 = vunpack.c.l.b16 %v688
      %v865 = vunpack.c.l.b16 %v689
      %v866 = vunpack.c.l.b16 %v690
      %v867 = vunpack.c.l.b16 %v691
      %v868 = vunpack.c.l.b16 %v692
      %v869 = vunpack.c.l.b16 %v693
      %v870 = vunpack.c.l.b16 %v694
      %v871 = vunpack.c.l.b16 %v695
      %v872 = vunpack.c.l.b16 %v696
      %v873 = vunpack.c.l.b16 %v697
      %v874 = vunpack.c.l.b16 %v698
      %v875 = vpack.c.b16 %v812, %v811
      %v876 = vpack.c.b16 %v814, %v813
      %v877 = vpack.c.b16 %v816, %v815
      %v878 = vpack.c.b16 %v818, %v817
      %v879 = vpack.c.b16 %v820, %v819
      %v880 = vpack.c.b16 %v822, %v821
      %v881 = vpack.c.b16 %v824, %v823
      %v882 = vpack.c.b16 %v826, %v825
      %v883 = vpack.c.b16 %v828, %v827
      %v884 = vpack.c.b16 %v830, %v829
      %v885 = vpack.c.b16 %v832, %v831
      %v886 = vpack.c.b16 %v834, %v833
      %v887 = vpack.c.b16 %v836, %v835
      %v888 = vpack.c.b16 %v838, %v837
      %v889 = vpack.c.b16 %v840, %v839
      %v890 = vpack.c.b16 %v842, %v841
      %v891 = vpack.c.b16 %v844, %v843
      %v892 = vpack.c.b16 %v846, %v845
      %v893 = vpack.c.b16 %v848, %v847
      %v894 = vpack.c.b16 %v850, %v849
      %v895 = vpack.c.b16 %v852, %v851
      %v896 = vpack.c.b16 %v854, %v853
      %v897 = vpack.c.b16 %v856, %v855
      %v898 = vpack.c.b16 %v858, %v857
      %v899 = vpack.c.b16 %v860, %v859
      %v900 = vpack.c.b16 %v862, %v861
      %v901 = vpack.c.b16 %v864, %v863
      %v902 = vpack.c.b16 %v866, %v865
      %v903 = vpack.c.b16 %v868, %v867
      %v904 = vpack.c.b16 %v870, %v869
      %v905 = vpack.c.b16 %v872, %v871
      %v906 = vpack.c.b16 %v874, %v873
      %939 = vmatpush.bf16.msra.mxu0 %v882
      %940 = vmatpush.bf16.msra.mxu0 %v881
      %941 = vmatpush.bf16.msra.mxu0 %v880
      %942 = vmatpush.bf16.msra.mxu0 %v879
      %943 = vmatpush.bf16.msra.mxu0 %v878
      %944 = vmatpush.bf16.msra.mxu0 %v877
      %945 = vmatpush.bf16.msra.mxu0 %v876
      %946 = vmatpush.bf16.msra.mxu0 %v875
      %947 = vmatmul.bf16.gmra.mxu0 %v721
      %v948 = vpop.f32.mrf.mxu0
      %v949 = vadd.f32 0.0, %v948
      %v950 = vpop.f32.mrf.mxu0
      %v951 = vadd.f32 0.0, %v950
      %952 = vdwg.mxu0
      %953 = vmatpush.bf16.msra.mxu0 %v890
      %954 = vmatpush.bf16.msra.mxu0 %v889
      %955 = vmatpush.bf16.msra.mxu0 %v888
      %956 = vmatpush.bf16.msra.mxu0 %v887
      %957 = vmatpush.bf16.msra.mxu0 %v886
      %958 = vmatpush.bf16.msra.mxu0 %v885
      %959 = vmatpush.bf16.msra.mxu0 %v884
      %960 = vmatpush.bf16.msra.mxu0 %v883
      %961 = vmatmul.bf16.gmra.mxu0 %v728
      %v962 = vpop.f32.mrf.mxu0
      %v963 = vadd.f32 %v949, %v962
      %v964 = vpop.f32.mrf.mxu0
      %v965 = vadd.f32 %v951, %v964
      %966 = vdwg.mxu0
      %967 = vmatpush.bf16.msra.mxu0 %v898
      %968 = vmatpush.bf16.msra.mxu0 %v897
      %969 = vmatpush.bf16.msra.mxu0 %v896
      %970 = vmatpush.bf16.msra.mxu0 %v895
      %971 = vmatpush.bf16.msra.mxu0 %v894
      %972 = vmatpush.bf16.msra.mxu0 %v893
      %973 = vmatpush.bf16.msra.mxu0 %v892
      %974 = vmatpush.bf16.msra.mxu0 %v891
      %975 = vmatmul.bf16.gmra.mxu0 %v735
      %v976 = vpop.f32.mrf.mxu0
      %v977 = vadd.f32 %v963, %v976
      %v978 = vpop.f32.mrf.mxu0
      %v979 = vadd.f32 %v965, %v978
      %980 = vdwg.mxu0
      %981 = vmatpush.bf16.msra.mxu0 %v906
      %982 = vmatpush.bf16.msra.mxu0 %v905
      %983 = vmatpush.bf16.msra.mxu0 %v904
      %984 = vmatpush.bf16.msra.mxu0 %v903
      %985 = vmatpush.bf16.msra.mxu0 %v902
      %986 = vmatpush.bf16.msra.mxu0 %v901
      %987 = vmatpush.bf16.msra.mxu0 %v900
      %988 = vmatpush.bf16.msra.mxu0 %v899
      %989 = vmatmul.bf16.gmra.mxu0 %v742
      %v990 = vpop.f32.mrf.mxu0
      %v991 = vadd.f32 %v977, %v990
      %v992 = vpop.f32.mrf.mxu0
      %v993 = vadd.f32 %v979, %v992
      %994 = vdwg.mxu0
      %v995 = vadd.f32 %v632, %v991
      %v996 = vadd.f32 %v633, %v993
      %997 = vst.msk [vmem:[#allocation2] sm:$0xff] %vm624, %v995
      %998 = vst.msk [vmem:[#allocation2 + $0x8] sm:$0xf] %vm626, %v996
      %v999 = vld [vmem:[%s262] sm:$0xee]
      %v1000 = vld [vmem:[%s262 + $0x8] sm:$0xee]
      %v1001 = vld [vmem:[%s262 + $0x10] sm:$0x77]
      %v1002 = vld [vmem:[%s262 + $0x18] sm:$0x77]
      %v1003 = vld [vmem:[#allocation2] sm:$0xff]
      %v1004 = vld [vmem:[#allocation2 + $0x8] sm:$0xf]
      %s1005 = scalar_lea.vmem %s268, 512
      %v1006 = vld [vmem:[%s1005] sm:$0xf]
      %v1007 = vld [vmem:[%s1005 + $0x4] sm:$0xf]
      %v1008 = vld [vmem:[%s1005 + $0x8] sm:$0xf]
      %v1009 = vld [vmem:[%s1005 + $0xc] sm:$0xf]
      %v1010 = vld [vmem:[%s1005 + $0x10] sm:$0xf]
      %v1011 = vld [vmem:[%s1005 + $0x14] sm:$0xf]
      %v1012 = vld [vmem:[%s1005 + $0x18] sm:$0xf]
      %v1013 = vld [vmem:[%s1005 + $0x1c] sm:$0xf]
      %v1014 = vld [vmem:[%s1005 + $0x20] sm:$0xf]
      %v1015 = vld [vmem:[%s1005 + $0x24] sm:$0xf]
      %v1016 = vld [vmem:[%s1005 + $0x28] sm:$0xf]
      %v1017 = vld [vmem:[%s1005 + $0x2c] sm:$0xf]
      %v1018 = vld [vmem:[%s1005 + $0x30] sm:$0xf]
      %v1019 = vld [vmem:[%s1005 + $0x34] sm:$0xf]
      %v1020 = vld [vmem:[%s1005 + $0x38] sm:$0xf]
      %v1021 = vld [vmem:[%s1005 + $0x3c] sm:$0xf]
      %v1022 = vld [vmem:[%s1005 + $0x40] sm:$0xf]
      %v1023 = vld [vmem:[%s1005 + $0x44] sm:$0xf]
      %v1024 = vld [vmem:[%s1005 + $0x48] sm:$0xf]
      %v1025 = vld [vmem:[%s1005 + $0x4c] sm:$0xf]
      %v1026 = vld [vmem:[%s1005 + $0x50] sm:$0xf]
      %v1027 = vld [vmem:[%s1005 + $0x54] sm:$0xf]
      %v1028 = vld [vmem:[%s1005 + $0x58] sm:$0xf]
      %v1029 = vld [vmem:[%s1005 + $0x5c] sm:$0xf]
      %v1030 = vld [vmem:[%s1005 + $0x60] sm:$0xf]
      %v1031 = vld [vmem:[%s1005 + $0x64] sm:$0xf]
      %v1032 = vld [vmem:[%s1005 + $0x68] sm:$0xf]
      %v1033 = vld [vmem:[%s1005 + $0x6c] sm:$0xf]
      %v1034 = vld [vmem:[%s1005 + $0x70] sm:$0xf]
      %v1035 = vld [vmem:[%s1005 + $0x74] sm:$0xf]
      %v1036 = vld [vmem:[%s1005 + $0x78] sm:$0xf]
      %v1037 = vld [vmem:[%s1005 + $0x7c] sm:$0xf]
      %v1038 = vld [vmem:[%s1005 + $0x80] sm:$0xf]
      %v1039 = vld [vmem:[%s1005 + $0x84] sm:$0xf]
      %v1040 = vld [vmem:[%s1005 + $0x88] sm:$0xf]
      %v1041 = vld [vmem:[%s1005 + $0x8c] sm:$0xf]
      %v1042 = vld [vmem:[%s1005 + $0x90] sm:$0xf]
      %v1043 = vld [vmem:[%s1005 + $0x94] sm:$0xf]
      %v1044 = vld [vmem:[%s1005 + $0x98] sm:$0xf]
      %v1045 = vld [vmem:[%s1005 + $0x9c] sm:$0xf]
      %v1046 = vld [vmem:[%s1005 + $0xa0] sm:$0xf]
      %v1047 = vld [vmem:[%s1005 + $0xa4] sm:$0xf]
      %v1048 = vld [vmem:[%s1005 + $0xa8] sm:$0xf]
      %v1049 = vld [vmem:[%s1005 + $0xac] sm:$0xf]
      %v1050 = vld [vmem:[%s1005 + $0xb0] sm:$0xf]
      %v1051 = vld [vmem:[%s1005 + $0xb4] sm:$0xf]
      %v1052 = vld [vmem:[%s1005 + $0xb8] sm:$0xf]
      %v1053 = vld [vmem:[%s1005 + $0xbc] sm:$0xf]
      %v1054 = vld [vmem:[%s1005 + $0xc0] sm:$0xf]
      %v1055 = vld [vmem:[%s1005 + $0xc4] sm:$0xf]
      %v1056 = vld [vmem:[%s1005 + $0xc8] sm:$0xf]
      %v1057 = vld [vmem:[%s1005 + $0xcc] sm:$0xf]
      %v1058 = vld [vmem:[%s1005 + $0xd0] sm:$0xf]
      %v1059 = vld [vmem:[%s1005 + $0xd4] sm:$0xf]
      %v1060 = vld [vmem:[%s1005 + $0xd8] sm:$0xf]
      %v1061 = vld [vmem:[%s1005 + $0xdc] sm:$0xf]
      %v1062 = vld [vmem:[%s1005 + $0xe0] sm:$0xf]
      %v1063 = vld [vmem:[%s1005 + $0xe4] sm:$0xf]
      %v1064 = vld [vmem:[%s1005 + $0xe8] sm:$0xf]
      %v1065 = vld [vmem:[%s1005 + $0xec] sm:$0xf]
      %v1066 = vld [vmem:[%s1005 + $0xf0] sm:$0xf]
      %v1067 = vld [vmem:[%s1005 + $0xf4] sm:$0xf]
      %v1068 = vld [vmem:[%s1005 + $0xf8] sm:$0xf]
      %v1069 = vld [vmem:[%s1005 + $0xfc] sm:$0xf]
      %v1074 = vunpack.c.l.b16 %v999
      %v1075 = vunpack.c.h.b16 %v999
      %v1076 = vunpack.c.l.b16 %v1000
      %v1077 = vunpack.c.h.b16 %v1000
      %v1078 = vunpack.c.l.b16 %v1001
      %v1079 = vunpack.c.h.b16 %v1001
      %v1080 = vunpack.c.l.b16 %v1002
      %v1081 = vunpack.c.h.b16 %v1002
      %v1082 = vpack.c.b16 %v1078, %v1074
      %v1083 = vpack.c.b16 %v1079, %v1075
      %v1084 = vpack.c.b16 %v1080, %v1076
      %v1085 = vpack.c.b16 %v1081, %v1077
      %v1086 = vrot.slane %v1082, 1
      %v1087 = vrot.slane %v1083, 1
      %v1088 = vrot.slane %v1084, 1
      %v1089 = vrot.slane %v1085, 1
      %v1158 = vunpack.c.l.b16 %v1006
      %v1159 = vunpack.c.l.b16 %v1007
      %v1160 = vunpack.c.l.b16 %v1008
      %v1161 = vunpack.c.l.b16 %v1009
      %v1162 = vunpack.c.l.b16 %v1010
      %v1163 = vunpack.c.l.b16 %v1011
      %v1164 = vunpack.c.l.b16 %v1012
      %v1165 = vunpack.c.l.b16 %v1013
      %v1166 = vunpack.c.l.b16 %v1014
      %v1167 = vunpack.c.l.b16 %v1015
      %v1168 = vunpack.c.l.b16 %v1016
      %v1169 = vunpack.c.l.b16 %v1017
      %v1170 = vunpack.c.l.b16 %v1018
      %v1171 = vunpack.c.l.b16 %v1019
      %v1172 = vunpack.c.l.b16 %v1020
      %v1173 = vunpack.c.l.b16 %v1021
      %v1174 = vunpack.c.l.b16 %v1022
      %v1175 = vunpack.c.l.b16 %v1023
      %v1176 = vunpack.c.l.b16 %v1024
      %v1177 = vunpack.c.l.b16 %v1025
      %v1178 = vunpack.c.l.b16 %v1026
      %v1179 = vunpack.c.l.b16 %v1027
      %v1180 = vunpack.c.l.b16 %v1028
      %v1181 = vunpack.c.l.b16 %v1029
      %v1182 = vunpack.c.l.b16 %v1030
      %v1183 = vunpack.c.l.b16 %v1031
      %v1184 = vunpack.c.l.b16 %v1032
      %v1185 = vunpack.c.l.b16 %v1033
      %v1186 = vunpack.c.l.b16 %v1034
      %v1187 = vunpack.c.l.b16 %v1035
      %v1188 = vunpack.c.l.b16 %v1036
      %v1189 = vunpack.c.l.b16 %v1037
      %v1190 = vunpack.c.l.b16 %v1038
      %v1191 = vunpack.c.l.b16 %v1039
      %v1192 = vunpack.c.l.b16 %v1040
      %v1193 = vunpack.c.l.b16 %v1041
      %v1194 = vunpack.c.l.b16 %v1042
      %v1195 = vunpack.c.l.b16 %v1043
      %v1196 = vunpack.c.l.b16 %v1044
      %v1197 = vunpack.c.l.b16 %v1045
      %v1198 = vunpack.c.l.b16 %v1046
      %v1199 = vunpack.c.l.b16 %v1047
      %v1200 = vunpack.c.l.b16 %v1048
      %v1201 = vunpack.c.l.b16 %v1049
      %v1202 = vunpack.c.l.b16 %v1050
      %v1203 = vunpack.c.l.b16 %v1051
      %v1204 = vunpack.c.l.b16 %v1052
      %v1205 = vunpack.c.l.b16 %v1053
      %v1206 = vunpack.c.l.b16 %v1054
      %v1207 = vunpack.c.l.b16 %v1055
      %v1208 = vunpack.c.l.b16 %v1056
      %v1209 = vunpack.c.l.b16 %v1057
      %v1210 = vunpack.c.l.b16 %v1058
      %v1211 = vunpack.c.l.b16 %v1059
      %v1212 = vunpack.c.l.b16 %v1060
      %v1213 = vunpack.c.l.b16 %v1061
      %v1214 = vunpack.c.l.b16 %v1062
      %v1215 = vunpack.c.l.b16 %v1063
      %v1216 = vunpack.c.l.b16 %v1064
      %v1217 = vunpack.c.l.b16 %v1065
      %v1218 = vunpack.c.l.b16 %v1066
      %v1219 = vunpack.c.l.b16 %v1067
      %v1220 = vunpack.c.l.b16 %v1068
      %v1221 = vunpack.c.l.b16 %v1069
      %v1222 = vpack.c.b16 %v1159, %v1158
      %v1223 = vpack.c.b16 %v1161, %v1160
      %v1224 = vpack.c.b16 %v1163, %v1162
      %v1225 = vpack.c.b16 %v1165, %v1164
      %v1226 = vpack.c.b16 %v1167, %v1166
      %v1227 = vpack.c.b16 %v1169, %v1168
      %v1228 = vpack.c.b16 %v1171, %v1170
      %v1229 = vpack.c.b16 %v1173, %v1172
      %v1230 = vpack.c.b16 %v1175, %v1174
      %v1231 = vpack.c.b16 %v1177, %v1176
      %v1232 = vpack.c.b16 %v1179, %v1178
      %v1233 = vpack.c.b16 %v1181, %v1180
      %v1234 = vpack.c.b16 %v1183, %v1182
      %v1235 = vpack.c.b16 %v1185, %v1184
      %v1236 = vpack.c.b16 %v1187, %v1186
      %v1237 = vpack.c.b16 %v1189, %v1188
      %v1238 = vpack.c.b16 %v1191, %v1190
      %v1239 = vpack.c.b16 %v1193, %v1192
      %v1240 = vpack.c.b16 %v1195, %v1194
      %v1241 = vpack.c.b16 %v1197, %v1196
      %v1242 = vpack.c.b16 %v1199, %v1198
      %v1243 = vpack.c.b16 %v1201, %v1200
      %v1244 = vpack.c.b16 %v1203, %v1202
      %v1245 = vpack.c.b16 %v1205, %v1204
      %v1246 = vpack.c.b16 %v1207, %v1206
      %v1247 = vpack.c.b16 %v1209, %v1208
      %v1248 = vpack.c.b16 %v1211, %v1210
      %v1249 = vpack.c.b16 %v1213, %v1212
      %v1250 = vpack.c.b16 %v1215, %v1214
      %v1251 = vpack.c.b16 %v1217, %v1216
      %v1252 = vpack.c.b16 %v1219, %v1218
      %v1253 = vpack.c.b16 %v1221, %v1220
      %1286 = vmatpush.bf16.msra.mxu0 %v1229
      %1287 = vmatpush.bf16.msra.mxu0 %v1228
      %1288 = vmatpush.bf16.msra.mxu0 %v1227
      %1289 = vmatpush.bf16.msra.mxu0 %v1226
      %1290 = vmatpush.bf16.msra.mxu0 %v1225
      %1291 = vmatpush.bf16.msra.mxu0 %v1224
      %1292 = vmatpush.bf16.msra.mxu0 %v1223
      %1293 = vmatpush.bf16.msra.mxu0 %v1222
      %1294 = vmatmul.bf16.gmra.mxu0 %v1086
      %v1295 = vpop.f32.mrf.mxu0
      %v1296 = vadd.f32 0.0, %v1295
      %v1297 = vpop.f32.mrf.mxu0
      %v1298 = vadd.f32 0.0, %v1297
      %1299 = vdwg.mxu0
      %1300 = vmatpush.bf16.msra.mxu0 %v1237
      %1301 = vmatpush.bf16.msra.mxu0 %v1236
      %1302 = vmatpush.bf16.msra.mxu0 %v1235
      %1303 = vmatpush.bf16.msra.mxu0 %v1234
      %1304 = vmatpush.bf16.msra.mxu0 %v1233
      %1305 = vmatpush.bf16.msra.mxu0 %v1232
      %1306 = vmatpush.bf16.msra.mxu0 %v1231
      %1307 = vmatpush.bf16.msra.mxu0 %v1230
      %1308 = vmatmul.bf16.gmra.mxu0 %v1087
      %v1309 = vpop.f32.mrf.mxu0
      %v1310 = vadd.f32 %v1296, %v1309
      %v1311 = vpop.f32.mrf.mxu0
      %v1312 = vadd.f32 %v1298, %v1311
      %1313 = vdwg.mxu0
      %1314 = vmatpush.bf16.msra.mxu0 %v1245
      %1315 = vmatpush.bf16.msra.mxu0 %v1244
      %1316 = vmatpush.bf16.msra.mxu0 %v1243
      %1317 = vmatpush.bf16.msra.mxu0 %v1242
      %1318 = vmatpush.bf16.msra.mxu0 %v1241
      %1319 = vmatpush.bf16.msra.mxu0 %v1240
      %1320 = vmatpush.bf16.msra.mxu0 %v1239
      %1321 = vmatpush.bf16.msra.mxu0 %v1238
      %1322 = vmatmul.bf16.gmra.mxu0 %v1088
      %v1323 = vpop.f32.mrf.mxu0
      %v1324 = vadd.f32 %v1310, %v1323
      %v1325 = vpop.f32.mrf.mxu0
      %v1326 = vadd.f32 %v1312, %v1325
      %1327 = vdwg.mxu0
      %1328 = vmatpush.bf16.msra.mxu0 %v1253
      %1329 = vmatpush.bf16.msra.mxu0 %v1252
      %1330 = vmatpush.bf16.msra.mxu0 %v1251
      %1331 = vmatpush.bf16.msra.mxu0 %v1250
      %1332 = vmatpush.bf16.msra.mxu0 %v1249
      %1333 = vmatpush.bf16.msra.mxu0 %v1248
      %1334 = vmatpush.bf16.msra.mxu0 %v1247
      %1335 = vmatpush.bf16.msra.mxu0 %v1246
      %1336 = vmatmul.bf16.gmra.mxu0 %v1089
      %v1337 = vpop.f32.mrf.mxu0
      %v1338 = vadd.f32 %v1324, %v1337
      %v1339 = vpop.f32.mrf.mxu0
      %v1340 = vadd.f32 %v1326, %v1339
      %1341 = vdwg.mxu0
      %v1342 = vadd.f32 %v1003, %v1338
      %v1343 = vadd.f32 %v1004, %v1340
      %1344 = vst.msk [vmem:[#allocation2] sm:$0xff] %vm624, %v1342
      %1345 = vst.msk [vmem:[#allocation2 + $0x8] sm:$0xf] %vm626, %v1343
      %v1346 = vld [vmem:[%s262] sm:$0x88]
      %v1347 = vld [vmem:[%s262 + $0x8] sm:$0x88]
      %v1348 = vld [vmem:[%s262 + $0x10] sm:$0xff]
      %v1349 = vld [vmem:[%s262 + $0x18] sm:$0xff]
      %v1350 = vld [vmem:[%s262 + $0x20] sm:$0x11]
      %v1351 = vld [vmem:[%s262 + $0x28] sm:$0x11]
      %v1352 = vld [vmem:[#allocation2] sm:$0xff]
      %v1353 = vld [vmem:[#allocation2 + $0x8] sm:$0xf]
      %s1354 = scalar_lea.vmem %s268, 768
      %v1355 = vld [vmem:[%s1354] sm:$0xf]
      %v1356 = vld [vmem:[%s1354 + $0x4] sm:$0xf]
      %v1357 = vld [vmem:[%s1354 + $0x8] sm:$0xf]
      %v1358 = vld [vmem:[%s1354 + $0xc] sm:$0xf]
      %v1359 = vld [vmem:[%s1354 + $0x10] sm:$0xf]
      %v1360 = vld [vmem:[%s1354 + $0x14] sm:$0xf]
      %v1361 = vld [vmem:[%s1354 + $0x18] sm:$0xf]
      %v1362 = vld [vmem:[%s1354 + $0x1c] sm:$0xf]
      %v1363 = vld [vmem:[%s1354 + $0x20] sm:$0xf]
      %v1364 = vld [vmem:[%s1354 + $0x24] sm:$0xf]
      %v1365 = vld [vmem:[%s1354 + $0x28] sm:$0xf]
      %v1366 = vld [vmem:[%s1354 + $0x2c] sm:$0xf]
      %v1367 = vld [vmem:[%s1354 + $0x30] sm:$0xf]
      %v1368 = vld [vmem:[%s1354 + $0x34] sm:$0xf]
      %v1369 = vld [vmem:[%s1354 + $0x38] sm:$0xf]
      %v1370 = vld [vmem:[%s1354 + $0x3c] sm:$0xf]
      %v1371 = vld [vmem:[%s1354 + $0x40] sm:$0xf]
      %v1372 = vld [vmem:[%s1354 + $0x44] sm:$0xf]
      %v1373 = vld [vmem:[%s1354 + $0x48] sm:$0xf]
      %v1374 = vld [vmem:[%s1354 + $0x4c] sm:$0xf]
      %v1375 = vld [vmem:[%s1354 + $0x50] sm:$0xf]
      %v1376 = vld [vmem:[%s1354 + $0x54] sm:$0xf]
      %v1377 = vld [vmem:[%s1354 + $0x58] sm:$0xf]
      %v1378 = vld [vmem:[%s1354 + $0x5c] sm:$0xf]
      %v1379 = vld [vmem:[%s1354 + $0x60] sm:$0xf]
      %v1380 = vld [vmem:[%s1354 + $0x64] sm:$0xf]
      %v1381 = vld [vmem:[%s1354 + $0x68] sm:$0xf]
      %v1382 = vld [vmem:[%s1354 + $0x6c] sm:$0xf]
      %v1383 = vld [vmem:[%s1354 + $0x70] sm:$0xf]
      %v1384 = vld [vmem:[%s1354 + $0x74] sm:$0xf]
      %v1385 = vld [vmem:[%s1354 + $0x78] sm:$0xf]
      %v1386 = vld [vmem:[%s1354 + $0x7c] sm:$0xf]
      %v1387 = vld [vmem:[%s1354 + $0x80] sm:$0xf]
      %v1388 = vld [vmem:[%s1354 + $0x84] sm:$0xf]
      %v1389 = vld [vmem:[%s1354 + $0x88] sm:$0xf]
      %v1390 = vld [vmem:[%s1354 + $0x8c] sm:$0xf]
      %v1391 = vld [vmem:[%s1354 + $0x90] sm:$0xf]
      %v1392 = vld [vmem:[%s1354 + $0x94] sm:$0xf]
      %v1393 = vld [vmem:[%s1354 + $0x98] sm:$0xf]
      %v1394 = vld [vmem:[%s1354 + $0x9c] sm:$0xf]
      %v1395 = vld [vmem:[%s1354 + $0xa0] sm:$0xf]
      %v1396 = vld [vmem:[%s1354 + $0xa4] sm:$0xf]
      %v1397 = vld [vmem:[%s1354 + $0xa8] sm:$0xf]
      %v1398 = vld [vmem:[%s1354 + $0xac] sm:$0xf]
      %v1399 = vld [vmem:[%s1354 + $0xb0] sm:$0xf]
      %v1400 = vld [vmem:[%s1354 + $0xb4] sm:$0xf]
      %v1401 = vld [vmem:[%s1354 + $0xb8] sm:$0xf]
      %v1402 = vld [vmem:[%s1354 + $0xbc] sm:$0xf]
      %v1403 = vld [vmem:[%s1354 + $0xc0] sm:$0xf]
      %v1404 = vld [vmem:[%s1354 + $0xc4] sm:$0xf]
      %v1405 = vld [vmem:[%s1354 + $0xc8] sm:$0xf]
      %v1406 = vld [vmem:[%s1354 + $0xcc] sm:$0xf]
      %v1407 = vld [vmem:[%s1354 + $0xd0] sm:$0xf]
      %v1408 = vld [vmem:[%s1354 + $0xd4] sm:$0xf]
      %v1409 = vld [vmem:[%s1354 + $0xd8] sm:$0xf]
      %v1410 = vld [vmem:[%s1354 + $0xdc] sm:$0xf]
      %v1411 = vld [vmem:[%s1354 + $0xe0] sm:$0xf]
      %v1412 = vld [vmem:[%s1354 + $0xe4] sm:$0xf]
      %v1413 = vld [vmem:[%s1354 + $0xe8] sm:$0xf]
      %v1414 = vld [vmem:[%s1354 + $0xec] sm:$0xf]
      %v1415 = vld [vmem:[%s1354 + $0xf0] sm:$0xf]
      %v1416 = vld [vmem:[%s1354 + $0xf4] sm:$0xf]
      %v1417 = vld [vmem:[%s1354 + $0xf8] sm:$0xf]
      %v1418 = vld [vmem:[%s1354 + $0xfc] sm:$0xf]
      %v1425 = vunpack.c.l.b16 %v1346
      %v1426 = vunpack.c.h.b16 %v1346
      %v1427 = vunpack.c.l.b16 %v1347
      %v1428 = vunpack.c.h.b16 %v1347
      %v1429 = vunpack.c.l.b16 %v1348
      %v1430 = vunpack.c.h.b16 %v1348
      %v1431 = vunpack.c.l.b16 %v1349
      %v1432 = vunpack.c.h.b16 %v1349
      %v1433 = vunpack.c.l.b16 %v1350
      %v1434 = vunpack.c.h.b16 %v1350
      %v1435 = vunpack.c.l.b16 %v1351
      %v1436 = vunpack.c.h.b16 %v1351
      %v1437 = vpack.c.b16 %v1429, %v1425
      %v1438 = vpack.c.b16 %v1430, %v1426
      %v1439 = vpack.c.b16 %v1431, %v1427
      %v1440 = vpack.c.b16 %v1432, %v1428
      %v1441 = vpack.c.b16 %v1433, %v1433
      %v1442 = vpack.c.b16 %v1434, %v1434
      %v1443 = vpack.c.b16 %v1435, %v1435
      %v1444 = vpack.c.b16 %v1436, %v1436
      %vm1445 = vcmask 1044480
      %v1446 = vrot.slane %v1437, 3
      %v1447 = vrot.slane %v1441, 3
      %v1448 = vsel %vm1445, %v1446, %v1447
      %v1449 = vrot.slane %v1438, 3
      %v1450 = vrot.slane %v1442, 3
      %v1451 = vsel %vm1445, %v1449, %v1450
      %v1452 = vrot.slane %v1439, 3
      %v1453 = vrot.slane %v1443, 3
      %v1454 = vsel %vm1445, %v1452, %v1453
      %v1455 = vrot.slane %v1440, 3
      %v1456 = vrot.slane %v1444, 3
      %v1457 = vsel %vm1445, %v1455, %v1456
      %v1526 = vunpack.c.l.b16 %v1355
      %v1527 = vunpack.c.l.b16 %v1356
      %v1528 = vunpack.c.l.b16 %v1357
      %v1529 = vunpack.c.l.b16 %v1358
      %v1530 = vunpack.c.l.b16 %v1359
      %v1531 = vunpack.c.l.b16 %v1360
      %v1532 = vunpack.c.l.b16 %v1361
      %v1533 = vunpack.c.l.b16 %v1362
      %v1534 = vunpack.c.l.b16 %v1363
      %v1535 = vunpack.c.l.b16 %v1364
      %v1536 = vunpack.c.l.b16 %v1365
      %v1537 = vunpack.c.l.b16 %v1366
      %v1538 = vunpack.c.l.b16 %v1367
      %v1539 = vunpack.c.l.b16 %v1368
      %v1540 = vunpack.c.l.b16 %v1369
      %v1541 = vunpack.c.l.b16 %v1370
      %v1542 = vunpack.c.l.b16 %v1371
      %v1543 = vunpack.c.l.b16 %v1372
      %v1544 = vunpack.c.l.b16 %v1373
      %v1545 = vunpack.c.l.b16 %v1374
      %v1546 = vunpack.c.l.b16 %v1375
      %v1547 = vunpack.c.l.b16 %v1376
      %v1548 = vunpack.c.l.b16 %v1377
      %v1549 = vunpack.c.l.b16 %v1378
      %v1550 = vunpack.c.l.b16 %v1379
      %v1551 = vunpack.c.l.b16 %v1380
      %v1552 = vunpack.c.l.b16 %v1381
      %v1553 = vunpack.c.l.b16 %v1382
      %v1554 = vunpack.c.l.b16 %v1383
      %v1555 = vunpack.c.l.b16 %v1384
      %v1556 = vunpack.c.l.b16 %v1385
      %v1557 = vunpack.c.l.b16 %v1386
      %v1558 = vunpack.c.l.b16 %v1387
      %v1559 = vunpack.c.l.b16 %v1388
      %v1560 = vunpack.c.l.b16 %v1389
      %v1561 = vunpack.c.l.b16 %v1390
      %v1562 = vunpack.c.l.b16 %v1391
      %v1563 = vunpack.c.l.b16 %v1392
      %v1564 = vunpack.c.l.b16 %v1393
      %v1565 = vunpack.c.l.b16 %v1394
      %v1566 = vunpack.c.l.b16 %v1395
      %v1567 = vunpack.c.l.b16 %v1396
      %v1568 = vunpack.c.l.b16 %v1397
      %v1569 = vunpack.c.l.b16 %v1398
      %v1570 = vunpack.c.l.b16 %v1399
      %v1571 = vunpack.c.l.b16 %v1400
      %v1572 = vunpack.c.l.b16 %v1401
      %v1573 = vunpack.c.l.b16 %v1402
      %v1574 = vunpack.c.l.b16 %v1403
      %v1575 = vunpack.c.l.b16 %v1404
      %v1576 = vunpack.c.l.b16 %v1405
      %v1577 = vunpack.c.l.b16 %v1406
      %v1578 = vunpack.c.l.b16 %v1407
      %v1579 = vunpack.c.l.b16 %v1408
      %v1580 = vunpack.c.l.b16 %v1409
      %v1581 = vunpack.c.l.b16 %v1410
      %v1582 = vunpack.c.l.b16 %v1411
      %v1583 = vunpack.c.l.b16 %v1412
      %v1584 = vunpack.c.l.b16 %v1413
      %v1585 = vunpack.c.l.b16 %v1414
      %v1586 = vunpack.c.l.b16 %v1415
      %v1587 = vunpack.c.l.b16 %v1416
      %v1588 = vunpack.c.l.b16 %v1417
      %v1589 = vunpack.c.l.b16 %v1418
      %v1590 = vpack.c.b16 %v1527, %v1526
      %v1591 = vpack.c.b16 %v1529, %v1528
      %v1592 = vpack.c.b16 %v1531, %v1530
      %v1593 = vpack.c.b16 %v1533, %v1532
      %v1594 = vpack.c.b16 %v1535, %v1534
      %v1595 = vpack.c.b16 %v1537, %v1536
      %v1596 = vpack.c.b16 %v1539, %v1538
      %v1597 = vpack.c.b16 %v1541, %v1540
      %v1598 = vpack.c.b16 %v1543, %v1542
      %v1599 = vpack.c.b16 %v1545, %v1544
      %v1600 = vpack.c.b16 %v1547, %v1546
      %v1601 = vpack.c.b16 %v1549, %v1548
      %v1602 = vpack.c.b16 %v1551, %v1550
      %v1603 = vpack.c.b16 %v1553, %v1552
      %v1604 = vpack.c.b16 %v1555, %v1554
      %v1605 = vpack.c.b16 %v1557, %v1556
      %v1606 = vpack.c.b16 %v1559, %v1558
      %v1607 = vpack.c.b16 %v1561, %v1560
      %v1608 = vpack.c.b16 %v1563, %v1562
      %v1609 = vpack.c.b16 %v1565, %v1564
      %v1610 = vpack.c.b16 %v1567, %v1566
      %v1611 = vpack.c.b16 %v1569, %v1568
      %v1612 = vpack.c.b16 %v1571, %v1570
      %v1613 = vpack.c.b16 %v1573, %v1572
      %v1614 = vpack.c.b16 %v1575, %v1574
      %v1615 = vpack.c.b16 %v1577, %v1576
      %v1616 = vpack.c.b16 %v1579, %v1578
      %v1617 = vpack.c.b16 %v1581, %v1580
      %v1618 = vpack.c.b16 %v1583, %v1582
      %v1619 = vpack.c.b16 %v1585, %v1584
      %v1620 = vpack.c.b16 %v1587, %v1586
      %v1621 = vpack.c.b16 %v1589, %v1588
      %1654 = vmatpush.bf16.msra.mxu0 %v1597
      %1655 = vmatpush.bf16.msra.mxu0 %v1596
      %1656 = vmatpush.bf16.msra.mxu0 %v1595
      %1657 = vmatpush.bf16.msra.mxu0 %v1594
      %1658 = vmatpush.bf16.msra.mxu0 %v1593
      %1659 = vmatpush.bf16.msra.mxu0 %v1592
      %1660 = vmatpush.bf16.msra.mxu0 %v1591
      %1661 = vmatpush.bf16.msra.mxu0 %v1590
      %1662 = vmatmul.bf16.gmra.mxu0 %v1448
      %v1663 = vpop.f32.mrf.mxu0
      %v1664 = vadd.f32 0.0, %v1663
      %v1665 = vpop.f32.mrf.mxu0
      %v1666 = vadd.f32 0.0, %v1665
      %1667 = vdwg.mxu0
      %1668 = vmatpush.bf16.msra.mxu0 %v1605
      %1669 = vmatpush.bf16.msra.mxu0 %v1604
      %1670 = vmatpush.bf16.msra.mxu0 %v1603
      %1671 = vmatpush.bf16.msra.mxu0 %v1602
      %1672 = vmatpush.bf16.msra.mxu0 %v1601
      %1673 = vmatpush.bf16.msra.mxu0 %v1600
      %1674 = vmatpush.bf16.msra.mxu0 %v1599
      %1675 = vmatpush.bf16.msra.mxu0 %v1598
      %1676 = vmatmul.bf16.gmra.mxu0 %v1451
      %v1677 = vpop.f32.mrf.mxu0
      %v1678 = vadd.f32 %v1664, %v1677
      %v1679 = vpop.f32.mrf.mxu0
      %v1680 = vadd.f32 %v1666, %v1679
      %1681 = vdwg.mxu0
      %1682 = vmatpush.bf16.msra.mxu0 %v1613
      %1683 = vmatpush.bf16.msra.mxu0 %v1612
      %1684 = vmatpush.bf16.msra.mxu0 %v1611
      %1685 = vmatpush.bf16.msra.mxu0 %v1610
      %1686 = vmatpush.bf16.msra.mxu0 %v1609
      %1687 = vmatpush.bf16.msra.mxu0 %v1608
      %1688 = vmatpush.bf16.msra.mxu0 %v1607
      %1689 = vmatpush.bf16.msra.mxu0 %v1606
      %1690 = vmatmul.bf16.gmra.mxu0 %v1454
      %v1691 = vpop.f32.mrf.mxu0
      %v1692 = vadd.f32 %v1678, %v1691
      %v1693 = vpop.f32.mrf.mxu0
      %v1694 = vadd.f32 %v1680, %v1693
      %1695 = vdwg.mxu0
      %1696 = vmatpush.bf16.msra.mxu0 %v1621
      %1697 = vmatpush.bf16.msra.mxu0 %v1620
      %1698 = vmatpush.bf16.msra.mxu0 %v1619
      %1699 = vmatpush.bf16.msra.mxu0 %v1618
      %1700 = vmatpush.bf16.msra.mxu0 %v1617
      %1701 = vmatpush.bf16.msra.mxu0 %v1616
      %1702 = vmatpush.bf16.msra.mxu0 %v1615
      %1703 = vmatpush.bf16.msra.mxu0 %v1614
      %1704 = vmatmul.bf16.gmra.mxu0 %v1457
      %v1705 = vpop.f32.mrf.mxu0
      %v1706 = vadd.f32 %v1692, %v1705
      %v1707 = vpop.f32.mrf.mxu0
      %v1708 = vadd.f32 %v1694, %v1707
      %1709 = vdwg.mxu0
      %v1710 = vadd.f32 %v1352, %v1706
      %v1711 = vadd.f32 %v1353, %v1708
      %1712 = vst.msk [vmem:[#allocation2] sm:$0xff] %vm624, %v1710
      %1713 = vst.msk [vmem:[#allocation2 + $0x8] sm:$0xf] %vm626, %v1711
      %v1714 = vld [vmem:[%s262] sm:$0x88]
      %v1715 = vld [vmem:[%s262 + $0x8] sm:$0x88]
      %v1716 = vld [vmem:[%s262 + $0x10] sm:$0xff]
      %v1717 = vld [vmem:[%s262 + $0x18] sm:$0xff]
      %v1718 = vld [vmem:[%s262 + $0x20] sm:$0x33]
      %v1719 = vld [vmem:[%s262 + $0x28] sm:$0x33]
      %v1720 = vld [vmem:[#allocation2] sm:$0xff]
      %v1721 = vld [vmem:[#allocation2 + $0x8] sm:$0xf]
      %s1722 = scalar_lea.vmem %s268, 1024
      %v1723 = vld [vmem:[%s1722] sm:$0xf]
      %v1724 = vld [vmem:[%s1722 + $0x4] sm:$0xf]
      %v1725 = vld [vmem:[%s1722 + $0x8] sm:$0xf]
      %v1726 = vld [vmem:[%s1722 + $0xc] sm:$0xf]
      %v1727 = vld [vmem:[%s1722 + $0x10] sm:$0xf]
      %v1728 = vld [vmem:[%s1722 + $0x14] sm:$0xf]
      %v1729 = vld [vmem:[%s1722 + $0x18] sm:$0xf]
      %v1730 = vld [vmem:[%s1722 + $0x1c] sm:$0xf]
      %v1731 = vld [vmem:[%s1722 + $0x20] sm:$0xf]
      %v1732 = vld [vmem:[%s1722 + $0x24] sm:$0xf]
      %v1733 = vld [vmem:[%s1722 + $0x28] sm:$0xf]
      %v1734 = vld [vmem:[%s1722 + $0x2c] sm:$0xf]
      %v1735 = vld [vmem:[%s1722 + $0x30] sm:$0xf]
      %v1736 = vld [vmem:[%s1722 + $0x34] sm:$0xf]
      %v1737 = vld [vmem:[%s1722 + $0x38] sm:$0xf]
      %v1738 = vld [vmem:[%s1722 + $0x3c] sm:$0xf]
      %v1739 = vld [vmem:[%s1722 + $0x40] sm:$0xf]
      %v1740 = vld [vmem:[%s1722 + $0x44] sm:$0xf]
      %v1741 = vld [vmem:[%s1722 + $0x48] sm:$0xf]
      %v1742 = vld [vmem:[%s1722 + $0x4c] sm:$0xf]
      %v1743 = vld [vmem:[%s1722 + $0x50] sm:$0xf]
      %v1744 = vld [vmem:[%s1722 + $0x54] sm:$0xf]
      %v1745 = vld [vmem:[%s1722 + $0x58] sm:$0xf]
      %v1746 = vld [vmem:[%s1722 + $0x5c] sm:$0xf]
      %v1747 = vld [vmem:[%s1722 + $0x60] sm:$0xf]
      %v1748 = vld [vmem:[%s1722 + $0x64] sm:$0xf]
      %v1749 = vld [vmem:[%s1722 + $0x68] sm:$0xf]
      %v1750 = vld [vmem:[%s1722 + $0x6c] sm:$0xf]
      %v1751 = vld [vmem:[%s1722 + $0x70] sm:$0xf]
      %v1752 = vld [vmem:[%s1722 + $0x74] sm:$0xf]
      %v1753 = vld [vmem:[%s1722 + $0x78] sm:$0xf]
      %v1754 = vld [vmem:[%s1722 + $0x7c] sm:$0xf]
      %v1755 = vld [vmem:[%s1722 + $0x80] sm:$0xf]
      %v1756 = vld [vmem:[%s1722 + $0x84] sm:$0xf]
      %v1757 = vld [vmem:[%s1722 + $0x88] sm:$0xf]
      %v1758 = vld [vmem:[%s1722 + $0x8c] sm:$0xf]
      %v1759 = vld [vmem:[%s1722 + $0x90] sm:$0xf]
      %v1760 = vld [vmem:[%s1722 + $0x94] sm:$0xf]
      %v1761 = vld [vmem:[%s1722 + $0x98] sm:$0xf]
      %v1762 = vld [vmem:[%s1722 + $0x9c] sm:$0xf]
      %v1763 = vld [vmem:[%s1722 + $0xa0] sm:$0xf]
      %v1764 = vld [vmem:[%s1722 + $0xa4] sm:$0xf]
      %v1765 = vld [vmem:[%s1722 + $0xa8] sm:$0xf]
      %v1766 = vld [vmem:[%s1722 + $0xac] sm:$0xf]
      %v1767 = vld [vmem:[%s1722 + $0xb0] sm:$0xf]
      %v1768 = vld [vmem:[%s1722 + $0xb4] sm:$0xf]
      %v1769 = vld [vmem:[%s1722 + $0xb8] sm:$0xf]
      %v1770 = vld [vmem:[%s1722 + $0xbc] sm:$0xf]
      %v1771 = vld [vmem:[%s1722 + $0xc0] sm:$0xf]
      %v1772 = vld [vmem:[%s1722 + $0xc4] sm:$0xf]
      %v1773 = vld [vmem:[%s1722 + $0xc8] sm:$0xf]
      %v1774 = vld [vmem:[%s1722 + $0xcc] sm:$0xf]
      %v1775 = vld [vmem:[%s1722 + $0xd0] sm:$0xf]
      %v1776 = vld [vmem:[%s1722 + $0xd4] sm:$0xf]
      %v1777 = vld [vmem:[%s1722 + $0xd8] sm:$0xf]
      %v1778 = vld [vmem:[%s1722 + $0xdc] sm:$0xf]
      %v1779 = vld [vmem:[%s1722 + $0xe0] sm:$0xf]
      %v1780 = vld [vmem:[%s1722 + $0xe4] sm:$0xf]
      %v1781 = vld [vmem:[%s1722 + $0xe8] sm:$0xf]
      %v1782 = vld [vmem:[%s1722 + $0xec] sm:$0xf]
      %v1783 = vld [vmem:[%s1722 + $0xf0] sm:$0xf]
      %v1784 = vld [vmem:[%s1722 + $0xf4] sm:$0xf]
      %v1785 = vld [vmem:[%s1722 + $0xf8] sm:$0xf]
      %v1786 = vld [vmem:[%s1722 + $0xfc] sm:$0xf]
      %v1793 = vunpack.c.l.b16 %v1714
      %v1794 = vunpack.c.h.b16 %v1714
      %v1795 = vunpack.c.l.b16 %v1715
      %v1796 = vunpack.c.h.b16 %v1715
      %v1797 = vunpack.c.l.b16 %v1716
      %v1798 = vunpack.c.h.b16 %v1716
      %v1799 = vunpack.c.l.b16 %v1717
      %v1800 = vunpack.c.h.b16 %v1717
      %v1801 = vunpack.c.l.b16 %v1718
      %v1802 = vunpack.c.h.b16 %v1718
      %v1803 = vunpack.c.l.b16 %v1719
      %v1804 = vunpack.c.h.b16 %v1719
      %v1805 = vpack.c.b16 %v1797, %v1793
      %v1806 = vpack.c.b16 %v1798, %v1794
      %v1807 = vpack.c.b16 %v1799, %v1795
      %v1808 = vpack.c.b16 %v1800, %v1796
      %v1809 = vpack.c.b16 %v1801, %v1801
      %v1810 = vpack.c.b16 %v1802, %v1802
      %v1811 = vpack.c.b16 %v1803, %v1803
      %v1812 = vpack.c.b16 %v1804, %v1804
      %vm1813 = vsmask.f32 4352
      %v1815 = vshrl.u32 %v1805, 16
      %v1817 = vrot.slane %v1815, 3
      %v1818 = vshll.u32 %v1805, 16
      %v1820 = vrot.slane %v1818, 4
      %v1821 = vor.u32 %v1817, %v1820
      %v1823 = vshrl.u32 %v1809, 16
      %v1825 = vrot.slane %v1823, 3
      %v1826 = vshll.u32 %v1809, 16
      %v1828 = vrot.slane %v1826, 4
      %v1829 = vor.u32 %v1825, %v1828
      %v1830 = vsel %vm1813, %v1821, %v1829
      %v1832 = vshrl.u32 %v1806, 16
      %v1834 = vrot.slane %v1832, 3
      %v1835 = vshll.u32 %v1806, 16
      %v1837 = vrot.slane %v1835, 4
      %v1838 = vor.u32 %v1834, %v1837
      %v1840 = vshrl.u32 %v1810, 16
      %v1842 = vrot.slane %v1840, 3
      %v1843 = vshll.u32 %v1810, 16
      %v1845 = vrot.slane %v1843, 4
      %v1846 = vor.u32 %v1842, %v1845
      %v1847 = vsel %vm1813, %v1838, %v1846
      %v1849 = vshrl.u32 %v1807, 16
      %v1851 = vrot.slane %v1849, 3
      %v1852 = vshll.u32 %v1807, 16
      %v1854 = vrot.slane %v1852, 4
      %v1855 = vor.u32 %v1851, %v1854
      %v1857 = vshrl.u32 %v1811, 16
      %v1859 = vrot.slane %v1857, 3
      %v1860 = vshll.u32 %v1811, 16
      %v1862 = vrot.slane %v1860, 4
      %v1863 = vor.u32 %v1859, %v1862
      %v1864 = vsel %vm1813, %v1855, %v1863
      %v1866 = vshrl.u32 %v1808, 16
      %v1868 = vrot.slane %v1866, 3
      %v1869 = vshll.u32 %v1808, 16
      %v1871 = vrot.slane %v1869, 4
      %v1872 = vor.u32 %v1868, %v1871
      %v1874 = vshrl.u32 %v1812, 16
      %v1876 = vrot.slane %v1874, 3
      %v1877 = vshll.u32 %v1812, 16
      %v1879 = vrot.slane %v1877, 4
      %v1880 = vor.u32 %v1876, %v1879
      %v1881 = vsel %vm1813, %v1872, %v1880
      %v1950 = vunpack.c.l.b16 %v1723
      %v1951 = vunpack.c.l.b16 %v1724
      %v1952 = vunpack.c.l.b16 %v1725
      %v1953 = vunpack.c.l.b16 %v1726
      %v1954 = vunpack.c.l.b16 %v1727
      %v1955 = vunpack.c.l.b16 %v1728
      %v1956 = vunpack.c.l.b16 %v1729
      %v1957 = vunpack.c.l.b16 %v1730
      %v1958 = vunpack.c.l.b16 %v1731
      %v1959 = vunpack.c.l.b16 %v1732
      %v1960 = vunpack.c.l.b16 %v1733
      %v1961 = vunpack.c.l.b16 %v1734
      %v1962 = vunpack.c.l.b16 %v1735
      %v1963 = vunpack.c.l.b16 %v1736
      %v1964 = vunpack.c.l.b16 %v1737
      %v1965 = vunpack.c.l.b16 %v1738
      %v1966 = vunpack.c.l.b16 %v1739
      %v1967 = vunpack.c.l.b16 %v1740
      %v1968 = vunpack.c.l.b16 %v1741
      %v1969 = vunpack.c.l.b16 %v1742
      %v1970 = vunpack.c.l.b16 %v1743
      %v1971 = vunpack.c.l.b16 %v1744
      %v1972 = vunpack.c.l.b16 %v1745
      %v1973 = vunpack.c.l.b16 %v1746
      %v1974 = vunpack.c.l.b16 %v1747
      %v1975 = vunpack.c.l.b16 %v1748
      %v1976 = vunpack.c.l.b16 %v1749
      %v1977 = vunpack.c.l.b16 %v1750
      %v1978 = vunpack.c.l.b16 %v1751
      %v1979 = vunpack.c.l.b16 %v1752
      %v1980 = vunpack.c.l.b16 %v1753
      %v1981 = vunpack.c.l.b16 %v1754
      %v1982 = vunpack.c.l.b16 %v1755
      %v1983 = vunpack.c.l.b16 %v1756
      %v1984 = vunpack.c.l.b16 %v1757
      %v1985 = vunpack.c.l.b16 %v1758
      %v1986 = vunpack.c.l.b16 %v1759
      %v1987 = vunpack.c.l.b16 %v1760
      %v1988 = vunpack.c.l.b16 %v1761
      %v1989 = vunpack.c.l.b16 %v1762
      %v1990 = vunpack.c.l.b16 %v1763
      %v1991 = vunpack.c.l.b16 %v1764
      %v1992 = vunpack.c.l.b16 %v1765
      %v1993 = vunpack.c.l.b16 %v1766
      %v1994 = vunpack.c.l.b16 %v1767
      %v1995 = vunpack.c.l.b16 %v1768
      %v1996 = vunpack.c.l.b16 %v1769
      %v1997 = vunpack.c.l.b16 %v1770
      %v1998 = vunpack.c.l.b16 %v1771
      %v1999 = vunpack.c.l.b16 %v1772
      %v2000 = vunpack.c.l.b16 %v1773
      %v2001 = vunpack.c.l.b16 %v1774
      %v2002 = vunpack.c.l.b16 %v1775
      %v2003 = vunpack.c.l.b16 %v1776
      %v2004 = vunpack.c.l.b16 %v1777
      %v2005 = vunpack.c.l.b16 %v1778
      %v2006 = vunpack.c.l.b16 %v1779
      %v2007 = vunpack.c.l.b16 %v1780
      %v2008 = vunpack.c.l.b16 %v1781
      %v2009 = vunpack.c.l.b16 %v1782
      %v2010 = vunpack.c.l.b16 %v1783
      %v2011 = vunpack.c.l.b16 %v1784
      %v2012 = vunpack.c.l.b16 %v1785
      %v2013 = vunpack.c.l.b16 %v1786
      %v2014 = vpack.c.b16 %v1951, %v1950
      %v2015 = vpack.c.b16 %v1953, %v1952
      %v2016 = vpack.c.b16 %v1955, %v1954
      %v2017 = vpack.c.b16 %v1957, %v1956
      %v2018 = vpack.c.b16 %v1959, %v1958
      %v2019 = vpack.c.b16 %v1961, %v1960
      %v2020 = vpack.c.b16 %v1963, %v1962
      %v2021 = vpack.c.b16 %v1965, %v1964
      %v2022 = vpack.c.b16 %v1967, %v1966
      %v2023 = vpack.c.b16 %v1969, %v1968
      %v2024 = vpack.c.b16 %v1971, %v1970
      %v2025 = vpack.c.b16 %v1973, %v1972
      %v2026 = vpack.c.b16 %v1975, %v1974
      %v2027 = vpack.c.b16 %v1977, %v1976
      %v2028 = vpack.c.b16 %v1979, %v1978
      %v2029 = vpack.c.b16 %v1981, %v1980
      %v2030 = vpack.c.b16 %v1983, %v1982
      %v2031 = vpack.c.b16 %v1985, %v1984
      %v2032 = vpack.c.b16 %v1987, %v1986
      %v2033 = vpack.c.b16 %v1989, %v1988
      %v2034 = vpack.c.b16 %v1991, %v1990
      %v2035 = vpack.c.b16 %v1993, %v1992
      %v2036 = vpack.c.b16 %v1995, %v1994
      %v2037 = vpack.c.b16 %v1997, %v1996
      %v2038 = vpack.c.b16 %v1999, %v1998
      %v2039 = vpack.c.b16 %v2001, %v2000
      %v2040 = vpack.c.b16 %v2003, %v2002
      %v2041 = vpack.c.b16 %v2005, %v2004
      %v2042 = vpack.c.b16 %v2007, %v2006
      %v2043 = vpack.c.b16 %v2009, %v2008
      %v2044 = vpack.c.b16 %v2011, %v2010
      %v2045 = vpack.c.b16 %v2013, %v2012
      %2078 = vmatpush.bf16.msra.mxu0 %v2021
      %2079 = vmatpush.bf16.msra.mxu0 %v2020
      %2080 = vmatpush.bf16.msra.mxu0 %v2019
      %2081 = vmatpush.bf16.msra.mxu0 %v2018
      %2082 = vmatpush.bf16.msra.mxu0 %v2017
      %2083 = vmatpush.bf16.msra.mxu0 %v2016
      %2084 = vmatpush.bf16.msra.mxu0 %v2015
      %2085 = vmatpush.bf16.msra.mxu0 %v2014
      %2086 = vmatmul.bf16.gmra.mxu0 %v1830
      %v2087 = vpop.f32.mrf.mxu0
      %v2088 = vadd.f32 0.0, %v2087
      %v2089 = vpop.f32.mrf.mxu0
      %v2090 = vadd.f32 0.0, %v2089
      %2091 = vdwg.mxu0
      %2092 = vmatpush.bf16.msra.mxu0 %v2029
      %2093 = vmatpush.bf16.msra.mxu0 %v2028
      %2094 = vmatpush.bf16.msra.mxu0 %v2027
      %2095 = vmatpush.bf16.msra.mxu0 %v2026
      %2096 = vmatpush.bf16.msra.mxu0 %v2025
      %2097 = vmatpush.bf16.msra.mxu0 %v2024
      %2098 = vmatpush.bf16.msra.mxu0 %v2023
      %2099 = vmatpush.bf16.msra.mxu0 %v2022
      %2100 = vmatmul.bf16.gmra.mxu0 %v1847
      %v2101 = vpop.f32.mrf.mxu0
      %v2102 = vadd.f32 %v2088, %v2101
      %v2103 = vpop.f32.mrf.mxu0
      %v2104 = vadd.f32 %v2090, %v2103
      %2105 = vdwg.mxu0
      %2106 = vmatpush.bf16.msra.mxu0 %v2037
      %2107 = vmatpush.bf16.msra.mxu0 %v2036
      %2108 = vmatpush.bf16.msra.mxu0 %v2035
      %2109 = vmatpush.bf16.msra.mxu0 %v2034
      %2110 = vmatpush.bf16.msra.mxu0 %v2033
      %2111 = vmatpush.bf16.msra.mxu0 %v2032
      %2112 = vmatpush.bf16.msra.mxu0 %v2031
      %2113 = vmatpush.bf16.msra.mxu0 %v2030
      %2114 = vmatmul.bf16.gmra.mxu0 %v1864
      %v2115 = vpop.f32.mrf.mxu0
      %v2116 = vadd.f32 %v2102, %v2115
      %v2117 = vpop.f32.mrf.mxu0
      %v2118 = vadd.f32 %v2104, %v2117
      %2119 = vdwg.mxu0
      %2120 = vmatpush.bf16.msra.mxu0 %v2045
      %2121 = vmatpush.bf16.msra.mxu0 %v2044
      %2122 = vmatpush.bf16.msra.mxu0 %v2043
      %2123 = vmatpush.bf16.msra.mxu0 %v2042
      %2124 = vmatpush.bf16.msra.mxu0 %v2041
      %2125 = vmatpush.bf16.msra.mxu0 %v2040
      %2126 = vmatpush.bf16.msra.mxu0 %v2039
      %2127 = vmatpush.bf16.msra.mxu0 %v2038
      %2128 = vmatmul.bf16.gmra.mxu0 %v1881
      %v2129 = vpop.f32.mrf.mxu0
      %v2130 = vadd.f32 %v2116, %v2129
      %v2131 = vpop.f32.mrf.mxu0
      %v2132 = vadd.f32 %v2118, %v2131
      %2133 = vdwg.mxu0
      %v2134 = vadd.f32 %v1720, %v2130
      %v2135 = vadd.f32 %v1721, %v2132
      %2136 = vst.msk [vmem:[#allocation2] sm:$0xff] %vm624, %v2134
      %2137 = vst.msk [vmem:[#allocation2 + $0x8] sm:$0xf] %vm626, %v2135
      %v2138 = vld [vmem:[%s262 + $0x10] sm:$0xff]
      %v2139 = vld [vmem:[%s262 + $0x18] sm:$0xff]
      %v2140 = vld [vmem:[%s262 + $0x20] sm:$0x33]
      %v2141 = vld [vmem:[%s262 + $0x28] sm:$0x33]
      %v2142 = vld [vmem:[#allocation2] sm:$0xff]
      %v2143 = vld [vmem:[#allocation2 + $0x8] sm:$0xf]
      %s2144 = scalar_lea.vmem %s268, 1280
      %v2145 = vld [vmem:[%s2144] sm:$0xf]
      %v2146 = vld [vmem:[%s2144 + $0x4] sm:$0xf]
      %v2147 = vld [vmem:[%s2144 + $0x8] sm:$0xf]
      %v2148 = vld [vmem:[%s2144 + $0xc] sm:$0xf]
      %v2149 = vld [vmem:[%s2144 + $0x10] sm:$0xf]
      %v2150 = vld [vmem:[%s2144 + $0x14] sm:$0xf]
      %v2151 = vld [vmem:[%s2144 + $0x18] sm:$0xf]
      %v2152 = vld [vmem:[%s2144 + $0x1c] sm:$0xf]
      %v2153 = vld [vmem:[%s2144 + $0x20] sm:$0xf]
      %v2154 = vld [vmem:[%s2144 + $0x24] sm:$0xf]
      %v2155 = vld [vmem:[%s2144 + $0x28] sm:$0xf]
      %v2156 = vld [vmem:[%s2144 + $0x2c] sm:$0xf]
      %v2157 = vld [vmem:[%s2144 + $0x30] sm:$0xf]
      %v2158 = vld [vmem:[%s2144 + $0x34] sm:$0xf]
      %v2159 = vld [vmem:[%s2144 + $0x38] sm:$0xf]
      %v2160 = vld [vmem:[%s2144 + $0x3c] sm:$0xf]
      %v2161 = vld [vmem:[%s2144 + $0x40] sm:$0xf]
      %v2162 = vld [vmem:[%s2144 + $0x44] sm:$0xf]
      %v2163 = vld [vmem:[%s2144 + $0x48] sm:$0xf]
      %v2164 = vld [vmem:[%s2144 + $0x4c] sm:$0xf]
      %v2165 = vld [vmem:[%s2144 + $0x50] sm:$0xf]
      %v2166 = vld [vmem:[%s2144 + $0x54] sm:$0xf]
      %v2167 = vld [vmem:[%s2144 + $0x58] sm:$0xf]
      %v2168 = vld [vmem:[%s2144 + $0x5c] sm:$0xf]
      %v2169 = vld [vmem:[%s2144 + $0x60] sm:$0xf]
      %v2170 = vld [vmem:[%s2144 + $0x64] sm:$0xf]
      %v2171 = vld [vmem:[%s2144 + $0x68] sm:$0xf]
      %v2172 = vld [vmem:[%s2144 + $0x6c] sm:$0xf]
      %v2173 = vld [vmem:[%s2144 + $0x70] sm:$0xf]
      %v2174 = vld [vmem:[%s2144 + $0x74] sm:$0xf]
      %v2175 = vld [vmem:[%s2144 + $0x78] sm:$0xf]
      %v2176 = vld [vmem:[%s2144 + $0x7c] sm:$0xf]
      %v2177 = vld [vmem:[%s2144 + $0x80] sm:$0xf]
      %v2178 = vld [vmem:[%s2144 + $0x84] sm:$0xf]
      %v2179 = vld [vmem:[%s2144 + $0x88] sm:$0xf]
      %v2180 = vld [vmem:[%s2144 + $0x8c] sm:$0xf]
      %v2181 = vld [vmem:[%s2144 + $0x90] sm:$0xf]
      %v2182 = vld [vmem:[%s2144 + $0x94] sm:$0xf]
      %v2183 = vld [vmem:[%s2144 + $0x98] sm:$0xf]
      %v2184 = vld [vmem:[%s2144 + $0x9c] sm:$0xf]
      %v2185 = vld [vmem:[%s2144 + $0xa0] sm:$0xf]
      %v2186 = vld [vmem:[%s2144 + $0xa4] sm:$0xf]
      %v2187 = vld [vmem:[%s2144 + $0xa8] sm:$0xf]
      %v2188 = vld [vmem:[%s2144 + $0xac] sm:$0xf]
      %v2189 = vld [vmem:[%s2144 + $0xb0] sm:$0xf]
      %v2190 = vld [vmem:[%s2144 + $0xb4] sm:$0xf]
      %v2191 = vld [vmem:[%s2144 + $0xb8] sm:$0xf]
      %v2192 = vld [vmem:[%s2144 + $0xbc] sm:$0xf]
      %v2193 = vld [vmem:[%s2144 + $0xc0] sm:$0xf]
      %v2194 = vld [vmem:[%s2144 + $0xc4] sm:$0xf]
      %v2195 = vld [vmem:[%s2144 + $0xc8] sm:$0xf]
      %v2196 = vld [vmem:[%s2144 + $0xcc] sm:$0xf]
      %v2197 = vld [vmem:[%s2144 + $0xd0] sm:$0xf]
      %v2198 = vld [vmem:[%s2144 + $0xd4] sm:$0xf]
      %v2199 = vld [vmem:[%s2144 + $0xd8] sm:$0xf]
      %v2200 = vld [vmem:[%s2144 + $0xdc] sm:$0xf]
      %v2201 = vld [vmem:[%s2144 + $0xe0] sm:$0xf]
      %v2202 = vld [vmem:[%s2144 + $0xe4] sm:$0xf]
      %v2203 = vld [vmem:[%s2144 + $0xe8] sm:$0xf]
      %v2204 = vld [vmem:[%s2144 + $0xec] sm:$0xf]
      %v2205 = vld [vmem:[%s2144 + $0xf0] sm:$0xf]
      %v2206 = vld [vmem:[%s2144 + $0xf4] sm:$0xf]
      %v2207 = vld [vmem:[%s2144 + $0xf8] sm:$0xf]
      %v2208 = vld [vmem:[%s2144 + $0xfc] sm:$0xf]
      %v2213 = vunpack.c.l.b16 %v2138
      %v2214 = vunpack.c.h.b16 %v2138
      %v2215 = vunpack.c.l.b16 %v2139
      %v2216 = vunpack.c.h.b16 %v2139
      %v2217 = vunpack.c.l.b16 %v2140
      %v2218 = vunpack.c.h.b16 %v2140
      %v2219 = vunpack.c.l.b16 %v2141
      %v2220 = vunpack.c.h.b16 %v2141
      %v2221 = vpack.c.b16 %v2217, %v2213
      %v2222 = vpack.c.b16 %v2218, %v2214
      %v2223 = vpack.c.b16 %v2219, %v2215
      %v2224 = vpack.c.b16 %v2220, %v2216
      %v2293 = vunpack.c.l.b16 %v2145
      %v2294 = vunpack.c.l.b16 %v2146
      %v2295 = vunpack.c.l.b16 %v2147
      %v2296 = vunpack.c.l.b16 %v2148
      %v2297 = vunpack.c.l.b16 %v2149
      %v2298 = vunpack.c.l.b16 %v2150
      %v2299 = vunpack.c.l.b16 %v2151
      %v2300 = vunpack.c.l.b16 %v2152
      %v2301 = vunpack.c.l.b16 %v2153
      %v2302 = vunpack.c.l.b16 %v2154
      %v2303 = vunpack.c.l.b16 %v2155
      %v2304 = vunpack.c.l.b16 %v2156
      %v2305 = vunpack.c.l.b16 %v2157
      %v2306 = vunpack.c.l.b16 %v2158
      %v2307 = vunpack.c.l.b16 %v2159
      %v2308 = vunpack.c.l.b16 %v2160
      %v2309 = vunpack.c.l.b16 %v2161
      %v2310 = vunpack.c.l.b16 %v2162
      %v2311 = vunpack.c.l.b16 %v2163
      %v2312 = vunpack.c.l.b16 %v2164
      %v2313 = vunpack.c.l.b16 %v2165
      %v2314 = vunpack.c.l.b16 %v2166
      %v2315 = vunpack.c.l.b16 %v2167
      %v2316 = vunpack.c.l.b16 %v2168
      %v2317 = vunpack.c.l.b16 %v2169
      %v2318 = vunpack.c.l.b16 %v2170
      %v2319 = vunpack.c.l.b16 %v2171
      %v2320 = vunpack.c.l.b16 %v2172
      %v2321 = vunpack.c.l.b16 %v2173
      %v2322 = vunpack.c.l.b16 %v2174
      %v2323 = vunpack.c.l.b16 %v2175
      %v2324 = vunpack.c.l.b16 %v2176
      %v2325 = vunpack.c.l.b16 %v2177
      %v2326 = vunpack.c.l.b16 %v2178
      %v2327 = vunpack.c.l.b16 %v2179
      %v2328 = vunpack.c.l.b16 %v2180
      %v2329 = vunpack.c.l.b16 %v2181
      %v2330 = vunpack.c.l.b16 %v2182
      %v2331 = vunpack.c.l.b16 %v2183
      %v2332 = vunpack.c.l.b16 %v2184
      %v2333 = vunpack.c.l.b16 %v2185
      %v2334 = vunpack.c.l.b16 %v2186
      %v2335 = vunpack.c.l.b16 %v2187
      %v2336 = vunpack.c.l.b16 %v2188
      %v2337 = vunpack.c.l.b16 %v2189
      %v2338 = vunpack.c.l.b16 %v2190
      %v2339 = vunpack.c.l.b16 %v2191
      %v2340 = vunpack.c.l.b16 %v2192
      %v2341 = vunpack.c.l.b16 %v2193
      %v2342 = vunpack.c.l.b16 %v2194
      %v2343 = vunpack.c.l.b16 %v2195
      %v2344 = vunpack.c.l.b16 %v2196
      %v2345 = vunpack.c.l.b16 %v2197
      %v2346 = vunpack.c.l.b16 %v2198
      %v2347 = vunpack.c.l.b16 %v2199
      %v2348 = vunpack.c.l.b16 %v2200
      %v2349 = vunpack.c.l.b16 %v2201
      %v2350 = vunpack.c.l.b16 %v2202
      %v2351 = vunpack.c.l.b16 %v2203
      %v2352 = vunpack.c.l.b16 %v2204
      %v2353 = vunpack.c.l.b16 %v2205
      %v2354 = vunpack.c.l.b16 %v2206
      %v2355 = vunpack.c.l.b16 %v2207
      %v2356 = vunpack.c.l.b16 %v2208
      %v2357 = vpack.c.b16 %v2294, %v2293
      %v2358 = vpack.c.b16 %v2296, %v2295
      %v2359 = vpack.c.b16 %v2298, %v2297
      %v2360 = vpack.c.b16 %v2300, %v2299
      %v2361 = vpack.c.b16 %v2302, %v2301
      %v2362 = vpack.c.b16 %v2304, %v2303
      %v2363 = vpack.c.b16 %v2306, %v2305
      %v2364 = vpack.c.b16 %v2308, %v2307
      %v2365 = vpack.c.b16 %v2310, %v2309
      %v2366 = vpack.c.b16 %v2312, %v2311
      %v2367 = vpack.c.b16 %v2314, %v2313
      %v2368 = vpack.c.b16 %v2316, %v2315
      %v2369 = vpack.c.b16 %v2318, %v2317
      %v2370 = vpack.c.b16 %v2320, %v2319
      %v2371 = vpack.c.b16 %v2322, %v2321
      %v2372 = vpack.c.b16 %v2324, %v2323
      %v2373 = vpack.c.b16 %v2326, %v2325
      %v2374 = vpack.c.b16 %v2328, %v2327
      %v2375 = vpack.c.b16 %v2330, %v2329
      %v2376 = vpack.c.b16 %v2332, %v2331
      %v2377 = vpack.c.b16 %v2334, %v2333
      %v2378 = vpack.c.b16 %v2336, %v2335
      %v2379 = vpack.c.b16 %v2338, %v2337
      %v2380 = vpack.c.b16 %v2340, %v2339
      %v2381 = vpack.c.b16 %v2342, %v2341
      %v2382 = vpack.c.b16 %v2344, %v2343
      %v2383 = vpack.c.b16 %v2346, %v2345
      %v2384 = vpack.c.b16 %v2348, %v2347
      %v2385 = vpack.c.b16 %v2350, %v2349
      %v2386 = vpack.c.b16 %v2352, %v2351
      %v2387 = vpack.c.b16 %v2354, %v2353
      %v2388 = vpack.c.b16 %v2356, %v2355
      %2421 = vmatpush.bf16.msra.mxu0 %v2364
      %2422 = vmatpush.bf16.msra.mxu0 %v2363
      %2423 = vmatpush.bf16.msra.mxu0 %v2362
      %2424 = vmatpush.bf16.msra.mxu0 %v2361
      %2425 = vmatpush.bf16.msra.mxu0 %v2360
      %2426 = vmatpush.bf16.msra.mxu0 %v2359
      %2427 = vmatpush.bf16.msra.mxu0 %v2358
      %2428 = vmatpush.bf16.msra.mxu0 %v2357
      %2429 = vmatmul.bf16.gmra.mxu0 %v2221
      %v2430 = vpop.f32.mrf.mxu0
      %v2431 = vadd.f32 0.0, %v2430
      %v2432 = vpop.f32.mrf.mxu0
      %v2433 = vadd.f32 0.0, %v2432
      %2434 = vdwg.mxu0
      %2435 = vmatpush.bf16.msra.mxu0 %v2372
      %2436 = vmatpush.bf16.msra.mxu0 %v2371
      %2437 = vmatpush.bf16.msra.mxu0 %v2370
      %2438 = vmatpush.bf16.msra.mxu0 %v2369
      %2439 = vmatpush.bf16.msra.mxu0 %v2368
      %2440 = vmatpush.bf16.msra.mxu0 %v2367
      %2441 = vmatpush.bf16.msra.mxu0 %v2366
      %2442 = vmatpush.bf16.msra.mxu0 %v2365
      %2443 = vmatmul.bf16.gmra.mxu0 %v2222
      %v2444 = vpop.f32.mrf.mxu0
      %v2445 = vadd.f32 %v2431, %v2444
      %v2446 = vpop.f32.mrf.mxu0
      %v2447 = vadd.f32 %v2433, %v2446
      %2448 = vdwg.mxu0
      %2449 = vmatpush.bf16.msra.mxu0 %v2380
      %2450 = vmatpush.bf16.msra.mxu0 %v2379
      %2451 = vmatpush.bf16.msra.mxu0 %v2378
      %2452 = vmatpush.bf16.msra.mxu0 %v2377
      %2453 = vmatpush.bf16.msra.mxu0 %v2376
      %2454 = vmatpush.bf16.msra.mxu0 %v2375
      %2455 = vmatpush.bf16.msra.mxu0 %v2374
      %2456 = vmatpush.bf16.msra.mxu0 %v2373
      %2457 = vmatmul.bf16.gmra.mxu0 %v2223
      %v2458 = vpop.f32.mrf.mxu0
      %v2459 = vadd.f32 %v2445, %v2458
      %v2460 = vpop.f32.mrf.mxu0
      %v2461 = vadd.f32 %v2447, %v2460
      %2462 = vdwg.mxu0
      %2463 = vmatpush.bf16.msra.mxu0 %v2388
      %2464 = vmatpush.bf16.msra.mxu0 %v2387
      %2465 = vmatpush.bf16.msra.mxu0 %v2386
      %2466 = vmatpush.bf16.msra.mxu0 %v2385
      %2467 = vmatpush.bf16.msra.mxu0 %v2384
      %2468 = vmatpush.bf16.msra.mxu0 %v2383
      %2469 = vmatpush.bf16.msra.mxu0 %v2382
      %2470 = vmatpush.bf16.msra.mxu0 %v2381
      %2471 = vmatmul.bf16.gmra.mxu0 %v2224
      %v2472 = vpop.f32.mrf.mxu0
      %v2473 = vadd.f32 %v2459, %v2472
      %v2474 = vpop.f32.mrf.mxu0
      %v2475 = vadd.f32 %v2461, %v2474
      %2476 = vdwg.mxu0
      %v2477 = vadd.f32 %v2142, %v2473
      %v2478 = vadd.f32 %v2143, %v2475
      %2479 = vst.msk [vmem:[#allocation2] sm:$0xff] %vm624, %v2477
      %2480 = vst.msk [vmem:[#allocation2 + $0x8] sm:$0xf] %vm626, %v2478
      %v2481 = vld [vmem:[%s262 + $0x10] sm:$0xcc]
      %v2482 = vld [vmem:[%s262 + $0x18] sm:$0xcc]
      %v2483 = vld [vmem:[%s262 + $0x20] sm:$0xff]
      %v2484 = vld [vmem:[%s262 + $0x28] sm:$0xff]
      %v2485 = vld [vmem:[#allocation2] sm:$0xff]
      %v2486 = vld [vmem:[#allocation2 + $0x8] sm:$0xf]
      %s2487 = scalar_lea.vmem %s268, 1536
      %v2488 = vld [vmem:[%s2487] sm:$0xf]
      %v2489 = vld [vmem:[%s2487 + $0x4] sm:$0xf]
      %v2490 = vld [vmem:[%s2487 + $0x8] sm:$0xf]
      %v2491 = vld [vmem:[%s2487 + $0xc] sm:$0xf]
      %v2492 = vld [vmem:[%s2487 + $0x10] sm:$0xf]
      %v2493 = vld [vmem:[%s2487 + $0x14] sm:$0xf]
      %v2494 = vld [vmem:[%s2487 + $0x18] sm:$0xf]
      %v2495 = vld [vmem:[%s2487 + $0x1c] sm:$0xf]
      %v2496 = vld [vmem:[%s2487 + $0x20] sm:$0xf]
      %v2497 = vld [vmem:[%s2487 + $0x24] sm:$0xf]
      %v2498 = vld [vmem:[%s2487 + $0x28] sm:$0xf]
      %v2499 = vld [vmem:[%s2487 + $0x2c] sm:$0xf]
      %v2500 = vld [vmem:[%s2487 + $0x30] sm:$0xf]
      %v2501 = vld [vmem:[%s2487 + $0x34] sm:$0xf]
      %v2502 = vld [vmem:[%s2487 + $0x38] sm:$0xf]
      %v2503 = vld [vmem:[%s2487 + $0x3c] sm:$0xf]
      %v2504 = vld [vmem:[%s2487 + $0x40] sm:$0xf]
      %v2505 = vld [vmem:[%s2487 + $0x44] sm:$0xf]
      %v2506 = vld [vmem:[%s2487 + $0x48] sm:$0xf]
      %v2507 = vld [vmem:[%s2487 + $0x4c] sm:$0xf]
      %v2508 = vld [vmem:[%s2487 + $0x50] sm:$0xf]
      %v2509 = vld [vmem:[%s2487 + $0x54] sm:$0xf]
      %v2510 = vld [vmem:[%s2487 + $0x58] sm:$0xf]
      %v2511 = vld [vmem:[%s2487 + $0x5c] sm:$0xf]
      %v2512 = vld [vmem:[%s2487 + $0x60] sm:$0xf]
      %v2513 = vld [vmem:[%s2487 + $0x64] sm:$0xf]
      %v2514 = vld [vmem:[%s2487 + $0x68] sm:$0xf]
      %v2515 = vld [vmem:[%s2487 + $0x6c] sm:$0xf]
      %v2516 = vld [vmem:[%s2487 + $0x70] sm:$0xf]
      %v2517 = vld [vmem:[%s2487 + $0x74] sm:$0xf]
      %v2518 = vld [vmem:[%s2487 + $0x78] sm:$0xf]
      %v2519 = vld [vmem:[%s2487 + $0x7c] sm:$0xf]
      %v2520 = vld [vmem:[%s2487 + $0x80] sm:$0xf]
      %v2521 = vld [vmem:[%s2487 + $0x84] sm:$0xf]
      %v2522 = vld [vmem:[%s2487 + $0x88] sm:$0xf]
      %v2523 = vld [vmem:[%s2487 + $0x8c] sm:$0xf]
      %v2524 = vld [vmem:[%s2487 + $0x90] sm:$0xf]
      %v2525 = vld [vmem:[%s2487 + $0x94] sm:$0xf]
      %v2526 = vld [vmem:[%s2487 + $0x98] sm:$0xf]
      %v2527 = vld [vmem:[%s2487 + $0x9c] sm:$0xf]
      %v2528 = vld [vmem:[%s2487 + $0xa0] sm:$0xf]
      %v2529 = vld [vmem:[%s2487 + $0xa4] sm:$0xf]
      %v2530 = vld [vmem:[%s2487 + $0xa8] sm:$0xf]
      %v2531 = vld [vmem:[%s2487 + $0xac] sm:$0xf]
      %v2532 = vld [vmem:[%s2487 + $0xb0] sm:$0xf]
      %v2533 = vld [vmem:[%s2487 + $0xb4] sm:$0xf]
      %v2534 = vld [vmem:[%s2487 + $0xb8] sm:$0xf]
      %v2535 = vld [vmem:[%s2487 + $0xbc] sm:$0xf]
      %v2536 = vld [vmem:[%s2487 + $0xc0] sm:$0xf]
      %v2537 = vld [vmem:[%s2487 + $0xc4] sm:$0xf]
      %v2538 = vld [vmem:[%s2487 + $0xc8] sm:$0xf]
      %v2539 = vld [vmem:[%s2487 + $0xcc] sm:$0xf]
      %v2540 = vld [vmem:[%s2487 + $0xd0] sm:$0xf]
      %v2541 = vld [vmem:[%s2487 + $0xd4] sm:$0xf]
      %v2542 = vld [vmem:[%s2487 + $0xd8] sm:$0xf]
      %v2543 = vld [vmem:[%s2487 + $0xdc] sm:$0xf]
      %v2544 = vld [vmem:[%s2487 + $0xe0] sm:$0xf]
      %v2545 = vld [vmem:[%s2487 + $0xe4] sm:$0xf]
      %v2546 = vld [vmem:[%s2487 + $0xe8] sm:$0xf]
      %v2547 = vld [vmem:[%s2487 + $0xec] sm:$0xf]
      %v2548 = vld [vmem:[%s2487 + $0xf0] sm:$0xf]
      %v2549 = vld [vmem:[%s2487 + $0xf4] sm:$0xf]
      %v2550 = vld [vmem:[%s2487 + $0xf8] sm:$0xf]
      %v2551 = vld [vmem:[%s2487 + $0xfc] sm:$0xf]
      %v2556 = vunpack.c.l.b16 %v2481
      %v2557 = vunpack.c.h.b16 %v2481
      %v2558 = vunpack.c.l.b16 %v2482
      %v2559 = vunpack.c.h.b16 %v2482
      %v2560 = vunpack.c.l.b16 %v2483
      %v2561 = vunpack.c.h.b16 %v2483
      %v2562 = vunpack.c.l.b16 %v2484
      %v2563 = vunpack.c.h.b16 %v2484
      %v2564 = vpack.c.b16 %v2560, %v2556
      %v2565 = vpack.c.b16 %v2561, %v2557
      %v2566 = vpack.c.b16 %v2562, %v2558
      %v2567 = vpack.c.b16 %v2563, %v2559
      %v2568 = vrot.slane %v2564, 2
      %v2569 = vrot.slane %v2565, 2
      %v2570 = vrot.slane %v2566, 2
      %v2571 = vrot.slane %v2567, 2
      %v2640 = vunpack.c.l.b16 %v2488
      %v2641 = vunpack.c.l.b16 %v2489
      %v2642 = vunpack.c.l.b16 %v2490
      %v2643 = vunpack.c.l.b16 %v2491
      %v2644 = vunpack.c.l.b16 %v2492
      %v2645 = vunpack.c.l.b16 %v2493
      %v2646 = vunpack.c.l.b16 %v2494
      %v2647 = vunpack.c.l.b16 %v2495
      %v2648 = vunpack.c.l.b16 %v2496
      %v2649 = vunpack.c.l.b16 %v2497
      %v2650 = vunpack.c.l.b16 %v2498
      %v2651 = vunpack.c.l.b16 %v2499
      %v2652 = vunpack.c.l.b16 %v2500
      %v2653 = vunpack.c.l.b16 %v2501
      %v2654 = vunpack.c.l.b16 %v2502
      %v2655 = vunpack.c.l.b16 %v2503
      %v2656 = vunpack.c.l.b16 %v2504
      %v2657 = vunpack.c.l.b16 %v2505
      %v2658 = vunpack.c.l.b16 %v2506
      %v2659 = vunpack.c.l.b16 %v2507
      %v2660 = vunpack.c.l.b16 %v2508
      %v2661 = vunpack.c.l.b16 %v2509
      %v2662 = vunpack.c.l.b16 %v2510
      %v2663 = vunpack.c.l.b16 %v2511
      %v2664 = vunpack.c.l.b16 %v2512
      %v2665 = vunpack.c.l.b16 %v2513
      %v2666 = vunpack.c.l.b16 %v2514
      %v2667 = vunpack.c.l.b16 %v2515
      %v2668 = vunpack.c.l.b16 %v2516
      %v2669 = vunpack.c.l.b16 %v2517
      %v2670 = vunpack.c.l.b16 %v2518
      %v2671 = vunpack.c.l.b16 %v2519
      %v2672 = vunpack.c.l.b16 %v2520
      %v2673 = vunpack.c.l.b16 %v2521
      %v2674 = vunpack.c.l.b16 %v2522
      %v2675 = vunpack.c.l.b16 %v2523
      %v2676 = vunpack.c.l.b16 %v2524
      %v2677 = vunpack.c.l.b16 %v2525
      %v2678 = vunpack.c.l.b16 %v2526
      %v2679 = vunpack.c.l.b16 %v2527
      %v2680 = vunpack.c.l.b16 %v2528
      %v2681 = vunpack.c.l.b16 %v2529
      %v2682 = vunpack.c.l.b16 %v2530
      %v2683 = vunpack.c.l.b16 %v2531
      %v2684 = vunpack.c.l.b16 %v2532
      %v2685 = vunpack.c.l.b16 %v2533
      %v2686 = vunpack.c.l.b16 %v2534
      %v2687 = vunpack.c.l.b16 %v2535
      %v2688 = vunpack.c.l.b16 %v2536
      %v2689 = vunpack.c.l.b16 %v2537
      %v2690 = vunpack.c.l.b16 %v2538
      %v2691 = vunpack.c.l.b16 %v2539
      %v2692 = vunpack.c.l.b16 %v2540
      %v2693 = vunpack.c.l.b16 %v2541
      %v2694 = vunpack.c.l.b16 %v2542
      %v2695 = vunpack.c.l.b16 %v2543
      %v2696 = vunpack.c.l.b16 %v2544
      %v2697 = vunpack.c.l.b16 %v2545
      %v2698 = vunpack.c.l.b16 %v2546
      %v2699 = vunpack.c.l.b16 %v2547
      %v2700 = vunpack.c.l.b16 %v2548
      %v2701 = vunpack.c.l.b16 %v2549
      %v2702 = vunpack.c.l.b16 %v2550
      %v2703 = vunpack.c.l.b16 %v2551
      %v2704 = vpack.c.b16 %v2641, %v2640
      %v2705 = vpack.c.b16 %v2643, %v2642
      %v2706 = vpack.c.b16 %v2645, %v2644
      %v2707 = vpack.c.b16 %v2647, %v2646
      %v2708 = vpack.c.b16 %v2649, %v2648
      %v2709 = vpack.c.b16 %v2651, %v2650
      %v2710 = vpack.c.b16 %v2653, %v2652
      %v2711 = vpack.c.b16 %v2655, %v2654
      %v2712 = vpack.c.b16 %v2657, %v2656
      %v2713 = vpack.c.b16 %v2659, %v2658
      %v2714 = vpack.c.b16 %v2661, %v2660
      %v2715 = vpack.c.b16 %v2663, %v2662
      %v2716 = vpack.c.b16 %v2665, %v2664
      %v2717 = vpack.c.b16 %v2667, %v2666
      %v2718 = vpack.c.b16 %v2669, %v2668
      %v2719 = vpack.c.b16 %v2671, %v2670
      %v2720 = vpack.c.b16 %v2673, %v2672
      %v2721 = vpack.c.b16 %v2675, %v2674
      %v2722 = vpack.c.b16 %v2677, %v2676
      %v2723 = vpack.c.b16 %v2679, %v2678
      %v2724 = vpack.c.b16 %v2681, %v2680
      %v2725 = vpack.c.b16 %v2683, %v2682
      %v2726 = vpack.c.b16 %v2685, %v2684
      %v2727 = vpack.c.b16 %v2687, %v2686
      %v2728 = vpack.c.b16 %v2689, %v2688
      %v2729 = vpack.c.b16 %v2691, %v2690
      %v2730 = vpack.c.b16 %v2693, %v2692
      %v2731 = vpack.c.b16 %v2695, %v2694
      %v2732 = vpack.c.b16 %v2697, %v2696
      %v2733 = vpack.c.b16 %v2699, %v2698
      %v2734 = vpack.c.b16 %v2701, %v2700
      %v2735 = vpack.c.b16 %v2703, %v2702
      %2768 = vmatpush.bf16.msra.mxu0 %v2711
      %2769 = vmatpush.bf16.msra.mxu0 %v2710
      %2770 = vmatpush.bf16.msra.mxu0 %v2709
      %2771 = vmatpush.bf16.msra.mxu0 %v2708
      %2772 = vmatpush.bf16.msra.mxu0 %v2707
      %2773 = vmatpush.bf16.msra.mxu0 %v2706
      %2774 = vmatpush.bf16.msra.mxu0 %v2705
      %2775 = vmatpush.bf16.msra.mxu0 %v2704
      %2776 = vmatmul.bf16.gmra.mxu0 %v2568
      %v2777 = vpop.f32.mrf.mxu0
      %v2778 = vadd.f32 0.0, %v2777
      %v2779 = vpop.f32.mrf.mxu0
      %v2780 = vadd.f32 0.0, %v2779
      %2781 = vdwg.mxu0
      %2782 = vmatpush.bf16.msra.mxu0 %v2719
      %2783 = vmatpush.bf16.msra.mxu0 %v2718
      %2784 = vmatpush.bf16.msra.mxu0 %v2717
      %2785 = vmatpush.bf16.msra.mxu0 %v2716
      %2786 = vmatpush.bf16.msra.mxu0 %v2715
      %2787 = vmatpush.bf16.msra.mxu0 %v2714
      %2788 = vmatpush.bf16.msra.mxu0 %v2713
      %2789 = vmatpush.bf16.msra.mxu0 %v2712
      %2790 = vmatmul.bf16.gmra.mxu0 %v2569
      %v2791 = vpop.f32.mrf.mxu0
      %v2792 = vadd.f32 %v2778, %v2791
      %v2793 = vpop.f32.mrf.mxu0
      %v2794 = vadd.f32 %v2780, %v2793
      %2795 = vdwg.mxu0
      %2796 = vmatpush.bf16.msra.mxu0 %v2727
      %2797 = vmatpush.bf16.msra.mxu0 %v2726
      %2798 = vmatpush.bf16.msra.mxu0 %v2725
      %2799 = vmatpush.bf16.msra.mxu0 %v2724
      %2800 = vmatpush.bf16.msra.mxu0 %v2723
      %2801 = vmatpush.bf16.msra.mxu0 %v2722
      %2802 = vmatpush.bf16.msra.mxu0 %v2721
      %2803 = vmatpush.bf16.msra.mxu0 %v2720
      %2804 = vmatmul.bf16.gmra.mxu0 %v2570
      %v2805 = vpop.f32.mrf.mxu0
      %v2806 = vadd.f32 %v2792, %v2805
      %v2807 = vpop.f32.mrf.mxu0
      %v2808 = vadd.f32 %v2794, %v2807
      %2809 = vdwg.mxu0
      %2810 = vmatpush.bf16.msra.mxu0 %v2735
      %2811 = vmatpush.bf16.msra.mxu0 %v2734
      %2812 = vmatpush.bf16.msra.mxu0 %v2733
      %2813 = vmatpush.bf16.msra.mxu0 %v2732
      %2814 = vmatpush.bf16.msra.mxu0 %v2731
      %2815 = vmatpush.bf16.msra.mxu0 %v2730
      %2816 = vmatpush.bf16.msra.mxu0 %v2729
      %2817 = vmatpush.bf16.msra.mxu0 %v2728
      %2818 = vmatmul.bf16.gmra.mxu0 %v2571
      %v2819 = vpop.f32.mrf.mxu0
      %v2820 = vadd.f32 %v2806, %v2819
      %v2821 = vpop.f32.mrf.mxu0
      %v2822 = vadd.f32 %v2808, %v2821
      %2823 = vdwg.mxu0
      %v2824 = vadd.f32 %v2485, %v2820
      %v2825 = vadd.f32 %v2486, %v2822
      %2826 = vst.msk [vmem:[#allocation2] sm:$0xff] %vm624, %v2824
      %2827 = vst.msk [vmem:[#allocation2 + $0x8] sm:$0xf] %vm626, %v2825
      %v2828 = vld [vmem:[%s262 + $0x10] sm:$0xcc]
      %v2829 = vld [vmem:[%s262 + $0x18] sm:$0xcc]
      %v2830 = vld [vmem:[%s262 + $0x20] sm:$0xff]
      %v2831 = vld [vmem:[%s262 + $0x28] sm:$0xff]
      %v2832 = vld [vmem:[%s262 + $0x30] sm:$0x11]
      %v2833 = vld [vmem:[%s262 + $0x38] sm:$0x11]
      %v2834 = vld [vmem:[#allocation2] sm:$0xff]
      %v2835 = vld [vmem:[#allocation2 + $0x8] sm:$0xf]
      %s2836 = scalar_lea.vmem %s268, 1792
      %v2837 = vld [vmem:[%s2836] sm:$0xf]
      %v2838 = vld [vmem:[%s2836 + $0x4] sm:$0xf]
      %v2839 = vld [vmem:[%s2836 + $0x8] sm:$0xf]
      %v2840 = vld [vmem:[%s2836 + $0xc] sm:$0xf]
      %v2841 = vld [vmem:[%s2836 + $0x10] sm:$0xf]
      %v2842 = vld [vmem:[%s2836 + $0x14] sm:$0xf]
      %v2843 = vld [vmem:[%s2836 + $0x18] sm:$0xf]
      %v2844 = vld [vmem:[%s2836 + $0x1c] sm:$0xf]
      %v2845 = vld [vmem:[%s2836 + $0x20] sm:$0xf]
      %v2846 = vld [vmem:[%s2836 + $0x24] sm:$0xf]
      %v2847 = vld [vmem:[%s2836 + $0x28] sm:$0xf]
      %v2848 = vld [vmem:[%s2836 + $0x2c] sm:$0xf]
      %v2849 = vld [vmem:[%s2836 + $0x30] sm:$0xf]
      %v2850 = vld [vmem:[%s2836 + $0x34] sm:$0xf]
      %v2851 = vld [vmem:[%s2836 + $0x38] sm:$0xf]
      %v2852 = vld [vmem:[%s2836 + $0x3c] sm:$0xf]
      %v2853 = vld [vmem:[%s2836 + $0x40] sm:$0xf]
      %v2854 = vld [vmem:[%s2836 + $0x44] sm:$0xf]
      %v2855 = vld [vmem:[%s2836 + $0x48] sm:$0xf]
      %v2856 = vld [vmem:[%s2836 + $0x4c] sm:$0xf]
      %v2857 = vld [vmem:[%s2836 + $0x50] sm:$0xf]
      %v2858 = vld [vmem:[%s2836 + $0x54] sm:$0xf]
      %v2859 = vld [vmem:[%s2836 + $0x58] sm:$0xf]
      %v2860 = vld [vmem:[%s2836 + $0x5c] sm:$0xf]
      %v2861 = vld [vmem:[%s2836 + $0x60] sm:$0xf]
      %v2862 = vld [vmem:[%s2836 + $0x64] sm:$0xf]
      %v2863 = vld [vmem:[%s2836 + $0x68] sm:$0xf]
      %v2864 = vld [vmem:[%s2836 + $0x6c] sm:$0xf]
      %v2865 = vld [vmem:[%s2836 + $0x70] sm:$0xf]
      %v2866 = vld [vmem:[%s2836 + $0x74] sm:$0xf]
      %v2867 = vld [vmem:[%s2836 + $0x78] sm:$0xf]
      %v2868 = vld [vmem:[%s2836 + $0x7c] sm:$0xf]
      %v2869 = vld [vmem:[%s2836 + $0x80] sm:$0xf]
      %v2870 = vld [vmem:[%s2836 + $0x84] sm:$0xf]
      %v2871 = vld [vmem:[%s2836 + $0x88] sm:$0xf]
      %v2872 = vld [vmem:[%s2836 + $0x8c] sm:$0xf]
      %v2873 = vld [vmem:[%s2836 + $0x90] sm:$0xf]
      %v2874 = vld [vmem:[%s2836 + $0x94] sm:$0xf]
      %v2875 = vld [vmem:[%s2836 + $0x98] sm:$0xf]
      %v2876 = vld [vmem:[%s2836 + $0x9c] sm:$0xf]
      %v2877 = vld [vmem:[%s2836 + $0xa0] sm:$0xf]
      %v2878 = vld [vmem:[%s2836 + $0xa4] sm:$0xf]
      %v2879 = vld [vmem:[%s2836 + $0xa8] sm:$0xf]
      %v2880 = vld [vmem:[%s2836 + $0xac] sm:$0xf]
      %v2881 = vld [vmem:[%s2836 + $0xb0] sm:$0xf]
      %v2882 = vld [vmem:[%s2836 + $0xb4] sm:$0xf]
      %v2883 = vld [vmem:[%s2836 + $0xb8] sm:$0xf]
      %v2884 = vld [vmem:[%s2836 + $0xbc] sm:$0xf]
      %v2885 = vld [vmem:[%s2836 + $0xc0] sm:$0xf]
      %v2886 = vld [vmem:[%s2836 + $0xc4] sm:$0xf]
      %v2887 = vld [vmem:[%s2836 + $0xc8] sm:$0xf]
      %v2888 = vld [vmem:[%s2836 + $0xcc] sm:$0xf]
      %v2889 = vld [vmem:[%s2836 + $0xd0] sm:$0xf]
      %v2890 = vld [vmem:[%s2836 + $0xd4] sm:$0xf]
      %v2891 = vld [vmem:[%s2836 + $0xd8] sm:$0xf]
      %v2892 = vld [vmem:[%s2836 + $0xdc] sm:$0xf]
      %v2893 = vld [vmem:[%s2836 + $0xe0] sm:$0xf]
      %v2894 = vld [vmem:[%s2836 + $0xe4] sm:$0xf]
      %v2895 = vld [vmem:[%s2836 + $0xe8] sm:$0xf]
      %v2896 = vld [vmem:[%s2836 + $0xec] sm:$0xf]
      %v2897 = vld [vmem:[%s2836 + $0xf0] sm:$0xf]
      %v2898 = vld [vmem:[%s2836 + $0xf4] sm:$0xf]
      %v2899 = vld [vmem:[%s2836 + $0xf8] sm:$0xf]
      %v2900 = vld [vmem:[%s2836 + $0xfc] sm:$0xf]
      %v2907 = vunpack.c.l.b16 %v2828
      %v2908 = vunpack.c.h.b16 %v2828
      %v2909 = vunpack.c.l.b16 %v2829
      %v2910 = vunpack.c.h.b16 %v2829
      %v2911 = vunpack.c.l.b16 %v2830
      %v2912 = vunpack.c.h.b16 %v2830
      %v2913 = vunpack.c.l.b16 %v2831
      %v2914 = vunpack.c.h.b16 %v2831
      %v2915 = vunpack.c.l.b16 %v2832
      %v2916 = vunpack.c.h.b16 %v2832
      %v2917 = vunpack.c.l.b16 %v2833
      %v2918 = vunpack.c.h.b16 %v2833
      %v2919 = vpack.c.b16 %v2911, %v2907
      %v2920 = vpack.c.b16 %v2912, %v2908
      %v2921 = vpack.c.b16 %v2913, %v2909
      %v2922 = vpack.c.b16 %v2914, %v2910
      %v2923 = vpack.c.b16 %v2915, %v2915
      %v2924 = vpack.c.b16 %v2916, %v2916
      %v2925 = vpack.c.b16 %v2917, %v2917
      %v2926 = vpack.c.b16 %v2918, %v2918
      %vm2927 = vsmask.f32 5376
      %v2929 = vshrl.u32 %v2919, 16
      %v2931 = vrot.slane %v2929, 2
      %v2932 = vshll.u32 %v2919, 16
      %v2934 = vrot.slane %v2932, 3
      %v2935 = vor.u32 %v2931, %v2934
      %v2937 = vshll.u32 %v2923, 16
      %v2939 = vrot.slane %v2937, 3
      %v2940 = vsel %vm2927, %v2935, %v2939
      %v2942 = vshrl.u32 %v2920, 16
      %v2944 = vrot.slane %v2942, 2
      %v2945 = vshll.u32 %v2920, 16
      %v2947 = vrot.slane %v2945, 3
      %v2948 = vor.u32 %v2944, %v2947
      %v2950 = vshll.u32 %v2924, 16
      %v2952 = vrot.slane %v2950, 3
      %v2953 = vsel %vm2927, %v2948, %v2952
      %v2955 = vshrl.u32 %v2921, 16
      %v2957 = vrot.slane %v2955, 2
      %v2958 = vshll.u32 %v2921, 16
      %v2960 = vrot.slane %v2958, 3
      %v2961 = vor.u32 %v2957, %v2960
      %v2963 = vshll.u32 %v2925, 16
      %v2965 = vrot.slane %v2963, 3
      %v2966 = vsel %vm2927, %v2961, %v2965
      %v2968 = vshrl.u32 %v2922, 16
      %v2970 = vrot.slane %v2968, 2
      %v2971 = vshll.u32 %v2922, 16
      %v2973 = vrot.slane %v2971, 3
      %v2974 = vor.u32 %v2970, %v2973
      %v2976 = vshll.u32 %v2926, 16
      %v2978 = vrot.slane %v2976, 3
      %v2979 = vsel %vm2927, %v2974, %v2978
      %v3048 = vunpack.c.l.b16 %v2837
      %v3049 = vunpack.c.l.b16 %v2838
      %v3050 = vunpack.c.l.b16 %v2839
      %v3051 = vunpack.c.l.b16 %v2840
      %v3052 = vunpack.c.l.b16 %v2841
      %v3053 = vunpack.c.l.b16 %v2842
      %v3054 = vunpack.c.l.b16 %v2843
      %v3055 = vunpack.c.l.b16 %v2844
      %v3056 = vunpack.c.l.b16 %v2845
      %v3057 = vunpack.c.l.b16 %v2846
      %v3058 = vunpack.c.l.b16 %v2847
      %v3059 = vunpack.c.l.b16 %v2848
      %v3060 = vunpack.c.l.b16 %v2849
      %v3061 = vunpack.c.l.b16 %v2850
      %v3062 = vunpack.c.l.b16 %v2851
      %v3063 = vunpack.c.l.b16 %v2852
      %v3064 = vunpack.c.l.b16 %v2853
      %v3065 = vunpack.c.l.b16 %v2854
      %v3066 = vunpack.c.l.b16 %v2855
      %v3067 = vunpack.c.l.b16 %v2856
      %v3068 = vunpack.c.l.b16 %v2857
      %v3069 = vunpack.c.l.b16 %v2858
      %v3070 = vunpack.c.l.b16 %v2859
      %v3071 = vunpack.c.l.b16 %v2860
      %v3072 = vunpack.c.l.b16 %v2861
      %v3073 = vunpack.c.l.b16 %v2862
      %v3074 = vunpack.c.l.b16 %v2863
      %v3075 = vunpack.c.l.b16 %v2864
      %v3076 = vunpack.c.l.b16 %v2865
      %v3077 = vunpack.c.l.b16 %v2866
      %v3078 = vunpack.c.l.b16 %v2867
      %v3079 = vunpack.c.l.b16 %v2868
      %v3080 = vunpack.c.l.b16 %v2869
      %v3081 = vunpack.c.l.b16 %v2870
      %v3082 = vunpack.c.l.b16 %v2871
      %v3083 = vunpack.c.l.b16 %v2872
      %v3084 = vunpack.c.l.b16 %v2873
      %v3085 = vunpack.c.l.b16 %v2874
      %v3086 = vunpack.c.l.b16 %v2875
      %v3087 = vunpack.c.l.b16 %v2876
      %v3088 = vunpack.c.l.b16 %v2877
      %v3089 = vunpack.c.l.b16 %v2878
      %v3090 = vunpack.c.l.b16 %v2879
      %v3091 = vunpack.c.l.b16 %v2880
      %v3092 = vunpack.c.l.b16 %v2881
      %v3093 = vunpack.c.l.b16 %v2882
      %v3094 = vunpack.c.l.b16 %v2883
      %v3095 = vunpack.c.l.b16 %v2884
      %v3096 = vunpack.c.l.b16 %v2885
      %v3097 = vunpack.c.l.b16 %v2886
      %v3098 = vunpack.c.l.b16 %v2887
      %v3099 = vunpack.c.l.b16 %v2888
      %v3100 = vunpack.c.l.b16 %v2889
      %v3101 = vunpack.c.l.b16 %v2890
      %v3102 = vunpack.c.l.b16 %v2891
      %v3103 = vunpack.c.l.b16 %v2892
      %v3104 = vunpack.c.l.b16 %v2893
      %v3105 = vunpack.c.l.b16 %v2894
      %v3106 = vunpack.c.l.b16 %v2895
      %v3107 = vunpack.c.l.b16 %v2896
      %v3108 = vunpack.c.l.b16 %v2897
      %v3109 = vunpack.c.l.b16 %v2898
      %v3110 = vunpack.c.l.b16 %v2899
      %v3111 = vunpack.c.l.b16 %v2900
      %v3112 = vpack.c.b16 %v3049, %v3048
      %v3113 = vpack.c.b16 %v3051, %v3050
      %v3114 = vpack.c.b16 %v3053, %v3052
      %v3115 = vpack.c.b16 %v3055, %v3054
      %v3116 = vpack.c.b16 %v3057, %v3056
      %v3117 = vpack.c.b16 %v3059, %v3058
      %v3118 = vpack.c.b16 %v3061, %v3060
      %v3119 = vpack.c.b16 %v3063, %v3062
      %v3120 = vpack.c.b16 %v3065, %v3064
      %v3121 = vpack.c.b16 %v3067, %v3066
      %v3122 = vpack.c.b16 %v3069, %v3068
      %v3123 = vpack.c.b16 %v3071, %v3070
      %v3124 = vpack.c.b16 %v3073, %v3072
      %v3125 = vpack.c.b16 %v3075, %v3074
      %v3126 = vpack.c.b16 %v3077, %v3076
      %v3127 = vpack.c.b16 %v3079, %v3078
      %v3128 = vpack.c.b16 %v3081, %v3080
      %v3129 = vpack.c.b16 %v3083, %v3082
      %v3130 = vpack.c.b16 %v3085, %v3084
      %v3131 = vpack.c.b16 %v3087, %v3086
      %v3132 = vpack.c.b16 %v3089, %v3088
      %v3133 = vpack.c.b16 %v3091, %v3090
      %v3134 = vpack.c.b16 %v3093, %v3092
      %v3135 = vpack.c.b16 %v3095, %v3094
      %v3136 = vpack.c.b16 %v3097, %v3096
      %v3137 = vpack.c.b16 %v3099, %v3098
      %v3138 = vpack.c.b16 %v3101, %v3100
      %v3139 = vpack.c.b16 %v3103, %v3102
      %v3140 = vpack.c.b16 %v3105, %v3104
      %v3141 = vpack.c.b16 %v3107, %v3106
      %v3142 = vpack.c.b16 %v3109, %v3108
      %v3143 = vpack.c.b16 %v3111, %v3110
      %3176 = vmatpush.bf16.msra.mxu0 %v3119
      %3177 = vmatpush.bf16.msra.mxu0 %v3118
      %3178 = vmatpush.bf16.msra.mxu0 %v3117
      %3179 = vmatpush.bf16.msra.mxu0 %v3116
      %3180 = vmatpush.bf16.msra.mxu0 %v3115
      %3181 = vmatpush.bf16.msra.mxu0 %v3114
      %3182 = vmatpush.bf16.msra.mxu0 %v3113
      %3183 = vmatpush.bf16.msra.mxu0 %v3112
      %3184 = vmatmul.bf16.gmra.mxu0 %v2940
      %v3185 = vpop.f32.mrf.mxu0
      %v3186 = vadd.f32 0.0, %v3185
      %v3187 = vpop.f32.mrf.mxu0
      %v3188 = vadd.f32 0.0, %v3187
      %3189 = vdwg.mxu0
      %3190 = vmatpush.bf16.msra.mxu0 %v3127
      %3191 = vmatpush.bf16.msra.mxu0 %v3126
      %3192 = vmatpush.bf16.msra.mxu0 %v3125
      %3193 = vmatpush.bf16.msra.mxu0 %v3124
      %3194 = vmatpush.bf16.msra.mxu0 %v3123
      %3195 = vmatpush.bf16.msra.mxu0 %v3122
      %3196 = vmatpush.bf16.msra.mxu0 %v3121
      %3197 = vmatpush.bf16.msra.mxu0 %v3120
      %3198 = vmatmul.bf16.gmra.mxu0 %v2953
      %v3199 = vpop.f32.mrf.mxu0
      %v3200 = vadd.f32 %v3186, %v3199
      %v3201 = vpop.f32.mrf.mxu0
      %v3202 = vadd.f32 %v3188, %v3201
      %3203 = vdwg.mxu0
      %3204 = vmatpush.bf16.msra.mxu0 %v3135
      %3205 = vmatpush.bf16.msra.mxu0 %v3134
      %3206 = vmatpush.bf16.msra.mxu0 %v3133
      %3207 = vmatpush.bf16.msra.mxu0 %v3132
      %3208 = vmatpush.bf16.msra.mxu0 %v3131
      %3209 = vmatpush.bf16.msra.mxu0 %v3130
      %3210 = vmatpush.bf16.msra.mxu0 %v3129
      %3211 = vmatpush.bf16.msra.mxu0 %v3128
      %3212 = vmatmul.bf16.gmra.mxu0 %v2966
      %v3213 = vpop.f32.mrf.mxu0
      %v3214 = vadd.f32 %v3200, %v3213
      %v3215 = vpop.f32.mrf.mxu0
      %v3216 = vadd.f32 %v3202, %v3215
      %3217 = vdwg.mxu0
      %3218 = vmatpush.bf16.msra.mxu0 %v3143
      %3219 = vmatpush.bf16.msra.mxu0 %v3142
      %3220 = vmatpush.bf16.msra.mxu0 %v3141
      %3221 = vmatpush.bf16.msra.mxu0 %v3140
      %3222 = vmatpush.bf16.msra.mxu0 %v3139
      %3223 = vmatpush.bf16.msra.mxu0 %v3138
      %3224 = vmatpush.bf16.msra.mxu0 %v3137
      %3225 = vmatpush.bf16.msra.mxu0 %v3136
      %3226 = vmatmul.bf16.gmra.mxu0 %v2979
      %v3227 = vpop.f32.mrf.mxu0
      %v3228 = vadd.f32 %v3214, %v3227
      %v3229 = vpop.f32.mrf.mxu0
      %v3230 = vadd.f32 %v3216, %v3229
      %3231 = vdwg.mxu0
      %v3232 = vadd.f32 %v2834, %v3228
      %v3233 = vadd.f32 %v2835, %v3230
      %3234 = vst.msk [vmem:[#allocation2] sm:$0xff] %vm624, %v3232
      %3235 = vst.msk [vmem:[#allocation2 + $0x8] sm:$0xf] %vm626, %v3233
      %v3236 = vld [vmem:[%s262 + $0x10] sm:$0x88]
      %v3237 = vld [vmem:[%s262 + $0x18] sm:$0x88]
      %v3238 = vld [vmem:[%s262 + $0x20] sm:$0xff]
      %v3239 = vld [vmem:[%s262 + $0x28] sm:$0xff]
      %v3240 = vld [vmem:[%s262 + $0x30] sm:$0x11]
      %v3241 = vld [vmem:[%s262 + $0x38] sm:$0x11]
      %v3242 = vld [vmem:[#allocation2] sm:$0xff]
      %v3243 = vld [vmem:[#allocation2 + $0x8] sm:$0xf]
      %s3244 = scalar_lea.vmem %s268, 2048
      %v3245 = vld [vmem:[%s3244] sm:$0xf]
      %v3246 = vld [vmem:[%s3244 + $0x4] sm:$0xf]
      %v3247 = vld [vmem:[%s3244 + $0x8] sm:$0xf]
      %v3248 = vld [vmem:[%s3244 + $0xc] sm:$0xf]
      %v3249 = vld [vmem:[%s3244 + $0x10] sm:$0xf]
      %v3250 = vld [vmem:[%s3244 + $0x14] sm:$0xf]
      %v3251 = vld [vmem:[%s3244 + $0x18] sm:$0xf]
      %v3252 = vld [vmem:[%s3244 + $0x1c] sm:$0xf]
      %v3253 = vld [vmem:[%s3244 + $0x20] sm:$0xf]
      %v3254 = vld [vmem:[%s3244 + $0x24] sm:$0xf]
      %v3255 = vld [vmem:[%s3244 + $0x28] sm:$0xf]
      %v3256 = vld [vmem:[%s3244 + $0x2c] sm:$0xf]
      %v3257 = vld [vmem:[%s3244 + $0x30] sm:$0xf]
      %v3258 = vld [vmem:[%s3244 + $0x34] sm:$0xf]
      %v3259 = vld [vmem:[%s3244 + $0x38] sm:$0xf]
      %v3260 = vld [vmem:[%s3244 + $0x3c] sm:$0xf]
      %v3261 = vld [vmem:[%s3244 + $0x40] sm:$0xf]
      %v3262 = vld [vmem:[%s3244 + $0x44] sm:$0xf]
      %v3263 = vld [vmem:[%s3244 + $0x48] sm:$0xf]
      %v3264 = vld [vmem:[%s3244 + $0x4c] sm:$0xf]
      %v3265 = vld [vmem:[%s3244 + $0x50] sm:$0xf]
      %v3266 = vld [vmem:[%s3244 + $0x54] sm:$0xf]
      %v3267 = vld [vmem:[%s3244 + $0x58] sm:$0xf]
      %v3268 = vld [vmem:[%s3244 + $0x5c] sm:$0xf]
      %v3269 = vld [vmem:[%s3244 + $0x60] sm:$0xf]
      %v3270 = vld [vmem:[%s3244 + $0x64] sm:$0xf]
      %v3271 = vld [vmem:[%s3244 + $0x68] sm:$0xf]
      %v3272 = vld [vmem:[%s3244 + $0x6c] sm:$0xf]
      %v3273 = vld [vmem:[%s3244 + $0x70] sm:$0xf]
      %v3274 = vld [vmem:[%s3244 + $0x74] sm:$0xf]
      %v3275 = vld [vmem:[%s3244 + $0x78] sm:$0xf]
      %v3276 = vld [vmem:[%s3244 + $0x7c] sm:$0xf]
      %v3277 = vld [vmem:[%s3244 + $0x80] sm:$0xf]
      %v3278 = vld [vmem:[%s3244 + $0x84] sm:$0xf]
      %v3279 = vld [vmem:[%s3244 + $0x88] sm:$0xf]
      %v3280 = vld [vmem:[%s3244 + $0x8c] sm:$0xf]
      %v3281 = vld [vmem:[%s3244 + $0x90] sm:$0xf]
      %v3282 = vld [vmem:[%s3244 + $0x94] sm:$0xf]
      %v3283 = vld [vmem:[%s3244 + $0x98] sm:$0xf]
      %v3284 = vld [vmem:[%s3244 + $0x9c] sm:$0xf]
      %v3285 = vld [vmem:[%s3244 + $0xa0] sm:$0xf]
      %v3286 = vld [vmem:[%s3244 + $0xa4] sm:$0xf]
      %v3287 = vld [vmem:[%s3244 + $0xa8] sm:$0xf]
      %v3288 = vld [vmem:[%s3244 + $0xac] sm:$0xf]
      %v3289 = vld [vmem:[%s3244 + $0xb0] sm:$0xf]
      %v3290 = vld [vmem:[%s3244 + $0xb4] sm:$0xf]
      %v3291 = vld [vmem:[%s3244 + $0xb8] sm:$0xf]
      %v3292 = vld [vmem:[%s3244 + $0xbc] sm:$0xf]
      %v3293 = vld [vmem:[%s3244 + $0xc0] sm:$0xf]
      %v3294 = vld [vmem:[%s3244 + $0xc4] sm:$0xf]
      %v3295 = vld [vmem:[%s3244 + $0xc8] sm:$0xf]
      %v3296 = vld [vmem:[%s3244 + $0xcc] sm:$0xf]
      %v3297 = vld [vmem:[%s3244 + $0xd0] sm:$0xf]
      %v3298 = vld [vmem:[%s3244 + $0xd4] sm:$0xf]
      %v3299 = vld [vmem:[%s3244 + $0xd8] sm:$0xf]
      %v3300 = vld [vmem:[%s3244 + $0xdc] sm:$0xf]
      %v3301 = vld [vmem:[%s3244 + $0xe0] sm:$0xf]
      %v3302 = vld [vmem:[%s3244 + $0xe4] sm:$0xf]
      %v3303 = vld [vmem:[%s3244 + $0xe8] sm:$0xf]
      %v3304 = vld [vmem:[%s3244 + $0xec] sm:$0xf]
      %v3305 = vld [vmem:[%s3244 + $0xf0] sm:$0xf]
      %v3306 = vld [vmem:[%s3244 + $0xf4] sm:$0xf]
      %v3307 = vld [vmem:[%s3244 + $0xf8] sm:$0xf]
      %v3308 = vld [vmem:[%s3244 + $0xfc] sm:$0xf]
      %v3315 = vunpack.c.l.b16 %v3236
      %v3316 = vunpack.c.h.b16 %v3236
      %v3317 = vunpack.c.l.b16 %v3237
      %v3318 = vunpack.c.h.b16 %v3237
      %v3319 = vunpack.c.l.b16 %v3238
      %v3320 = vunpack.c.h.b16 %v3238
      %v3321 = vunpack.c.l.b16 %v3239
      %v3322 = vunpack.c.h.b16 %v3239
      %v3323 = vunpack.c.l.b16 %v3240
      %v3324 = vunpack.c.h.b16 %v3240
      %v3325 = vunpack.c.l.b16 %v3241
      %v3326 = vunpack.c.h.b16 %v3241
      %v3327 = vpack.c.b16 %v3319, %v3315
      %v3328 = vpack.c.b16 %v3320, %v3316
      %v3329 = vpack.c.b16 %v3321, %v3317
      %v3330 = vpack.c.b16 %v3322, %v3318
      %v3331 = vpack.c.b16 %v3323, %v3323
      %v3332 = vpack.c.b16 %v3324, %v3324
      %v3333 = vpack.c.b16 %v3325, %v3325
      %v3334 = vpack.c.b16 %v3326, %v3326
      %v3335 = vrot.slane %v3327, 3
      %v3336 = vrot.slane %v3331, 3
      %v3337 = vsel %vm1445, %v3335, %v3336
      %v3338 = vrot.slane %v3328, 3
      %v3339 = vrot.slane %v3332, 3
      %v3340 = vsel %vm1445, %v3338, %v3339
      %v3341 = vrot.slane %v3329, 3
      %v3342 = vrot.slane %v3333, 3
      %v3343 = vsel %vm1445, %v3341, %v3342
      %v3344 = vrot.slane %v3330, 3
      %v3345 = vrot.slane %v3334, 3
      %v3346 = vsel %vm1445, %v3344, %v3345
      %v3415 = vunpack.c.l.b16 %v3245
      %v3416 = vunpack.c.l.b16 %v3246
      %v3417 = vunpack.c.l.b16 %v3247
      %v3418 = vunpack.c.l.b16 %v3248
      %v3419 = vunpack.c.l.b16 %v3249
      %v3420 = vunpack.c.l.b16 %v3250
      %v3421 = vunpack.c.l.b16 %v3251
      %v3422 = vunpack.c.l.b16 %v3252
      %v3423 = vunpack.c.l.b16 %v3253
      %v3424 = vunpack.c.l.b16 %v3254
      %v3425 = vunpack.c.l.b16 %v3255
      %v3426 = vunpack.c.l.b16 %v3256
      %v3427 = vunpack.c.l.b16 %v3257
      %v3428 = vunpack.c.l.b16 %v3258
      %v3429 = vunpack.c.l.b16 %v3259
      %v3430 = vunpack.c.l.b16 %v3260
      %v3431 = vunpack.c.l.b16 %v3261
      %v3432 = vunpack.c.l.b16 %v3262
      %v3433 = vunpack.c.l.b16 %v3263
      %v3434 = vunpack.c.l.b16 %v3264
      %v3435 = vunpack.c.l.b16 %v3265
      %v3436 = vunpack.c.l.b16 %v3266
      %v3437 = vunpack.c.l.b16 %v3267
      %v3438 = vunpack.c.l.b16 %v3268
      %v3439 = vunpack.c.l.b16 %v3269
      %v3440 = vunpack.c.l.b16 %v3270
      %v3441 = vunpack.c.l.b16 %v3271
      %v3442 = vunpack.c.l.b16 %v3272
      %v3443 = vunpack.c.l.b16 %v3273
      %v3444 = vunpack.c.l.b16 %v3274
      %v3445 = vunpack.c.l.b16 %v3275
      %v3446 = vunpack.c.l.b16 %v3276
      %v3447 = vunpack.c.l.b16 %v3277
      %v3448 = vunpack.c.l.b16 %v3278
      %v3449 = vunpack.c.l.b16 %v3279
      %v3450 = vunpack.c.l.b16 %v3280
      %v3451 = vunpack.c.l.b16 %v3281
      %v3452 = vunpack.c.l.b16 %v3282
      %v3453 = vunpack.c.l.b16 %v3283
      %v3454 = vunpack.c.l.b16 %v3284
      %v3455 = vunpack.c.l.b16 %v3285
      %v3456 = vunpack.c.l.b16 %v3286
      %v3457 = vunpack.c.l.b16 %v3287
      %v3458 = vunpack.c.l.b16 %v3288
      %v3459 = vunpack.c.l.b16 %v3289
      %v3460 = vunpack.c.l.b16 %v3290
      %v3461 = vunpack.c.l.b16 %v3291
      %v3462 = vunpack.c.l.b16 %v3292
      %v3463 = vunpack.c.l.b16 %v3293
      %v3464 = vunpack.c.l.b16 %v3294
      %v3465 = vunpack.c.l.b16 %v3295
      %v3466 = vunpack.c.l.b16 %v3296
      %v3467 = vunpack.c.l.b16 %v3297
      %v3468 = vunpack.c.l.b16 %v3298
      %v3469 = vunpack.c.l.b16 %v3299
      %v3470 = vunpack.c.l.b16 %v3300
      %v3471 = vunpack.c.l.b16 %v3301
      %v3472 = vunpack.c.l.b16 %v3302
      %v3473 = vunpack.c.l.b16 %v3303
      %v3474 = vunpack.c.l.b16 %v3304
      %v3475 = vunpack.c.l.b16 %v3305
      %v3476 = vunpack.c.l.b16 %v3306
      %v3477 = vunpack.c.l.b16 %v3307
      %v3478 = vunpack.c.l.b16 %v3308
      %v3479 = vpack.c.b16 %v3416, %v3415
      %v3480 = vpack.c.b16 %v3418, %v3417
      %v3481 = vpack.c.b16 %v3420, %v3419
      %v3482 = vpack.c.b16 %v3422, %v3421
      %v3483 = vpack.c.b16 %v3424, %v3423
      %v3484 = vpack.c.b16 %v3426, %v3425
      %v3485 = vpack.c.b16 %v3428, %v3427
      %v3486 = vpack.c.b16 %v3430, %v3429
      %v3487 = vpack.c.b16 %v3432, %v3431
      %v3488 = vpack.c.b16 %v3434, %v3433
      %v3489 = vpack.c.b16 %v3436, %v3435
      %v3490 = vpack.c.b16 %v3438, %v3437
      %v3491 = vpack.c.b16 %v3440, %v3439
      %v3492 = vpack.c.b16 %v3442, %v3441
      %v3493 = vpack.c.b16 %v3444, %v3443
      %v3494 = vpack.c.b16 %v3446, %v3445
      %v3495 = vpack.c.b16 %v3448, %v3447
      %v3496 = vpack.c.b16 %v3450, %v3449
      %v3497 = vpack.c.b16 %v3452, %v3451
      %v3498 = vpack.c.b16 %v3454, %v3453
      %v3499 = vpack.c.b16 %v3456, %v3455
      %v3500 = vpack.c.b16 %v3458, %v3457
      %v3501 = vpack.c.b16 %v3460, %v3459
      %v3502 = vpack.c.b16 %v3462, %v3461
      %v3503 = vpack.c.b16 %v3464, %v3463
      %v3504 = vpack.c.b16 %v3466, %v3465
      %v3505 = vpack.c.b16 %v3468, %v3467
      %v3506 = vpack.c.b16 %v3470, %v3469
      %v3507 = vpack.c.b16 %v3472, %v3471
      %v3508 = vpack.c.b16 %v3474, %v3473
      %v3509 = vpack.c.b16 %v3476, %v3475
      %v3510 = vpack.c.b16 %v3478, %v3477
      %3543 = vmatpush.bf16.msra.mxu0 %v3486
      %3544 = vmatpush.bf16.msra.mxu0 %v3485
      %3545 = vmatpush.bf16.msra.mxu0 %v3484
      %3546 = vmatpush.bf16.msra.mxu0 %v3483
      %3547 = vmatpush.bf16.msra.mxu0 %v3482
      %3548 = vmatpush.bf16.msra.mxu0 %v3481
      %3549 = vmatpush.bf16.msra.mxu0 %v3480
      %3550 = vmatpush.bf16.msra.mxu0 %v3479
      %3551 = vmatmul.bf16.gmra.mxu0 %v3337
      %v3552 = vpop.f32.mrf.mxu0
      %v3553 = vadd.f32 0.0, %v3552
      %v3554 = vpop.f32.mrf.mxu0
      %v3555 = vadd.f32 0.0, %v3554
      %3556 = vdwg.mxu0
      %3557 = vmatpush.bf16.msra.mxu0 %v3494
      %3558 = vmatpush.bf16.msra.mxu0 %v3493
      %3559 = vmatpush.bf16.msra.mxu0 %v3492
      %3560 = vmatpush.bf16.msra.mxu0 %v3491
      %3561 = vmatpush.bf16.msra.mxu0 %v3490
      %3562 = vmatpush.bf16.msra.mxu0 %v3489
      %3563 = vmatpush.bf16.msra.mxu0 %v3488
      %3564 = vmatpush.bf16.msra.mxu0 %v3487
      %3565 = vmatmul.bf16.gmra.mxu0 %v3340
      %v3566 = vpop.f32.mrf.mxu0
      %v3567 = vadd.f32 %v3553, %v3566
      %v3568 = vpop.f32.mrf.mxu0
      %v3569 = vadd.f32 %v3555, %v3568
      %3570 = vdwg.mxu0
      %3571 = vmatpush.bf16.msra.mxu0 %v3502
      %3572 = vmatpush.bf16.msra.mxu0 %v3501
      %3573 = vmatpush.bf16.msra.mxu0 %v3500
      %3574 = vmatpush.bf16.msra.mxu0 %v3499
      %3575 = vmatpush.bf16.msra.mxu0 %v3498
      %3576 = vmatpush.bf16.msra.mxu0 %v3497
      %3577 = vmatpush.bf16.msra.mxu0 %v3496
      %3578 = vmatpush.bf16.msra.mxu0 %v3495
      %3579 = vmatmul.bf16.gmra.mxu0 %v3343
      %v3580 = vpop.f32.mrf.mxu0
      %v3581 = vadd.f32 %v3567, %v3580
      %v3582 = vpop.f32.mrf.mxu0
      %v3583 = vadd.f32 %v3569, %v3582
      %3584 = vdwg.mxu0
      %3585 = vmatpush.bf16.msra.mxu0 %v3510
      %3586 = vmatpush.bf16.msra.mxu0 %v3509
      %3587 = vmatpush.bf16.msra.mxu0 %v3508
      %3588 = vmatpush.bf16.msra.mxu0 %v3507
      %3589 = vmatpush.bf16.msra.mxu0 %v3506
      %3590 = vmatpush.bf16.msra.mxu0 %v3505
      %3591 = vmatpush.bf16.msra.mxu0 %v3504
      %3592 = vmatpush.bf16.msra.mxu0 %v3503
      %3593 = vmatmul.bf16.gmra.mxu0 %v3346
      %v3594 = vpop.f32.mrf.mxu0
      %v3595 = vadd.f32 %v3581, %v3594
      %v3596 = vpop.f32.mrf.mxu0
      %v3597 = vadd.f32 %v3583, %v3596
      %3598 = vdwg.mxu0
      %v3599 = vadd.f32 %v3242, %v3595
      %v3600 = vadd.f32 %v3243, %v3597
      %3601 = vst.msk [vmem:[#allocation2] sm:$0xff] %vm624, %v3599
      %3602 = vst.msk [vmem:[#allocation2 + $0x8] sm:$0xf] %vm626, %v3600
      // Predicated region
      $region45: #{vit_encoder_forward.43} parent=39 // pred_check
        %p3603 = pneg %p276
      $region46: #{vit_encoder_forward.43} parent=39 // pred_check_branch
        %3605 = sbr.rel (%p3603) target = $region48
      $region47: #{vit_encoder_forward.43} parent=39 // pred_region
        %v3606 = vld [vmem:[#allocation2] sm:$0xff]
        %v3607 = vld [vmem:[#allocation2 + $0x8] sm:$0xf]
        %v3608 = vld [vmem:[%s2] sm:$0x1]
        %v3610 = vperm.slane %v3608, 0
        %v3612 = vadd.f32 %v3606, %v3610
        %v3613 = vadd.f32 %v3607, %v3610
        %v3614 = vmax.f32 %v3612, 0.0
        %v3615 = vmax.f32 %v3613, 0.0
        %v3616 = vpack.c.bf16 %v3615, %v3614
        %v3617 = vld [vmem:[%s3] sm:$0xf]
        %v3618 = vld [vmem:[%s3 + $0x4] sm:$0xf]
        %v3619 = vld [vmem:[%s3 + $0x8] sm:$0xf]
        %v3620 = vld [vmem:[%s3 + $0xc] sm:$0xf]
        %v3621 = vld [vmem:[%s3 + $0x10] sm:$0xf]
        %v3622 = vld [vmem:[%s3 + $0x14] sm:$0xf]
        %v3623 = vld [vmem:[%s3 + $0x18] sm:$0xf]
        %v3624 = vld [vmem:[%s3 + $0x1c] sm:$0xf]
        %v3625 = vld [vmem:[%s4] sm:$0x1]
        %v3627 = vperm.slane %v3625, 0
        %v3637 = vunpack.c.l.b16 %v3617
        %v3638 = vunpack.c.l.b16 %v3618
        %v3639 = vunpack.c.l.b16 %v3619
        %v3640 = vunpack.c.l.b16 %v3620
        %v3641 = vunpack.c.l.b16 %v3621
        %v3642 = vunpack.c.l.b16 %v3622
        %v3643 = vunpack.c.l.b16 %v3623
        %v3644 = vunpack.c.l.b16 %v3624
        %v3645 = vpack.c.b16 %v3638, %v3637
        %v3646 = vpack.c.b16 %v3640, %v3639
        %v3647 = vpack.c.b16 %v3642, %v3641
        %v3648 = vpack.c.b16 %v3644, %v3643
        %v3654 = vsel %vm624, %v3616, 0
        %3656 = vmatpush.bf16.msra.mxu0 0
        %3657 = vmatpush.bf16.msra.mxu0 0
        %3658 = vmatpush.bf16.msra.mxu0 0
        %3659 = vmatpush.bf16.msra.mxu0 0
        %3660 = vmatpush.bf16.msra.mxu0 %v3648
        %3661 = vmatpush.bf16.msra.mxu0 %v3647
        %3662 = vmatpush.bf16.msra.mxu0 %v3646
        %3663 = vmatpush.bf16.msra.mxu0 %v3645
        %3664 = vmatmul.bf16.gmra.mxu0 %v3654
        %v3665 = vpop.f32.mrf.mxu0
        %v3666 = vadd.f32 %v3627, %v3665
        %v3667 = vpop.f32.mrf.mxu0
        %v3668 = vadd.f32 %v3627, %v3667
        %3669 = vdwg.mxu0
        %vm3670 = vcmask 31744
        %3671 = vst.msk [vmem:[%s274] sm:$0xff] %vm3670, %v3666
        %vm3672 = vcmask 27648
        %3673 = vst.msk [vmem:[%s274 + $0x8] sm:$0xf] %vm3672, %v3668
      $region48: #{vit_encoder_forward.43} parent=39 // pred_fallthru
        _
      %p3674 = scmp.lt.s32.totalorder %s20, 1
      %s3675 = scalar_select %p3674, %s20, 1
      %s3676 = smul.addr %s3675, 2
      %s3677 = smul.addr %s3676, 8
      %s3678 = scalar_lea.vmem %s5, %s3677
      // Predicated region
      $region49: #{vit_encoder_forward.43} parent=39 // pred_check
        %p3679 = pneg %p163
      $region50: #{vit_encoder_forward.43} parent=39 // pred_check_branch
        %3681 = sbr.rel (%p3679) target = $region52
      $region51: #{vit_encoder_forward.43} parent=39 // pred_region
        _
      $region52: #{vit_encoder_forward.43} parent=39 // pred_fallthru
        _
    $region40: #{vit_encoder_forward.43} parent=5 // pred_fallthru
      _
    %p3682 = scmp.le.s32.totalorder 2, %s11
    // Predicated region
    $region53: #{vit_encoder_forward.43} parent=5 // pred_check
      %p3683 = pneg %p3682
    $region54: #{vit_encoder_forward.43} parent=5 // pred_check_branch
      %3685 = sbr.rel (%p3683) target = $region56
    $region55: #{vit_encoder_forward.43} parent=5 // pred_region
      %s3686 = ssub.s32 %s11, 2
      // Predicated region
      $region57: #{vit_encoder_forward.43} parent=55 // pred_check
        %p3687 = pneg %p169
      $region58: #{vit_encoder_forward.43} parent=55 // pred_check_branch
        %3689 = sbr.rel (%p3687) target = $region60
      $region59: #{vit_encoder_forward.43} parent=55 // pred_region
        %p3690 = scmp.lt.s32.totalorder %s22, 1
        %s3691 = scalar_select %p3690, %s22, 1
        %s3692 = smul.addr %s3691, 2
        %s3693 = smul.addr %s3692, 8
        %s3694 = scalar_lea.vmem %s5, %s3693
      $region60: #{vit_encoder_forward.43} parent=55 // pred_fallthru
        _
    $region56: #{vit_encoder_forward.43} parent=5 // pred_fallthru
      _
  $region6: #{vit_encoder_forward.43} parent=0 // loop_footer
    %s15 = sadd.s32 1, %s11
  $region7: #{vit_encoder_forward.43} parent=0 // loop_footer_branch
    %10 = sbr.rel target = $region3
  $region8: #{vit_encoder_forward.43} parent=0 // loop_exit
    _

</llo_original>
